<compile_context>
chip_gen: v6e
topology: v6e:2x2x1
jax: 0.10.0
libtpu: 0.0.40
codegen_flags: <defaults>
</compile_context>

<pallas_src>
import functools

import jax
import jax.numpy as jnp
from jax import lax
from jax.experimental import pallas as pl
from jax.experimental.pallas import tpu as pltpu


# --------------------------------------------------------------------------
# Helpers
# --------------------------------------------------------------------------
def _round_up(x, m):
    return (x + m - 1) // m * m


def _pad_to(x, shape):
    if tuple(x.shape) == tuple(shape):
        return x
    pads = [(0, t - s) for s, t in zip(x.shape, shape)]
    return jnp.pad(x, pads)


# --------------------------------------------------------------------------
# Pallas kernels
# --------------------------------------------------------------------------
def _matmul_shift_act_kernel(a_ref, b_ref, shift_ref, o_ref, acc_ref, *, act):
    """Grouped tiled matmul: o[g] = act(a[g] @ b[g] + shift[g]).

    Blocks: a (1, tm, tk) bf16, b (1, tk, tn) bf16, shift (1, 1, tn) f32,
    o (1, tm, tn) f32, acc scratch (tm, tn) f32.  Grid = (G, M/tm, N/tn, K/tk),
    K innermost ("arbitrary"); init on k==0, epilogue + writeback on k==last.
    """
    k = pl.program_id(3)

    @pl.when(k == 0)
    def _init():
        acc_ref[...] = jnp.zeros_like(acc_ref)

    acc_ref[...] += jnp.dot(a_ref[0], b_ref[0],
                            preferred_element_type=jnp.float32)

    @pl.when(k == pl.num_programs(3) - 1)
    def _finalize():
        y = acc_ref[...] + shift_ref[0]
        if act == "leaky_relu":
            y = jnp.where(y >= 0.0, y, 0.2 * y)
        elif act == "relu":
            y = jnp.maximum(y, 0.0)
        elif act == "tanh":
            y = jnp.tanh(y)
        # act == "none": identity
        o_ref[0] = y


def _self_attention_kernel(x_ref, wqkv_ref, bqkv_ref, gamma_ref, o_ref, *, c8):
    """SAGAN self-attention for one batch element, channels-last.

    x block: (1, N, C).  Fused projection: qkv = x @ Wqkv^T + b  -> (N, 2*C8+C).
      energy[i, j] = q_i . k_j ; attn = softmax_j(energy)
      out = attn @ v ; o = gamma * out + x
    """
    x = x_ref[0]                                                        # (N, C)
    qkv = jnp.dot(x, wqkv_ref[...],
                  preferred_element_type=jnp.float32) + bqkv_ref[...]   # (N, 2C8+C)
    q = qkv[:, :c8]
    k = qkv[:, c8:2 * c8]
    v = qkv[:, 2 * c8:]
    # energy = q @ k^T without materializing an explicit transpose.
    energy = lax.dot_general(q, k, (((1,), (1,)), ((), ())),
                             preferred_element_type=jnp.float32)        # (N, N)
    energy = energy - jnp.max(energy, axis=-1, keepdims=True)
    p = jnp.exp(energy)
    attn = p * pl.reciprocal(jnp.sum(p, axis=-1, keepdims=True), approx=True)
    out = jnp.dot(attn, v, preferred_element_type=jnp.float32)          # (N, C)
    o_ref[0] = gamma_ref[0, 0] * out + x


# --------------------------------------------------------------------------
# Wrappers around pallas_call
# --------------------------------------------------------------------------
def matmul_shift_act(a, b, shift, act):
    """a: (G, M, K), b: (G, K, N), shift: (G, 1, N).  Returns f32 (G, M, N).

    Inputs are cast to bf16 (f32 accumulation on the MXU).  Tiles are capped so
    the per-step VMEM footprint stays a few MiB (v7x-safe) with double buffering.
    """
    G, M, K = a.shape
    _, _, N = b.shape

    tm = min(512, _round_up(M, 16))      # bf16 sublane packing
    tn = min(256, _round_up(N, 128))     # lane-dense, multiple of 128 (v5e MXU)
    tk = min(512, _round_up(K, 128))
    Mp, Kp, Np = _round_up(M, tm), _round_up(K, tk), _round_up(N, tn)

    a_p = _pad_to(a, (G, Mp, Kp)).astype(jnp.bfloat16)
    b_p = _pad_to(b, (G, Kp, Np)).astype(jnp.bfloat16)
    s_p = _pad_to(shift.astype(jnp.float32), (G, 1, Np))

    grid = (G, Mp // tm, Np // tn, Kp // tk)
    flops = 2 * G * Mp * Np * Kp
    bytes_accessed = 2 * G * (Mp * Kp + Kp * Np) + 4 * G * (Mp * Np + Np)
    transcendentals = G * Mp * Np if act == "tanh" else 0

    out = pl.pallas_call(
        functools.partial(_matmul_shift_act_kernel, act=act),
        out_shape=jax.ShapeDtypeStruct((G, Mp, Np), jnp.float32),
        grid=grid,
        in_specs=[
            pl.BlockSpec((1, tm, tk), lambda g, i, j, k: (g, i, k)),
            pl.BlockSpec((1, tk, tn), lambda g, i, j, k: (g, k, j)),
            pl.BlockSpec((1, 1, tn), lambda g, i, j, k: (g, 0, j)),
        ],
        out_specs=pl.BlockSpec((1, tm, tn), lambda g, i, j, k: (g, i, j)),
        scratch_shapes=[pltpu.VMEM((tm, tn), jnp.float32)],
        compiler_params=pltpu.CompilerParams(
            dimension_semantics=("parallel", "parallel", "parallel", "arbitrary"),
            vmem_limit_bytes=32 * 1024 * 1024),
        cost_estimate=pl.CostEstimate(flops=flops,
                                      transcendentals=transcendentals,
                                      bytes_accessed=bytes_accessed),
    )(a_p, b_p, s_p)
    return out[:, :M, :N]


def self_attention(x, wq, bq, wk, bk, wv, bv, gamma):
    """x: (B, H, W, C) NHWC -> (B, H, W, C), SAGAN self-attention."""
    B, H, W, C = x.shape
    N = H * W
    C8 = wq.shape[0]

    x_nc = x.reshape(B, N, C).astype(jnp.float32)
    # Fuse the three 1x1-conv projections into one (C, 2*C8 + C) matmul.
    w_qkv = jnp.concatenate([wq, wk, wv], axis=0).T.astype(jnp.float32)
    b_qkv = jnp.concatenate([bq, bk, bv], axis=0)[None, :].astype(jnp.float32)
    gamma_s = jnp.asarray(gamma, jnp.float32).reshape(1, 1)

    flops = 2 * B * (N * C * (2 * C8 + C) + N * N * C8 + N * N * C)
    bytes_accessed = 4 * (2 * B * N * C + C * (2 * C8 + C) + (2 * C8 + C))

    out = pl.pallas_call(
        functools.partial(_self_attention_kernel, c8=C8),
        out_shape=jax.ShapeDtypeStruct((B, N, C), jnp.float32),
        grid=(B,),
        in_specs=[
            pl.BlockSpec((1, N, C), lambda b: (b, 0, 0)),
            pl.BlockSpec((C, 2 * C8 + C), lambda b: (0, 0)),
            pl.BlockSpec((1, 2 * C8 + C), lambda b: (0, 0)),
            pl.BlockSpec(memory_space=pltpu.MemorySpace.SMEM),   # gamma scalar
        ],
        out_specs=pl.BlockSpec((1, N, C), lambda b: (b, 0, 0)),
        compiler_params=pltpu.CompilerParams(
            dimension_semantics=("parallel",),
            vmem_limit_bytes=32 * 1024 * 1024),
        cost_estimate=pl.CostEstimate(flops=flops, transcendentals=B * N * N,
                                      bytes_accessed=bytes_accessed),
    )(x_nc, w_qkv, b_qkv, gamma_s)
    return out.reshape(B, H, W, C)


# --------------------------------------------------------------------------
# Conv / ConvTranspose via im2col + grouped Pallas matmul (NHWC)
# --------------------------------------------------------------------------
def conv2d(x, w, bias, scale, shift, act, stride, padding):
    """x: (B, H, W, Cin) NHWC.  w: (Cout, Cin, kh, kw) (PyTorch layout)."""
    B, H, W, Cin = x.shape
    Cout, _, kh, kw = w.shape
    Ho = (H + 2 * padding - kh) // stride + 1
    Wo = (W + 2 * padding - kw) // stride + 1

    # bf16 patches: halves im2col HBM traffic; no transpose needed in NHWC.
    xp = jnp.pad(x, ((0, 0), (padding, padding), (padding, padding), (0, 0)))
    xp = xp.astype(jnp.bfloat16)
    cols = []
    for i in range(kh):
        for j in range(kw):
            cols.append(xp[:, i:i + stride * Ho:stride, j:j + stride * Wo:stride, :])
    patches = jnp.stack(cols, axis=3)                       # (B, Ho, Wo, kh*kw, Cin)
    patches = patches.reshape(1, B * Ho * Wo, kh * kw * Cin)

    # Fold BatchNorm scale into the weight, bias*scale+shift into the epilogue.
    w_mat = w.transpose(2, 3, 1, 0).reshape(kh * kw * Cin, Cout).astype(jnp.float32)
    w_mat = (w_mat * scale[None, :])[None]                  # (1, K, Cout)
    shift_f = (bias * scale + shift)[None, None, :]         # (1, 1, Cout)

    out = matmul_shift_act(patches, w_mat, shift_f, act)    # (1, M, Cout) f32
    return out[0].reshape(B, Ho, Wo, Cout)


def conv_transpose2d(x, w, bias, scale, shift, act):
    """ConvTranspose2d(kernel=4, stride=2, padding=1), NHWC.

    x: (B, H, W, Cin), w: (Cin, Cout, 4, 4) (PyTorch layout) -> (B, 2H, 2W, Cout).
    Sub-pixel decomposition: 4 phase-convs (2x2 kernels) over the ORIGINAL input
    (no zero-insertion), batched as one grouped matmul (group axis = phase).
    """
    B, H, W, Cin = x.shape
    Cout = w.shape[1]

    xp = jnp.pad(x, ((0, 0), (1, 1), (1, 1), (0, 0))).astype(jnp.bfloat16)
    # Equivalent stride-1 conv kernel: w_conv[co, ci, a, b] = w[ci, co, 3-a, 3-b]
    w_conv = jnp.flip(w, axis=(2, 3)).transpose(1, 0, 2, 3).astype(jnp.float32)

    patches, weights = [], []
    for ry in (0, 1):
        a_idx = (0, 2) if ry == 0 else (1, 3)
        for rx in (0, 1):
            b_idx = (0, 2) if rx == 0 else (1, 3)
            cols, rows = [], []
            for da, a in enumerate(a_idx):
                for db, b in enumerate(b_idx):
                    cols.append(xp[:, ry + da:ry + da + H, rx + db:rx + db + W, :])
                    rows.append(w_conv[:, :, a, b])                 # (Cout, Cin)
            patches.append(jnp.stack(cols, axis=3).reshape(B * H * W, 4 * Cin))
            weights.append(jnp.stack(rows, axis=0)                  # (4, Cout, Cin)
                           .transpose(0, 2, 1).reshape(4 * Cin, Cout))

    a_g = jnp.stack(patches, axis=0)                                 # (4, M, 4*Cin)
    b_g = jnp.stack(weights, axis=0) * scale[None, None, :]          # (4, 4*Cin, Cout)
    shift_f = jnp.broadcast_to((bias * scale + shift)[None, None, :], (4, 1, Cout))

    out = matmul_shift_act(a_g, b_g, shift_f, act)                   # (4, M, Cout)
    out = out.reshape(2, 2, B, H, W, Cout).transpose(2, 3, 0, 4, 1, 5)
    return out.reshape(B, 2 * H, 2 * W, Cout)


# --------------------------------------------------------------------------
# Parameter construction (deterministic, synthetic)
# --------------------------------------------------------------------------
def _bn_fold(gamma, beta, running_mean, running_var, eps=1e-5):
    scale = gamma / jnp.sqrt(running_var + eps)
    shift = beta - running_mean * scale
    return scale, shift


def make_params(key, rgb_channels=3, depth_channels=1, output_channels=4):
    ks = iter(jax.random.split(key, 64))
    f32 = jnp.float32

    def w(shape, s=0.05):
        return (s * jax.random.normal(next(ks), shape)).astype(f32)

    def bn(c):
        gamma = (1.0 + 0.05 * jax.random.normal(next(ks), (c,))).astype(f32)
        beta = (0.05 * jax.random.normal(next(ks), (c,))).astype(f32)
        return _bn_fold(gamma, beta, jnp.zeros((c,), f32), jnp.ones((c,), f32))

    def attn(c):
        c8 = c // 8
        return dict(
            wq=w((c8, c)), bq=w((c8,)),
            wk=w((c8, c)), bk=w((c8,)),
            wv=w((c, c)), bv=w((c,)),
            gamma=jnp.full((1, 1), 0.5, f32),  # PyTorch inits gamma=0; nonzero to exercise path
        )

    cin = rgb_channels + depth_channels
    p = {}
    # Encoder
    p["conv1_w"], p["conv1_b"] = w((64, cin, 4, 4)), w((64,))
    p["attn1"] = attn(64)
    p["conv2_w"], p["conv2_b"] = w((128, 64, 4, 4)), w((128,))
    p["bn2"] = bn(128)
    p["conv3_w"], p["conv3_b"] = w((256, 128, 4, 4)), w((256,))
    p["bn3"] = bn(256)
    p["attn2"] = attn(256)
    p["conv4_w"], p["conv4_b"] = w((256, 256, 4, 4)), w((256,))
    p["bn4"] = bn(256)
    # Decoder (ConvTranspose2d weights are (Cin, Cout, k, k))
    p["dec1_w"], p["dec1_b"] = w((256, 256, 4, 4)), w((256,))
    p["dbn1"] = bn(256)
    p["dec2_w"], p["dec2_b"] = w((256, 128, 4, 4)), w((128,))
    p["dbn2"] = bn(128)
    p["dec3_w"], p["dec3_b"] = w((128, 64, 4, 4)), w((64,))
    p["dbn3"] = bn(64)
    p["dec4_w"], p["dec4_b"] = w((64, output_channels, 4, 4)), w((output_channels,))
    return p


# --------------------------------------------------------------------------
# Generator forward
# --------------------------------------------------------------------------
def generator_forward(p, rgb, depth):
    ones = lambda c: jnp.ones((c,), jnp.float32)
    zeros = lambda c: jnp.zeros((c,), jnp.float32)

    x = jnp.concatenate([rgb, depth], axis=1).astype(jnp.float32)  # (B, 4, H, W)
    x = x.transpose(0, 2, 3, 1)                                    # NCHW -> NHWC, once

    # ---- encoder ----
    x = conv2d(x, p["conv1_w"], p["conv1_b"], ones(64), zeros(64),
               "leaky_relu", stride=2, padding=1)
    a = p["attn1"]
    x = self_attention(x, a["wq"], a["bq"], a["wk"], a["bk"], a["wv"], a["bv"], a["gamma"])
    x = conv2d(x, p["conv2_w"], p["conv2_b"], *p["bn2"], "leaky_relu", stride=2, padding=1)
    x = conv2d(x, p["conv3_w"], p["conv3_b"], *p["bn3"], "leaky_relu", stride=2, padding=1)
    a = p["attn2"]
    x = self_attention(x, a["wq"], a["bq"], a["wk"], a["bk"], a["wv"], a["bv"], a["gamma"])
    x = conv2d(x, p["conv4_w"], p["conv4_b"], *p["bn4"], "leaky_relu", stride=2, padding=1)

    # ---- decoder ----
    x = conv_transpose2d(x, p["dec1_w"], p["dec1_b"], *p["dbn1"], "relu")
    x = conv_transpose2d(x, p["dec2_w"], p["dec2_b"], *p["dbn2"], "relu")
    x = conv_transpose2d(x, p["dec3_w"], p["dec3_b"], *p["dbn3"], "relu")
    out_c = p["dec4_w"].shape[1]
    x = conv_transpose2d(x, p["dec4_w"], p["dec4_b"], ones(out_c), zeros(out_c), "tanh")
    return x.transpose(0, 3, 1, 2)                                 # NHWC -> NCHW


# --------------------------------------------------------------------------
if __name__ == "__main__":
    key = jax.random.PRNGKey(0)
    k_param, k_rgb, k_depth = jax.random.split(key, 3)

    B, H, W = 2, 16, 16
    rgb = jax.random.normal(k_rgb, (B, 3, H, W), dtype=jnp.float32)
    depth = jax.random.normal(k_depth, (B, 1, H, W), dtype=jnp.float32)

    params = make_params(k_param)
    fwd = jax.jit(generator_forward)
    out = jax.block_until_ready(fwd(params, rgb, depth))

    assert out.shape == (B, 4, H, W), out.shape
    assert bool(jnp.all(jnp.isfinite(out)))
    assert bool(jnp.all(jnp.abs(out) <= 1.0 + 1e-6))  # tanh output range
    print("KERNEL_OK")
</pallas_src>

<mosaic_0001>
module attributes {stable_mosaic.version = 11 : i64} {
  func.func @_self_attention_kernel(%arg0: i32, %arg1: memref<1x64x64xf32, #tpu.memory_space<vmem>>, %arg2: memref<64x80xf32, #tpu.memory_space<vmem>>, %arg3: memref<1x80xf32, #tpu.memory_space<vmem>>, %arg4: memref<1x1xf32, #tpu.memory_space<smem>>, %arg5: memref<1x64x64xf32, #tpu.memory_space<vmem>>) attributes {dimension_semantics = [#tpu.dimension_semantics<parallel>], iteration_bounds = array<i64: 2>, scalar_prefetch = 0 : i64, scratch_operands = 0 : i64, tpu.core_type = #tpu.core_type<tc>, window_params = [{transform_indices = @transform_0, window_bounds = array<i64: 1, 64, 64>}, {pipeline_mode = #tpu.pipeline_mode<synchronous>, transform_indices = @transform_1, window_bounds = array<i64: 64, 80>}, {pipeline_mode = #tpu.pipeline_mode<synchronous>, transform_indices = @transform_2, window_bounds = array<i64: 1, 80>}, {transform_indices = @transform_3, window_bounds = array<i64: 1, 1>}, {transform_indices = @transform_4, window_bounds = array<i64: 1, 64, 64>}]} {
    %c0 = arith.constant 0 : index
    %c0_0 = arith.constant 0 : index
    %c0_1 = arith.constant 0 : index
    %0 = vector.load %arg1[%c0, %c0_0, %c0_1] : memref<1x64x64xf32, #tpu.memory_space<vmem>>, vector<1x64x64xf32>
    %1 = vector.shape_cast %0 : vector<1x64x64xf32> to vector<64x64xf32>
    %c0_2 = arith.constant 0 : index
    %c0_3 = arith.constant 0 : index
    %2 = vector.load %arg2[%c0_2, %c0_3] : memref<64x80xf32, #tpu.memory_space<vmem>>, vector<64x80xf32>
    %cst = arith.constant dense<0.000000e+00> : vector<64x80xf32>
    %3 = tpu.matmul %1, %2, %cst {dimension_numbers = #tpu.dot_dimension_numbers<[1], [0], [0], [1], [0, 0, 1, 1], [], []>} : vector<64x64xf32>, vector<64x80xf32>, vector<64x80xf32> -> vector<64x80xf32>
    %c0_4 = arith.constant 0 : index
    %c0_5 = arith.constant 0 : index
    %4 = vector.load %arg3[%c0_4, %c0_5] : memref<1x80xf32, #tpu.memory_space<vmem>>, vector<1x80xf32>
    %5 = vector.broadcast %4 : vector<1x80xf32> to vector<64x80xf32>
    %6 = arith.addf %3, %5 : vector<64x80xf32>
    %7 = vector.extract_strided_slice %6 {offsets = [0, 0], sizes = [64, 8], strides = [1, 1]} : vector<64x80xf32> to vector<64x8xf32>
    %8 = vector.extract_strided_slice %6 {offsets = [0, 8], sizes = [64, 8], strides = [1, 1]} : vector<64x80xf32> to vector<64x8xf32>
    %9 = vector.extract_strided_slice %6 {offsets = [0, 16], sizes = [64, 64], strides = [1, 1]} : vector<64x80xf32> to vector<64x64xf32>
    %cst_6 = arith.constant dense<0.000000e+00> : vector<64x64xf32>
    %10 = tpu.matmul %7, %8, %cst_6 {dimension_numbers = #tpu.dot_dimension_numbers<[1], [1], [0], [0], [0, 0, 1, 0], [], []>} : vector<64x8xf32>, vector<64x8xf32>, vector<64x64xf32> -> vector<64x64xf32>
    %cst_7 = arith.constant dense<0xFF800000> : vector<64xf32>
    %11 = vector.multi_reduction <maximumf>, %10, %cst_7 [1] : vector<64x64xf32> to vector<64xf32>
    %12 = vector.shape_cast %11 : vector<64xf32> to vector<64x1xf32>
    %13 = vector.broadcast %12 : vector<64x1xf32> to vector<64x64xf32>
    %14 = arith.subf %10, %13 : vector<64x64xf32>
    %15 = math.exp %14 : vector<64x64xf32>
    %cst_8 = arith.constant dense<0.000000e+00> : vector<64xf32>
    %16 = vector.multi_reduction <add>, %15, %cst_8 [1] : vector<64x64xf32> to vector<64xf32>
    %17 = vector.shape_cast %16 : vector<64xf32> to vector<64x1xf32>
    %18 = tpu.reciprocal %17 {approx = true} : vector<64x1xf32> -> vector<64x1xf32>
    %19 = vector.broadcast %18 : vector<64x1xf32> to vector<64x64xf32>
    %20 = arith.mulf %15, %19 : vector<64x64xf32>
    %cst_9 = arith.constant dense<0.000000e+00> : vector<64x64xf32>
    %21 = tpu.matmul %20, %9, %cst_9 {dimension_numbers = #tpu.dot_dimension_numbers<[1], [0], [0], [1], [0, 0, 1, 1], [], []>} : vector<64x64xf32>, vector<64x64xf32>, vector<64x64xf32> -> vector<64x64xf32>
    %c0_10 = arith.constant 0 : index
    %c0_11 = arith.constant 0 : index
    %22 = memref.load %arg4[%c0_10, %c0_11] : memref<1x1xf32, #tpu.memory_space<smem>>
    %23 = vector.broadcast %22 : f32 to vector<64x64xf32>
    %24 = arith.mulf %23, %21 : vector<64x64xf32>
    %25 = arith.addf %24, %1 : vector<64x64xf32>
    %c0_12 = arith.constant 0 : index
    %c0_13 = arith.constant 0 : index
    %c0_14 = arith.constant 0 : index
    %26 = vector.load %arg5[%c0_12, %c0_13, %c0_14] : memref<1x64x64xf32, #tpu.memory_space<vmem>>, vector<1x64x64xf32>
    %27 = vector.shape_cast %26 : vector<1x64x64xf32> to vector<64x64xf32>
    %28 = vector.shape_cast %25 : vector<64x64xf32> to vector<1x64x64xf32>
    tpu.vector_store %arg5[%c0_12, %c0_13, %c0_14], %28 {strides = array<i32>} : memref<1x64x64xf32, #tpu.memory_space<vmem>>, vector<1x64x64xf32>,
    return
  }
  func.func @transform_0(%arg0: i32) -> (i32, i32, i32) {
    %c0_i32 = arith.constant 0 : i32
    %c0_i32_0 = arith.constant 0 : i32
    %c0_i32_1 = arith.constant 0 : i32
    return %arg0, %c0_i32, %c0_i32_0 : i32, i32, i32
  }
  func.func @transform_1(%arg0: i32) -> (i32, i32) {
    %c0_i32 = arith.constant 0 : i32
    %c0_i32_0 = arith.constant 0 : i32
    %c0_i32_1 = arith.constant 0 : i32
    return %c0_i32, %c0_i32_0 : i32, i32
  }
  func.func @transform_2(%arg0: i32) -> (i32, i32) {
    %c0_i32 = arith.constant 0 : i32
    %c0_i32_0 = arith.constant 0 : i32
    %c0_i32_1 = arith.constant 0 : i32
    return %c0_i32, %c0_i32_0 : i32, i32
  }
  func.func @transform_3(%arg0: i32) -> (i32, i32) {
    %c0_i32 = arith.constant 0 : i32
    %c0_i32_0 = arith.constant 0 : i32
    %c0_i32_1 = arith.constant 0 : i32
    return %c0_i32, %c0_i32_0 : i32, i32
  }
  func.func @transform_4(%arg0: i32) -> (i32, i32, i32) {
    %c0_i32 = arith.constant 0 : i32
    %c0_i32_0 = arith.constant 0 : i32
    %c0_i32_1 = arith.constant 0 : i32
    return %arg0, %c0_i32, %c0_i32_0 : i32, i32, i32
  }
}

module attributes {stable_mosaic.version = 11 : i64} {
  func.func @_matmul_shift_act_kernel(%arg0: i32, %arg1: i32, %arg2: i32, %arg3: i32, %arg4: memref<1x128x128xbf16, #tpu.memory_space<vmem>>, %arg5: memref<1x128x128xbf16, #tpu.memory_space<vmem>>, %arg6: memref<1x1x128xf32, #tpu.memory_space<vmem>>, %arg7: memref<1x128x128xf32, #tpu.memory_space<vmem>>, %arg8: memref<128x128xf32, #tpu.memory_space<vmem>>) attributes {dimension_semantics = [#tpu.dimension_semantics<parallel>, #tpu.dimension_semantics<parallel>, #tpu.dimension_semantics<parallel>, #tpu.dimension_semantics<arbitrary>], iteration_bounds = array<i64: 1, 1, 1, 1>, scalar_prefetch = 0 : i64, scratch_operands = 1 : i64, tpu.core_type = #tpu.core_type<tc>, window_params = [{transform_indices = @transform_0, window_bounds = array<i64: 1, 128, 128>}, {transform_indices = @transform_1, window_bounds = array<i64: 1, 128, 128>}, {transform_indices = @transform_2, window_bounds = array<i64: 1, 1, 128>}, {transform_indices = @transform_3, window_bounds = array<i64: 1, 128, 128>}]} {
    %c0_i32 = arith.constant 0 : i32
    %0 = arith.cmpi eq, %arg3, %c0_i32 : i32
    %1 = arith.extui %0 : i1 to i32
    %c0_i32_0 = arith.constant 0 : i32
    %2 = arith.cmpi ne, %1, %c0_i32_0 : i32
    scf.if %2 {
      %cst_12 = arith.constant 0.000000e+00 : f32
      %14 = vector.broadcast %cst_12 : f32 to vector<128x128xf32>
      %c0_13 = arith.constant 0 : index
      %c0_14 = arith.constant 0 : index
      %15 = vector.load %arg8[%c0_13, %c0_14] : memref<128x128xf32, #tpu.memory_space<vmem>>, vector<128x128xf32>
      tpu.vector_store %arg8[%c0_13, %c0_14], %14 {strides = array<i32>} : memref<128x128xf32, #tpu.memory_space<vmem>>, vector<128x128xf32>,
    } else {
    }
    %c0 = arith.constant 0 : index
    %c0_1 = arith.constant 0 : index
    %3 = vector.load %arg8[%c0, %c0_1] : memref<128x128xf32, #tpu.memory_space<vmem>>, vector<128x128xf32>
    %c0_2 = arith.constant 0 : index
    %c0_3 = arith.constant 0 : index
    %c0_4 = arith.constant 0 : index
    %4 = vector.load %arg4[%c0_2, %c0_3, %c0_4] : memref<1x128x128xbf16, #tpu.memory_space<vmem>>, vector<1x128x128xbf16>
    %5 = vector.shape_cast %4 : vector<1x128x128xbf16> to vector<128x128xbf16>
    %c0_5 = arith.constant 0 : index
    %c0_6 = arith.constant 0 : index
    %c0_7 = arith.constant 0 : index
    %6 = vector.load %arg5[%c0_5, %c0_6, %c0_7] : memref<1x128x128xbf16, #tpu.memory_space<vmem>>, vector<1x128x128xbf16>
    %7 = vector.shape_cast %6 : vector<1x128x128xbf16> to vector<128x128xbf16>
    %cst = arith.constant dense<0.000000e+00> : vector<128x128xf32>
    %8 = tpu.matmul %5, %7, %cst {dimension_numbers = #tpu.dot_dimension_numbers<[1], [0], [0], [1], [0, 0, 1, 1], [], []>} : vector<128x128xbf16>, vector<128x128xbf16>, vector<128x128xf32> -> vector<128x128xf32>
    %9 = arith.addf %3, %8 : vector<128x128xf32>
    %c0_8 = arith.constant 0 : index
    %c0_9 = arith.constant 0 : index
    %10 = vector.load %arg8[%c0_8, %c0_9] : memref<128x128xf32, #tpu.memory_space<vmem>>, vector<128x128xf32>
    tpu.vector_store %arg8[%c0_8, %c0_9], %9 {strides = array<i32>} : memref<128x128xf32, #tpu.memory_space<vmem>>, vector<128x128xf32>,
    %c0_i32_10 = arith.constant 0 : i32
    %11 = arith.cmpi eq, %arg3, %c0_i32_10 : i32
    %12 = arith.extui %11 : i1 to i32
    %c0_i32_11 = arith.constant 0 : i32
    %13 = arith.cmpi ne, %12, %c0_i32_11 : i32
    scf.if %13 {
      %c0_12 = arith.constant 0 : index
      %c0_13 = arith.constant 0 : index
      %14 = vector.load %arg8[%c0_12, %c0_13] : memref<128x128xf32, #tpu.memory_space<vmem>>, vector<128x128xf32>
      %c0_14 = arith.constant 0 : index
      %c0_15 = arith.constant 0 : index
      %c0_16 = arith.constant 0 : index
      %15 = vector.load %arg6[%c0_14, %c0_15, %c0_16] : memref<1x1x128xf32, #tpu.memory_space<vmem>>, vector<1x1x128xf32>
      %16 = vector.shape_cast %15 : vector<1x1x128xf32> to vector<1x128xf32>
      %17 = vector.broadcast %16 : vector<1x128xf32> to vector<128x128xf32>
      %18 = arith.addf %14, %17 : vector<128x128xf32>
      %cst_17 = arith.constant 0.000000e+00 : f32
      %19 = vector.broadcast %cst_17 : f32 to vector<128x128xf32>
      %20 = arith.cmpf oge, %18, %19 : vector<128x128xf32>
      %cst_18 = arith.constant 2.000000e-01 : f32
      %21 = vector.broadcast %cst_18 : f32 to vector<128x128xf32>
      %22 = arith.mulf %21, %18 : vector<128x128xf32>
      %23 = arith.select %20, %18, %22 : vector<128x128xi1>, vector<128x128xf32>
      %c0_19 = arith.constant 0 : index
      %c0_20 = arith.constant 0 : index
      %c0_21 = arith.constant 0 : index
      %24 = vector.load %arg7[%c0_19, %c0_20, %c0_21] : memref<1x128x128xf32, #tpu.memory_space<vmem>>, vector<1x128x128xf32>
      %25 = vector.shape_cast %24 : vector<1x128x128xf32> to vector<128x128xf32>
      %26 = vector.shape_cast %23 : vector<128x128xf32> to vector<1x128x128xf32>
      tpu.vector_store %arg7[%c0_19, %c0_20, %c0_21], %26 {strides = array<i32>} : memref<1x128x128xf32, #tpu.memory_space<vmem>>, vector<1x128x128xf32>,
    } else {
    }
    return
  }
  func.func @transform_0(%arg0: i32, %arg1: i32, %arg2: i32, %arg3: i32) -> (i32, i32, i32) {
    %c0_i32 = arith.constant 0 : i32
    return %arg0, %arg1, %arg3 : i32, i32, i32
  }
  func.func @transform_1(%arg0: i32, %arg1: i32, %arg2: i32, %arg3: i32) -> (i32, i32, i32) {
    %c0_i32 = arith.constant 0 : i32
    return %arg0, %arg3, %arg2 : i32, i32, i32
  }
  func.func @transform_2(%arg0: i32, %arg1: i32, %arg2: i32, %arg3: i32) -> (i32, i32, i32) {
    %c0_i32 = arith.constant 0 : i32
    %c0_i32_0 = arith.constant 0 : i32
    return %arg0, %c0_i32, %arg2 : i32, i32, i32
  }
  func.func @transform_3(%arg0: i32, %arg1: i32, %arg2: i32, %arg3: i32) -> (i32, i32, i32) {
    %c0_i32 = arith.constant 0 : i32
    return %arg0, %arg1, %arg2 : i32, i32, i32
  }
}

module attributes {stable_mosaic.version = 11 : i64} {
  func.func @_matmul_shift_act_kernel(%arg0: i32, %arg1: i32, %arg2: i32, %arg3: i32, %arg4: memref<1x32x512xbf16, #tpu.memory_space<vmem>>, %arg5: memref<1x512x128xbf16, #tpu.memory_space<vmem>>, %arg6: memref<1x1x128xf32, #tpu.memory_space<vmem>>, %arg7: memref<1x32x128xf32, #tpu.memory_space<vmem>>, %arg8: memref<32x128xf32, #tpu.memory_space<vmem>>) attributes {dimension_semantics = [#tpu.dimension_semantics<parallel>, #tpu.dimension_semantics<parallel>, #tpu.dimension_semantics<parallel>, #tpu.dimension_semantics<arbitrary>], iteration_bounds = array<i64: 1, 1, 1, 2>, scalar_prefetch = 0 : i64, scratch_operands = 1 : i64, tpu.core_type = #tpu.core_type<tc>, window_params = [{transform_indices = @transform_0, window_bounds = array<i64: 1, 32, 512>}, {transform_indices = @transform_1, window_bounds = array<i64: 1, 512, 128>}, {transform_indices = @transform_2, window_bounds = array<i64: 1, 1, 128>}, {transform_indices = @transform_3, window_bounds = array<i64: 1, 32, 128>}]} {
    %c0_i32 = arith.constant 0 : i32
    %0 = arith.cmpi eq, %arg3, %c0_i32 : i32
    %1 = arith.extui %0 : i1 to i32
    %c0_i32_0 = arith.constant 0 : i32
    %2 = arith.cmpi ne, %1, %c0_i32_0 : i32
    scf.if %2 {
      %cst_11 = arith.constant 0.000000e+00 : f32
      %14 = vector.broadcast %cst_11 : f32 to vector<32x128xf32>
      %c0_12 = arith.constant 0 : index
      %c0_13 = arith.constant 0 : index
      %15 = vector.load %arg8[%c0_12, %c0_13] : memref<32x128xf32, #tpu.memory_space<vmem>>, vector<32x128xf32>
      tpu.vector_store %arg8[%c0_12, %c0_13], %14 {strides = array<i32>} : memref<32x128xf32, #tpu.memory_space<vmem>>, vector<32x128xf32>,
    } else {
    }
    %c0 = arith.constant 0 : index
    %c0_1 = arith.constant 0 : index
    %3 = vector.load %arg8[%c0, %c0_1] : memref<32x128xf32, #tpu.memory_space<vmem>>, vector<32x128xf32>
    %c0_2 = arith.constant 0 : index
    %c0_3 = arith.constant 0 : index
    %c0_4 = arith.constant 0 : index
    %4 = vector.load %arg4[%c0_2, %c0_3, %c0_4] : memref<1x32x512xbf16, #tpu.memory_space<vmem>>, vector<1x32x512xbf16>
    %5 = vector.shape_cast %4 : vector<1x32x512xbf16> to vector<32x512xbf16>
    %c0_5 = arith.constant 0 : index
    %c0_6 = arith.constant 0 : index
    %c0_7 = arith.constant 0 : index
    %6 = vector.load %arg5[%c0_5, %c0_6, %c0_7] : memref<1x512x128xbf16, #tpu.memory_space<vmem>>, vector<1x512x128xbf16>
    %7 = vector.shape_cast %6 : vector<1x512x128xbf16> to vector<512x128xbf16>
    %cst = arith.constant dense<0.000000e+00> : vector<32x128xf32>
    %8 = tpu.matmul %5, %7, %cst {dimension_numbers = #tpu.dot_dimension_numbers<[1], [0], [0], [1], [0, 0, 1, 1], [], []>} : vector<32x512xbf16>, vector<512x128xbf16>, vector<32x128xf32> -> vector<32x128xf32>
    %9 = arith.addf %3, %8 : vector<32x128xf32>
    %c0_8 = arith.constant 0 : index
    %c0_9 = arith.constant 0 : index
    %10 = vector.load %arg8[%c0_8, %c0_9] : memref<32x128xf32, #tpu.memory_space<vmem>>, vector<32x128xf32>
    tpu.vector_store %arg8[%c0_8, %c0_9], %9 {strides = array<i32>} : memref<32x128xf32, #tpu.memory_space<vmem>>, vector<32x128xf32>,
    %c1_i32 = arith.constant 1 : i32
    %11 = arith.cmpi eq, %arg3, %c1_i32 : i32
    %12 = arith.extui %11 : i1 to i32
    %c0_i32_10 = arith.constant 0 : i32
    %13 = arith.cmpi ne, %12, %c0_i32_10 : i32
    scf.if %13 {
      %c0_11 = arith.constant 0 : index
      %c0_12 = arith.constant 0 : index
      %14 = vector.load %arg8[%c0_11, %c0_12] : memref<32x128xf32, #tpu.memory_space<vmem>>, vector<32x128xf32>
      %c0_13 = arith.constant 0 : index
      %c0_14 = arith.constant 0 : index
      %c0_15 = arith.constant 0 : index
      %15 = vector.load %arg6[%c0_13, %c0_14, %c0_15] : memref<1x1x128xf32, #tpu.memory_space<vmem>>, vector<1x1x128xf32>
      %16 = vector.shape_cast %15 : vector<1x1x128xf32> to vector<1x128xf32>
      %17 = vector.broadcast %16 : vector<1x128xf32> to vector<32x128xf32>
      %18 = arith.addf %14, %17 : vector<32x128xf32>
      %cst_16 = arith.constant 0.000000e+00 : f32
      %19 = vector.broadcast %cst_16 : f32 to vector<32x128xf32>
      %20 = arith.cmpf oge, %18, %19 : vector<32x128xf32>
      %cst_17 = arith.constant 2.000000e-01 : f32
      %21 = vector.broadcast %cst_17 : f32 to vector<32x128xf32>
      %22 = arith.mulf %21, %18 : vector<32x128xf32>
      %23 = arith.select %20, %18, %22 : vector<32x128xi1>, vector<32x128xf32>
      %c0_18 = arith.constant 0 : index
      %c0_19 = arith.constant 0 : index
      %c0_20 = arith.constant 0 : index
      %24 = vector.load %arg7[%c0_18, %c0_19, %c0_20] : memref<1x32x128xf32, #tpu.memory_space<vmem>>, vector<1x32x128xf32>
      %25 = vector.shape_cast %24 : vector<1x32x128xf32> to vector<32x128xf32>
      %26 = vector.shape_cast %23 : vector<32x128xf32> to vector<1x32x128xf32>
      tpu.vector_store %arg7[%c0_18, %c0_19, %c0_20], %26 {strides = array<i32>} : memref<1x32x128xf32, #tpu.memory_space<vmem>>, vector<1x32x128xf32>,
    } else {
    }
    return
  }
  func.func @transform_0(%arg0: i32, %arg1: i32, %arg2: i32, %arg3: i32) -> (i32, i32, i32) {
    %c0_i32 = arith.constant 0 : i32
    return %arg0, %arg1, %arg3 : i32, i32, i32
  }
  func.func @transform_1(%arg0: i32, %arg1: i32, %arg2: i32, %arg3: i32) -> (i32, i32, i32) {
    %c0_i32 = arith.constant 0 : i32
    return %arg0, %arg3, %arg2 : i32, i32, i32
  }
  func.func @transform_2(%arg0: i32, %arg1: i32, %arg2: i32, %arg3: i32) -> (i32, i32, i32) {
    %c0_i32 = arith.constant 0 : i32
    %c0_i32_0 = arith.constant 0 : i32
    return %arg0, %c0_i32, %arg2 : i32, i32, i32
  }
  func.func @transform_3(%arg0: i32, %arg1: i32, %arg2: i32, %arg3: i32) -> (i32, i32, i32) {
    %c0_i32 = arith.constant 0 : i32
    return %arg0, %arg1, %arg2 : i32, i32, i32
  }
}

module attributes {stable_mosaic.version = 11 : i64} {
  func.func @_matmul_shift_act_kernel(%arg0: i32, %arg1: i32, %arg2: i32, %arg3: i32, %arg4: memref<1x16x512xbf16, #tpu.memory_space<vmem>>, %arg5: memref<1x512x256xbf16, #tpu.memory_space<vmem>>, %arg6: memref<1x1x256xf32, #tpu.memory_space<vmem>>, %arg7: memref<1x16x256xf32, #tpu.memory_space<vmem>>, %arg8: memref<16x256xf32, #tpu.memory_space<vmem>>) attributes {dimension_semantics = [#tpu.dimension_semantics<parallel>, #tpu.dimension_semantics<parallel>, #tpu.dimension_semantics<parallel>, #tpu.dimension_semantics<arbitrary>], iteration_bounds = array<i64: 1, 1, 1, 4>, scalar_prefetch = 0 : i64, scratch_operands = 1 : i64, tpu.core_type = #tpu.core_type<tc>, window_params = [{transform_indices = @transform_0, window_bounds = array<i64: 1, 16, 512>}, {transform_indices = @transform_1, window_bounds = array<i64: 1, 512, 256>}, {transform_indices = @transform_2, window_bounds = array<i64: 1, 1, 256>}, {transform_indices = @transform_3, window_bounds = array<i64: 1, 16, 256>}]} {
    %c0_i32 = arith.constant 0 : i32
    %0 = arith.cmpi eq, %arg3, %c0_i32 : i32
    %1 = arith.extui %0 : i1 to i32
    %c0_i32_0 = arith.constant 0 : i32
    %2 = arith.cmpi ne, %1, %c0_i32_0 : i32
    scf.if %2 {
      %cst_11 = arith.constant 0.000000e+00 : f32
      %14 = vector.broadcast %cst_11 : f32 to vector<16x256xf32>
      %c0_12 = arith.constant 0 : index
      %c0_13 = arith.constant 0 : index
      %15 = vector.load %arg8[%c0_12, %c0_13] : memref<16x256xf32, #tpu.memory_space<vmem>>, vector<16x256xf32>
      tpu.vector_store %arg8[%c0_12, %c0_13], %14 {strides = array<i32>} : memref<16x256xf32, #tpu.memory_space<vmem>>, vector<16x256xf32>,
    } else {
    }
    %c0 = arith.constant 0 : index
    %c0_1 = arith.constant 0 : index
    %3 = vector.load %arg8[%c0, %c0_1] : memref<16x256xf32, #tpu.memory_space<vmem>>, vector<16x256xf32>
    %c0_2 = arith.constant 0 : index
    %c0_3 = arith.constant 0 : index
    %c0_4 = arith.constant 0 : index
    %4 = vector.load %arg4[%c0_2, %c0_3, %c0_4] : memref<1x16x512xbf16, #tpu.memory_space<vmem>>, vector<1x16x512xbf16>
    %5 = vector.shape_cast %4 : vector<1x16x512xbf16> to vector<16x512xbf16>
    %c0_5 = arith.constant 0 : index
    %c0_6 = arith.constant 0 : index
    %c0_7 = arith.constant 0 : index
    %6 = vector.load %arg5[%c0_5, %c0_6, %c0_7] : memref<1x512x256xbf16, #tpu.memory_space<vmem>>, vector<1x512x256xbf16>
    %7 = vector.shape_cast %6 : vector<1x512x256xbf16> to vector<512x256xbf16>
    %cst = arith.constant dense<0.000000e+00> : vector<16x256xf32>
    %8 = tpu.matmul %5, %7, %cst {dimension_numbers = #tpu.dot_dimension_numbers<[1], [0], [0], [1], [0, 0, 1, 1], [], []>} : vector<16x512xbf16>, vector<512x256xbf16>, vector<16x256xf32> -> vector<16x256xf32>
    %9 = arith.addf %3, %8 : vector<16x256xf32>
    %c0_8 = arith.constant 0 : index
    %c0_9 = arith.constant 0 : index
    %10 = vector.load %arg8[%c0_8, %c0_9] : memref<16x256xf32, #tpu.memory_space<vmem>>, vector<16x256xf32>
    tpu.vector_store %arg8[%c0_8, %c0_9], %9 {strides = array<i32>} : memref<16x256xf32, #tpu.memory_space<vmem>>, vector<16x256xf32>,
    %c3_i32 = arith.constant 3 : i32
    %11 = arith.cmpi eq, %arg3, %c3_i32 : i32
    %12 = arith.extui %11 : i1 to i32
    %c0_i32_10 = arith.constant 0 : i32
    %13 = arith.cmpi ne, %12, %c0_i32_10 : i32
    scf.if %13 {
      %c0_11 = arith.constant 0 : index
      %c0_12 = arith.constant 0 : index
      %14 = vector.load %arg8[%c0_11, %c0_12] : memref<16x256xf32, #tpu.memory_space<vmem>>, vector<16x256xf32>
      %c0_13 = arith.constant 0 : index
      %c0_14 = arith.constant 0 : index
      %c0_15 = arith.constant 0 : index
      %15 = vector.load %arg6[%c0_13, %c0_14, %c0_15] : memref<1x1x256xf32, #tpu.memory_space<vmem>>, vector<1x1x256xf32>
      %16 = vector.shape_cast %15 : vector<1x1x256xf32> to vector<1x256xf32>
      %17 = vector.broadcast %16 : vector<1x256xf32> to vector<16x256xf32>
      %18 = arith.addf %14, %17 : vector<16x256xf32>
      %cst_16 = arith.constant 0.000000e+00 : f32
      %19 = vector.broadcast %cst_16 : f32 to vector<16x256xf32>
      %20 = arith.cmpf oge, %18, %19 : vector<16x256xf32>
      %cst_17 = arith.constant 2.000000e-01 : f32
      %21 = vector.broadcast %cst_17 : f32 to vector<16x256xf32>
      %22 = arith.mulf %21, %18 : vector<16x256xf32>
      %23 = arith.select %20, %18, %22 : vector<16x256xi1>, vector<16x256xf32>
      %c0_18 = arith.constant 0 : index
      %c0_19 = arith.constant 0 : index
      %c0_20 = arith.constant 0 : index
      %24 = vector.load %arg7[%c0_18, %c0_19, %c0_20] : memref<1x16x256xf32, #tpu.memory_space<vmem>>, vector<1x16x256xf32>
      %25 = vector.shape_cast %24 : vector<1x16x256xf32> to vector<16x256xf32>
      %26 = vector.shape_cast %23 : vector<16x256xf32> to vector<1x16x256xf32>
      tpu.vector_store %arg7[%c0_18, %c0_19, %c0_20], %26 {strides = array<i32>} : memref<1x16x256xf32, #tpu.memory_space<vmem>>, vector<1x16x256xf32>,
    } else {
    }
    return
  }
  func.func @transform_0(%arg0: i32, %arg1: i32, %arg2: i32, %arg3: i32) -> (i32, i32, i32) {
    %c0_i32 = arith.constant 0 : i32
    return %arg0, %arg1, %arg3 : i32, i32, i32
  }
  func.func @transform_1(%arg0: i32, %arg1: i32, %arg2: i32, %arg3: i32) -> (i32, i32, i32) {
    %c0_i32 = arith.constant 0 : i32
    return %arg0, %arg3, %arg2 : i32, i32, i32
  }
  func.func @transform_2(%arg0: i32, %arg1: i32, %arg2: i32, %arg3: i32) -> (i32, i32, i32) {
    %c0_i32 = arith.constant 0 : i32
    %c0_i32_0 = arith.constant 0 : i32
    return %arg0, %c0_i32, %arg2 : i32, i32, i32
  }
  func.func @transform_3(%arg0: i32, %arg1: i32, %arg2: i32, %arg3: i32) -> (i32, i32, i32) {
    %c0_i32 = arith.constant 0 : i32
    return %arg0, %arg1, %arg2 : i32, i32, i32
  }
}

module attributes {stable_mosaic.version = 11 : i64} {
  func.func @_self_attention_kernel(%arg0: i32, %arg1: memref<1x4x256xf32, #tpu.memory_space<vmem>>, %arg2: memref<256x320xf32, #tpu.memory_space<vmem>>, %arg3: memref<1x320xf32, #tpu.memory_space<vmem>>, %arg4: memref<1x1xf32, #tpu.memory_space<smem>>, %arg5: memref<1x4x256xf32, #tpu.memory_space<vmem>>) attributes {dimension_semantics = [#tpu.dimension_semantics<parallel>], iteration_bounds = array<i64: 2>, scalar_prefetch = 0 : i64, scratch_operands = 0 : i64, tpu.core_type = #tpu.core_type<tc>, window_params = [{transform_indices = @transform_0, window_bounds = array<i64: 1, 4, 256>}, {pipeline_mode = #tpu.pipeline_mode<synchronous>, transform_indices = @transform_1, window_bounds = array<i64: 256, 320>}, {pipeline_mode = #tpu.pipeline_mode<synchronous>, transform_indices = @transform_2, window_bounds = array<i64: 1, 320>}, {transform_indices = @transform_3, window_bounds = array<i64: 1, 1>}, {transform_indices = @transform_4, window_bounds = array<i64: 1, 4, 256>}]} {
    %c0 = arith.constant 0 : index
    %c0_0 = arith.constant 0 : index
    %c0_1 = arith.constant 0 : index
    %0 = vector.load %arg1[%c0, %c0_0, %c0_1] : memref<1x4x256xf32, #tpu.memory_space<vmem>>, vector<1x4x256xf32>
    %1 = vector.shape_cast %0 : vector<1x4x256xf32> to vector<4x256xf32>
    %c0_2 = arith.constant 0 : index
    %c0_3 = arith.constant 0 : index
    %2 = vector.load %arg2[%c0_2, %c0_3] : memref<256x320xf32, #tpu.memory_space<vmem>>, vector<256x320xf32>
    %cst = arith.constant dense<0.000000e+00> : vector<4x320xf32>
    %3 = tpu.matmul %1, %2, %cst {dimension_numbers = #tpu.dot_dimension_numbers<[1], [0], [0], [1], [0, 0, 1, 1], [], []>} : vector<4x256xf32>, vector<256x320xf32>, vector<4x320xf32> -> vector<4x320xf32>
    %c0_4 = arith.constant 0 : index
    %c0_5 = arith.constant 0 : index
    %4 = vector.load %arg3[%c0_4, %c0_5] : memref<1x320xf32, #tpu.memory_space<vmem>>, vector<1x320xf32>
    %5 = vector.broadcast %4 : vector<1x320xf32> to vector<4x320xf32>
    %6 = arith.addf %3, %5 : vector<4x320xf32>
    %7 = vector.extract_strided_slice %6 {offsets = [0, 0], sizes = [4, 32], strides = [1, 1]} : vector<4x320xf32> to vector<4x32xf32>
    %8 = vector.extract_strided_slice %6 {offsets = [0, 32], sizes = [4, 32], strides = [1, 1]} : vector<4x320xf32> to vector<4x32xf32>
    %9 = vector.extract_strided_slice %6 {offsets = [0, 64], sizes = [4, 256], strides = [1, 1]} : vector<4x320xf32> to vector<4x256xf32>
    %cst_6 = arith.constant dense<0.000000e+00> : vector<4x4xf32>
    %10 = tpu.matmul %7, %8, %cst_6 {dimension_numbers = #tpu.dot_dimension_numbers<[1], [1], [0], [0], [0, 0, 1, 0], [], []>} : vector<4x32xf32>, vector<4x32xf32>, vector<4x4xf32> -> vector<4x4xf32>
    %cst_7 = arith.constant dense<0xFF800000> : vector<4xf32>
    %11 = vector.multi_reduction <maximumf>, %10, %cst_7 [1] : vector<4x4xf32> to vector<4xf32>
    %12 = vector.shape_cast %11 : vector<4xf32> to vector<4x1xf32>
    %13 = vector.broadcast %12 : vector<4x1xf32> to vector<4x4xf32>
    %14 = arith.subf %10, %13 : vector<4x4xf32>
    %15 = math.exp %14 : vector<4x4xf32>
    %cst_8 = arith.constant dense<0.000000e+00> : vector<4xf32>
    %16 = vector.multi_reduction <add>, %15, %cst_8 [1] : vector<4x4xf32> to vector<4xf32>
    %17 = vector.shape_cast %16 : vector<4xf32> to vector<4x1xf32>
    %18 = tpu.reciprocal %17 {approx = true} : vector<4x1xf32> -> vector<4x1xf32>
    %19 = vector.broadcast %18 : vector<4x1xf32> to vector<4x4xf32>
    %20 = arith.mulf %15, %19 : vector<4x4xf32>
    %cst_9 = arith.constant dense<0.000000e+00> : vector<4x256xf32>
    %21 = tpu.matmul %20, %9, %cst_9 {dimension_numbers = #tpu.dot_dimension_numbers<[1], [0], [0], [1], [0, 0, 1, 1], [], []>} : vector<4x4xf32>, vector<4x256xf32>, vector<4x256xf32> -> vector<4x256xf32>
    %c0_10 = arith.constant 0 : index
    %c0_11 = arith.constant 0 : index
    %22 = memref.load %arg4[%c0_10, %c0_11] : memref<1x1xf32, #tpu.memory_space<smem>>
    %23 = vector.broadcast %22 : f32 to vector<4x256xf32>
    %24 = arith.mulf %23, %21 : vector<4x256xf32>
    %25 = arith.addf %24, %1 : vector<4x256xf32>
    %c0_12 = arith.constant 0 : index
    %c0_13 = arith.constant 0 : index
    %c0_14 = arith.constant 0 : index
    %26 = vector.load %arg5[%c0_12, %c0_13, %c0_14] : memref<1x4x256xf32, #tpu.memory_space<vmem>>, vector<1x4x256xf32>
    %27 = vector.shape_cast %26 : vector<1x4x256xf32> to vector<4x256xf32>
    %28 = vector.shape_cast %25 : vector<4x256xf32> to vector<1x4x256xf32>
    tpu.vector_store %arg5[%c0_12, %c0_13, %c0_14], %28 {strides = array<i32>} : memref<1x4x256xf32, #tpu.memory_space<vmem>>, vector<1x4x256xf32>,
    return
  }
  func.func @transform_0(%arg0: i32) -> (i32, i32, i32) {
    %c0_i32 = arith.constant 0 : i32
    %c0_i32_0 = arith.constant 0 : i32
    %c0_i32_1 = arith.constant 0 : i32
    return %arg0, %c0_i32, %c0_i32_0 : i32, i32, i32
  }
  func.func @transform_1(%arg0: i32) -> (i32, i32) {
    %c0_i32 = arith.constant 0 : i32
    %c0_i32_0 = arith.constant 0 : i32
    %c0_i32_1 = arith.constant 0 : i32
    return %c0_i32, %c0_i32_0 : i32, i32
  }
  func.func @transform_2(%arg0: i32) -> (i32, i32) {
    %c0_i32 = arith.constant 0 : i32
    %c0_i32_0 = arith.constant 0 : i32
    %c0_i32_1 = arith.constant 0 : i32
    return %c0_i32, %c0_i32_0 : i32, i32
  }
  func.func @transform_3(%arg0: i32) -> (i32, i32) {
    %c0_i32 = arith.constant 0 : i32
    %c0_i32_0 = arith.constant 0 : i32
    %c0_i32_1 = arith.constant 0 : i32
    return %c0_i32, %c0_i32_0 : i32, i32
  }
  func.func @transform_4(%arg0: i32) -> (i32, i32, i32) {
    %c0_i32 = arith.constant 0 : i32
    %c0_i32_0 = arith.constant 0 : i32
    %c0_i32_1 = arith.constant 0 : i32
    return %arg0, %c0_i32, %c0_i32_0 : i32, i32, i32
  }
}

module attributes {stable_mosaic.version = 11 : i64} {
  func.func @_matmul_shift_act_kernel(%arg0: i32, %arg1: i32, %arg2: i32, %arg3: i32, %arg4: memref<1x16x512xbf16, #tpu.memory_space<vmem>>, %arg5: memref<1x512x256xbf16, #tpu.memory_space<vmem>>, %arg6: memref<1x1x256xf32, #tpu.memory_space<vmem>>, %arg7: memref<1x16x256xf32, #tpu.memory_space<vmem>>, %arg8: memref<16x256xf32, #tpu.memory_space<vmem>>) attributes {dimension_semantics = [#tpu.dimension_semantics<parallel>, #tpu.dimension_semantics<parallel>, #tpu.dimension_semantics<parallel>, #tpu.dimension_semantics<arbitrary>], iteration_bounds = array<i64: 1, 1, 1, 8>, scalar_prefetch = 0 : i64, scratch_operands = 1 : i64, tpu.core_type = #tpu.core_type<tc>, window_params = [{transform_indices = @transform_0, window_bounds = array<i64: 1, 16, 512>}, {transform_indices = @transform_1, window_bounds = array<i64: 1, 512, 256>}, {transform_indices = @transform_2, window_bounds = array<i64: 1, 1, 256>}, {transform_indices = @transform_3, window_bounds = array<i64: 1, 16, 256>}]} {
    %c0_i32 = arith.constant 0 : i32
    %0 = arith.cmpi eq, %arg3, %c0_i32 : i32
    %1 = arith.extui %0 : i1 to i32
    %c0_i32_0 = arith.constant 0 : i32
    %2 = arith.cmpi ne, %1, %c0_i32_0 : i32
    scf.if %2 {
      %cst_11 = arith.constant 0.000000e+00 : f32
      %14 = vector.broadcast %cst_11 : f32 to vector<16x256xf32>
      %c0_12 = arith.constant 0 : index
      %c0_13 = arith.constant 0 : index
      %15 = vector.load %arg8[%c0_12, %c0_13] : memref<16x256xf32, #tpu.memory_space<vmem>>, vector<16x256xf32>
      tpu.vector_store %arg8[%c0_12, %c0_13], %14 {strides = array<i32>} : memref<16x256xf32, #tpu.memory_space<vmem>>, vector<16x256xf32>,
    } else {
    }
    %c0 = arith.constant 0 : index
    %c0_1 = arith.constant 0 : index
    %3 = vector.load %arg8[%c0, %c0_1] : memref<16x256xf32, #tpu.memory_space<vmem>>, vector<16x256xf32>
    %c0_2 = arith.constant 0 : index
    %c0_3 = arith.constant 0 : index
    %c0_4 = arith.constant 0 : index
    %4 = vector.load %arg4[%c0_2, %c0_3, %c0_4] : memref<1x16x512xbf16, #tpu.memory_space<vmem>>, vector<1x16x512xbf16>
    %5 = vector.shape_cast %4 : vector<1x16x512xbf16> to vector<16x512xbf16>
    %c0_5 = arith.constant 0 : index
    %c0_6 = arith.constant 0 : index
    %c0_7 = arith.constant 0 : index
    %6 = vector.load %arg5[%c0_5, %c0_6, %c0_7] : memref<1x512x256xbf16, #tpu.memory_space<vmem>>, vector<1x512x256xbf16>
    %7 = vector.shape_cast %6 : vector<1x512x256xbf16> to vector<512x256xbf16>
    %cst = arith.constant dense<0.000000e+00> : vector<16x256xf32>
    %8 = tpu.matmul %5, %7, %cst {dimension_numbers = #tpu.dot_dimension_numbers<[1], [0], [0], [1], [0, 0, 1, 1], [], []>} : vector<16x512xbf16>, vector<512x256xbf16>, vector<16x256xf32> -> vector<16x256xf32>
    %9 = arith.addf %3, %8 : vector<16x256xf32>
    %c0_8 = arith.constant 0 : index
    %c0_9 = arith.constant 0 : index
    %10 = vector.load %arg8[%c0_8, %c0_9] : memref<16x256xf32, #tpu.memory_space<vmem>>, vector<16x256xf32>
    tpu.vector_store %arg8[%c0_8, %c0_9], %9 {strides = array<i32>} : memref<16x256xf32, #tpu.memory_space<vmem>>, vector<16x256xf32>,
    %c7_i32 = arith.constant 7 : i32
    %11 = arith.cmpi eq, %arg3, %c7_i32 : i32
    %12 = arith.extui %11 : i1 to i32
    %c0_i32_10 = arith.constant 0 : i32
    %13 = arith.cmpi ne, %12, %c0_i32_10 : i32
    scf.if %13 {
      %c0_11 = arith.constant 0 : index
      %c0_12 = arith.constant 0 : index
      %14 = vector.load %arg8[%c0_11, %c0_12] : memref<16x256xf32, #tpu.memory_space<vmem>>, vector<16x256xf32>
      %c0_13 = arith.constant 0 : index
      %c0_14 = arith.constant 0 : index
      %c0_15 = arith.constant 0 : index
      %15 = vector.load %arg6[%c0_13, %c0_14, %c0_15] : memref<1x1x256xf32, #tpu.memory_space<vmem>>, vector<1x1x256xf32>
      %16 = vector.shape_cast %15 : vector<1x1x256xf32> to vector<1x256xf32>
      %17 = vector.broadcast %16 : vector<1x256xf32> to vector<16x256xf32>
      %18 = arith.addf %14, %17 : vector<16x256xf32>
      %cst_16 = arith.constant 0.000000e+00 : f32
      %19 = vector.broadcast %cst_16 : f32 to vector<16x256xf32>
      %20 = arith.cmpf oge, %18, %19 : vector<16x256xf32>
      %cst_17 = arith.constant 2.000000e-01 : f32
      %21 = vector.broadcast %cst_17 : f32 to vector<16x256xf32>
      %22 = arith.mulf %21, %18 : vector<16x256xf32>
      %23 = arith.select %20, %18, %22 : vector<16x256xi1>, vector<16x256xf32>
      %c0_18 = arith.constant 0 : index
      %c0_19 = arith.constant 0 : index
      %c0_20 = arith.constant 0 : index
      %24 = vector.load %arg7[%c0_18, %c0_19, %c0_20] : memref<1x16x256xf32, #tpu.memory_space<vmem>>, vector<1x16x256xf32>
      %25 = vector.shape_cast %24 : vector<1x16x256xf32> to vector<16x256xf32>
      %26 = vector.shape_cast %23 : vector<16x256xf32> to vector<1x16x256xf32>
      tpu.vector_store %arg7[%c0_18, %c0_19, %c0_20], %26 {strides = array<i32>} : memref<1x16x256xf32, #tpu.memory_space<vmem>>, vector<1x16x256xf32>,
    } else {
    }
    return
  }
  func.func @transform_0(%arg0: i32, %arg1: i32, %arg2: i32, %arg3: i32) -> (i32, i32, i32) {
    %c0_i32 = arith.constant 0 : i32
    return %arg0, %arg1, %arg3 : i32, i32, i32
  }
  func.func @transform_1(%arg0: i32, %arg1: i32, %arg2: i32, %arg3: i32) -> (i32, i32, i32) {
    %c0_i32 = arith.constant 0 : i32
    return %arg0, %arg3, %arg2 : i32, i32, i32
  }
  func.func @transform_2(%arg0: i32, %arg1: i32, %arg2: i32, %arg3: i32) -> (i32, i32, i32) {
    %c0_i32 = arith.constant 0 : i32
    %c0_i32_0 = arith.constant 0 : i32
    return %arg0, %c0_i32, %arg2 : i32, i32, i32
  }
  func.func @transform_3(%arg0: i32, %arg1: i32, %arg2: i32, %arg3: i32) -> (i32, i32, i32) {
    %c0_i32 = arith.constant 0 : i32
    return %arg0, %arg1, %arg2 : i32, i32, i32
  }
}

module attributes {stable_mosaic.version = 11 : i64} {
  func.func @_matmul_shift_act_kernel(%arg0: i32, %arg1: i32, %arg2: i32, %arg3: i32, %arg4: memref<1x16x512xbf16, #tpu.memory_space<vmem>>, %arg5: memref<1x512x256xbf16, #tpu.memory_space<vmem>>, %arg6: memref<1x1x256xf32, #tpu.memory_space<vmem>>, %arg7: memref<1x16x256xf32, #tpu.memory_space<vmem>>, %arg8: memref<16x256xf32, #tpu.memory_space<vmem>>) attributes {dimension_semantics = [#tpu.dimension_semantics<parallel>, #tpu.dimension_semantics<parallel>, #tpu.dimension_semantics<parallel>, #tpu.dimension_semantics<arbitrary>], iteration_bounds = array<i64: 4, 1, 1, 2>, scalar_prefetch = 0 : i64, scratch_operands = 1 : i64, tpu.core_type = #tpu.core_type<tc>, window_params = [{transform_indices = @transform_0, window_bounds = array<i64: 1, 16, 512>}, {transform_indices = @transform_1, window_bounds = array<i64: 1, 512, 256>}, {transform_indices = @transform_2, window_bounds = array<i64: 1, 1, 256>}, {transform_indices = @transform_3, window_bounds = array<i64: 1, 16, 256>}]} {
    %c0_i32 = arith.constant 0 : i32
    %0 = arith.cmpi eq, %arg3, %c0_i32 : i32
    %1 = arith.extui %0 : i1 to i32
    %c0_i32_0 = arith.constant 0 : i32
    %2 = arith.cmpi ne, %1, %c0_i32_0 : i32
    scf.if %2 {
      %cst_11 = arith.constant 0.000000e+00 : f32
      %14 = vector.broadcast %cst_11 : f32 to vector<16x256xf32>
      %c0_12 = arith.constant 0 : index
      %c0_13 = arith.constant 0 : index
      %15 = vector.load %arg8[%c0_12, %c0_13] : memref<16x256xf32, #tpu.memory_space<vmem>>, vector<16x256xf32>
      tpu.vector_store %arg8[%c0_12, %c0_13], %14 {strides = array<i32>} : memref<16x256xf32, #tpu.memory_space<vmem>>, vector<16x256xf32>,
    } else {
    }
    %c0 = arith.constant 0 : index
    %c0_1 = arith.constant 0 : index
    %3 = vector.load %arg8[%c0, %c0_1] : memref<16x256xf32, #tpu.memory_space<vmem>>, vector<16x256xf32>
    %c0_2 = arith.constant 0 : index
    %c0_3 = arith.constant 0 : index
    %c0_4 = arith.constant 0 : index
    %4 = vector.load %arg4[%c0_2, %c0_3, %c0_4] : memref<1x16x512xbf16, #tpu.memory_space<vmem>>, vector<1x16x512xbf16>
    %5 = vector.shape_cast %4 : vector<1x16x512xbf16> to vector<16x512xbf16>
    %c0_5 = arith.constant 0 : index
    %c0_6 = arith.constant 0 : index
    %c0_7 = arith.constant 0 : index
    %6 = vector.load %arg5[%c0_5, %c0_6, %c0_7] : memref<1x512x256xbf16, #tpu.memory_space<vmem>>, vector<1x512x256xbf16>
    %7 = vector.shape_cast %6 : vector<1x512x256xbf16> to vector<512x256xbf16>
    %cst = arith.constant dense<0.000000e+00> : vector<16x256xf32>
    %8 = tpu.matmul %5, %7, %cst {dimension_numbers = #tpu.dot_dimension_numbers<[1], [0], [0], [1], [0, 0, 1, 1], [], []>} : vector<16x512xbf16>, vector<512x256xbf16>, vector<16x256xf32> -> vector<16x256xf32>
    %9 = arith.addf %3, %8 : vector<16x256xf32>
    %c0_8 = arith.constant 0 : index
    %c0_9 = arith.constant 0 : index
    %10 = vector.load %arg8[%c0_8, %c0_9] : memref<16x256xf32, #tpu.memory_space<vmem>>, vector<16x256xf32>
    tpu.vector_store %arg8[%c0_8, %c0_9], %9 {strides = array<i32>} : memref<16x256xf32, #tpu.memory_space<vmem>>, vector<16x256xf32>,
    %c1_i32 = arith.constant 1 : i32
    %11 = arith.cmpi eq, %arg3, %c1_i32 : i32
    %12 = arith.extui %11 : i1 to i32
    %c0_i32_10 = arith.constant 0 : i32
    %13 = arith.cmpi ne, %12, %c0_i32_10 : i32
    scf.if %13 {
      %c0_11 = arith.constant 0 : index
      %c0_12 = arith.constant 0 : index
      %14 = vector.load %arg8[%c0_11, %c0_12] : memref<16x256xf32, #tpu.memory_space<vmem>>, vector<16x256xf32>
      %c0_13 = arith.constant 0 : index
      %c0_14 = arith.constant 0 : index
      %c0_15 = arith.constant 0 : index
      %15 = vector.load %arg6[%c0_13, %c0_14, %c0_15] : memref<1x1x256xf32, #tpu.memory_space<vmem>>, vector<1x1x256xf32>
      %16 = vector.shape_cast %15 : vector<1x1x256xf32> to vector<1x256xf32>
      %17 = vector.broadcast %16 : vector<1x256xf32> to vector<16x256xf32>
      %18 = arith.addf %14, %17 : vector<16x256xf32>
      %cst_16 = arith.constant 0.000000e+00 : f32
      %19 = vector.broadcast %cst_16 : f32 to vector<16x256xf32>
      %20 = arith.maximumf %18, %19 : vector<16x256xf32>
      %c0_17 = arith.constant 0 : index
      %c0_18 = arith.constant 0 : index
      %c0_19 = arith.constant 0 : index
      %21 = vector.load %arg7[%c0_17, %c0_18, %c0_19] : memref<1x16x256xf32, #tpu.memory_space<vmem>>, vector<1x16x256xf32>
      %22 = vector.shape_cast %21 : vector<1x16x256xf32> to vector<16x256xf32>
      %23 = vector.shape_cast %20 : vector<16x256xf32> to vector<1x16x256xf32>
      tpu.vector_store %arg7[%c0_17, %c0_18, %c0_19], %23 {strides = array<i32>} : memref<1x16x256xf32, #tpu.memory_space<vmem>>, vector<1x16x256xf32>,
    } else {
    }
    return
  }
  func.func @transform_0(%arg0: i32, %arg1: i32, %arg2: i32, %arg3: i32) -> (i32, i32, i32) {
    %c0_i32 = arith.constant 0 : i32
    return %arg0, %arg1, %arg3 : i32, i32, i32
  }
  func.func @transform_1(%arg0: i32, %arg1: i32, %arg2: i32, %arg3: i32) -> (i32, i32, i32) {
    %c0_i32 = arith.constant 0 : i32
    return %arg0, %arg3, %arg2 : i32, i32, i32
  }
  func.func @transform_2(%arg0: i32, %arg1: i32, %arg2: i32, %arg3: i32) -> (i32, i32, i32) {
    %c0_i32 = arith.constant 0 : i32
    %c0_i32_0 = arith.constant 0 : i32
    return %arg0, %c0_i32, %arg2 : i32, i32, i32
  }
  func.func @transform_3(%arg0: i32, %arg1: i32, %arg2: i32, %arg3: i32) -> (i32, i32, i32) {
    %c0_i32 = arith.constant 0 : i32
    return %arg0, %arg1, %arg2 : i32, i32, i32
  }
}

module attributes {stable_mosaic.version = 11 : i64} {
  func.func @_matmul_shift_act_kernel(%arg0: i32, %arg1: i32, %arg2: i32, %arg3: i32, %arg4: memref<1x16x512xbf16, #tpu.memory_space<vmem>>, %arg5: memref<1x512x128xbf16, #tpu.memory_space<vmem>>, %arg6: memref<1x1x128xf32, #tpu.memory_space<vmem>>, %arg7: memref<1x16x128xf32, #tpu.memory_space<vmem>>, %arg8: memref<16x128xf32, #tpu.memory_space<vmem>>) attributes {dimension_semantics = [#tpu.dimension_semantics<parallel>, #tpu.dimension_semantics<parallel>, #tpu.dimension_semantics<parallel>, #tpu.dimension_semantics<arbitrary>], iteration_bounds = array<i64: 4, 1, 1, 2>, scalar_prefetch = 0 : i64, scratch_operands = 1 : i64, tpu.core_type = #tpu.core_type<tc>, window_params = [{transform_indices = @transform_0, window_bounds = array<i64: 1, 16, 512>}, {transform_indices = @transform_1, window_bounds = array<i64: 1, 512, 128>}, {transform_indices = @transform_2, window_bounds = array<i64: 1, 1, 128>}, {transform_indices = @transform_3, window_bounds = array<i64: 1, 16, 128>}]} {
    %c0_i32 = arith.constant 0 : i32
    %0 = arith.cmpi eq, %arg3, %c0_i32 : i32
    %1 = arith.extui %0 : i1 to i32
    %c0_i32_0 = arith.constant 0 : i32
    %2 = arith.cmpi ne, %1, %c0_i32_0 : i32
    scf.if %2 {
      %cst_11 = arith.constant 0.000000e+00 : f32
      %14 = vector.broadcast %cst_11 : f32 to vector<16x128xf32>
      %c0_12 = arith.constant 0 : index
      %c0_13 = arith.constant 0 : index
      %15 = vector.load %arg8[%c0_12, %c0_13] : memref<16x128xf32, #tpu.memory_space<vmem>>, vector<16x128xf32>
      tpu.vector_store %arg8[%c0_12, %c0_13], %14 {strides = array<i32>} : memref<16x128xf32, #tpu.memory_space<vmem>>, vector<16x128xf32>,
    } else {
    }
    %c0 = arith.constant 0 : index
    %c0_1 = arith.constant 0 : index
    %3 = vector.load %arg8[%c0, %c0_1] : memref<16x128xf32, #tpu.memory_space<vmem>>, vector<16x128xf32>
    %c0_2 = arith.constant 0 : index
    %c0_3 = arith.constant 0 : index
    %c0_4 = arith.constant 0 : index
    %4 = vector.load %arg4[%c0_2, %c0_3, %c0_4] : memref<1x16x512xbf16, #tpu.memory_space<vmem>>, vector<1x16x512xbf16>
    %5 = vector.shape_cast %4 : vector<1x16x512xbf16> to vector<16x512xbf16>
    %c0_5 = arith.constant 0 : index
    %c0_6 = arith.constant 0 : index
    %c0_7 = arith.constant 0 : index
    %6 = vector.load %arg5[%c0_5, %c0_6, %c0_7] : memref<1x512x128xbf16, #tpu.memory_space<vmem>>, vector<1x512x128xbf16>
    %7 = vector.shape_cast %6 : vector<1x512x128xbf16> to vector<512x128xbf16>
    %cst = arith.constant dense<0.000000e+00> : vector<16x128xf32>
    %8 = tpu.matmul %5, %7, %cst {dimension_numbers = #tpu.dot_dimension_numbers<[1], [0], [0], [1], [0, 0, 1, 1], [], []>} : vector<16x512xbf16>, vector<512x128xbf16>, vector<16x128xf32> -> vector<16x128xf32>
    %9 = arith.addf %3, %8 : vector<16x128xf32>
    %c0_8 = arith.constant 0 : index
    %c0_9 = arith.constant 0 : index
    %10 = vector.load %arg8[%c0_8, %c0_9] : memref<16x128xf32, #tpu.memory_space<vmem>>, vector<16x128xf32>
    tpu.vector_store %arg8[%c0_8, %c0_9], %9 {strides = array<i32>} : memref<16x128xf32, #tpu.memory_space<vmem>>, vector<16x128xf32>,
    %c1_i32 = arith.constant 1 : i32
    %11 = arith.cmpi eq, %arg3, %c1_i32 : i32
    %12 = arith.extui %11 : i1 to i32
    %c0_i32_10 = arith.constant 0 : i32
    %13 = arith.cmpi ne, %12, %c0_i32_10 : i32
    scf.if %13 {
      %c0_11 = arith.constant 0 : index
      %c0_12 = arith.constant 0 : index
      %14 = vector.load %arg8[%c0_11, %c0_12] : memref<16x128xf32, #tpu.memory_space<vmem>>, vector<16x128xf32>
      %c0_13 = arith.constant 0 : index
      %c0_14 = arith.constant 0 : index
      %c0_15 = arith.constant 0 : index
      %15 = vector.load %arg6[%c0_13, %c0_14, %c0_15] : memref<1x1x128xf32, #tpu.memory_space<vmem>>, vector<1x1x128xf32>
      %16 = vector.shape_cast %15 : vector<1x1x128xf32> to vector<1x128xf32>
      %17 = vector.broadcast %16 : vector<1x128xf32> to vector<16x128xf32>
      %18 = arith.addf %14, %17 : vector<16x128xf32>
      %cst_16 = arith.constant 0.000000e+00 : f32
      %19 = vector.broadcast %cst_16 : f32 to vector<16x128xf32>
      %20 = arith.maximumf %18, %19 : vector<16x128xf32>
      %c0_17 = arith.constant 0 : index
      %c0_18 = arith.constant 0 : index
      %c0_19 = arith.constant 0 : index
      %21 = vector.load %arg7[%c0_17, %c0_18, %c0_19] : memref<1x16x128xf32, #tpu.memory_space<vmem>>, vector<1x16x128xf32>
      %22 = vector.shape_cast %21 : vector<1x16x128xf32> to vector<16x128xf32>
      %23 = vector.shape_cast %20 : vector<16x128xf32> to vector<1x16x128xf32>
      tpu.vector_store %arg7[%c0_17, %c0_18, %c0_19], %23 {strides = array<i32>} : memref<1x16x128xf32, #tpu.memory_space<vmem>>, vector<1x16x128xf32>,
    } else {
    }
    return
  }
  func.func @transform_0(%arg0: i32, %arg1: i32, %arg2: i32, %arg3: i32) -> (i32, i32, i32) {
    %c0_i32 = arith.constant 0 : i32
    return %arg0, %arg1, %arg3 : i32, i32, i32
  }
  func.func @transform_1(%arg0: i32, %arg1: i32, %arg2: i32, %arg3: i32) -> (i32, i32, i32) {
    %c0_i32 = arith.constant 0 : i32
    return %arg0, %arg3, %arg2 : i32, i32, i32
  }
  func.func @transform_2(%arg0: i32, %arg1: i32, %arg2: i32, %arg3: i32) -> (i32, i32, i32) {
    %c0_i32 = arith.constant 0 : i32
    %c0_i32_0 = arith.constant 0 : i32
    return %arg0, %c0_i32, %arg2 : i32, i32, i32
  }
  func.func @transform_3(%arg0: i32, %arg1: i32, %arg2: i32, %arg3: i32) -> (i32, i32, i32) {
    %c0_i32 = arith.constant 0 : i32
    return %arg0, %arg1, %arg2 : i32, i32, i32
  }
}

module attributes {stable_mosaic.version = 11 : i64} {
  func.func @_matmul_shift_act_kernel(%arg0: i32, %arg1: i32, %arg2: i32, %arg3: i32, %arg4: memref<1x32x512xbf16, #tpu.memory_space<vmem>>, %arg5: memref<1x512x128xbf16, #tpu.memory_space<vmem>>, %arg6: memref<1x1x128xf32, #tpu.memory_space<vmem>>, %arg7: memref<1x32x128xf32, #tpu.memory_space<vmem>>, %arg8: memref<32x128xf32, #tpu.memory_space<vmem>>) attributes {dimension_semantics = [#tpu.dimension_semantics<parallel>, #tpu.dimension_semantics<parallel>, #tpu.dimension_semantics<parallel>, #tpu.dimension_semantics<arbitrary>], iteration_bounds = array<i64: 4, 1, 1, 1>, scalar_prefetch = 0 : i64, scratch_operands = 1 : i64, tpu.core_type = #tpu.core_type<tc>, window_params = [{transform_indices = @transform_0, window_bounds = array<i64: 1, 32, 512>}, {transform_indices = @transform_1, window_bounds = array<i64: 1, 512, 128>}, {transform_indices = @transform_2, window_bounds = array<i64: 1, 1, 128>}, {transform_indices = @transform_3, window_bounds = array<i64: 1, 32, 128>}]} {
    %c0_i32 = arith.constant 0 : i32
    %0 = arith.cmpi eq, %arg3, %c0_i32 : i32
    %1 = arith.extui %0 : i1 to i32
    %c0_i32_0 = arith.constant 0 : i32
    %2 = arith.cmpi ne, %1, %c0_i32_0 : i32
    scf.if %2 {
      %cst_12 = arith.constant 0.000000e+00 : f32
      %14 = vector.broadcast %cst_12 : f32 to vector<32x128xf32>
      %c0_13 = arith.constant 0 : index
      %c0_14 = arith.constant 0 : index
      %15 = vector.load %arg8[%c0_13, %c0_14] : memref<32x128xf32, #tpu.memory_space<vmem>>, vector<32x128xf32>
      tpu.vector_store %arg8[%c0_13, %c0_14], %14 {strides = array<i32>} : memref<32x128xf32, #tpu.memory_space<vmem>>, vector<32x128xf32>,
    } else {
    }
    %c0 = arith.constant 0 : index
    %c0_1 = arith.constant 0 : index
    %3 = vector.load %arg8[%c0, %c0_1] : memref<32x128xf32, #tpu.memory_space<vmem>>, vector<32x128xf32>
    %c0_2 = arith.constant 0 : index
    %c0_3 = arith.constant 0 : index
    %c0_4 = arith.constant 0 : index
    %4 = vector.load %arg4[%c0_2, %c0_3, %c0_4] : memref<1x32x512xbf16, #tpu.memory_space<vmem>>, vector<1x32x512xbf16>
    %5 = vector.shape_cast %4 : vector<1x32x512xbf16> to vector<32x512xbf16>
    %c0_5 = arith.constant 0 : index
    %c0_6 = arith.constant 0 : index
    %c0_7 = arith.constant 0 : index
    %6 = vector.load %arg5[%c0_5, %c0_6, %c0_7] : memref<1x512x128xbf16, #tpu.memory_space<vmem>>, vector<1x512x128xbf16>
    %7 = vector.shape_cast %6 : vector<1x512x128xbf16> to vector<512x128xbf16>
    %cst = arith.constant dense<0.000000e+00> : vector<32x128xf32>
    %8 = tpu.matmul %5, %7, %cst {dimension_numbers = #tpu.dot_dimension_numbers<[1], [0], [0], [1], [0, 0, 1, 1], [], []>} : vector<32x512xbf16>, vector<512x128xbf16>, vector<32x128xf32> -> vector<32x128xf32>
    %9 = arith.addf %3, %8 : vector<32x128xf32>
    %c0_8 = arith.constant 0 : index
    %c0_9 = arith.constant 0 : index
    %10 = vector.load %arg8[%c0_8, %c0_9] : memref<32x128xf32, #tpu.memory_space<vmem>>, vector<32x128xf32>
    tpu.vector_store %arg8[%c0_8, %c0_9], %9 {strides = array<i32>} : memref<32x128xf32, #tpu.memory_space<vmem>>, vector<32x128xf32>,
    %c0_i32_10 = arith.constant 0 : i32
    %11 = arith.cmpi eq, %arg3, %c0_i32_10 : i32
    %12 = arith.extui %11 : i1 to i32
    %c0_i32_11 = arith.constant 0 : i32
    %13 = arith.cmpi ne, %12, %c0_i32_11 : i32
    scf.if %13 {
      %c0_12 = arith.constant 0 : index
      %c0_13 = arith.constant 0 : index
      %14 = vector.load %arg8[%c0_12, %c0_13] : memref<32x128xf32, #tpu.memory_space<vmem>>, vector<32x128xf32>
      %c0_14 = arith.constant 0 : index
      %c0_15 = arith.constant 0 : index
      %c0_16 = arith.constant 0 : index
      %15 = vector.load %arg6[%c0_14, %c0_15, %c0_16] : memref<1x1x128xf32, #tpu.memory_space<vmem>>, vector<1x1x128xf32>
      %16 = vector.shape_cast %15 : vector<1x1x128xf32> to vector<1x128xf32>
      %17 = vector.broadcast %16 : vector<1x128xf32> to vector<32x128xf32>
      %18 = arith.addf %14, %17 : vector<32x128xf32>
      %cst_17 = arith.constant 0.000000e+00 : f32
      %19 = vector.broadcast %cst_17 : f32 to vector<32x128xf32>
      %20 = arith.maximumf %18, %19 : vector<32x128xf32>
      %c0_18 = arith.constant 0 : index
      %c0_19 = arith.constant 0 : index
      %c0_20 = arith.constant 0 : index
      %21 = vector.load %arg7[%c0_18, %c0_19, %c0_20] : memref<1x32x128xf32, #tpu.memory_space<vmem>>, vector<1x32x128xf32>
      %22 = vector.shape_cast %21 : vector<1x32x128xf32> to vector<32x128xf32>
      %23 = vector.shape_cast %20 : vector<32x128xf32> to vector<1x32x128xf32>
      tpu.vector_store %arg7[%c0_18, %c0_19, %c0_20], %23 {strides = array<i32>} : memref<1x32x128xf32, #tpu.memory_space<vmem>>, vector<1x32x128xf32>,
    } else {
    }
    return
  }
  func.func @transform_0(%arg0: i32, %arg1: i32, %arg2: i32, %arg3: i32) -> (i32, i32, i32) {
    %c0_i32 = arith.constant 0 : i32
    return %arg0, %arg1, %arg3 : i32, i32, i32
  }
  func.func @transform_1(%arg0: i32, %arg1: i32, %arg2: i32, %arg3: i32) -> (i32, i32, i32) {
    %c0_i32 = arith.constant 0 : i32
    return %arg0, %arg3, %arg2 : i32, i32, i32
  }
  func.func @transform_2(%arg0: i32, %arg1: i32, %arg2: i32, %arg3: i32) -> (i32, i32, i32) {
    %c0_i32 = arith.constant 0 : i32
    %c0_i32_0 = arith.constant 0 : i32
    return %arg0, %c0_i32, %arg2 : i32, i32, i32
  }
  func.func @transform_3(%arg0: i32, %arg1: i32, %arg2: i32, %arg3: i32) -> (i32, i32, i32) {
    %c0_i32 = arith.constant 0 : i32
    return %arg0, %arg1, %arg2 : i32, i32, i32
  }
}

module attributes {stable_mosaic.version = 11 : i64} {
  func.func @_matmul_shift_act_kernel(%arg0: i32, %arg1: i32, %arg2: i32, %arg3: i32, %arg4: memref<1x128x256xbf16, #tpu.memory_space<vmem>>, %arg5: memref<1x256x128xbf16, #tpu.memory_space<vmem>>, %arg6: memref<1x1x128xf32, #tpu.memory_space<vmem>>, %arg7: memref<1x128x128xf32, #tpu.memory_space<vmem>>, %arg8: memref<128x128xf32, #tpu.memory_space<vmem>>) attributes {dimension_semantics = [#tpu.dimension_semantics<parallel>, #tpu.dimension_semantics<parallel>, #tpu.dimension_semantics<parallel>, #tpu.dimension_semantics<arbitrary>], iteration_bounds = array<i64: 4, 1, 1, 1>, scalar_prefetch = 0 : i64, scratch_operands = 1 : i64, tpu.core_type = #tpu.core_type<tc>, window_params = [{transform_indices = @transform_0, window_bounds = array<i64: 1, 128, 256>}, {transform_indices = @transform_1, window_bounds = array<i64: 1, 256, 128>}, {transform_indices = @transform_2, window_bounds = array<i64: 1, 1, 128>}, {transform_indices = @transform_3, window_bounds = array<i64: 1, 128, 128>}]} {
    %c0_i32 = arith.constant 0 : i32
    %0 = arith.cmpi eq, %arg3, %c0_i32 : i32
    %1 = arith.extui %0 : i1 to i32
    %c0_i32_0 = arith.constant 0 : i32
    %2 = arith.cmpi ne, %1, %c0_i32_0 : i32
    scf.if %2 {
      %cst_12 = arith.constant 0.000000e+00 : f32
      %14 = vector.broadcast %cst_12 : f32 to vector<128x128xf32>
      %c0_13 = arith.constant 0 : index
      %c0_14 = arith.constant 0 : index
      %15 = vector.load %arg8[%c0_13, %c0_14] : memref<128x128xf32, #tpu.memory_space<vmem>>, vector<128x128xf32>
      tpu.vector_store %arg8[%c0_13, %c0_14], %14 {strides = array<i32>} : memref<128x128xf32, #tpu.memory_space<vmem>>, vector<128x128xf32>,
    } else {
    }
    %c0 = arith.constant 0 : index
    %c0_1 = arith.constant 0 : index
    %3 = vector.load %arg8[%c0, %c0_1] : memref<128x128xf32, #tpu.memory_space<vmem>>, vector<128x128xf32>
    %c0_2 = arith.constant 0 : index
    %c0_3 = arith.constant 0 : index
    %c0_4 = arith.constant 0 : index
    %4 = vector.load %arg4[%c0_2, %c0_3, %c0_4] : memref<1x128x256xbf16, #tpu.memory_space<vmem>>, vector<1x128x256xbf16>
    %5 = vector.shape_cast %4 : vector<1x128x256xbf16> to vector<128x256xbf16>
    %c0_5 = arith.constant 0 : index
    %c0_6 = arith.constant 0 : index
    %c0_7 = arith.constant 0 : index
    %6 = vector.load %arg5[%c0_5, %c0_6, %c0_7] : memref<1x256x128xbf16, #tpu.memory_space<vmem>>, vector<1x256x128xbf16>
    %7 = vector.shape_cast %6 : vector<1x256x128xbf16> to vector<256x128xbf16>
    %cst = arith.constant dense<0.000000e+00> : vector<128x128xf32>
    %8 = tpu.matmul %5, %7, %cst {dimension_numbers = #tpu.dot_dimension_numbers<[1], [0], [0], [1], [0, 0, 1, 1], [], []>} : vector<128x256xbf16>, vector<256x128xbf16>, vector<128x128xf32> -> vector<128x128xf32>
    %9 = arith.addf %3, %8 : vector<128x128xf32>
    %c0_8 = arith.constant 0 : index
    %c0_9 = arith.constant 0 : index
    %10 = vector.load %arg8[%c0_8, %c0_9] : memref<128x128xf32, #tpu.memory_space<vmem>>, vector<128x128xf32>
    tpu.vector_store %arg8[%c0_8, %c0_9], %9 {strides = array<i32>} : memref<128x128xf32, #tpu.memory_space<vmem>>, vector<128x128xf32>,
    %c0_i32_10 = arith.constant 0 : i32
    %11 = arith.cmpi eq, %arg3, %c0_i32_10 : i32
    %12 = arith.extui %11 : i1 to i32
    %c0_i32_11 = arith.constant 0 : i32
    %13 = arith.cmpi ne, %12, %c0_i32_11 : i32
    scf.if %13 {
      %c0_12 = arith.constant 0 : index
      %c0_13 = arith.constant 0 : index
      %14 = vector.load %arg8[%c0_12, %c0_13] : memref<128x128xf32, #tpu.memory_space<vmem>>, vector<128x128xf32>
      %c0_14 = arith.constant 0 : index
      %c0_15 = arith.constant 0 : index
      %c0_16 = arith.constant 0 : index
      %15 = vector.load %arg6[%c0_14, %c0_15, %c0_16] : memref<1x1x128xf32, #tpu.memory_space<vmem>>, vector<1x1x128xf32>
      %16 = vector.shape_cast %15 : vector<1x1x128xf32> to vector<1x128xf32>
      %17 = vector.broadcast %16 : vector<1x128xf32> to vector<128x128xf32>
      %18 = arith.addf %14, %17 : vector<128x128xf32>
      %19 = math.tanh %18 : vector<128x128xf32>
      %c0_17 = arith.constant 0 : index
      %c0_18 = arith.constant 0 : index
      %c0_19 = arith.constant 0 : index
      %20 = vector.load %arg7[%c0_17, %c0_18, %c0_19] : memref<1x128x128xf32, #tpu.memory_space<vmem>>, vector<1x128x128xf32>
      %21 = vector.shape_cast %20 : vector<1x128x128xf32> to vector<128x128xf32>
      %22 = vector.shape_cast %19 : vector<128x128xf32> to vector<1x128x128xf32>
      tpu.vector_store %arg7[%c0_17, %c0_18, %c0_19], %22 {strides = array<i32>} : memref<1x128x128xf32, #tpu.memory_space<vmem>>, vector<1x128x128xf32>,
    } else {
    }
    return
  }
  func.func @transform_0(%arg0: i32, %arg1: i32, %arg2: i32, %arg3: i32) -> (i32, i32, i32) {
    %c0_i32 = arith.constant 0 : i32
    return %arg0, %arg1, %arg3 : i32, i32, i32
  }
  func.func @transform_1(%arg0: i32, %arg1: i32, %arg2: i32, %arg3: i32) -> (i32, i32, i32) {
    %c0_i32 = arith.constant 0 : i32
    return %arg0, %arg3, %arg2 : i32, i32, i32
  }
  func.func @transform_2(%arg0: i32, %arg1: i32, %arg2: i32, %arg3: i32) -> (i32, i32, i32) {
    %c0_i32 = arith.constant 0 : i32
    %c0_i32_0 = arith.constant 0 : i32
    return %arg0, %c0_i32, %arg2 : i32, i32, i32
  }
  func.func @transform_3(%arg0: i32, %arg1: i32, %arg2: i32, %arg3: i32) -> (i32, i32, i32) {
    %c0_i32 = arith.constant 0 : i32
    return %arg0, %arg1, %arg2 : i32, i32, i32
  }
}

</mosaic_0001>

<llo_original>
// kernel: generator_forward.11
$region0: #{generator_forward.11}
  #allocation0 [shape = 'u32[]', space=smem, size = 0x4, offset = 0x4, fixed_abs, tag = 'smem constant byte address 0x4 - core index']
  #allocation1 [shape = 'u32[144,128]{1,0:T(1,128)}', space=vmem, size = 0x12000, scoped, tag = 'internal scratch']
  #allocation2 [shape = 'f32[1,1]{1,0:T(1,128)S(6)}', space=smem, size = 0x200, scoped, tag = 'scoped memory for generator_forward.11']
  %s0 = inlined_call_operand.vmem [shape: f32[2,64,64], index: 0, kind: input, shape index: {}]
  %s1 = inlined_call_operand.vmem [shape: f32[64,80], index: 1, kind: input, shape index: {}]
  %s2 = inlined_call_operand.vmem [shape: f32[1,80], index: 2, kind: input, shape index: {}]
  %s3 = inlined_call_operand.<no memory space> [shape: f32[1,1], index: 3, kind: input, shape index: {}]
  %s4 = inlined_call_operand.vmem [shape: f32[2,64,64], index: 4, kind: output, shape index: {}]
  %s5 = sld [smem:[#allocation0]]
  $region49: #{generator_forward.11} parent=0
    _
  %s7 = ssub.s32 1, %s5
  %s8 = scalar_select 0, %s7, %s5
  %9 = sst [smem:[#allocation2]] %s3
  loop: start=0, step=1, limit=4
  $region2: #{generator_forward.11} parent=0 // loop_pre_header
    _
  $region3: #{generator_forward.11} parent=0 // loop_header
    %s11 = sphi 0, %s15
    %p12 = scmp.ge.s32.totalorder %s11, 4
    %s21 = sphi 0, %s23
    %s24 = sphi 0, %s21
    %s25 = sphi 0, %s24
    %s41 = sphi 0, %s25
    %s45 = sphi 0, %s45
    %s47 = sphi 0, %s45
    %s48 = sphi 0, %s47
    %s62 = sphi 0, %s48
    %s66 = sphi 0, %s66
    %s68 = sphi 0, %s66
    %s69 = sphi 0, %s68
    %s83 = sphi 0, %s69
    %s87 = sphi 0, %s87
    %s89 = sphi 0, %s87
    %s90 = sphi 0, %s89
    %s104 = sphi 0, %s90
    %s110 = sphi 0, %s112
    %s113 = sphi 0, %s110
    %s114 = sphi 0, %s113
    %s130 = sphi 0, %s114
  $region4: #{generator_forward.11} parent=0 // loop_header_branch
    %14 = sbr.rel (%p12) target = $region8
  $region5: #{generator_forward.11} parent=0 // loop_body
    %s16 = ssub.s32 %s11, 1
    %s17 = ssub.s32 %s11, 2
    %s18 = sadd.s32 %s11, 1
    %s19 = ssub.s32 %s11, %s18
    %p20 = scmp.eq.s32.totalorder %s19, 0
    %s22 = sadd.s32 %s21, 1
    %s23 = scalar_select %p20, %s21, %s22
    %p26 = pneg %p20
    %p27 = scmp.eq.s32.totalorder %s11, 1
    %p28 = por %p26, %p27
    %p29 = scmp.ne.s32.totalorder %s21, %s24
    %p30 = scmp.eq.s32.totalorder %s11, 0
    %p31 = por %p29, %p30
    %p32 = scmp.ne.s32.totalorder %s21, %s24
    %p33 = scmp.eq.s32.totalorder %s16, 1
    %p34 = por %p32, %p33
    %p35 = scmp.ne.s32.totalorder %s24, %s25
    %p36 = scmp.eq.s32.totalorder %s16, 0
    %p37 = por %p35, %p36
    %p38 = scmp.ne.s32.totalorder %s24, %s25
    %p39 = scmp.eq.s32.totalorder %s17, 1
    %p40 = por %p38, %p39
    %p42 = scmp.ne.s32.totalorder %s25, %s41
    %p43 = scmp.eq.s32.totalorder %s17, 0
    %p44 = por %p42, %p43
    %s46 = sadd.s32 %s45, 1
    %p49 = scmp.eq.s32.totalorder %s11, 1
    %p50 = scmp.ne.s32.totalorder %s45, %s47
    %p51 = scmp.eq.s32.totalorder %s11, 0
    %p52 = por %p50, %p51
    %p53 = scmp.ne.s32.totalorder %s45, %s47
    %p54 = scmp.eq.s32.totalorder %s16, 1
    %p55 = por %p53, %p54
    %p56 = scmp.ne.s32.totalorder %s47, %s48
    %p57 = scmp.eq.s32.totalorder %s16, 0
    %p58 = por %p56, %p57
    %p59 = scmp.ne.s32.totalorder %s47, %s48
    %p60 = scmp.eq.s32.totalorder %s17, 1
    %p61 = por %p59, %p60
    %p63 = scmp.ne.s32.totalorder %s48, %s62
    %p64 = scmp.eq.s32.totalorder %s17, 0
    %p65 = por %p63, %p64
    %s67 = sadd.s32 %s66, 1
    %p70 = scmp.eq.s32.totalorder %s11, 1
    %p71 = scmp.ne.s32.totalorder %s66, %s68
    %p72 = scmp.eq.s32.totalorder %s11, 0
    %p73 = por %p71, %p72
    %p74 = scmp.ne.s32.totalorder %s66, %s68
    %p75 = scmp.eq.s32.totalorder %s16, 1
    %p76 = por %p74, %p75
    %p77 = scmp.ne.s32.totalorder %s68, %s69
    %p78 = scmp.eq.s32.totalorder %s16, 0
    %p79 = por %p77, %p78
    %p80 = scmp.ne.s32.totalorder %s68, %s69
    %p81 = scmp.eq.s32.totalorder %s17, 1
    %p82 = por %p80, %p81
    %p84 = scmp.ne.s32.totalorder %s69, %s83
    %p85 = scmp.eq.s32.totalorder %s17, 0
    %p86 = por %p84, %p85
    %s88 = sadd.s32 %s87, 1
    %p91 = scmp.eq.s32.totalorder %s11, 1
    %p92 = scmp.ne.s32.totalorder %s87, %s89
    %p93 = scmp.eq.s32.totalorder %s11, 0
    %p94 = por %p92, %p93
    %p95 = scmp.ne.s32.totalorder %s87, %s89
    %p96 = scmp.eq.s32.totalorder %s16, 1
    %p97 = por %p95, %p96
    %p98 = scmp.ne.s32.totalorder %s89, %s90
    %p99 = scmp.eq.s32.totalorder %s16, 0
    %p100 = por %p98, %p99
    %p101 = scmp.ne.s32.totalorder %s89, %s90
    %p102 = scmp.eq.s32.totalorder %s17, 1
    %p103 = por %p101, %p102
    %p105 = scmp.ne.s32.totalorder %s90, %s104
    %p106 = scmp.eq.s32.totalorder %s17, 0
    %p107 = por %p105, %p106
    %s108 = ssub.s32 %s11, %s18
    %p109 = scmp.eq.s32.totalorder %s108, 0
    %s111 = sadd.s32 %s110, 1
    %s112 = scalar_select %p109, %s110, %s111
    %p115 = pneg %p109
    %p116 = scmp.eq.s32.totalorder %s11, 1
    %p117 = por %p115, %p116
    %p118 = scmp.ne.s32.totalorder %s110, %s113
    %p119 = scmp.eq.s32.totalorder %s11, 0
    %p120 = por %p118, %p119
    %p121 = scmp.ne.s32.totalorder %s110, %s113
    %p122 = scmp.eq.s32.totalorder %s16, 1
    %p123 = por %p121, %p122
    %p124 = scmp.ne.s32.totalorder %s113, %s114
    %p125 = scmp.eq.s32.totalorder %s16, 0
    %p126 = por %p124, %p125
    %p127 = scmp.ne.s32.totalorder %s113, %s114
    %p128 = scmp.eq.s32.totalorder %s17, 1
    %p129 = por %p127, %p128
    %p131 = scmp.ne.s32.totalorder %s114, %s130
    %p132 = scmp.eq.s32.totalorder %s17, 0
    %p133 = por %p131, %p132
    %p134 = scmp.le.s32.totalorder 1, %s11
    %p135 = scmp.lt.s32.totalorder %s11, 3
    %p136 = pnand %p134, %p135
    %p137 = pneg %p136
    // Predicated region
    $region9: #{generator_forward.11} parent=5 // pred_check
      _
    $region10: #{generator_forward.11} parent=5 // pred_check_branch
      %139 = sbr.rel (%p136) target = $region12
    $region11: #{generator_forward.11} parent=5 // pred_region
      %s140 = ssub.s32 %s11, 1
      // Predicated region
      $region13: #{generator_forward.11} parent=11 // pred_check
        %p141 = pneg %p58
      $region14: #{generator_forward.11} parent=11 // pred_check_branch
        %143 = sbr.rel (%p141) target = $region16
      $region15: #{generator_forward.11} parent=11 // pred_region
        _
      $region16: #{generator_forward.11} parent=11 // pred_fallthru
        _
      // Predicated region
      $region17: #{generator_forward.11} parent=11 // pred_check
        %p144 = pneg %p79
      $region18: #{generator_forward.11} parent=11 // pred_check_branch
        %146 = sbr.rel (%p144) target = $region20
      $region19: #{generator_forward.11} parent=11 // pred_region
        _
      $region20: #{generator_forward.11} parent=11 // pred_fallthru
        _
      // Predicated region
      $region21: #{generator_forward.11} parent=11 // pred_check
        %p147 = pneg %p100
      $region22: #{generator_forward.11} parent=11 // pred_check_branch
        %149 = sbr.rel (%p147) target = $region24
      $region23: #{generator_forward.11} parent=11 // pred_region
        _
      $region24: #{generator_forward.11} parent=11 // pred_fallthru
        _
    $region12: #{generator_forward.11} parent=5 // pred_fallthru
      _
    %p150 = scmp.lt.s32.totalorder %s11, 2
    // Predicated region
    $region25: #{generator_forward.11} parent=5 // pred_check
      %p151 = pneg %p150
    $region26: #{generator_forward.11} parent=5 // pred_check_branch
      %153 = sbr.rel (%p151) target = $region28
    $region27: #{generator_forward.11} parent=5 // pred_region
      // Predicated region
      $region29: #{generator_forward.11} parent=27 // pred_check
        %p154 = pneg %p31
      $region30: #{generator_forward.11} parent=27 // pred_check_branch
        %156 = sbr.rel (%p154) target = $region32
      $region31: #{generator_forward.11} parent=27 // pred_region
        %p157 = scmp.lt.s32.totalorder %s11, 1
        %s158 = scalar_select %p157, %s11, 1
        %s159 = smul.addr %s158, 8
        %s160 = smul.addr %s159, 8
        %s161 = scalar_lea.vmem %s0, %s160
      $region32: #{generator_forward.11} parent=27 // pred_fallthru
        _
    $region28: #{generator_forward.11} parent=5 // pred_fallthru
      _
    %p162 = scmp.le.s32.totalorder 1, %s11
    %p163 = scmp.lt.s32.totalorder %s11, 3
    %p164 = pnand %p162, %p163
    %p165 = pneg %p164
    // Predicated region
    $region33: #{generator_forward.11} parent=5 // pred_check
      _
    $region34: #{generator_forward.11} parent=5 // pred_check_branch
      %167 = sbr.rel (%p164) target = $region36
    $region35: #{generator_forward.11} parent=5 // pred_region
      %s168 = ssub.s32 %s11, 1
      %p169 = scmp.lt.s32.totalorder %s16, 1
      %s170 = scalar_select %p169, %s16, 1
      %s171 = smul.addr %s170, 8
      %s172 = smul.addr %s171, 8
      %s173 = scalar_lea.vmem %s0, %s172
      %p174 = pneg %p37
      %p175 = pneg %p34
      %p176 = pneg %p58
      %p177 = pneg %p55
      %p178 = pneg %p79
      %p179 = pneg %p76
      %p180 = pneg %p100
      %p181 = pneg %p97
      %p182 = pneg %p126
      %p183 = pneg %p123
      %p184 = scmp.lt.s32.totalorder %s16, 1
      %s185 = scalar_select %p184, %s16, 1
      %s186 = smul.addr %s185, 8
      %s187 = smul.addr %s186, 8
      %s188 = scalar_lea.vmem %s4, %s187
      %p189 = scmp.lt.s32.totalorder %s16, 1
      %s190 = scalar_select %p189, %s16, 1
      %s191 = smul.addr %s190, 8
      %s192 = smul.addr %s191, 8
      %s193 = scalar_lea.vmem %s0, %s192
      %p194 = scmp.lt.s32.totalorder %s16, 1
      %s195 = scalar_select %p194, %s16, 1
      %s196 = smul.addr %s195, 8
      %s197 = smul.addr %s196, 8
      %s198 = scalar_lea.vmem %s4, %s197
      %v199 = vld [vmem:[%s193] sm:$0xff]
      %v200 = vld [vmem:[%s193 + $0x8] sm:$0xff]
      %v201 = vld [vmem:[%s193 + $0x10] sm:$0xff]
      %v202 = vld [vmem:[%s193 + $0x18] sm:$0xff]
      %v203 = vld [vmem:[%s193 + $0x20] sm:$0xff]
      %v204 = vld [vmem:[%s193 + $0x28] sm:$0xff]
      %v205 = vld [vmem:[%s193 + $0x30] sm:$0xff]
      %v206 = vld [vmem:[%s193 + $0x38] sm:$0xff]
      %v207 = vld [vmem:[%s1] sm:$0xff]
      %v208 = vld [vmem:[%s1 + $0x8] sm:$0xff]
      %v209 = vld [vmem:[%s1 + $0x10] sm:$0xff]
      %v210 = vld [vmem:[%s1 + $0x18] sm:$0xff]
      %v211 = vld [vmem:[%s1 + $0x20] sm:$0xff]
      %v212 = vld [vmem:[%s1 + $0x28] sm:$0xff]
      %v213 = vld [vmem:[%s1 + $0x30] sm:$0xff]
      %v214 = vld [vmem:[%s1 + $0x38] sm:$0xff]
      %v215 = vld [vmem:[%s2] sm:$0x1]
      %v217 = vlaneseq
      %v218 = vshrl.u32 %v217, 7
      %v219 = vsub.s32 0, %v218
      %v220 = vrot.slane %v215, %v219
      %vm222 = vcmask 523264
      %v224 = vsel %vm222, %v199, 0
      %v227 = vsel %vm222, %v200, 0
      %v230 = vsel %vm222, %v201, 0
      %v233 = vsel %vm222, %v202, 0
      %v236 = vsel %vm222, %v203, 0
      %v239 = vsel %vm222, %v204, 0
      %v242 = vsel %vm222, %v205, 0
      %v245 = vsel %vm222, %v206, 0
      %247 = vmatprep.subr.mxu0 0.0
      %248 = vmatpush1.msra.mxu0 0.0
      %249 = vmatprep.subr.mxu0 0.0
      %250 = vmatpush1.msra.mxu0 0.0
      %251 = vmatprep.subr.mxu0 0.0
      %252 = vmatpush1.msra.mxu0 0.0
      %253 = vmatprep.subr.mxu0 0.0
      %254 = vmatpush1.msra.mxu0 0.0
      %255 = vmatprep.subr.mxu0 0.0
      %256 = vmatpush1.msra.mxu0 0.0
      %257 = vmatprep.subr.mxu0 0.0
      %258 = vmatpush1.msra.mxu0 0.0
      %259 = vmatprep.subr.mxu0 0.0
      %260 = vmatpush1.msra.mxu0 0.0
      %261 = vmatprep.subr.mxu0 0.0
      %262 = vmatpush1.msra.mxu0 0.0
      %263 = vmatprep.subr.mxu0 0.0
      %264 = vmatpush1.msra.mxu0 %v214
      %265 = vmatprep.subr.mxu0 0.0
      %266 = vmatpush1.msra.mxu0 %v213
      %267 = vmatprep.subr.mxu0 0.0
      %268 = vmatpush1.msra.mxu0 %v212
      %269 = vmatprep.subr.mxu0 0.0
      %270 = vmatpush1.msra.mxu0 %v211
      %271 = vmatprep.subr.mxu0 0.0
      %272 = vmatpush1.msra.mxu0 %v210
      %273 = vmatprep.subr.mxu0 0.0
      %274 = vmatpush1.msra.mxu0 %v209
      %275 = vmatprep.subr.mxu0 0.0
      %276 = vmatpush1.msra.mxu0 %v208
      %277 = vmatprep.subr.mxu0 0.0
      %278 = vmatpush1.msra.mxu0 %v207
      %279 = vmatprep.subr.mxu0 0.0
      %280 = vmatpush2.msra.mxu0 0.0
      %281 = vmatprep.subr.mxu0 0.0
      %282 = vmatpush2.msra.mxu0 0.0
      %283 = vmatprep.subr.mxu0 0.0
      %284 = vmatpush2.msra.mxu0 0.0
      %285 = vmatprep.subr.mxu0 0.0
      %286 = vmatpush2.msra.mxu0 0.0
      %287 = vmatprep.subr.mxu0 0.0
      %288 = vmatpush2.msra.mxu0 0.0
      %289 = vmatprep.subr.mxu0 0.0
      %290 = vmatpush2.msra.mxu0 0.0
      %291 = vmatprep.subr.mxu0 0.0
      %292 = vmatpush2.msra.mxu0 0.0
      %293 = vmatprep.subr.mxu0 0.0
      %294 = vmatpush2.msra.mxu0 0.0
      %295 = vmatprep.subr.mxu0 0.0
      %296 = vmatpush2.msra.mxu0 0.0
      %297 = vmatprep.subr.mxu0 0.0
      %298 = vmatpush2.msra.mxu0 0.0
      %299 = vmatprep.subr.mxu0 0.0
      %300 = vmatpush2.msra.mxu0 0.0
      %301 = vmatprep.subr.mxu0 0.0
      %302 = vmatpush2.msra.mxu0 0.0
      %303 = vmatprep.subr.mxu0 0.0
      %304 = vmatpush2.msra.mxu0 0.0
      %305 = vmatprep.subr.mxu0 0.0
      %306 = vmatpush2.msra.mxu0 0.0
      %307 = vmatprep.subr.mxu0 0.0
      %308 = vmatpush2.msra.mxu0 0.0
      %309 = vmatprep.subr.mxu0 0.0
      %310 = vmatpush2.msra.mxu0 0.0
      %311 = vmatprep.mubr.f32.mxu0 0.0
      %312 = vmatmul.mubr.f32.gmra.mxu0 %v224
      %v313 = vpop.f32.mrf.mxu0
      %v314 = vadd.f32 %v220, %v313
      %v315 = vpop.f32.mrf.mxu0
      %316 = vmatprep.mubr.f32.mxu0 0.0
      %317 = vmatmul.mubr.f32.gmra.mxu0 %v227
      %v318 = vpop.f32.mrf.mxu0
      %v319 = vadd.f32 %v220, %v318
      %v320 = vpop.f32.mrf.mxu0
      %321 = vmatprep.mubr.f32.mxu0 0.0
      %322 = vmatmul.mubr.f32.gmra.mxu0 %v230
      %v323 = vpop.f32.mrf.mxu0
      %v324 = vadd.f32 %v220, %v323
      %v325 = vpop.f32.mrf.mxu0
      %326 = vmatprep.mubr.f32.mxu0 0.0
      %327 = vmatmul.mubr.f32.gmra.mxu0 %v233
      %v328 = vpop.f32.mrf.mxu0
      %v329 = vadd.f32 %v220, %v328
      %v330 = vpop.f32.mrf.mxu0
      %331 = vmatprep.mubr.f32.mxu0 0.0
      %332 = vmatmul.mubr.f32.gmra.mxu0 %v236
      %v333 = vpop.f32.mrf.mxu0
      %v334 = vadd.f32 %v220, %v333
      %v335 = vpop.f32.mrf.mxu0
      %336 = vmatprep.mubr.f32.mxu0 0.0
      %337 = vmatmul.mubr.f32.gmra.mxu0 %v239
      %v338 = vpop.f32.mrf.mxu0
      %v339 = vadd.f32 %v220, %v338
      %v340 = vpop.f32.mrf.mxu0
      %341 = vmatprep.mubr.f32.mxu0 0.0
      %342 = vmatmul.mubr.f32.gmra.mxu0 %v242
      %v343 = vpop.f32.mrf.mxu0
      %v344 = vadd.f32 %v220, %v343
      %v345 = vpop.f32.mrf.mxu0
      %346 = vmatprep.mubr.f32.mxu0 0.0
      %347 = vmatmul.mubr.f32.gmra.mxu0 %v245
      %v348 = vpop.f32.mrf.mxu0
      %v349 = vadd.f32 %v220, %v348
      %v350 = vpop.f32.mrf.mxu0
      %351 = vdwg.mxu0
      %360 = vrot.lane.b32.xlu0 %v314, 120
      %v361 = vpop.permute.xlu0 %360
      %362 = vrot.lane.b32.xlu0 %v319, 120
      %v363 = vpop.permute.xlu0 %362
      %364 = vrot.lane.b32.xlu0 %v324, 120
      %v365 = vpop.permute.xlu0 %364
      %366 = vrot.lane.b32.xlu0 %v329, 120
      %v367 = vpop.permute.xlu0 %366
      %368 = vrot.lane.b32.xlu0 %v334, 120
      %v369 = vpop.permute.xlu0 %368
      %370 = vrot.lane.b32.xlu0 %v339, 120
      %v371 = vpop.permute.xlu0 %370
      %372 = vrot.lane.b32.xlu0 %v344, 120
      %v373 = vpop.permute.xlu0 %372
      %374 = vrot.lane.b32.xlu0 %v349, 120
      %v375 = vpop.permute.xlu0 %374
      %vm376 = vcmask 64512
      %v377 = vsel %vm376, %v314, 0
      %v379 = vsel %vm376, %v319, 0
      %v381 = vsel %vm376, %v324, 0
      %v383 = vsel %vm376, %v329, 0
      %v385 = vsel %vm376, %v334, 0
      %v387 = vsel %vm376, %v339, 0
      %v389 = vsel %vm376, %v344, 0
      %v391 = vsel %vm376, %v349, 0
      %v393 = vsel %vm376, %v361, 0
      %v395 = vsel %vm376, %v363, 0
      %v397 = vsel %vm376, %v365, 0
      %v399 = vsel %vm376, %v367, 0
      %v401 = vsel %vm376, %v369, 0
      %v403 = vsel %vm376, %v371, 0
      %v405 = vsel %vm376, %v373, 0
      %v407 = vsel %vm376, %v375, 0
      %409 = vmatprep.subr.mxu0 0.0
      %410 = vmatpush1.xpose.msra.mxu0 0.0
      %411 = vmatprep.subr.mxu0 0.0
      %412 = vmatpush1.xpose.msra.mxu0 0.0
      %413 = vmatprep.subr.mxu0 0.0
      %414 = vmatpush1.xpose.msra.mxu0 0.0
      %415 = vmatprep.subr.mxu0 0.0
      %416 = vmatpush1.xpose.msra.mxu0 0.0
      %417 = vmatprep.subr.mxu0 0.0
      %418 = vmatpush1.xpose.msra.mxu0 0.0
      %419 = vmatprep.subr.mxu0 0.0
      %420 = vmatpush1.xpose.msra.mxu0 0.0
      %421 = vmatprep.subr.mxu0 0.0
      %422 = vmatpush1.xpose.msra.mxu0 0.0
      %423 = vmatprep.subr.mxu0 0.0
      %424 = vmatpush1.xpose.msra.mxu0 0.0
      %425 = vmatprep.subr.mxu0 0.0
      %426 = vmatpush1.xpose.msra.mxu0 %v407
      %427 = vmatprep.subr.mxu0 0.0
      %428 = vmatpush1.xpose.msra.mxu0 %v405
      %429 = vmatprep.subr.mxu0 0.0
      %430 = vmatpush1.xpose.msra.mxu0 %v403
      %431 = vmatprep.subr.mxu0 0.0
      %432 = vmatpush1.xpose.msra.mxu0 %v401
      %433 = vmatprep.subr.mxu0 0.0
      %434 = vmatpush1.xpose.msra.mxu0 %v399
      %435 = vmatprep.subr.mxu0 0.0
      %436 = vmatpush1.xpose.msra.mxu0 %v397
      %437 = vmatprep.subr.mxu0 0.0
      %438 = vmatpush1.xpose.msra.mxu0 %v395
      %439 = vmatprep.subr.mxu0 0.0
      %440 = vmatpush1.xpose.msra.mxu0 %v393
      %441 = vmatprep.subr.mxu0 0.0
      %442 = vmatpush2.xpose.msra.mxu0 0.0
      %443 = vmatprep.subr.mxu0 0.0
      %444 = vmatpush2.xpose.msra.mxu0 0.0
      %445 = vmatprep.subr.mxu0 0.0
      %446 = vmatpush2.xpose.msra.mxu0 0.0
      %447 = vmatprep.subr.mxu0 0.0
      %448 = vmatpush2.xpose.msra.mxu0 0.0
      %449 = vmatprep.subr.mxu0 0.0
      %450 = vmatpush2.xpose.msra.mxu0 0.0
      %451 = vmatprep.subr.mxu0 0.0
      %452 = vmatpush2.xpose.msra.mxu0 0.0
      %453 = vmatprep.subr.mxu0 0.0
      %454 = vmatpush2.xpose.msra.mxu0 0.0
      %455 = vmatprep.subr.mxu0 0.0
      %456 = vmatpush2.xpose.msra.mxu0 0.0
      %457 = vmatprep.subr.mxu0 0.0
      %458 = vmatpush2.xpose.msra.mxu0 0.0
      %459 = vmatprep.subr.mxu0 0.0
      %460 = vmatpush2.xpose.msra.mxu0 0.0
      %461 = vmatprep.subr.mxu0 0.0
      %462 = vmatpush2.xpose.msra.mxu0 0.0
      %463 = vmatprep.subr.mxu0 0.0
      %464 = vmatpush2.xpose.msra.mxu0 0.0
      %465 = vmatprep.subr.mxu0 0.0
      %466 = vmatpush2.xpose.msra.mxu0 0.0
      %467 = vmatprep.subr.mxu0 0.0
      %468 = vmatpush2.xpose.msra.mxu0 0.0
      %469 = vmatprep.subr.mxu0 0.0
      %470 = vmatpush2.xpose.msra.mxu0 0.0
      %471 = vmatprep.subr.mxu0 0.0
      %472 = vmatpush2.xpose.msra.mxu0 0.0
      %473 = vmatprep.mubr.f32.mxu0 0.0
      %474 = vmatmul.mubr.f32.gmra.mxu0 %v377
      %v475 = vpop.f32.mrf.mxu0
      %v476 = vadd.f32 0.0, %v475
      %v477 = vpop.f32.mrf.mxu0
      %478 = vmatprep.mubr.f32.mxu0 0.0
      %479 = vmatmul.mubr.f32.gmra.mxu0 %v379
      %v480 = vpop.f32.mrf.mxu0
      %v481 = vadd.f32 0.0, %v480
      %v482 = vpop.f32.mrf.mxu0
      %483 = vmatprep.mubr.f32.mxu0 0.0
      %484 = vmatmul.mubr.f32.gmra.mxu0 %v381
      %v485 = vpop.f32.mrf.mxu0
      %v486 = vadd.f32 0.0, %v485
      %v487 = vpop.f32.mrf.mxu0
      %488 = vmatprep.mubr.f32.mxu0 0.0
      %489 = vmatmul.mubr.f32.gmra.mxu0 %v383
      %v490 = vpop.f32.mrf.mxu0
      %v491 = vadd.f32 0.0, %v490
      %v492 = vpop.f32.mrf.mxu0
      %493 = vmatprep.mubr.f32.mxu0 0.0
      %494 = vmatmul.mubr.f32.gmra.mxu0 %v385
      %v495 = vpop.f32.mrf.mxu0
      %v496 = vadd.f32 0.0, %v495
      %v497 = vpop.f32.mrf.mxu0
      %498 = vmatprep.mubr.f32.mxu0 0.0
      %499 = vmatmul.mubr.f32.gmra.mxu0 %v387
      %v500 = vpop.f32.mrf.mxu0
      %v501 = vadd.f32 0.0, %v500
      %v502 = vpop.f32.mrf.mxu0
      %503 = vmatprep.mubr.f32.mxu0 0.0
      %504 = vmatmul.mubr.f32.gmra.mxu0 %v389
      %v505 = vpop.f32.mrf.mxu0
      %v506 = vadd.f32 0.0, %v505
      %v507 = vpop.f32.mrf.mxu0
      %508 = vmatprep.mubr.f32.mxu0 0.0
      %509 = vmatmul.mubr.f32.gmra.mxu0 %v391
      %v510 = vpop.f32.mrf.mxu0
      %v511 = vadd.f32 0.0, %v510
      %v512 = vpop.f32.mrf.mxu0
      %513 = vdwg.mxu0
      %v514 = vsel %vm222, %v476, -inf
      %515 = vmax.xlane.f32.xlu0 %v514
      %v516 = vpop.xlane.xlu0 %515
      %v517 = vsel %vm222, %v481, -inf
      %518 = vmax.xlane.f32.xlu0 %v517
      %v519 = vpop.xlane.xlu0 %518
      %v520 = vsel %vm222, %v486, -inf
      %521 = vmax.xlane.f32.xlu0 %v520
      %v522 = vpop.xlane.xlu0 %521
      %v523 = vsel %vm222, %v491, -inf
      %524 = vmax.xlane.f32.xlu0 %v523
      %v525 = vpop.xlane.xlu0 %524
      %v526 = vsel %vm222, %v496, -inf
      %527 = vmax.xlane.f32.xlu0 %v526
      %v528 = vpop.xlane.xlu0 %527
      %v529 = vsel %vm222, %v501, -inf
      %530 = vmax.xlane.f32.xlu0 %v529
      %v531 = vpop.xlane.xlu0 %530
      %v532 = vsel %vm222, %v506, -inf
      %533 = vmax.xlane.f32.xlu0 %v532
      %v534 = vpop.xlane.xlu0 %533
      %v535 = vsel %vm222, %v511, -inf
      %536 = vmax.xlane.f32.xlu0 %v535
      %v537 = vpop.xlane.xlu0 %536
      %v538 = vsub.f32 %v476, %v516
      %v539 = vsub.f32 %v481, %v519
      %v540 = vsub.f32 %v486, %v522
      %v541 = vsub.f32 %v491, %v525
      %v542 = vsub.f32 %v496, %v528
      %v543 = vsub.f32 %v501, %v531
      %v544 = vsub.f32 %v506, %v534
      %v545 = vsub.f32 %v511, %v537
      %v546 = vmul.f32 %v538, 1.442695
      %v547 = vpow.pop %v546
      %v548 = vmul.f32 %v539, 1.442695
      %v549 = vpow.pop %v548
      %v550 = vmul.f32 %v540, 1.442695
      %v551 = vpow.pop %v550
      %v552 = vmul.f32 %v541, 1.442695
      %v553 = vpow.pop %v552
      %v554 = vmul.f32 %v542, 1.442695
      %v555 = vpow.pop %v554
      %v556 = vmul.f32 %v543, 1.442695
      %v557 = vpow.pop %v556
      %v558 = vmul.f32 %v544, 1.442695
      %v559 = vpow.pop %v558
      %v560 = vmul.f32 %v545, 1.442695
      %v561 = vpow.pop %v560
      %v562 = vsel %vm222, %v547, 0.0
      %563 = vadd.xlane.f32.xlu0 %v562
      %v564 = vpop.xlane.xlu0 %563
      %v565 = vsel %vm222, %v549, 0.0
      %566 = vadd.xlane.f32.xlu0 %v565
      %v567 = vpop.xlane.xlu0 %566
      %v568 = vsel %vm222, %v551, 0.0
      %569 = vadd.xlane.f32.xlu0 %v568
      %v570 = vpop.xlane.xlu0 %569
      %v571 = vsel %vm222, %v553, 0.0
      %572 = vadd.xlane.f32.xlu0 %v571
      %v573 = vpop.xlane.xlu0 %572
      %v574 = vsel %vm222, %v555, 0.0
      %575 = vadd.xlane.f32.xlu0 %v574
      %v576 = vpop.xlane.xlu0 %575
      %v577 = vsel %vm222, %v557, 0.0
      %578 = vadd.xlane.f32.xlu0 %v577
      %v579 = vpop.xlane.xlu0 %578
      %v580 = vsel %vm222, %v559, 0.0
      %581 = vadd.xlane.f32.xlu0 %v580
      %v582 = vpop.xlane.xlu0 %581
      %v583 = vsel %vm222, %v561, 0.0
      %584 = vadd.xlane.f32.xlu0 %v583
      %v585 = vpop.xlane.xlu0 %584
      %v586 = vrcp.pop %v564
      %v587 = vrcp.pop %v567
      %v588 = vrcp.pop %v570
      %v589 = vrcp.pop %v573
      %v590 = vrcp.pop %v576
      %v591 = vrcp.pop %v579
      %v592 = vrcp.pop %v582
      %v593 = vrcp.pop %v585
      %v594 = vmul.f32 %v547, %v586
      %v595 = vmul.f32 %v549, %v587
      %v596 = vmul.f32 %v551, %v588
      %v597 = vmul.f32 %v553, %v589
      %v598 = vmul.f32 %v555, %v590
      %v599 = vmul.f32 %v557, %v591
      %v600 = vmul.f32 %v559, %v592
      %v601 = vmul.f32 %v561, %v593
      %602 = vrot.lane.b32.xlu0 %v314, 112
      %v603 = vpop.permute.xlu0 %602
      %604 = vrot.lane.b32.xlu0 %v319, 112
      %v605 = vpop.permute.xlu0 %604
      %606 = vrot.lane.b32.xlu0 %v324, 112
      %v607 = vpop.permute.xlu0 %606
      %608 = vrot.lane.b32.xlu0 %v329, 112
      %v609 = vpop.permute.xlu0 %608
      %610 = vrot.lane.b32.xlu0 %v334, 112
      %v611 = vpop.permute.xlu0 %610
      %612 = vrot.lane.b32.xlu0 %v339, 112
      %v613 = vpop.permute.xlu0 %612
      %614 = vrot.lane.b32.xlu0 %v344, 112
      %v615 = vpop.permute.xlu0 %614
      %616 = vrot.lane.b32.xlu0 %v349, 112
      %v617 = vpop.permute.xlu0 %616
      %v627 = vsel %vm222, %v594, 0
      %v630 = vsel %vm222, %v595, 0
      %v633 = vsel %vm222, %v596, 0
      %v636 = vsel %vm222, %v597, 0
      %v639 = vsel %vm222, %v598, 0
      %v642 = vsel %vm222, %v599, 0
      %v645 = vsel %vm222, %v600, 0
      %v648 = vsel %vm222, %v601, 0
      %650 = vmatprep.subr.mxu0 0.0
      %651 = vmatpush1.msra.mxu0 0.0
      %652 = vmatprep.subr.mxu0 0.0
      %653 = vmatpush1.msra.mxu0 0.0
      %654 = vmatprep.subr.mxu0 0.0
      %655 = vmatpush1.msra.mxu0 0.0
      %656 = vmatprep.subr.mxu0 0.0
      %657 = vmatpush1.msra.mxu0 0.0
      %658 = vmatprep.subr.mxu0 0.0
      %659 = vmatpush1.msra.mxu0 0.0
      %660 = vmatprep.subr.mxu0 0.0
      %661 = vmatpush1.msra.mxu0 0.0
      %662 = vmatprep.subr.mxu0 0.0
      %663 = vmatpush1.msra.mxu0 0.0
      %664 = vmatprep.subr.mxu0 0.0
      %665 = vmatpush1.msra.mxu0 0.0
      %666 = vmatprep.subr.mxu0 0.0
      %667 = vmatpush1.msra.mxu0 %v617
      %668 = vmatprep.subr.mxu0 0.0
      %669 = vmatpush1.msra.mxu0 %v615
      %670 = vmatprep.subr.mxu0 0.0
      %671 = vmatpush1.msra.mxu0 %v613
      %672 = vmatprep.subr.mxu0 0.0
      %673 = vmatpush1.msra.mxu0 %v611
      %674 = vmatprep.subr.mxu0 0.0
      %675 = vmatpush1.msra.mxu0 %v609
      %676 = vmatprep.subr.mxu0 0.0
      %677 = vmatpush1.msra.mxu0 %v607
      %678 = vmatprep.subr.mxu0 0.0
      %679 = vmatpush1.msra.mxu0 %v605
      %680 = vmatprep.subr.mxu0 0.0
      %681 = vmatpush1.msra.mxu0 %v603
      %682 = vmatprep.subr.mxu0 0.0
      %683 = vmatpush2.msra.mxu0 0.0
      %684 = vmatprep.subr.mxu0 0.0
      %685 = vmatpush2.msra.mxu0 0.0
      %686 = vmatprep.subr.mxu0 0.0
      %687 = vmatpush2.msra.mxu0 0.0
      %688 = vmatprep.subr.mxu0 0.0
      %689 = vmatpush2.msra.mxu0 0.0
      %690 = vmatprep.subr.mxu0 0.0
      %691 = vmatpush2.msra.mxu0 0.0
      %692 = vmatprep.subr.mxu0 0.0
      %693 = vmatpush2.msra.mxu0 0.0
      %694 = vmatprep.subr.mxu0 0.0
      %695 = vmatpush2.msra.mxu0 0.0
      %696 = vmatprep.subr.mxu0 0.0
      %697 = vmatpush2.msra.mxu0 0.0
      %698 = vmatprep.subr.mxu0 0.0
      %699 = vmatpush2.msra.mxu0 0.0
      %700 = vmatprep.subr.mxu0 0.0
      %701 = vmatpush2.msra.mxu0 0.0
      %702 = vmatprep.subr.mxu0 0.0
      %703 = vmatpush2.msra.mxu0 0.0
      %704 = vmatprep.subr.mxu0 0.0
      %705 = vmatpush2.msra.mxu0 0.0
      %706 = vmatprep.subr.mxu0 0.0
      %707 = vmatpush2.msra.mxu0 0.0
      %708 = vmatprep.subr.mxu0 0.0
      %709 = vmatpush2.msra.mxu0 0.0
      %710 = vmatprep.subr.mxu0 0.0
      %711 = vmatpush2.msra.mxu0 0.0
      %712 = vmatprep.subr.mxu0 0.0
      %713 = vmatpush2.msra.mxu0 0.0
      %714 = vmatprep.mubr.f32.mxu0 0.0
      %715 = vmatmul.mubr.f32.gmra.mxu0 %v627
      %v716 = vpop.f32.mrf.mxu0
      %v717 = vadd.f32 0.0, %v716
      %v718 = vpop.f32.mrf.mxu0
      %719 = vmatprep.mubr.f32.mxu0 0.0
      %720 = vmatmul.mubr.f32.gmra.mxu0 %v630
      %v721 = vpop.f32.mrf.mxu0
      %v722 = vadd.f32 0.0, %v721
      %v723 = vpop.f32.mrf.mxu0
      %724 = vmatprep.mubr.f32.mxu0 0.0
      %725 = vmatmul.mubr.f32.gmra.mxu0 %v633
      %v726 = vpop.f32.mrf.mxu0
      %v727 = vadd.f32 0.0, %v726
      %v728 = vpop.f32.mrf.mxu0
      %729 = vmatprep.mubr.f32.mxu0 0.0
      %730 = vmatmul.mubr.f32.gmra.mxu0 %v636
      %v731 = vpop.f32.mrf.mxu0
      %v732 = vadd.f32 0.0, %v731
      %v733 = vpop.f32.mrf.mxu0
      %734 = vmatprep.mubr.f32.mxu0 0.0
      %735 = vmatmul.mubr.f32.gmra.mxu0 %v639
      %v736 = vpop.f32.mrf.mxu0
      %v737 = vadd.f32 0.0, %v736
      %v738 = vpop.f32.mrf.mxu0
      %739 = vmatprep.mubr.f32.mxu0 0.0
      %740 = vmatmul.mubr.f32.gmra.mxu0 %v642
      %v741 = vpop.f32.mrf.mxu0
      %v742 = vadd.f32 0.0, %v741
      %v743 = vpop.f32.mrf.mxu0
      %744 = vmatprep.mubr.f32.mxu0 0.0
      %745 = vmatmul.mubr.f32.gmra.mxu0 %v645
      %v746 = vpop.f32.mrf.mxu0
      %v747 = vadd.f32 0.0, %v746
      %v748 = vpop.f32.mrf.mxu0
      %749 = vmatprep.mubr.f32.mxu0 0.0
      %750 = vmatmul.mubr.f32.gmra.mxu0 %v648
      %v751 = vpop.f32.mrf.mxu0
      %v752 = vadd.f32 0.0, %v751
      %v753 = vpop.f32.mrf.mxu0
      %754 = vdwg.mxu0
      %s755 = sld [smem:[#allocation2]]
      %v756 = vstv %s755
      %v757 = vmul.f32 %v756, %v717
      %v758 = vmul.f32 %v756, %v722
      %v759 = vmul.f32 %v756, %v727
      %v760 = vmul.f32 %v756, %v732
      %v761 = vmul.f32 %v756, %v737
      %v762 = vmul.f32 %v756, %v742
      %v763 = vmul.f32 %v756, %v747
      %v764 = vmul.f32 %v756, %v752
      %v765 = vadd.f32 %v757, %v199
      %v766 = vadd.f32 %v758, %v200
      %v767 = vadd.f32 %v759, %v201
      %v768 = vadd.f32 %v760, %v202
      %v769 = vadd.f32 %v761, %v203
      %v770 = vadd.f32 %v762, %v204
      %v771 = vadd.f32 %v763, %v205
      %v772 = vadd.f32 %v764, %v206
      %773 = vst.msk [vmem:[%s198] sm:$0xff] %vm222, %v765
      %774 = vst.msk [vmem:[%s198 + $0x8] sm:$0xff] %vm222, %v766
      %775 = vst.msk [vmem:[%s198 + $0x10] sm:$0xff] %vm222, %v767
      %776 = vst.msk [vmem:[%s198 + $0x18] sm:$0xff] %vm222, %v768
      %777 = vst.msk [vmem:[%s198 + $0x20] sm:$0xff] %vm222, %v769
      %778 = vst.msk [vmem:[%s198 + $0x28] sm:$0xff] %vm222, %v770
      %779 = vst.msk [vmem:[%s198 + $0x30] sm:$0xff] %vm222, %v771
      %780 = vst.msk [vmem:[%s198 + $0x38] sm:$0xff] %vm222, %v772
      %p781 = scmp.lt.s32.totalorder %s16, 1
      %s782 = scalar_select %p781, %s16, 1
      %s783 = smul.addr %s782, 8
      %s784 = smul.addr %s783, 8
      %s785 = scalar_lea.vmem %s4, %s784
      // Predicated region
      $region37: #{generator_forward.11} parent=35 // pred_check
        %p786 = pneg %p123
      $region38: #{generator_forward.11} parent=35 // pred_check_branch
        %788 = sbr.rel (%p786) target = $region40
      $region39: #{generator_forward.11} parent=35 // pred_region
        _
      $region40: #{generator_forward.11} parent=35 // pred_fallthru
        _
    $region36: #{generator_forward.11} parent=5 // pred_fallthru
      _
    %p789 = scmp.le.s32.totalorder 2, %s11
    // Predicated region
    $region41: #{generator_forward.11} parent=5 // pred_check
      %p790 = pneg %p789
    $region42: #{generator_forward.11} parent=5 // pred_check_branch
      %792 = sbr.rel (%p790) target = $region44
    $region43: #{generator_forward.11} parent=5 // pred_region
      %s793 = ssub.s32 %s11, 2
      // Predicated region
      $region45: #{generator_forward.11} parent=43 // pred_check
        %p794 = pneg %p129
      $region46: #{generator_forward.11} parent=43 // pred_check_branch
        %796 = sbr.rel (%p794) target = $region48
      $region47: #{generator_forward.11} parent=43 // pred_region
        %p797 = scmp.lt.s32.totalorder %s17, 1
        %s798 = scalar_select %p797, %s17, 1
        %s799 = smul.addr %s798, 8
        %s800 = smul.addr %s799, 8
        %s801 = scalar_lea.vmem %s4, %s800
      $region48: #{generator_forward.11} parent=43 // pred_fallthru
        _
    $region44: #{generator_forward.11} parent=5 // pred_fallthru
      _
  $region6: #{generator_forward.11} parent=0 // loop_footer
    %s15 = sadd.s32 1, %s11
  $region7: #{generator_forward.11} parent=0 // loop_footer_branch
    %10 = sbr.rel target = $region3
  $region8: #{generator_forward.11} parent=0 // loop_exit
    _

// kernel: generator_forward.10
$region0: #{generator_forward.10}
  #allocation0 [shape = 'u32[]', space=smem, size = 0x4, offset = 0x4, fixed_abs, tag = 'smem constant byte address 0x4 - core index']
  #allocation1 [shape = 'u32[144,128]{1,0:T(1,128)}', space=vmem, size = 0x12000, scoped, tag = 'internal scratch']
  #allocation2 [shape = 'f32[128,128]{1,0:T(8,128)}', space=vmem, size = 0x10000, scoped, tag = 'scratch operand']
  %s0 = inlined_call_operand.vmem [shape: bf16[1,128,128], index: 0, kind: input, shape index: {}]
  %s1 = inlined_call_operand.vmem [shape: bf16[1,128,128], index: 1, kind: input, shape index: {}]
  %s2 = inlined_call_operand.vmem [shape: f32[1,1,128], index: 2, kind: input, shape index: {}]
  %s3 = inlined_call_operand.vmem [shape: f32[1,128,128], index: 3, kind: output, shape index: {}]
  %s4 = sld [smem:[#allocation0]]
  $region30: #{generator_forward.10} parent=0
    _
  %s6 = ssub.s32 1, %s4
  %s7 = scalar_select 0, %s6, %s4
  // Predicated region
  $region2: #{generator_forward.10} parent=0 // pred_check
    _
  $region3: #{generator_forward.10} parent=0 // pred_check_branch
    %9 = sbr.rel (0) target = $region5
  $region4: #{generator_forward.10} parent=0 // pred_region
    _
  $region5: #{generator_forward.10} parent=0 // pred_fallthru
    _
  // Predicated region
  $region6: #{generator_forward.10} parent=0 // pred_check
    _
  $region7: #{generator_forward.10} parent=0 // pred_check_branch
    %11 = sbr.rel (0) target = $region9
  $region8: #{generator_forward.10} parent=0 // pred_region
    _
  $region9: #{generator_forward.10} parent=0 // pred_fallthru
    _
  // Predicated region
  $region10: #{generator_forward.10} parent=0 // pred_check
    _
  $region11: #{generator_forward.10} parent=0 // pred_check_branch
    %13 = sbr.rel (0) target = $region13
  $region12: #{generator_forward.10} parent=0 // pred_region
    _
  $region13: #{generator_forward.10} parent=0 // pred_fallthru
    _
  %p15 = scmp.eq.s32.totalorder 0, 0
  // Predicated region
  $region14: #{generator_forward.10} parent=0 // pred_check
    %p16 = pneg %p15
  $region15: #{generator_forward.10} parent=0 // pred_check_branch
    %18 = sbr.rel (%p16) target = $region17
  $region16: #{generator_forward.10} parent=0 // pred_region
    %19 = vst [vmem:[#allocation2] sm:$0xff] 0.0
    %20 = vst [vmem:[#allocation2 + $0x8] sm:$0xff] 0.0
    %21 = vst [vmem:[#allocation2 + $0x10] sm:$0xff] 0.0
    %22 = vst [vmem:[#allocation2 + $0x18] sm:$0xff] 0.0
    %23 = vst [vmem:[#allocation2 + $0x20] sm:$0xff] 0.0
    %24 = vst [vmem:[#allocation2 + $0x28] sm:$0xff] 0.0
    %25 = vst [vmem:[#allocation2 + $0x30] sm:$0xff] 0.0
    %26 = vst [vmem:[#allocation2 + $0x38] sm:$0xff] 0.0
    %27 = vst [vmem:[#allocation2 + $0x40] sm:$0xff] 0.0
    %28 = vst [vmem:[#allocation2 + $0x48] sm:$0xff] 0.0
    %29 = vst [vmem:[#allocation2 + $0x50] sm:$0xff] 0.0
    %30 = vst [vmem:[#allocation2 + $0x58] sm:$0xff] 0.0
    %31 = vst [vmem:[#allocation2 + $0x60] sm:$0xff] 0.0
    %32 = vst [vmem:[#allocation2 + $0x68] sm:$0xff] 0.0
    %33 = vst [vmem:[#allocation2 + $0x70] sm:$0xff] 0.0
    %34 = vst [vmem:[#allocation2 + $0x78] sm:$0xff] 0.0
  $region17: #{generator_forward.10} parent=0 // pred_fallthru
    _
  %v35 = vld [vmem:[#allocation2] sm:$0xff]
  %v36 = vld [vmem:[#allocation2 + $0x8] sm:$0xff]
  %v37 = vld [vmem:[#allocation2 + $0x10] sm:$0xff]
  %v38 = vld [vmem:[#allocation2 + $0x18] sm:$0xff]
  %v39 = vld [vmem:[#allocation2 + $0x20] sm:$0xff]
  %v40 = vld [vmem:[#allocation2 + $0x28] sm:$0xff]
  %v41 = vld [vmem:[#allocation2 + $0x30] sm:$0xff]
  %v42 = vld [vmem:[#allocation2 + $0x38] sm:$0xff]
  %v43 = vld [vmem:[#allocation2 + $0x40] sm:$0xff]
  %v44 = vld [vmem:[#allocation2 + $0x48] sm:$0xff]
  %v45 = vld [vmem:[#allocation2 + $0x50] sm:$0xff]
  %v46 = vld [vmem:[#allocation2 + $0x58] sm:$0xff]
  %v47 = vld [vmem:[#allocation2 + $0x60] sm:$0xff]
  %v48 = vld [vmem:[#allocation2 + $0x68] sm:$0xff]
  %v49 = vld [vmem:[#allocation2 + $0x70] sm:$0xff]
  %v50 = vld [vmem:[#allocation2 + $0x78] sm:$0xff]
  %v51 = vld [vmem:[%s0] sm:$0xf]
  %v52 = vld [vmem:[%s0 + $0x4] sm:$0xf]
  %v53 = vld [vmem:[%s0 + $0x8] sm:$0xf]
  %v54 = vld [vmem:[%s0 + $0xc] sm:$0xf]
  %v55 = vld [vmem:[%s0 + $0x10] sm:$0xf]
  %v56 = vld [vmem:[%s0 + $0x14] sm:$0xf]
  %v57 = vld [vmem:[%s0 + $0x18] sm:$0xf]
  %v58 = vld [vmem:[%s0 + $0x1c] sm:$0xf]
  %v59 = vld [vmem:[%s0 + $0x20] sm:$0xf]
  %v60 = vld [vmem:[%s0 + $0x24] sm:$0xf]
  %v61 = vld [vmem:[%s0 + $0x28] sm:$0xf]
  %v62 = vld [vmem:[%s0 + $0x2c] sm:$0xf]
  %v63 = vld [vmem:[%s0 + $0x30] sm:$0xf]
  %v64 = vld [vmem:[%s0 + $0x34] sm:$0xf]
  %v65 = vld [vmem:[%s0 + $0x38] sm:$0xf]
  %v66 = vld [vmem:[%s0 + $0x3c] sm:$0xf]
  %v67 = vld [vmem:[%s1] sm:$0xf]
  %v68 = vld [vmem:[%s1 + $0x4] sm:$0xf]
  %v69 = vld [vmem:[%s1 + $0x8] sm:$0xf]
  %v70 = vld [vmem:[%s1 + $0xc] sm:$0xf]
  %v71 = vld [vmem:[%s1 + $0x10] sm:$0xf]
  %v72 = vld [vmem:[%s1 + $0x14] sm:$0xf]
  %v73 = vld [vmem:[%s1 + $0x18] sm:$0xf]
  %v74 = vld [vmem:[%s1 + $0x1c] sm:$0xf]
  %v75 = vld [vmem:[%s1 + $0x20] sm:$0xf]
  %v76 = vld [vmem:[%s1 + $0x24] sm:$0xf]
  %v77 = vld [vmem:[%s1 + $0x28] sm:$0xf]
  %v78 = vld [vmem:[%s1 + $0x2c] sm:$0xf]
  %v79 = vld [vmem:[%s1 + $0x30] sm:$0xf]
  %v80 = vld [vmem:[%s1 + $0x34] sm:$0xf]
  %v81 = vld [vmem:[%s1 + $0x38] sm:$0xf]
  %v82 = vld [vmem:[%s1 + $0x3c] sm:$0xf]
  %v99 = vunpack.c.l.b16 %v51
  %v100 = vunpack.c.l.b16 %v52
  %v101 = vunpack.c.l.b16 %v53
  %v102 = vunpack.c.l.b16 %v54
  %v103 = vunpack.c.l.b16 %v55
  %v104 = vunpack.c.l.b16 %v56
  %v105 = vunpack.c.l.b16 %v57
  %v106 = vunpack.c.l.b16 %v58
  %v107 = vunpack.c.l.b16 %v59
  %v108 = vunpack.c.l.b16 %v60
  %v109 = vunpack.c.l.b16 %v61
  %v110 = vunpack.c.l.b16 %v62
  %v111 = vunpack.c.l.b16 %v63
  %v112 = vunpack.c.l.b16 %v64
  %v113 = vunpack.c.l.b16 %v65
  %v114 = vunpack.c.l.b16 %v66
  %v115 = vpack.c.b16 %v100, %v99
  %v116 = vpack.c.b16 %v102, %v101
  %v117 = vpack.c.b16 %v104, %v103
  %v118 = vpack.c.b16 %v106, %v105
  %v119 = vpack.c.b16 %v108, %v107
  %v120 = vpack.c.b16 %v110, %v109
  %v121 = vpack.c.b16 %v112, %v111
  %v122 = vpack.c.b16 %v114, %v113
  %v147 = vunpack.c.l.b16 %v67
  %v148 = vunpack.c.l.b16 %v68
  %v149 = vunpack.c.l.b16 %v69
  %v150 = vunpack.c.l.b16 %v70
  %v151 = vunpack.c.l.b16 %v71
  %v152 = vunpack.c.l.b16 %v72
  %v153 = vunpack.c.l.b16 %v73
  %v154 = vunpack.c.l.b16 %v74
  %v155 = vunpack.c.l.b16 %v75
  %v156 = vunpack.c.l.b16 %v76
  %v157 = vunpack.c.l.b16 %v77
  %v158 = vunpack.c.l.b16 %v78
  %v159 = vunpack.c.l.b16 %v79
  %v160 = vunpack.c.l.b16 %v80
  %v161 = vunpack.c.l.b16 %v81
  %v162 = vunpack.c.l.b16 %v82
  %v163 = vpack.c.b16 %v148, %v147
  %v164 = vpack.c.b16 %v150, %v149
  %v165 = vpack.c.b16 %v152, %v151
  %v166 = vpack.c.b16 %v154, %v153
  %v167 = vpack.c.b16 %v156, %v155
  %v168 = vpack.c.b16 %v158, %v157
  %v169 = vpack.c.b16 %v160, %v159
  %v170 = vpack.c.b16 %v162, %v161
  %179 = vmatprep.subr.bf16.mxu0 0
  %180 = vmatpush1.bf16.msra.mxu0 %v170
  %181 = vmatprep.subr.bf16.mxu0 0
  %182 = vmatpush1.bf16.msra.mxu0 %v169
  %183 = vmatprep.subr.bf16.mxu0 0
  %184 = vmatpush1.bf16.msra.mxu0 %v168
  %185 = vmatprep.subr.bf16.mxu0 0
  %186 = vmatpush1.bf16.msra.mxu0 %v167
  %187 = vmatprep.subr.bf16.mxu0 0
  %188 = vmatpush1.bf16.msra.mxu0 %v166
  %189 = vmatprep.subr.bf16.mxu0 0
  %190 = vmatpush1.bf16.msra.mxu0 %v165
  %191 = vmatprep.subr.bf16.mxu0 0
  %192 = vmatpush1.bf16.msra.mxu0 %v164
  %193 = vmatprep.subr.bf16.mxu0 0
  %194 = vmatpush1.bf16.msra.mxu0 %v163
  %195 = vmatprep.subr.bf16.mxu0 0
  %196 = vmatpush2.bf16.msra.mxu0 0
  %197 = vmatprep.subr.bf16.mxu0 0
  %198 = vmatpush2.bf16.msra.mxu0 0
  %199 = vmatprep.subr.bf16.mxu0 0
  %200 = vmatpush2.bf16.msra.mxu0 0
  %201 = vmatprep.subr.bf16.mxu0 0
  %202 = vmatpush2.bf16.msra.mxu0 0
  %203 = vmatprep.subr.bf16.mxu0 0
  %204 = vmatpush2.bf16.msra.mxu0 0
  %205 = vmatprep.subr.bf16.mxu0 0
  %206 = vmatpush2.bf16.msra.mxu0 0
  %207 = vmatprep.subr.bf16.mxu0 0
  %208 = vmatpush2.bf16.msra.mxu0 0
  %209 = vmatprep.subr.bf16.mxu0 0
  %210 = vmatpush2.bf16.msra.mxu0 0
  %211 = vmatprep.mubr.bf16.mxu0 0
  %212 = vmatmul.mubr.bf16.gmra.mxu0 %v115
  %v213 = vpop.f32.mrf.mxu0
  %v214 = vadd.f32 0.0, %v213
  %v215 = vpop.f32.mrf.mxu0
  %v216 = vpop.f32.mrf.mxu0
  %v217 = vadd.f32 0.0, %v216
  %v218 = vpop.f32.mrf.mxu0
  %219 = vmatprep.mubr.bf16.mxu0 0
  %220 = vmatmul.mubr.bf16.gmra.mxu0 %v116
  %v221 = vpop.f32.mrf.mxu0
  %v222 = vadd.f32 0.0, %v221
  %v223 = vpop.f32.mrf.mxu0
  %v224 = vpop.f32.mrf.mxu0
  %v225 = vadd.f32 0.0, %v224
  %v226 = vpop.f32.mrf.mxu0
  %227 = vmatprep.mubr.bf16.mxu0 0
  %228 = vmatmul.mubr.bf16.gmra.mxu0 %v117
  %v229 = vpop.f32.mrf.mxu0
  %v230 = vadd.f32 0.0, %v229
  %v231 = vpop.f32.mrf.mxu0
  %v232 = vpop.f32.mrf.mxu0
  %v233 = vadd.f32 0.0, %v232
  %v234 = vpop.f32.mrf.mxu0
  %235 = vmatprep.mubr.bf16.mxu0 0
  %236 = vmatmul.mubr.bf16.gmra.mxu0 %v118
  %v237 = vpop.f32.mrf.mxu0
  %v238 = vadd.f32 0.0, %v237
  %v239 = vpop.f32.mrf.mxu0
  %v240 = vpop.f32.mrf.mxu0
  %v241 = vadd.f32 0.0, %v240
  %v242 = vpop.f32.mrf.mxu0
  %243 = vmatprep.mubr.bf16.mxu0 0
  %244 = vmatmul.mubr.bf16.gmra.mxu0 %v119
  %v245 = vpop.f32.mrf.mxu0
  %v246 = vadd.f32 0.0, %v245
  %v247 = vpop.f32.mrf.mxu0
  %v248 = vpop.f32.mrf.mxu0
  %v249 = vadd.f32 0.0, %v248
  %v250 = vpop.f32.mrf.mxu0
  %251 = vmatprep.mubr.bf16.mxu0 0
  %252 = vmatmul.mubr.bf16.gmra.mxu0 %v120
  %v253 = vpop.f32.mrf.mxu0
  %v254 = vadd.f32 0.0, %v253
  %v255 = vpop.f32.mrf.mxu0
  %v256 = vpop.f32.mrf.mxu0
  %v257 = vadd.f32 0.0, %v256
  %v258 = vpop.f32.mrf.mxu0
  %259 = vmatprep.mubr.bf16.mxu0 0
  %260 = vmatmul.mubr.bf16.gmra.mxu0 %v121
  %v261 = vpop.f32.mrf.mxu0
  %v262 = vadd.f32 0.0, %v261
  %v263 = vpop.f32.mrf.mxu0
  %v264 = vpop.f32.mrf.mxu0
  %v265 = vadd.f32 0.0, %v264
  %v266 = vpop.f32.mrf.mxu0
  %267 = vmatprep.mubr.bf16.mxu0 0
  %268 = vmatmul.mubr.bf16.gmra.mxu0 %v122
  %v269 = vpop.f32.mrf.mxu0
  %v270 = vadd.f32 0.0, %v269
  %v271 = vpop.f32.mrf.mxu0
  %v272 = vpop.f32.mrf.mxu0
  %v273 = vadd.f32 0.0, %v272
  %v274 = vpop.f32.mrf.mxu0
  %275 = vdwg.mxu0
  %v276 = vadd.f32 %v35, %v214
  %v277 = vadd.f32 %v36, %v217
  %v278 = vadd.f32 %v37, %v222
  %v279 = vadd.f32 %v38, %v225
  %v280 = vadd.f32 %v39, %v230
  %v281 = vadd.f32 %v40, %v233
  %v282 = vadd.f32 %v41, %v238
  %v283 = vadd.f32 %v42, %v241
  %v284 = vadd.f32 %v43, %v246
  %v285 = vadd.f32 %v44, %v249
  %v286 = vadd.f32 %v45, %v254
  %v287 = vadd.f32 %v46, %v257
  %v288 = vadd.f32 %v47, %v262
  %v289 = vadd.f32 %v48, %v265
  %v290 = vadd.f32 %v49, %v270
  %v291 = vadd.f32 %v50, %v273
  %292 = vst [vmem:[#allocation2] sm:$0xff] %v276
  %293 = vst [vmem:[#allocation2 + $0x8] sm:$0xff] %v277
  %294 = vst [vmem:[#allocation2 + $0x10] sm:$0xff] %v278
  %295 = vst [vmem:[#allocation2 + $0x18] sm:$0xff] %v279
  %296 = vst [vmem:[#allocation2 + $0x20] sm:$0xff] %v280
  %297 = vst [vmem:[#allocation2 + $0x28] sm:$0xff] %v281
  %298 = vst [vmem:[#allocation2 + $0x30] sm:$0xff] %v282
  %299 = vst [vmem:[#allocation2 + $0x38] sm:$0xff] %v283
  %300 = vst [vmem:[#allocation2 + $0x40] sm:$0xff] %v284
  %301 = vst [vmem:[#allocation2 + $0x48] sm:$0xff] %v285
  %302 = vst [vmem:[#allocation2 + $0x50] sm:$0xff] %v286
  %303 = vst [vmem:[#allocation2 + $0x58] sm:$0xff] %v287
  %304 = vst [vmem:[#allocation2 + $0x60] sm:$0xff] %v288
  %305 = vst [vmem:[#allocation2 + $0x68] sm:$0xff] %v289
  %306 = vst [vmem:[#allocation2 + $0x70] sm:$0xff] %v290
  %307 = vst [vmem:[#allocation2 + $0x78] sm:$0xff] %v291
  // Predicated region
  $region18: #{generator_forward.10} parent=0 // pred_check
    %p308 = pneg %p15
  $region19: #{generator_forward.10} parent=0 // pred_check_branch
    %310 = sbr.rel (%p308) target = $region21
  $region20: #{generator_forward.10} parent=0 // pred_region
    %v311 = vld [vmem:[#allocation2] sm:$0xff]
    %v312 = vld [vmem:[#allocation2 + $0x8] sm:$0xff]
    %v313 = vld [vmem:[#allocation2 + $0x10] sm:$0xff]
    %v314 = vld [vmem:[#allocation2 + $0x18] sm:$0xff]
    %v315 = vld [vmem:[#allocation2 + $0x20] sm:$0xff]
    %v316 = vld [vmem:[#allocation2 + $0x28] sm:$0xff]
    %v317 = vld [vmem:[#allocation2 + $0x30] sm:$0xff]
    %v318 = vld [vmem:[#allocation2 + $0x38] sm:$0xff]
    %v319 = vld [vmem:[#allocation2 + $0x40] sm:$0xff]
    %v320 = vld [vmem:[#allocation2 + $0x48] sm:$0xff]
    %v321 = vld [vmem:[#allocation2 + $0x50] sm:$0xff]
    %v322 = vld [vmem:[#allocation2 + $0x58] sm:$0xff]
    %v323 = vld [vmem:[#allocation2 + $0x60] sm:$0xff]
    %v324 = vld [vmem:[#allocation2 + $0x68] sm:$0xff]
    %v325 = vld [vmem:[#allocation2 + $0x70] sm:$0xff]
    %v326 = vld [vmem:[#allocation2 + $0x78] sm:$0xff]
    %v327 = vld [vmem:[%s2] sm:$0x1]
    %v329 = vlaneseq
    %v330 = vshrl.u32 %v329, 7
    %v331 = vsub.s32 0, %v330
    %v332 = vrot.slane %v327, %v331
    %v334 = vadd.f32 %v311, %v332
    %v335 = vadd.f32 %v312, %v332
    %v336 = vadd.f32 %v313, %v332
    %v337 = vadd.f32 %v314, %v332
    %v338 = vadd.f32 %v315, %v332
    %v339 = vadd.f32 %v316, %v332
    %v340 = vadd.f32 %v317, %v332
    %v341 = vadd.f32 %v318, %v332
    %v342 = vadd.f32 %v319, %v332
    %v343 = vadd.f32 %v320, %v332
    %v344 = vadd.f32 %v321, %v332
    %v345 = vadd.f32 %v322, %v332
    %v346 = vadd.f32 %v323, %v332
    %v347 = vadd.f32 %v324, %v332
    %v348 = vadd.f32 %v325, %v332
    %v349 = vadd.f32 %v326, %v332
    %vm350 = vcmp.ge.f32.partialorder %v334, 0.0
    %vm351 = vcmp.ge.f32.partialorder %v335, 0.0
    %vm352 = vcmp.ge.f32.partialorder %v336, 0.0
    %vm353 = vcmp.ge.f32.partialorder %v337, 0.0
    %vm354 = vcmp.ge.f32.partialorder %v338, 0.0
    %vm355 = vcmp.ge.f32.partialorder %v339, 0.0
    %vm356 = vcmp.ge.f32.partialorder %v340, 0.0
    %vm357 = vcmp.ge.f32.partialorder %v341, 0.0
    %vm358 = vcmp.ge.f32.partialorder %v342, 0.0
    %vm359 = vcmp.ge.f32.partialorder %v343, 0.0
    %vm360 = vcmp.ge.f32.partialorder %v344, 0.0
    %vm361 = vcmp.ge.f32.partialorder %v345, 0.0
    %vm362 = vcmp.ge.f32.partialorder %v346, 0.0
    %vm363 = vcmp.ge.f32.partialorder %v347, 0.0
    %vm364 = vcmp.ge.f32.partialorder %v348, 0.0
    %vm365 = vcmp.ge.f32.partialorder %v349, 0.0
    %v366 = vmul.f32 %v334, 0.2
    %v367 = vmul.f32 %v335, 0.2
    %v368 = vmul.f32 %v336, 0.2
    %v369 = vmul.f32 %v337, 0.2
    %v370 = vmul.f32 %v338, 0.2
    %v371 = vmul.f32 %v339, 0.2
    %v372 = vmul.f32 %v340, 0.2
    %v373 = vmul.f32 %v341, 0.2
    %v374 = vmul.f32 %v342, 0.2
    %v375 = vmul.f32 %v343, 0.2
    %v376 = vmul.f32 %v344, 0.2
    %v377 = vmul.f32 %v345, 0.2
    %v378 = vmul.f32 %v346, 0.2
    %v379 = vmul.f32 %v347, 0.2
    %v380 = vmul.f32 %v348, 0.2
    %v381 = vmul.f32 %v349, 0.2
    %v382 = vsel %vm350, %v334, %v366
    %v383 = vsel %vm351, %v335, %v367
    %v384 = vsel %vm352, %v336, %v368
    %v385 = vsel %vm353, %v337, %v369
    %v386 = vsel %vm354, %v338, %v370
    %v387 = vsel %vm355, %v339, %v371
    %v388 = vsel %vm356, %v340, %v372
    %v389 = vsel %vm357, %v341, %v373
    %v390 = vsel %vm358, %v342, %v374
    %v391 = vsel %vm359, %v343, %v375
    %v392 = vsel %vm360, %v344, %v376
    %v393 = vsel %vm361, %v345, %v377
    %v394 = vsel %vm362, %v346, %v378
    %v395 = vsel %vm363, %v347, %v379
    %v396 = vsel %vm364, %v348, %v380
    %v397 = vsel %vm365, %v349, %v381
    %398 = vst [vmem:[%s3] sm:$0xff] %v382
    %399 = vst [vmem:[%s3 + $0x8] sm:$0xff] %v383
    %400 = vst [vmem:[%s3 + $0x10] sm:$0xff] %v384
    %401 = vst [vmem:[%s3 + $0x18] sm:$0xff] %v385
    %402 = vst [vmem:[%s3 + $0x20] sm:$0xff] %v386
    %403 = vst [vmem:[%s3 + $0x28] sm:$0xff] %v387
    %404 = vst [vmem:[%s3 + $0x30] sm:$0xff] %v388
    %405 = vst [vmem:[%s3 + $0x38] sm:$0xff] %v389
    %406 = vst [vmem:[%s3 + $0x40] sm:$0xff] %v390
    %407 = vst [vmem:[%s3 + $0x48] sm:$0xff] %v391
    %408 = vst [vmem:[%s3 + $0x50] sm:$0xff] %v392
    %409 = vst [vmem:[%s3 + $0x58] sm:$0xff] %v393
    %410 = vst [vmem:[%s3 + $0x60] sm:$0xff] %v394
    %411 = vst [vmem:[%s3 + $0x68] sm:$0xff] %v395
    %412 = vst [vmem:[%s3 + $0x70] sm:$0xff] %v396
    %413 = vst [vmem:[%s3 + $0x78] sm:$0xff] %v397
  $region21: #{generator_forward.10} parent=0 // pred_fallthru
    _
  // Predicated region
  $region22: #{generator_forward.10} parent=0 // pred_check
    _
  $region23: #{generator_forward.10} parent=0 // pred_check_branch
    %415 = sbr.rel (0) target = $region25
  $region24: #{generator_forward.10} parent=0 // pred_region
    _
  $region25: #{generator_forward.10} parent=0 // pred_fallthru
    _
  // Predicated region
  $region26: #{generator_forward.10} parent=0 // pred_check
    _
  $region27: #{generator_forward.10} parent=0 // pred_check_branch
    %417 = sbr.rel (0) target = $region29
  $region28: #{generator_forward.10} parent=0 // pred_region
    _
  $region29: #{generator_forward.10} parent=0 // pred_fallthru
    _

// kernel: generator_forward.12
$region0: #{generator_forward.12}
  #allocation0 [shape = 'u32[]', space=smem, size = 0x4, offset = 0x4, fixed_abs, tag = 'smem constant byte address 0x4 - core index']
  #allocation1 [shape = 'u32[144,128]{1,0:T(1,128)}', space=vmem, size = 0x12000, scoped, tag = 'internal scratch']
  #allocation2 [shape = 'f32[32,128]{1,0:T(8,128)}', space=vmem, size = 0x4000, scoped, tag = 'scratch operand']
  %s0 = inlined_call_operand.vmem [shape: bf16[1,32,1024], index: 0, kind: input, shape index: {}]
  %s1 = inlined_call_operand.vmem [shape: bf16[1,1024,128], index: 1, kind: input, shape index: {}]
  %s2 = inlined_call_operand.vmem [shape: f32[1,1,128], index: 2, kind: input, shape index: {}]
  %s3 = inlined_call_operand.vmem [shape: f32[1,32,128], index: 3, kind: output, shape index: {}]
  %s4 = sld [smem:[#allocation0]]
  $region76: #{generator_forward.12} parent=0
    _
  %s6 = ssub.s32 1, %s4
  %s7 = scalar_select 0, %s6, %s4
  $region1: #{generator_forward.12} parent=0
    #allocation3 [shape = 'u8[65536]{0}', space=vmem, size = 0x10000, scoped, tag = 'input window, operand 0']
    loop: start=0, step=1, limit=4
    $region2: #{generator_forward.12} parent=1 // loop_pre_header
      _
    $region3: #{generator_forward.12} parent=1 // loop_header
      %s9 = sphi 0, %s13
      %p10 = scmp.ge.s32.totalorder %s9, 4
      %s16 = sphi 0, %s42
      %s17 = sphi 0, %s38
      %s18 = sphi 0, %s34
      %s19 = sphi 0, %s30
      %s20 = sphi 0, %s16
      %s21 = sphi 0, %s17
      %s22 = sphi 0, %s18
      %s23 = sphi 0, %s19
      %s24 = sphi 0, %s20
      %s25 = sphi 0, %s21
      %s26 = sphi 0, %s22
      %s27 = sphi 0, %s23
      %s49 = sphi 0, %s51
      %s52 = sphi 0, %s49
      %s53 = sphi 0, %s52
      %s69 = sphi 0, %s53
      %s79 = sphi 0, %s81
      %s82 = sphi 0, %s79
      %s83 = sphi 0, %s82
      %s99 = sphi 0, %s83
      %s107 = sphi 0, %s109
      %s110 = sphi 0, %s107
      %s111 = sphi 0, %s110
      %s127 = sphi 0, %s111
      %s137 = sphi 0, %s139
      %s140 = sphi 0, %s137
      %s141 = sphi 0, %s140
      %s157 = sphi 0, %s141
    $region4: #{generator_forward.12} parent=1 // loop_header_branch
      %12 = sbr.rel (%p10) target = $region8
    $region5: #{generator_forward.12} parent=1 // loop_body
      %s14 = ssub.s32 %s9, 1
      %s15 = ssub.s32 %s9, 2
      %s28 = sadd.s32 1, %s19
      %p29 = scmp.ge.s32.totalorder %s28, 2
      %s30 = scalar_select %p29, 0, %s28
      %s31 = sadd.s32 1, %s18
      %s32 = scalar_select %p29, %s31, %s18
      %p33 = scmp.ge.s32.totalorder %s32, 1
      %s34 = scalar_select %p33, 0, %s32
      %s35 = sadd.s32 1, %s17
      %s36 = scalar_select %p33, %s35, %s17
      %p37 = scmp.ge.s32.totalorder %s36, 1
      %s38 = scalar_select %p37, 0, %s36
      %s39 = sadd.s32 1, %s16
      %s40 = scalar_select %p37, %s39, %s16
      %p41 = scmp.ge.s32.totalorder %s40, 1
      %s42 = scalar_select %p41, 0, %s40
      %s43 = ssub.s32 %s16, %s42
      %s44 = ssub.s32 %s17, %s38
      %s45 = sor.u32 %s43, %s44
      %s46 = ssub.s32 %s19, %s30
      %s47 = sor.u32 %s45, %s46
      %p48 = scmp.eq.s32.totalorder %s47, 0
      %s50 = sadd.s32 %s49, 1
      %s51 = scalar_select %p48, %s49, %s50
      %p54 = pneg %p48
      %p55 = scmp.eq.s32.totalorder %s9, 1
      %p56 = por %p54, %p55
      %p57 = scmp.ne.s32.totalorder %s49, %s52
      %p58 = scmp.eq.s32.totalorder %s9, 0
      %p59 = por %p57, %p58
      %p60 = scmp.ne.s32.totalorder %s49, %s52
      %p61 = scmp.eq.s32.totalorder %s14, 1
      %p62 = por %p60, %p61
      %p63 = scmp.ne.s32.totalorder %s52, %s53
      %p64 = scmp.eq.s32.totalorder %s14, 0
      %p65 = por %p63, %p64
      %p66 = scmp.ne.s32.totalorder %s52, %s53
      %p67 = scmp.eq.s32.totalorder %s15, 1
      %p68 = por %p66, %p67
      %p70 = scmp.ne.s32.totalorder %s53, %s69
      %p71 = scmp.eq.s32.totalorder %s15, 0
      %p72 = por %p70, %p71
      %s73 = ssub.s32 %s16, %s42
      %s74 = ssub.s32 %s19, %s30
      %s75 = sor.u32 %s73, %s74
      %s76 = ssub.s32 %s18, %s34
      %s77 = sor.u32 %s75, %s76
      %p78 = scmp.eq.s32.totalorder %s77, 0
      %s80 = sadd.s32 %s79, 1
      %s81 = scalar_select %p78, %s79, %s80
      %p84 = pneg %p78
      %p85 = scmp.eq.s32.totalorder %s9, 1
      %p86 = por %p84, %p85
      %p87 = scmp.ne.s32.totalorder %s79, %s82
      %p88 = scmp.eq.s32.totalorder %s9, 0
      %p89 = por %p87, %p88
      %p90 = scmp.ne.s32.totalorder %s79, %s82
      %p91 = scmp.eq.s32.totalorder %s14, 1
      %p92 = por %p90, %p91
      %p93 = scmp.ne.s32.totalorder %s82, %s83
      %p94 = scmp.eq.s32.totalorder %s14, 0
      %p95 = por %p93, %p94
      %p96 = scmp.ne.s32.totalorder %s82, %s83
      %p97 = scmp.eq.s32.totalorder %s15, 1
      %p98 = por %p96, %p97
      %p100 = scmp.ne.s32.totalorder %s83, %s99
      %p101 = scmp.eq.s32.totalorder %s15, 0
      %p102 = por %p100, %p101
      %s103 = ssub.s32 %s16, %s42
      %s104 = ssub.s32 %s18, %s34
      %s105 = sor.u32 %s103, %s104
      %p106 = scmp.eq.s32.totalorder %s105, 0
      %s108 = sadd.s32 %s107, 1
      %s109 = scalar_select %p106, %s107, %s108
      %p112 = pneg %p106
      %p113 = scmp.eq.s32.totalorder %s9, 1
      %p114 = por %p112, %p113
      %p115 = scmp.ne.s32.totalorder %s107, %s110
      %p116 = scmp.eq.s32.totalorder %s9, 0
      %p117 = por %p115, %p116
      %p118 = scmp.ne.s32.totalorder %s107, %s110
      %p119 = scmp.eq.s32.totalorder %s14, 1
      %p120 = por %p118, %p119
      %p121 = scmp.ne.s32.totalorder %s110, %s111
      %p122 = scmp.eq.s32.totalorder %s14, 0
      %p123 = por %p121, %p122
      %p124 = scmp.ne.s32.totalorder %s110, %s111
      %p125 = scmp.eq.s32.totalorder %s15, 1
      %p126 = por %p124, %p125
      %p128 = scmp.ne.s32.totalorder %s111, %s127
      %p129 = scmp.eq.s32.totalorder %s15, 0
      %p130 = por %p128, %p129
      %s131 = ssub.s32 %s16, %s42
      %s132 = ssub.s32 %s17, %s38
      %s133 = sor.u32 %s131, %s132
      %s134 = ssub.s32 %s18, %s34
      %s135 = sor.u32 %s133, %s134
      %p136 = scmp.eq.s32.totalorder %s135, 0
      %s138 = sadd.s32 %s137, 1
      %s139 = scalar_select %p136, %s137, %s138
      %p142 = pneg %p136
      %p143 = scmp.eq.s32.totalorder %s9, 1
      %p144 = por %p142, %p143
      %p145 = scmp.ne.s32.totalorder %s137, %s140
      %p146 = scmp.eq.s32.totalorder %s9, 0
      %p147 = por %p145, %p146
      %p148 = scmp.ne.s32.totalorder %s137, %s140
      %p149 = scmp.eq.s32.totalorder %s14, 1
      %p150 = por %p148, %p149
      %p151 = scmp.ne.s32.totalorder %s140, %s141
      %p152 = scmp.eq.s32.totalorder %s14, 0
      %p153 = por %p151, %p152
      %p154 = scmp.ne.s32.totalorder %s140, %s141
      %p155 = scmp.eq.s32.totalorder %s15, 1
      %p156 = por %p154, %p155
      %p158 = scmp.ne.s32.totalorder %s141, %s157
      %p159 = scmp.eq.s32.totalorder %s15, 0
      %p160 = por %p158, %p159
      %p161 = scmp.le.s32.totalorder 1, %s9
      %p162 = scmp.lt.s32.totalorder %s9, 3
      %p163 = pnand %p161, %p162
      %p164 = pneg %p163
      // Predicated region
      $region9: #{generator_forward.12} parent=5 // pred_check
        _
      $region10: #{generator_forward.12} parent=5 // pred_check_branch
        %166 = sbr.rel (%p163) target = $region12
      $region11: #{generator_forward.12} parent=5 // pred_region
        %s167 = ssub.s32 %s9, 1
        // Predicated region
        $region13: #{generator_forward.12} parent=11 // pred_check
          %p168 = pneg %p123
        $region14: #{generator_forward.12} parent=11 // pred_check_branch
          %170 = sbr.rel (%p168) target = $region16
        $region15: #{generator_forward.12} parent=11 // pred_region
          %p171 = scmp.lt.s32.totalorder %s20, 0
          %s172 = scalar_select %p171, %s20, 0
          %p173 = scmp.lt.s32.totalorder %s22, 0
          %s174 = scalar_select %p173, %s22, 0
          %s175 = sadd.s32 %s174, %s172
          %s176 = scalar_lea.vmem %s2, %s175
        $region16: #{generator_forward.12} parent=11 // pred_fallthru
          _
      $region12: #{generator_forward.12} parent=5 // pred_fallthru
        _
      %p177 = scmp.lt.s32.totalorder %s9, 2
      // Predicated region
      $region17: #{generator_forward.12} parent=5 // pred_check
        %p178 = pneg %p177
      $region18: #{generator_forward.12} parent=5 // pred_check_branch
        %180 = sbr.rel (%p178) target = $region20
      $region19: #{generator_forward.12} parent=5 // pred_region
        // Predicated region
        $region21: #{generator_forward.12} parent=19 // pred_check
          %p181 = pneg %p59
        $region22: #{generator_forward.12} parent=19 // pred_check_branch
          %183 = sbr.rel (%p181) target = $region24
        $region23: #{generator_forward.12} parent=19 // pred_region
          %s184 = sand.u32 %s49, 1
          %s185 = sand.u32 %s49, 1
          %s186 = smul.addr %s185, 64
          %s187 = scalar_lea.vmem [#allocation3], %s186
          %s188 = smul.u32 4, %s17
          %s189 = smul.u32 4, %s19
          %s190 = smul.addr %s188, 8
          %s191 = sadd.s32 %s189, %s190
          %s192 = smul.addr %s16, 32
          %s193 = sadd.s32 %s191, %s192
          %s194 = smul.addr %s193, 4
          %s195 = scalar_lea.vmem %s0, %s194
          // Predicated region
          $region25: #{generator_forward.12} parent=23 // pred_check
            _
          $region26: #{generator_forward.12} parent=23 // pred_check_branch
            %197 = sbr.rel (0) target = $region28
          $region27: #{generator_forward.12} parent=23 // pred_region
            // Predicated region
            $region29: #{generator_forward.12} parent=27 // pred_check
              _
            $region30: #{generator_forward.12} parent=27 // pred_check_branch
              %199 = sbr.rel (0) target = $region32
            $region31: #{generator_forward.12} parent=27 // pred_region
              loop: start=0, step=1, limit=1
              $region33: #{generator_forward.12} parent=31 // loop_pre_header
                _
              $region34: #{generator_forward.12} parent=31 // loop_header
                %s201 = sphi 0, %s205
                %p202 = scmp.ge.s32.totalorder %s201, 1
                %s206 = sphi %s195, %s195
                %s207 = sphi %s187, %s187
              $region35: #{generator_forward.12} parent=31 // loop_header_branch
                %204 = sbr.rel (%p202) target = $region39
              $region36: #{generator_forward.12} parent=31 // loop_body
                %v208 = vld [vmem:[%s206] sm:$0xff]
                %209 = vst [vmem:[%s207] sm:$0xff] %v208
                %v210 = vld [vmem:[%s206 + $0x8] sm:$0xff]
                %211 = vst [vmem:[%s207 + $0x8] sm:$0xff] %v210
                %v212 = vld [vmem:[%s206 + $0x20] sm:$0xff]
                %213 = vst [vmem:[%s207 + $0x10] sm:$0xff] %v212
                %v214 = vld [vmem:[%s206 + $0x28] sm:$0xff]
                %215 = vst [vmem:[%s207 + $0x18] sm:$0xff] %v214
                %v216 = vld [vmem:[%s206 + $0x40] sm:$0xff]
                %217 = vst [vmem:[%s207 + $0x20] sm:$0xff] %v216
                %v218 = vld [vmem:[%s206 + $0x48] sm:$0xff]
                %219 = vst [vmem:[%s207 + $0x28] sm:$0xff] %v218
                %v220 = vld [vmem:[%s206 + $0x60] sm:$0xff]
                %221 = vst [vmem:[%s207 + $0x30] sm:$0xff] %v220
                %v222 = vld [vmem:[%s206 + $0x68] sm:$0xff]
                %223 = vst [vmem:[%s207 + $0x38] sm:$0xff] %v222
              $region37: #{generator_forward.12} parent=31 // loop_footer
                %s205 = sadd.s32 1, %s201
              $region38: #{generator_forward.12} parent=31 // loop_footer_branch
                %200 = sbr.rel target = $region34
              $region39: #{generator_forward.12} parent=31 // loop_exit
                _
            $region32: #{generator_forward.12} parent=27 // pred_fallthru
              _
            // Predicated region
            $region40: #{generator_forward.12} parent=27 // pred_check
              _
            $region41: #{generator_forward.12} parent=27 // pred_check_branch
              %225 = sbr.rel target = $region43
            $region42: #{generator_forward.12} parent=27 // pred_region
              _
            $region43: #{generator_forward.12} parent=27 // pred_fallthru
              _
          $region28: #{generator_forward.12} parent=23 // pred_fallthru
            _
          %226 = vnop
        $region24: #{generator_forward.12} parent=19 // pred_fallthru
          _
        // Predicated region
        $region44: #{generator_forward.12} parent=19 // pred_check
          %p227 = pneg %p89
        $region45: #{generator_forward.12} parent=19 // pred_check_branch
          %229 = sbr.rel (%p227) target = $region47
        $region46: #{generator_forward.12} parent=19 // pred_region
          %s230 = smul.u32 64, %s19
          %p231 = scmp.lt.s32.totalorder %s16, 0
          %s232 = scalar_select %p231, %s16, 0
          %p233 = scmp.lt.s32.totalorder %s230, 127
          %s234 = scalar_select %p233, %s230, 127
          %p235 = scmp.lt.s32.totalorder %s18, 0
          %s236 = scalar_select %p235, %s18, 0
          %s237 = sadd.s32 %s236, %s234
          %s238 = smul.addr %s232, 128
          %s239 = sadd.s32 %s237, %s238
          %s240 = smul.addr %s239, 4
          %s241 = scalar_lea.vmem %s1, %s240
          %s242 = smul.u32 64, %s19
        $region47: #{generator_forward.12} parent=19 // pred_fallthru
          _
      $region20: #{generator_forward.12} parent=5 // pred_fallthru
        _
      %p243 = scmp.le.s32.totalorder 1, %s9
      %p244 = scmp.lt.s32.totalorder %s9, 3
      %p245 = pnand %p243, %p244
      %p246 = pneg %p245
      // Predicated region
      $region48: #{generator_forward.12} parent=5 // pred_check
        _
      $region49: #{generator_forward.12} parent=5 // pred_check_branch
        %248 = sbr.rel (%p245) target = $region51
      $region50: #{generator_forward.12} parent=5 // pred_region
        %s249 = ssub.s32 %s9, 1
        %s250 = sand.u32 %s52, 1
        %s251 = sand.u32 %s52, 1
        %s252 = smul.addr %s251, 64
        %s253 = scalar_lea.vmem [#allocation3], %s252
        // Predicated region
        $region52: #{generator_forward.12} parent=50 // pred_check
          %p254 = pneg %p65
        $region53: #{generator_forward.12} parent=50 // pred_check_branch
          %256 = sbr.rel (%p254) target = $region55
        $region54: #{generator_forward.12} parent=50 // pred_region
          _
        $region55: #{generator_forward.12} parent=50 // pred_fallthru
          _
        %s257 = sand.u32 %s52, 1
        %s258 = sand.u32 %s52, 1
        %s259 = smul.addr %s258, 64
        %s260 = scalar_lea.vmem [#allocation3], %s259
        %p261 = pneg %p65
        %p262 = pneg %p62
        %s263 = smul.u32 64, %s23
        %p264 = scmp.lt.s32.totalorder %s20, 0
        %s265 = scalar_select %p264, %s20, 0
        %p266 = scmp.lt.s32.totalorder %s263, 127
        %s267 = scalar_select %p266, %s263, 127
        %p268 = scmp.lt.s32.totalorder %s22, 0
        %s269 = scalar_select %p268, %s22, 0
        %s270 = sadd.s32 %s269, %s267
        %s271 = smul.addr %s265, 128
        %s272 = sadd.s32 %s270, %s271
        %s273 = smul.addr %s272, 4
        %s274 = scalar_lea.vmem %s1, %s273
        %p275 = pneg %p95
        %p276 = pneg %p92
        %p277 = scmp.lt.s32.totalorder %s20, 0
        %s278 = scalar_select %p277, %s20, 0
        %p279 = scmp.lt.s32.totalorder %s22, 0
        %s280 = scalar_select %p279, %s22, 0
        %s281 = sadd.s32 %s280, %s278
        %s282 = scalar_lea.vmem %s2, %s281
        %p283 = pneg %p123
        %p284 = pneg %p120
        %p285 = pneg %p153
        %p286 = pneg %p150
        %s287 = smul.u32 4, %s21
        %p288 = scmp.lt.s32.totalorder %s20, 0
        %s289 = scalar_select %p288, %s20, 0
        %p290 = scmp.lt.s32.totalorder %s287, 3
        %s291 = scalar_select %p290, %s287, 3
        %p292 = scmp.lt.s32.totalorder %s22, 0
        %s293 = scalar_select %p292, %s22, 0
        %s294 = sadd.s32 %s293, %s291
        %s295 = smul.addr %s289, 4
        %s296 = sadd.s32 %s294, %s295
        %s297 = smul.addr %s296, 8
        %s298 = scalar_lea.vmem %s3, %s297
        %s299 = smul.u32 4, %s21
        %s300 = smul.u32 4, %s23
        %s301 = smul.u32 64, %s23
        %p302 = scmp.lt.s32.totalorder %s20, 0
        %s303 = scalar_select %p302, %s20, 0
        %p304 = scmp.lt.s32.totalorder %s301, 127
        %s305 = scalar_select %p304, %s301, 127
        %p306 = scmp.lt.s32.totalorder %s22, 0
        %s307 = scalar_select %p306, %s22, 0
        %s308 = sadd.s32 %s307, %s305
        %s309 = smul.addr %s303, 128
        %s310 = sadd.s32 %s308, %s309
        %s311 = smul.addr %s310, 4
        %s312 = scalar_lea.vmem %s1, %s311
        %s313 = smul.u32 64, %s23
        %p314 = scmp.lt.s32.totalorder %s20, 0
        %s315 = scalar_select %p314, %s20, 0
        %p316 = scmp.lt.s32.totalorder %s22, 0
        %s317 = scalar_select %p316, %s22, 0
        %s318 = sadd.s32 %s317, %s315
        %s319 = scalar_lea.vmem %s2, %s318
        %s320 = smul.u32 4, %s21
        %p321 = scmp.lt.s32.totalorder %s20, 0
        %s322 = scalar_select %p321, %s20, 0
        %p323 = scmp.lt.s32.totalorder %s320, 3
        %s324 = scalar_select %p323, %s320, 3
        %p325 = scmp.lt.s32.totalorder %s22, 0
        %s326 = scalar_select %p325, %s22, 0
        %s327 = sadd.s32 %s326, %s324
        %s328 = smul.addr %s322, 4
        %s329 = sadd.s32 %s327, %s328
        %s330 = smul.addr %s329, 8
        %s331 = scalar_lea.vmem %s3, %s330
        %s332 = smul.u32 4, %s21
        %p334 = scmp.eq.s32.totalorder %s23, 0
        // Predicated region
        $region56: #{generator_forward.12} parent=50 // pred_check
          %p335 = pneg %p334
        $region57: #{generator_forward.12} parent=50 // pred_check_branch
          %337 = sbr.rel (%p335) target = $region59
        $region58: #{generator_forward.12} parent=50 // pred_region
          %338 = vst [vmem:[#allocation2] sm:$0xff] 0.0
          %339 = vst [vmem:[#allocation2 + $0x8] sm:$0xff] 0.0
          %340 = vst [vmem:[#allocation2 + $0x10] sm:$0xff] 0.0
          %341 = vst [vmem:[#allocation2 + $0x18] sm:$0xff] 0.0
        $region59: #{generator_forward.12} parent=50 // pred_fallthru
          _
        %v342 = vld [vmem:[#allocation2] sm:$0xff]
        %v343 = vld [vmem:[#allocation2 + $0x8] sm:$0xff]
        %v344 = vld [vmem:[#allocation2 + $0x10] sm:$0xff]
        %v345 = vld [vmem:[#allocation2 + $0x18] sm:$0xff]
        %v346 = vld [vmem:[%s253] sm:$0xff]
        %v347 = vld [vmem:[%s253 + $0x8] sm:$0xff]
        %v348 = vld [vmem:[%s253 + $0x10] sm:$0xff]
        %v349 = vld [vmem:[%s253 + $0x18] sm:$0xff]
        %v350 = vld [vmem:[%s253 + $0x20] sm:$0xff]
        %v351 = vld [vmem:[%s253 + $0x28] sm:$0xff]
        %v352 = vld [vmem:[%s253 + $0x30] sm:$0xff]
        %v353 = vld [vmem:[%s253 + $0x38] sm:$0xff]
        %v354 = vld [vmem:[%s312] sm:$0xf]
        %v355 = vld [vmem:[%s312 + $0x4] sm:$0xf]
        %v356 = vld [vmem:[%s312 + $0x8] sm:$0xf]
        %v357 = vld [vmem:[%s312 + $0xc] sm:$0xf]
        %v358 = vld [vmem:[%s312 + $0x10] sm:$0xf]
        %v359 = vld [vmem:[%s312 + $0x14] sm:$0xf]
        %v360 = vld [vmem:[%s312 + $0x18] sm:$0xf]
        %v361 = vld [vmem:[%s312 + $0x1c] sm:$0xf]
        %v362 = vld [vmem:[%s312 + $0x20] sm:$0xf]
        %v363 = vld [vmem:[%s312 + $0x24] sm:$0xf]
        %v364 = vld [vmem:[%s312 + $0x28] sm:$0xf]
        %v365 = vld [vmem:[%s312 + $0x2c] sm:$0xf]
        %v366 = vld [vmem:[%s312 + $0x30] sm:$0xf]
        %v367 = vld [vmem:[%s312 + $0x34] sm:$0xf]
        %v368 = vld [vmem:[%s312 + $0x38] sm:$0xf]
        %v369 = vld [vmem:[%s312 + $0x3c] sm:$0xf]
        %v370 = vld [vmem:[%s312 + $0x40] sm:$0xf]
        %v371 = vld [vmem:[%s312 + $0x44] sm:$0xf]
        %v372 = vld [vmem:[%s312 + $0x48] sm:$0xf]
        %v373 = vld [vmem:[%s312 + $0x4c] sm:$0xf]
        %v374 = vld [vmem:[%s312 + $0x50] sm:$0xf]
        %v375 = vld [vmem:[%s312 + $0x54] sm:$0xf]
        %v376 = vld [vmem:[%s312 + $0x58] sm:$0xf]
        %v377 = vld [vmem:[%s312 + $0x5c] sm:$0xf]
        %v378 = vld [vmem:[%s312 + $0x60] sm:$0xf]
        %v379 = vld [vmem:[%s312 + $0x64] sm:$0xf]
        %v380 = vld [vmem:[%s312 + $0x68] sm:$0xf]
        %v381 = vld [vmem:[%s312 + $0x6c] sm:$0xf]
        %v382 = vld [vmem:[%s312 + $0x70] sm:$0xf]
        %v383 = vld [vmem:[%s312 + $0x74] sm:$0xf]
        %v384 = vld [vmem:[%s312 + $0x78] sm:$0xf]
        %v385 = vld [vmem:[%s312 + $0x7c] sm:$0xf]
        %v386 = vld [vmem:[%s312 + $0x80] sm:$0xf]
        %v387 = vld [vmem:[%s312 + $0x84] sm:$0xf]
        %v388 = vld [vmem:[%s312 + $0x88] sm:$0xf]
        %v389 = vld [vmem:[%s312 + $0x8c] sm:$0xf]
        %v390 = vld [vmem:[%s312 + $0x90] sm:$0xf]
        %v391 = vld [vmem:[%s312 + $0x94] sm:$0xf]
        %v392 = vld [vmem:[%s312 + $0x98] sm:$0xf]
        %v393 = vld [vmem:[%s312 + $0x9c] sm:$0xf]
        %v394 = vld [vmem:[%s312 + $0xa0] sm:$0xf]
        %v395 = vld [vmem:[%s312 + $0xa4] sm:$0xf]
        %v396 = vld [vmem:[%s312 + $0xa8] sm:$0xf]
        %v397 = vld [vmem:[%s312 + $0xac] sm:$0xf]
        %v398 = vld [vmem:[%s312 + $0xb0] sm:$0xf]
        %v399 = vld [vmem:[%s312 + $0xb4] sm:$0xf]
        %v400 = vld [vmem:[%s312 + $0xb8] sm:$0xf]
        %v401 = vld [vmem:[%s312 + $0xbc] sm:$0xf]
        %v402 = vld [vmem:[%s312 + $0xc0] sm:$0xf]
        %v403 = vld [vmem:[%s312 + $0xc4] sm:$0xf]
        %v404 = vld [vmem:[%s312 + $0xc8] sm:$0xf]
        %v405 = vld [vmem:[%s312 + $0xcc] sm:$0xf]
        %v406 = vld [vmem:[%s312 + $0xd0] sm:$0xf]
        %v407 = vld [vmem:[%s312 + $0xd4] sm:$0xf]
        %v408 = vld [vmem:[%s312 + $0xd8] sm:$0xf]
        %v409 = vld [vmem:[%s312 + $0xdc] sm:$0xf]
        %v410 = vld [vmem:[%s312 + $0xe0] sm:$0xf]
        %v411 = vld [vmem:[%s312 + $0xe4] sm:$0xf]
        %v412 = vld [vmem:[%s312 + $0xe8] sm:$0xf]
        %v413 = vld [vmem:[%s312 + $0xec] sm:$0xf]
        %v414 = vld [vmem:[%s312 + $0xf0] sm:$0xf]
        %v415 = vld [vmem:[%s312 + $0xf4] sm:$0xf]
        %v416 = vld [vmem:[%s312 + $0xf8] sm:$0xf]
        %v417 = vld [vmem:[%s312 + $0xfc] sm:$0xf]
        %v426 = vunpack.c.l.b16 %v346
        %v427 = vunpack.c.h.b16 %v346
        %v428 = vunpack.c.l.b16 %v347
        %v429 = vunpack.c.h.b16 %v347
        %v430 = vunpack.c.l.b16 %v348
        %v431 = vunpack.c.h.b16 %v348
        %v432 = vunpack.c.l.b16 %v349
        %v433 = vunpack.c.h.b16 %v349
        %v434 = vunpack.c.l.b16 %v350
        %v435 = vunpack.c.h.b16 %v350
        %v436 = vunpack.c.l.b16 %v351
        %v437 = vunpack.c.h.b16 %v351
        %v438 = vunpack.c.l.b16 %v352
        %v439 = vunpack.c.h.b16 %v352
        %v440 = vunpack.c.l.b16 %v353
        %v441 = vunpack.c.h.b16 %v353
        %v442 = vpack.c.b16 %v430, %v426
        %v443 = vpack.c.b16 %v431, %v427
        %v444 = vpack.c.b16 %v432, %v428
        %v445 = vpack.c.b16 %v433, %v429
        %v446 = vpack.c.b16 %v438, %v434
        %v447 = vpack.c.b16 %v439, %v435
        %v448 = vpack.c.b16 %v440, %v436
        %v449 = vpack.c.b16 %v441, %v437
        %v522 = vunpack.c.l.b16 %v354
        %v523 = vunpack.c.l.b16 %v355
        %v524 = vunpack.c.l.b16 %v356
        %v525 = vunpack.c.l.b16 %v357
        %v526 = vunpack.c.l.b16 %v358
        %v527 = vunpack.c.l.b16 %v359
        %v528 = vunpack.c.l.b16 %v360
        %v529 = vunpack.c.l.b16 %v361
        %v530 = vunpack.c.l.b16 %v362
        %v531 = vunpack.c.l.b16 %v363
        %v532 = vunpack.c.l.b16 %v364
        %v533 = vunpack.c.l.b16 %v365
        %v534 = vunpack.c.l.b16 %v366
        %v535 = vunpack.c.l.b16 %v367
        %v536 = vunpack.c.l.b16 %v368
        %v537 = vunpack.c.l.b16 %v369
        %v538 = vunpack.c.l.b16 %v370
        %v539 = vunpack.c.l.b16 %v371
        %v540 = vunpack.c.l.b16 %v372
        %v541 = vunpack.c.l.b16 %v373
        %v542 = vunpack.c.l.b16 %v374
        %v543 = vunpack.c.l.b16 %v375
        %v544 = vunpack.c.l.b16 %v376
        %v545 = vunpack.c.l.b16 %v377
        %v546 = vunpack.c.l.b16 %v378
        %v547 = vunpack.c.l.b16 %v379
        %v548 = vunpack.c.l.b16 %v380
        %v549 = vunpack.c.l.b16 %v381
        %v550 = vunpack.c.l.b16 %v382
        %v551 = vunpack.c.l.b16 %v383
        %v552 = vunpack.c.l.b16 %v384
        %v553 = vunpack.c.l.b16 %v385
        %v554 = vunpack.c.l.b16 %v386
        %v555 = vunpack.c.l.b16 %v387
        %v556 = vunpack.c.l.b16 %v388
        %v557 = vunpack.c.l.b16 %v389
        %v558 = vunpack.c.l.b16 %v390
        %v559 = vunpack.c.l.b16 %v391
        %v560 = vunpack.c.l.b16 %v392
        %v561 = vunpack.c.l.b16 %v393
        %v562 = vunpack.c.l.b16 %v394
        %v563 = vunpack.c.l.b16 %v395
        %v564 = vunpack.c.l.b16 %v396
        %v565 = vunpack.c.l.b16 %v397
        %v566 = vunpack.c.l.b16 %v398
        %v567 = vunpack.c.l.b16 %v399
        %v568 = vunpack.c.l.b16 %v400
        %v569 = vunpack.c.l.b16 %v401
        %v570 = vunpack.c.l.b16 %v402
        %v571 = vunpack.c.l.b16 %v403
        %v572 = vunpack.c.l.b16 %v404
        %v573 = vunpack.c.l.b16 %v405
        %v574 = vunpack.c.l.b16 %v406
        %v575 = vunpack.c.l.b16 %v407
        %v576 = vunpack.c.l.b16 %v408
        %v577 = vunpack.c.l.b16 %v409
        %v578 = vunpack.c.l.b16 %v410
        %v579 = vunpack.c.l.b16 %v411
        %v580 = vunpack.c.l.b16 %v412
        %v581 = vunpack.c.l.b16 %v413
        %v582 = vunpack.c.l.b16 %v414
        %v583 = vunpack.c.l.b16 %v415
        %v584 = vunpack.c.l.b16 %v416
        %v585 = vunpack.c.l.b16 %v417
        %v586 = vpack.c.b16 %v523, %v522
        %v587 = vpack.c.b16 %v525, %v524
        %v588 = vpack.c.b16 %v527, %v526
        %v589 = vpack.c.b16 %v529, %v528
        %v590 = vpack.c.b16 %v531, %v530
        %v591 = vpack.c.b16 %v533, %v532
        %v592 = vpack.c.b16 %v535, %v534
        %v593 = vpack.c.b16 %v537, %v536
        %v594 = vpack.c.b16 %v539, %v538
        %v595 = vpack.c.b16 %v541, %v540
        %v596 = vpack.c.b16 %v543, %v542
        %v597 = vpack.c.b16 %v545, %v544
        %v598 = vpack.c.b16 %v547, %v546
        %v599 = vpack.c.b16 %v549, %v548
        %v600 = vpack.c.b16 %v551, %v550
        %v601 = vpack.c.b16 %v553, %v552
        %v602 = vpack.c.b16 %v555, %v554
        %v603 = vpack.c.b16 %v557, %v556
        %v604 = vpack.c.b16 %v559, %v558
        %v605 = vpack.c.b16 %v561, %v560
        %v606 = vpack.c.b16 %v563, %v562
        %v607 = vpack.c.b16 %v565, %v564
        %v608 = vpack.c.b16 %v567, %v566
        %v609 = vpack.c.b16 %v569, %v568
        %v610 = vpack.c.b16 %v571, %v570
        %v611 = vpack.c.b16 %v573, %v572
        %v612 = vpack.c.b16 %v575, %v574
        %v613 = vpack.c.b16 %v577, %v576
        %v614 = vpack.c.b16 %v579, %v578
        %v615 = vpack.c.b16 %v581, %v580
        %v616 = vpack.c.b16 %v583, %v582
        %v617 = vpack.c.b16 %v585, %v584
        %650 = vmatprep.subr.bf16.mxu0 0
        %651 = vmatpush1.bf16.msra.mxu0 %v593
        %652 = vmatprep.subr.bf16.mxu0 0
        %653 = vmatpush1.bf16.msra.mxu0 %v592
        %654 = vmatprep.subr.bf16.mxu0 0
        %655 = vmatpush1.bf16.msra.mxu0 %v591
        %656 = vmatprep.subr.bf16.mxu0 0
        %657 = vmatpush1.bf16.msra.mxu0 %v590
        %658 = vmatprep.subr.bf16.mxu0 0
        %659 = vmatpush1.bf16.msra.mxu0 %v589
        %660 = vmatprep.subr.bf16.mxu0 0
        %661 = vmatpush1.bf16.msra.mxu0 %v588
        %662 = vmatprep.subr.bf16.mxu0 0
        %663 = vmatpush1.bf16.msra.mxu0 %v587
        %664 = vmatprep.subr.bf16.mxu0 0
        %665 = vmatpush1.bf16.msra.mxu0 %v586
        %666 = vmatprep.subr.bf16.mxu0 0
        %667 = vmatpush2.bf16.msra.mxu0 %v601
        %668 = vmatprep.subr.bf16.mxu0 0
        %669 = vmatpush2.bf16.msra.mxu0 %v600
        %670 = vmatprep.subr.bf16.mxu0 0
        %671 = vmatpush2.bf16.msra.mxu0 %v599
        %672 = vmatprep.subr.bf16.mxu0 0
        %673 = vmatpush2.bf16.msra.mxu0 %v598
        %674 = vmatprep.subr.bf16.mxu0 0
        %675 = vmatpush2.bf16.msra.mxu0 %v597
        %676 = vmatprep.subr.bf16.mxu0 0
        %677 = vmatpush2.bf16.msra.mxu0 %v596
        %678 = vmatprep.subr.bf16.mxu0 0
        %679 = vmatpush2.bf16.msra.mxu0 %v595
        %680 = vmatprep.subr.bf16.mxu0 0
        %681 = vmatpush2.bf16.msra.mxu0 %v594
        %682 = vmatprep.mubr.bf16.mxu0 %v443
        %683 = vmatmul.mubr.bf16.gmra.mxu0 %v442
        %v684 = vpop.f32.mrf.mxu0
        %v685 = vadd.f32 0.0, %v684
        %v686 = vpop.f32.mrf.mxu0
        %v687 = vpop.f32.mrf.mxu0
        %v688 = vadd.f32 0.0, %v687
        %v689 = vpop.f32.mrf.mxu0
        %690 = vmatprep.mubr.bf16.mxu0 %v447
        %691 = vmatmul.mubr.bf16.gmra.mxu0 %v446
        %v692 = vpop.f32.mrf.mxu0
        %v693 = vadd.f32 0.0, %v692
        %v694 = vpop.f32.mrf.mxu0
        %v695 = vpop.f32.mrf.mxu0
        %v696 = vadd.f32 0.0, %v695
        %v697 = vpop.f32.mrf.mxu0
        %698 = vdwg.mxu0
        %699 = vmatprep.subr.bf16.mxu0 0
        %700 = vmatpush1.bf16.msra.mxu0 %v609
        %701 = vmatprep.subr.bf16.mxu0 0
        %702 = vmatpush1.bf16.msra.mxu0 %v608
        %703 = vmatprep.subr.bf16.mxu0 0
        %704 = vmatpush1.bf16.msra.mxu0 %v607
        %705 = vmatprep.subr.bf16.mxu0 0
        %706 = vmatpush1.bf16.msra.mxu0 %v606
        %707 = vmatprep.subr.bf16.mxu0 0
        %708 = vmatpush1.bf16.msra.mxu0 %v605
        %709 = vmatprep.subr.bf16.mxu0 0
        %710 = vmatpush1.bf16.msra.mxu0 %v604
        %711 = vmatprep.subr.bf16.mxu0 0
        %712 = vmatpush1.bf16.msra.mxu0 %v603
        %713 = vmatprep.subr.bf16.mxu0 0
        %714 = vmatpush1.bf16.msra.mxu0 %v602
        %715 = vmatprep.subr.bf16.mxu0 0
        %716 = vmatpush2.bf16.msra.mxu0 %v617
        %717 = vmatprep.subr.bf16.mxu0 0
        %718 = vmatpush2.bf16.msra.mxu0 %v616
        %719 = vmatprep.subr.bf16.mxu0 0
        %720 = vmatpush2.bf16.msra.mxu0 %v615
        %721 = vmatprep.subr.bf16.mxu0 0
        %722 = vmatpush2.bf16.msra.mxu0 %v614
        %723 = vmatprep.subr.bf16.mxu0 0
        %724 = vmatpush2.bf16.msra.mxu0 %v613
        %725 = vmatprep.subr.bf16.mxu0 0
        %726 = vmatpush2.bf16.msra.mxu0 %v612
        %727 = vmatprep.subr.bf16.mxu0 0
        %728 = vmatpush2.bf16.msra.mxu0 %v611
        %729 = vmatprep.subr.bf16.mxu0 0
        %730 = vmatpush2.bf16.msra.mxu0 %v610
        %731 = vmatprep.mubr.bf16.mxu0 %v445
        %732 = vmatmul.mubr.bf16.gmra.mxu0 %v444
        %v733 = vpop.f32.mrf.mxu0
        %v734 = vadd.f32 %v685, %v733
        %v735 = vpop.f32.mrf.mxu0
        %v736 = vpop.f32.mrf.mxu0
        %v737 = vadd.f32 %v688, %v736
        %v738 = vpop.f32.mrf.mxu0
        %739 = vmatprep.mubr.bf16.mxu0 %v449
        %740 = vmatmul.mubr.bf16.gmra.mxu0 %v448
        %v741 = vpop.f32.mrf.mxu0
        %v742 = vadd.f32 %v693, %v741
        %v743 = vpop.f32.mrf.mxu0
        %v744 = vpop.f32.mrf.mxu0
        %v745 = vadd.f32 %v696, %v744
        %v746 = vpop.f32.mrf.mxu0
        %747 = vdwg.mxu0
        %v748 = vadd.f32 %v342, %v734
        %v749 = vadd.f32 %v343, %v737
        %v750 = vadd.f32 %v344, %v742
        %v751 = vadd.f32 %v345, %v745
        %752 = vst [vmem:[#allocation2] sm:$0xff] %v748
        %753 = vst [vmem:[#allocation2 + $0x8] sm:$0xff] %v749
        %754 = vst [vmem:[#allocation2 + $0x10] sm:$0xff] %v750
        %755 = vst [vmem:[#allocation2 + $0x18] sm:$0xff] %v751
        %p756 = scmp.eq.s32.totalorder %s23, 1
        // Predicated region
        $region60: #{generator_forward.12} parent=50 // pred_check
          %p757 = pneg %p756
        $region61: #{generator_forward.12} parent=50 // pred_check_branch
          %759 = sbr.rel (%p757) target = $region63
        $region62: #{generator_forward.12} parent=50 // pred_region
          %v760 = vld [vmem:[#allocation2] sm:$0xff]
          %v761 = vld [vmem:[#allocation2 + $0x8] sm:$0xff]
          %v762 = vld [vmem:[#allocation2 + $0x10] sm:$0xff]
          %v763 = vld [vmem:[#allocation2 + $0x18] sm:$0xff]
          %v764 = vld [vmem:[%s319] sm:$0x1]
          %v766 = vlaneseq
          %v767 = vshrl.u32 %v766, 7
          %v768 = vsub.s32 0, %v767
          %v769 = vrot.slane %v764, %v768
          %v771 = vadd.f32 %v760, %v769
          %v772 = vadd.f32 %v761, %v769
          %v773 = vadd.f32 %v762, %v769
          %v774 = vadd.f32 %v763, %v769
          %vm775 = vcmp.ge.f32.partialorder %v771, 0.0
          %vm776 = vcmp.ge.f32.partialorder %v772, 0.0
          %vm777 = vcmp.ge.f32.partialorder %v773, 0.0
          %vm778 = vcmp.ge.f32.partialorder %v774, 0.0
          %v779 = vmul.f32 %v771, 0.2
          %v780 = vmul.f32 %v772, 0.2
          %v781 = vmul.f32 %v773, 0.2
          %v782 = vmul.f32 %v774, 0.2
          %v783 = vsel %vm775, %v771, %v779
          %v784 = vsel %vm776, %v772, %v780
          %v785 = vsel %vm777, %v773, %v781
          %v786 = vsel %vm778, %v774, %v782
          %787 = vst [vmem:[%s331] sm:$0xff] %v783
          %788 = vst [vmem:[%s331 + $0x8] sm:$0xff] %v784
          %789 = vst [vmem:[%s331 + $0x10] sm:$0xff] %v785
          %790 = vst [vmem:[%s331 + $0x18] sm:$0xff] %v786
        $region63: #{generator_forward.12} parent=50 // pred_fallthru
          _
        %s791 = smul.u32 4, %s21
        %p792 = scmp.lt.s32.totalorder %s20, 0
        %s793 = scalar_select %p792, %s20, 0
        %p794 = scmp.lt.s32.totalorder %s791, 3
        %s795 = scalar_select %p794, %s791, 3
        %p796 = scmp.lt.s32.totalorder %s22, 0
        %s797 = scalar_select %p796, %s22, 0
        %s798 = sadd.s32 %s797, %s795
        %s799 = smul.addr %s793, 4
        %s800 = sadd.s32 %s798, %s799
        %s801 = smul.addr %s800, 8
        %s802 = scalar_lea.vmem %s3, %s801
        // Predicated region
        $region64: #{generator_forward.12} parent=50 // pred_check
          %p803 = pneg %p150
        $region65: #{generator_forward.12} parent=50 // pred_check_branch
          %805 = sbr.rel (%p803) target = $region67
        $region66: #{generator_forward.12} parent=50 // pred_region
          %s806 = smul.u32 4, %s21
        $region67: #{generator_forward.12} parent=50 // pred_fallthru
          _
        // Predicated region
        $region68: #{generator_forward.12} parent=50 // pred_check
          %p807 = pneg %p150
        $region69: #{generator_forward.12} parent=50 // pred_check_branch
          %809 = sbr.rel (%p807) target = $region71
        $region70: #{generator_forward.12} parent=50 // pred_region
          %s810 = smul.u32 4, %s21
          %p811 = scmp.lt.s32.totalorder %s20, 0
          %s812 = scalar_select %p811, %s20, 0
          %p813 = scmp.lt.s32.totalorder %s810, 3
          %s814 = scalar_select %p813, %s810, 3
          %p815 = scmp.lt.s32.totalorder %s22, 0
          %s816 = scalar_select %p815, %s22, 0
          %s817 = sadd.s32 %s816, %s814
          %s818 = smul.addr %s812, 4
          %s819 = sadd.s32 %s817, %s818
          %s820 = smul.addr %s819, 8
          %s821 = scalar_lea.vmem %s3, %s820
        $region71: #{generator_forward.12} parent=50 // pred_fallthru
          _
      $region51: #{generator_forward.12} parent=5 // pred_fallthru
        _
      %p822 = scmp.le.s32.totalorder 2, %s9
      // Predicated region
      $region72: #{generator_forward.12} parent=5 // pred_check
        %p823 = pneg %p822
      $region73: #{generator_forward.12} parent=5 // pred_check_branch
        %825 = sbr.rel (%p823) target = $region75
      $region74: #{generator_forward.12} parent=5 // pred_region
        %s826 = ssub.s32 %s9, 2
      $region75: #{generator_forward.12} parent=5 // pred_fallthru
        _
    $region6: #{generator_forward.12} parent=1 // loop_footer
      %s13 = sadd.s32 1, %s9
    $region7: #{generator_forward.12} parent=1 // loop_footer_branch
      %8 = sbr.rel target = $region3
    $region8: #{generator_forward.12} parent=1 // loop_exit
      _

// kernel: squeeze.70
$region0: #{squeeze.70}
  %s0 = inlined_call_operand.vmem [shape: f32[1,8,256], index: 0, kind: input, shape index: {}]
  %s1 = inlined_call_operand.vmem [shape: f32[2,4,256], index: 1, kind: output, shape index: {}]
  $region1: #{squeeze.70} parent=0
    #allocation0 [shape = 'u8[16384]{0}', space=vmem, size = 0x4000, scoped, tag = 'scoped mem for output reshape']
    %v2 = vld [vmem:[%s0] sm:$0xff]
    %3 = vst [vmem:[#allocation0] sm:$0xf] %v2
    %s4 = scalar_lea.vmem [#allocation0], 12
    %5 = vst [vmem:[%s4] sm:$0xf0] %v2
    %s6 = scalar_lea.vmem %s0, 8
    %v7 = vld [vmem:[%s6] sm:$0xff]
    %s8 = scalar_lea.vmem [#allocation0], 8
    %9 = vst [vmem:[%s8] sm:$0xf] %v7
    %s10 = scalar_lea.vmem [#allocation0], 20
    %11 = vst [vmem:[%s10] sm:$0xf0] %v7
    %s13 = sshll.u32 1, 4
    %s14 = ssub.s32 %s13, 1
    %v16 = vld [vmem:[#allocation0] sm:%s14]
    %s17 = sshll.u32 1, 4
    %s18 = ssub.s32 %s17, 1
    %19 = vst [vmem:[%s1] sm:%s18] %v16
    %s20 = scalar_lea.vmem [#allocation0], 8
    %v21 = vld [vmem:[%s20] sm:%s14]
    %s22 = sshll.u32 1, 4
    %s23 = ssub.s32 %s22, 1
    %s24 = scalar_lea.vmem %s1, 4
    %25 = vst [vmem:[%s24] sm:%s23] %v21
    %s26 = scalar_lea.vmem [#allocation0], 16
    %v27 = vld [vmem:[%s26] sm:%s14]
    %s28 = sshll.u32 1, 4
    %s29 = ssub.s32 %s28, 1
    %s30 = smul.addr 4, 2
    %s31 = scalar_lea.vmem %s1, %s30
    %32 = vst [vmem:[%s31] sm:%s29] %v27
    %s33 = scalar_lea.vmem [#allocation0], 24
    %v34 = vld [vmem:[%s33] sm:%s14]
    %s35 = sshll.u32 1, 4
    %s36 = ssub.s32 %s35, 1
    %s37 = smul.addr 4, 3
    %s38 = scalar_lea.vmem %s1, %s37
    %39 = vst [vmem:[%s38] sm:%s36] %v34

// kernel: generator_forward.13
$region0: #{generator_forward.13}
  #allocation0 [shape = 'u32[]', space=smem, size = 0x4, offset = 0x4, fixed_abs, tag = 'smem constant byte address 0x4 - core index']
  #allocation1 [shape = 'u32[144,128]{1,0:T(1,128)}', space=vmem, size = 0x12000, scoped, tag = 'internal scratch']
  #allocation2 [shape = 'f32[16,256]{1,0:T(8,128)}', space=vmem, size = 0x4000, scoped, tag = 'scratch operand']
  %s0 = inlined_call_operand.vmem [shape: bf16[1,16,2048], index: 0, kind: input, shape index: {}]
  %s1 = inlined_call_operand.vmem [shape: bf16[1,2048,256], index: 1, kind: input, shape index: {}]
  %s2 = inlined_call_operand.vmem [shape: f32[1,1,256], index: 2, kind: input, shape index: {}]
  %s3 = inlined_call_operand.vmem [shape: f32[1,16,256], index: 3, kind: output, shape index: {}]
  %s4 = sld [smem:[#allocation0]]
  $region76: #{generator_forward.13} parent=0
    _
  %s6 = ssub.s32 1, %s4
  %s7 = scalar_select 0, %s6, %s4
  $region1: #{generator_forward.13} parent=0
    #allocation3 [shape = 'u8[32768]{0}', space=vmem, size = 0x8000, scoped, tag = 'input window, operand 0']
    loop: start=0, step=1, limit=6
    $region2: #{generator_forward.13} parent=1 // loop_pre_header
      _
    $region3: #{generator_forward.13} parent=1 // loop_header
      %s9 = sphi 0, %s13
      %p10 = scmp.ge.s32.totalorder %s9, 6
      %s16 = sphi 0, %s42
      %s17 = sphi 0, %s38
      %s18 = sphi 0, %s34
      %s19 = sphi 0, %s30
      %s20 = sphi 0, %s16
      %s21 = sphi 0, %s17
      %s22 = sphi 0, %s18
      %s23 = sphi 0, %s19
      %s24 = sphi 0, %s20
      %s25 = sphi 0, %s21
      %s26 = sphi 0, %s22
      %s27 = sphi 0, %s23
      %s49 = sphi 0, %s51
      %s52 = sphi 0, %s49
      %s53 = sphi 0, %s52
      %s69 = sphi 0, %s53
      %s79 = sphi 0, %s81
      %s82 = sphi 0, %s79
      %s83 = sphi 0, %s82
      %s99 = sphi 0, %s83
      %s107 = sphi 0, %s109
      %s110 = sphi 0, %s107
      %s111 = sphi 0, %s110
      %s127 = sphi 0, %s111
      %s137 = sphi 0, %s139
      %s140 = sphi 0, %s137
      %s141 = sphi 0, %s140
      %s157 = sphi 0, %s141
    $region4: #{generator_forward.13} parent=1 // loop_header_branch
      %12 = sbr.rel (%p10) target = $region8
    $region5: #{generator_forward.13} parent=1 // loop_body
      %s14 = ssub.s32 %s9, 1
      %s15 = ssub.s32 %s9, 2
      %s28 = sadd.s32 1, %s19
      %p29 = scmp.ge.s32.totalorder %s28, 4
      %s30 = scalar_select %p29, 0, %s28
      %s31 = sadd.s32 1, %s18
      %s32 = scalar_select %p29, %s31, %s18
      %p33 = scmp.ge.s32.totalorder %s32, 1
      %s34 = scalar_select %p33, 0, %s32
      %s35 = sadd.s32 1, %s17
      %s36 = scalar_select %p33, %s35, %s17
      %p37 = scmp.ge.s32.totalorder %s36, 1
      %s38 = scalar_select %p37, 0, %s36
      %s39 = sadd.s32 1, %s16
      %s40 = scalar_select %p37, %s39, %s16
      %p41 = scmp.ge.s32.totalorder %s40, 1
      %s42 = scalar_select %p41, 0, %s40
      %s43 = ssub.s32 %s16, %s42
      %s44 = ssub.s32 %s17, %s38
      %s45 = sor.u32 %s43, %s44
      %s46 = ssub.s32 %s19, %s30
      %s47 = sor.u32 %s45, %s46
      %p48 = scmp.eq.s32.totalorder %s47, 0
      %s50 = sadd.s32 %s49, 1
      %s51 = scalar_select %p48, %s49, %s50
      %p54 = pneg %p48
      %p55 = scmp.eq.s32.totalorder %s9, 3
      %p56 = por %p54, %p55
      %p57 = scmp.ne.s32.totalorder %s49, %s52
      %p58 = scmp.eq.s32.totalorder %s9, 0
      %p59 = por %p57, %p58
      %p60 = scmp.ne.s32.totalorder %s49, %s52
      %p61 = scmp.eq.s32.totalorder %s14, 3
      %p62 = por %p60, %p61
      %p63 = scmp.ne.s32.totalorder %s52, %s53
      %p64 = scmp.eq.s32.totalorder %s14, 0
      %p65 = por %p63, %p64
      %p66 = scmp.ne.s32.totalorder %s52, %s53
      %p67 = scmp.eq.s32.totalorder %s15, 3
      %p68 = por %p66, %p67
      %p70 = scmp.ne.s32.totalorder %s53, %s69
      %p71 = scmp.eq.s32.totalorder %s15, 0
      %p72 = por %p70, %p71
      %s73 = ssub.s32 %s16, %s42
      %s74 = ssub.s32 %s19, %s30
      %s75 = sor.u32 %s73, %s74
      %s76 = ssub.s32 %s18, %s34
      %s77 = sor.u32 %s75, %s76
      %p78 = scmp.eq.s32.totalorder %s77, 0
      %s80 = sadd.s32 %s79, 1
      %s81 = scalar_select %p78, %s79, %s80
      %p84 = pneg %p78
      %p85 = scmp.eq.s32.totalorder %s9, 3
      %p86 = por %p84, %p85
      %p87 = scmp.ne.s32.totalorder %s79, %s82
      %p88 = scmp.eq.s32.totalorder %s9, 0
      %p89 = por %p87, %p88
      %p90 = scmp.ne.s32.totalorder %s79, %s82
      %p91 = scmp.eq.s32.totalorder %s14, 3
      %p92 = por %p90, %p91
      %p93 = scmp.ne.s32.totalorder %s82, %s83
      %p94 = scmp.eq.s32.totalorder %s14, 0
      %p95 = por %p93, %p94
      %p96 = scmp.ne.s32.totalorder %s82, %s83
      %p97 = scmp.eq.s32.totalorder %s15, 3
      %p98 = por %p96, %p97
      %p100 = scmp.ne.s32.totalorder %s83, %s99
      %p101 = scmp.eq.s32.totalorder %s15, 0
      %p102 = por %p100, %p101
      %s103 = ssub.s32 %s16, %s42
      %s104 = ssub.s32 %s18, %s34
      %s105 = sor.u32 %s103, %s104
      %p106 = scmp.eq.s32.totalorder %s105, 0
      %s108 = sadd.s32 %s107, 1
      %s109 = scalar_select %p106, %s107, %s108
      %p112 = pneg %p106
      %p113 = scmp.eq.s32.totalorder %s9, 3
      %p114 = por %p112, %p113
      %p115 = scmp.ne.s32.totalorder %s107, %s110
      %p116 = scmp.eq.s32.totalorder %s9, 0
      %p117 = por %p115, %p116
      %p118 = scmp.ne.s32.totalorder %s107, %s110
      %p119 = scmp.eq.s32.totalorder %s14, 3
      %p120 = por %p118, %p119
      %p121 = scmp.ne.s32.totalorder %s110, %s111
      %p122 = scmp.eq.s32.totalorder %s14, 0
      %p123 = por %p121, %p122
      %p124 = scmp.ne.s32.totalorder %s110, %s111
      %p125 = scmp.eq.s32.totalorder %s15, 3
      %p126 = por %p124, %p125
      %p128 = scmp.ne.s32.totalorder %s111, %s127
      %p129 = scmp.eq.s32.totalorder %s15, 0
      %p130 = por %p128, %p129
      %s131 = ssub.s32 %s16, %s42
      %s132 = ssub.s32 %s17, %s38
      %s133 = sor.u32 %s131, %s132
      %s134 = ssub.s32 %s18, %s34
      %s135 = sor.u32 %s133, %s134
      %p136 = scmp.eq.s32.totalorder %s135, 0
      %s138 = sadd.s32 %s137, 1
      %s139 = scalar_select %p136, %s137, %s138
      %p142 = pneg %p136
      %p143 = scmp.eq.s32.totalorder %s9, 3
      %p144 = por %p142, %p143
      %p145 = scmp.ne.s32.totalorder %s137, %s140
      %p146 = scmp.eq.s32.totalorder %s9, 0
      %p147 = por %p145, %p146
      %p148 = scmp.ne.s32.totalorder %s137, %s140
      %p149 = scmp.eq.s32.totalorder %s14, 3
      %p150 = por %p148, %p149
      %p151 = scmp.ne.s32.totalorder %s140, %s141
      %p152 = scmp.eq.s32.totalorder %s14, 0
      %p153 = por %p151, %p152
      %p154 = scmp.ne.s32.totalorder %s140, %s141
      %p155 = scmp.eq.s32.totalorder %s15, 3
      %p156 = por %p154, %p155
      %p158 = scmp.ne.s32.totalorder %s141, %s157
      %p159 = scmp.eq.s32.totalorder %s15, 0
      %p160 = por %p158, %p159
      %p161 = scmp.le.s32.totalorder 1, %s9
      %p162 = scmp.lt.s32.totalorder %s9, 5
      %p163 = pnand %p161, %p162
      %p164 = pneg %p163
      // Predicated region
      $region9: #{generator_forward.13} parent=5 // pred_check
        _
      $region10: #{generator_forward.13} parent=5 // pred_check_branch
        %166 = sbr.rel (%p163) target = $region12
      $region11: #{generator_forward.13} parent=5 // pred_region
        %s167 = ssub.s32 %s9, 1
        // Predicated region
        $region13: #{generator_forward.13} parent=11 // pred_check
          %p168 = pneg %p123
        $region14: #{generator_forward.13} parent=11 // pred_check_branch
          %170 = sbr.rel (%p168) target = $region16
        $region15: #{generator_forward.13} parent=11 // pred_region
          %s171 = smul.u32 2, %s22
          %p172 = scmp.lt.s32.totalorder %s20, 0
          %s173 = scalar_select %p172, %s20, 0
          %p174 = scmp.lt.s32.totalorder %s171, 1
          %s175 = scalar_select %p174, %s171, 1
          %s176 = smul.addr %s173, 2
          %s177 = sadd.s32 %s175, %s176
          %s178 = scalar_lea.vmem %s2, %s177
          %s179 = smul.u32 2, %s22
        $region16: #{generator_forward.13} parent=11 // pred_fallthru
          _
      $region12: #{generator_forward.13} parent=5 // pred_fallthru
        _
      %p180 = scmp.lt.s32.totalorder %s9, 4
      // Predicated region
      $region17: #{generator_forward.13} parent=5 // pred_check
        %p181 = pneg %p180
      $region18: #{generator_forward.13} parent=5 // pred_check_branch
        %183 = sbr.rel (%p181) target = $region20
      $region19: #{generator_forward.13} parent=5 // pred_region
        // Predicated region
        $region21: #{generator_forward.13} parent=19 // pred_check
          %p184 = pneg %p59
        $region22: #{generator_forward.13} parent=19 // pred_check_branch
          %186 = sbr.rel (%p184) target = $region24
        $region23: #{generator_forward.13} parent=19 // pred_region
          %s187 = sand.u32 %s49, 1
          %s188 = sand.u32 %s49, 1
          %s189 = smul.addr %s188, 32
          %s190 = scalar_lea.vmem [#allocation3], %s189
          %s191 = smul.u32 2, %s17
          %s192 = smul.u32 4, %s19
          %s193 = smul.addr %s191, 16
          %s194 = sadd.s32 %s192, %s193
          %s195 = smul.addr %s16, 32
          %s196 = sadd.s32 %s194, %s195
          %s197 = smul.addr %s196, 4
          %s198 = scalar_lea.vmem %s0, %s197
          // Predicated region
          $region25: #{generator_forward.13} parent=23 // pred_check
            _
          $region26: #{generator_forward.13} parent=23 // pred_check_branch
            %200 = sbr.rel (0) target = $region28
          $region27: #{generator_forward.13} parent=23 // pred_region
            // Predicated region
            $region29: #{generator_forward.13} parent=27 // pred_check
              _
            $region30: #{generator_forward.13} parent=27 // pred_check_branch
              %202 = sbr.rel (0) target = $region32
            $region31: #{generator_forward.13} parent=27 // pred_region
              loop: start=0, step=1, limit=1
              $region33: #{generator_forward.13} parent=31 // loop_pre_header
                _
              $region34: #{generator_forward.13} parent=31 // loop_header
                %s204 = sphi 0, %s208
                %p205 = scmp.ge.s32.totalorder %s204, 1
                %s209 = sphi %s198, %s198
                %s210 = sphi %s190, %s190
              $region35: #{generator_forward.13} parent=31 // loop_header_branch
                %207 = sbr.rel (%p205) target = $region39
              $region36: #{generator_forward.13} parent=31 // loop_body
                %v211 = vld [vmem:[%s209] sm:$0xff]
                %212 = vst [vmem:[%s210] sm:$0xff] %v211
                %v213 = vld [vmem:[%s209 + $0x8] sm:$0xff]
                %214 = vst [vmem:[%s210 + $0x8] sm:$0xff] %v213
                %v215 = vld [vmem:[%s209 + $0x40] sm:$0xff]
                %216 = vst [vmem:[%s210 + $0x10] sm:$0xff] %v215
                %v217 = vld [vmem:[%s209 + $0x48] sm:$0xff]
                %218 = vst [vmem:[%s210 + $0x18] sm:$0xff] %v217
              $region37: #{generator_forward.13} parent=31 // loop_footer
                %s208 = sadd.s32 1, %s204
              $region38: #{generator_forward.13} parent=31 // loop_footer_branch
                %203 = sbr.rel target = $region34
              $region39: #{generator_forward.13} parent=31 // loop_exit
                _
            $region32: #{generator_forward.13} parent=27 // pred_fallthru
              _
            // Predicated region
            $region40: #{generator_forward.13} parent=27 // pred_check
              _
            $region41: #{generator_forward.13} parent=27 // pred_check_branch
              %220 = sbr.rel target = $region43
            $region42: #{generator_forward.13} parent=27 // pred_region
              _
            $region43: #{generator_forward.13} parent=27 // pred_fallthru
              _
          $region28: #{generator_forward.13} parent=23 // pred_fallthru
            _
          %221 = vnop
        $region24: #{generator_forward.13} parent=19 // pred_fallthru
          _
        // Predicated region
        $region44: #{generator_forward.13} parent=19 // pred_check
          %p222 = pneg %p89
        $region45: #{generator_forward.13} parent=19 // pred_check_branch
          %224 = sbr.rel (%p222) target = $region47
        $region46: #{generator_forward.13} parent=19 // pred_region
          %s225 = smul.u32 64, %s19
          %s226 = smul.u32 2, %s18
          %p227 = scmp.lt.s32.totalorder %s16, 0
          %s228 = scalar_select %p227, %s16, 0
          %p229 = scmp.lt.s32.totalorder %s225, 255
          %s230 = scalar_select %p229, %s225, 255
          %p231 = scmp.lt.s32.totalorder %s226, 1
          %s232 = scalar_select %p231, %s226, 1
          %s233 = smul.addr %s230, 2
          %s234 = sadd.s32 %s232, %s233
          %s235 = smul.addr %s228, 512
          %s236 = sadd.s32 %s234, %s235
          %s237 = smul.addr %s236, 4
          %s238 = scalar_lea.vmem %s1, %s237
          %s239 = smul.u32 64, %s19
          %s240 = smul.u32 2, %s18
        $region47: #{generator_forward.13} parent=19 // pred_fallthru
          _
      $region20: #{generator_forward.13} parent=5 // pred_fallthru
        _
      %p241 = scmp.le.s32.totalorder 1, %s9
      %p242 = scmp.lt.s32.totalorder %s9, 5
      %p243 = pnand %p241, %p242
      %p244 = pneg %p243
      // Predicated region
      $region48: #{generator_forward.13} parent=5 // pred_check
        _
      $region49: #{generator_forward.13} parent=5 // pred_check_branch
        %246 = sbr.rel (%p243) target = $region51
      $region50: #{generator_forward.13} parent=5 // pred_region
        %s247 = ssub.s32 %s9, 1
        %s248 = sand.u32 %s52, 1
        %s249 = sand.u32 %s52, 1
        %s250 = smul.addr %s249, 32
        %s251 = scalar_lea.vmem [#allocation3], %s250
        // Predicated region
        $region52: #{generator_forward.13} parent=50 // pred_check
          %p252 = pneg %p65
        $region53: #{generator_forward.13} parent=50 // pred_check_branch
          %254 = sbr.rel (%p252) target = $region55
        $region54: #{generator_forward.13} parent=50 // pred_region
          _
        $region55: #{generator_forward.13} parent=50 // pred_fallthru
          _
        %s255 = sand.u32 %s52, 1
        %s256 = sand.u32 %s52, 1
        %s257 = smul.addr %s256, 32
        %s258 = scalar_lea.vmem [#allocation3], %s257
        %p259 = pneg %p65
        %p260 = pneg %p62
        %s261 = smul.u32 64, %s23
        %s262 = smul.u32 2, %s22
        %p263 = scmp.lt.s32.totalorder %s20, 0
        %s264 = scalar_select %p263, %s20, 0
        %p265 = scmp.lt.s32.totalorder %s261, 255
        %s266 = scalar_select %p265, %s261, 255
        %p267 = scmp.lt.s32.totalorder %s262, 1
        %s268 = scalar_select %p267, %s262, 1
        %s269 = smul.addr %s266, 2
        %s270 = sadd.s32 %s268, %s269
        %s271 = smul.addr %s264, 512
        %s272 = sadd.s32 %s270, %s271
        %s273 = smul.addr %s272, 4
        %s274 = scalar_lea.vmem %s1, %s273
        %p275 = pneg %p95
        %p276 = pneg %p92
        %s277 = smul.u32 2, %s22
        %p278 = scmp.lt.s32.totalorder %s20, 0
        %s279 = scalar_select %p278, %s20, 0
        %p280 = scmp.lt.s32.totalorder %s277, 1
        %s281 = scalar_select %p280, %s277, 1
        %s282 = smul.addr %s279, 2
        %s283 = sadd.s32 %s281, %s282
        %s284 = scalar_lea.vmem %s2, %s283
        %p285 = pneg %p123
        %p286 = pneg %p120
        %p287 = pneg %p153
        %p288 = pneg %p150
        %s289 = smul.u32 2, %s21
        %s290 = smul.u32 2, %s22
        %p291 = scmp.lt.s32.totalorder %s20, 0
        %s292 = scalar_select %p291, %s20, 0
        %p293 = scmp.lt.s32.totalorder %s289, 1
        %s294 = scalar_select %p293, %s289, 1
        %p295 = scmp.lt.s32.totalorder %s290, 1
        %s296 = scalar_select %p295, %s290, 1
        %s297 = smul.addr %s294, 2
        %s298 = sadd.s32 %s296, %s297
        %s299 = smul.addr %s292, 4
        %s300 = sadd.s32 %s298, %s299
        %s301 = smul.addr %s300, 8
        %s302 = scalar_lea.vmem %s3, %s301
        %s303 = smul.u32 2, %s21
        %s304 = smul.u32 4, %s23
        %s305 = smul.u32 64, %s23
        %s306 = smul.u32 2, %s22
        %p307 = scmp.lt.s32.totalorder %s20, 0
        %s308 = scalar_select %p307, %s20, 0
        %p309 = scmp.lt.s32.totalorder %s305, 255
        %s310 = scalar_select %p309, %s305, 255
        %p311 = scmp.lt.s32.totalorder %s306, 1
        %s312 = scalar_select %p311, %s306, 1
        %s313 = smul.addr %s310, 2
        %s314 = sadd.s32 %s312, %s313
        %s315 = smul.addr %s308, 512
        %s316 = sadd.s32 %s314, %s315
        %s317 = smul.addr %s316, 4
        %s318 = scalar_lea.vmem %s1, %s317
        %s319 = smul.u32 64, %s23
        %s320 = smul.u32 2, %s22
        %s321 = smul.u32 2, %s22
        %p322 = scmp.lt.s32.totalorder %s20, 0
        %s323 = scalar_select %p322, %s20, 0
        %p324 = scmp.lt.s32.totalorder %s321, 1
        %s325 = scalar_select %p324, %s321, 1
        %s326 = smul.addr %s323, 2
        %s327 = sadd.s32 %s325, %s326
        %s328 = scalar_lea.vmem %s2, %s327
        %s329 = smul.u32 2, %s22
        %s330 = smul.u32 2, %s21
        %s331 = smul.u32 2, %s22
        %p332 = scmp.lt.s32.totalorder %s20, 0
        %s333 = scalar_select %p332, %s20, 0
        %p334 = scmp.lt.s32.totalorder %s330, 1
        %s335 = scalar_select %p334, %s330, 1
        %p336 = scmp.lt.s32.totalorder %s331, 1
        %s337 = scalar_select %p336, %s331, 1
        %s338 = smul.addr %s335, 2
        %s339 = sadd.s32 %s337, %s338
        %s340 = smul.addr %s333, 4
        %s341 = sadd.s32 %s339, %s340
        %s342 = smul.addr %s341, 8
        %s343 = scalar_lea.vmem %s3, %s342
        %s344 = smul.u32 2, %s21
        %s345 = smul.u32 2, %s22
        %p346 = scmp.eq.s32.totalorder %s23, 0
        // Predicated region
        $region56: #{generator_forward.13} parent=50 // pred_check
          %p347 = pneg %p346
        $region57: #{generator_forward.13} parent=50 // pred_check_branch
          %349 = sbr.rel (%p347) target = $region59
        $region58: #{generator_forward.13} parent=50 // pred_region
          %350 = vst [vmem:[#allocation2] sm:$0xff] 0.0
          %351 = vst [vmem:[#allocation2 + $0x8] sm:$0xff] 0.0
          %352 = vst [vmem:[#allocation2 + $0x10] sm:$0xff] 0.0
          %353 = vst [vmem:[#allocation2 + $0x18] sm:$0xff] 0.0
        $region59: #{generator_forward.13} parent=50 // pred_fallthru
          _
        %v354 = vld [vmem:[#allocation2] sm:$0xff]
        %v355 = vld [vmem:[#allocation2 + $0x8] sm:$0xff]
        %v356 = vld [vmem:[#allocation2 + $0x10] sm:$0xff]
        %v357 = vld [vmem:[#allocation2 + $0x18] sm:$0xff]
        %v358 = vld [vmem:[%s251] sm:$0xff]
        %v359 = vld [vmem:[%s251 + $0x8] sm:$0xff]
        %v360 = vld [vmem:[%s251 + $0x10] sm:$0xff]
        %v361 = vld [vmem:[%s251 + $0x18] sm:$0xff]
        %v362 = vld [vmem:[%s318] sm:$0xff]
        %v363 = vld [vmem:[%s318 + $0x8] sm:$0xff]
        %v364 = vld [vmem:[%s318 + $0x10] sm:$0xff]
        %v365 = vld [vmem:[%s318 + $0x18] sm:$0xff]
        %v366 = vld [vmem:[%s318 + $0x20] sm:$0xff]
        %v367 = vld [vmem:[%s318 + $0x28] sm:$0xff]
        %v368 = vld [vmem:[%s318 + $0x30] sm:$0xff]
        %v369 = vld [vmem:[%s318 + $0x38] sm:$0xff]
        %v370 = vld [vmem:[%s318 + $0x40] sm:$0xff]
        %v371 = vld [vmem:[%s318 + $0x48] sm:$0xff]
        %v372 = vld [vmem:[%s318 + $0x50] sm:$0xff]
        %v373 = vld [vmem:[%s318 + $0x58] sm:$0xff]
        %v374 = vld [vmem:[%s318 + $0x60] sm:$0xff]
        %v375 = vld [vmem:[%s318 + $0x68] sm:$0xff]
        %v376 = vld [vmem:[%s318 + $0x70] sm:$0xff]
        %v377 = vld [vmem:[%s318 + $0x78] sm:$0xff]
        %v378 = vld [vmem:[%s318 + $0x80] sm:$0xff]
        %v379 = vld [vmem:[%s318 + $0x88] sm:$0xff]
        %v380 = vld [vmem:[%s318 + $0x90] sm:$0xff]
        %v381 = vld [vmem:[%s318 + $0x98] sm:$0xff]
        %v382 = vld [vmem:[%s318 + $0xa0] sm:$0xff]
        %v383 = vld [vmem:[%s318 + $0xa8] sm:$0xff]
        %v384 = vld [vmem:[%s318 + $0xb0] sm:$0xff]
        %v385 = vld [vmem:[%s318 + $0xb8] sm:$0xff]
        %v386 = vld [vmem:[%s318 + $0xc0] sm:$0xff]
        %v387 = vld [vmem:[%s318 + $0xc8] sm:$0xff]
        %v388 = vld [vmem:[%s318 + $0xd0] sm:$0xff]
        %v389 = vld [vmem:[%s318 + $0xd8] sm:$0xff]
        %v390 = vld [vmem:[%s318 + $0xe0] sm:$0xff]
        %v391 = vld [vmem:[%s318 + $0xe8] sm:$0xff]
        %v392 = vld [vmem:[%s318 + $0xf0] sm:$0xff]
        %v393 = vld [vmem:[%s318 + $0xf8] sm:$0xff]
        %v394 = vld [vmem:[%s318 + $0x100] sm:$0xff]
        %v395 = vld [vmem:[%s318 + $0x108] sm:$0xff]
        %v396 = vld [vmem:[%s318 + $0x110] sm:$0xff]
        %v397 = vld [vmem:[%s318 + $0x118] sm:$0xff]
        %v398 = vld [vmem:[%s318 + $0x120] sm:$0xff]
        %v399 = vld [vmem:[%s318 + $0x128] sm:$0xff]
        %v400 = vld [vmem:[%s318 + $0x130] sm:$0xff]
        %v401 = vld [vmem:[%s318 + $0x138] sm:$0xff]
        %v402 = vld [vmem:[%s318 + $0x140] sm:$0xff]
        %v403 = vld [vmem:[%s318 + $0x148] sm:$0xff]
        %v404 = vld [vmem:[%s318 + $0x150] sm:$0xff]
        %v405 = vld [vmem:[%s318 + $0x158] sm:$0xff]
        %v406 = vld [vmem:[%s318 + $0x160] sm:$0xff]
        %v407 = vld [vmem:[%s318 + $0x168] sm:$0xff]
        %v408 = vld [vmem:[%s318 + $0x170] sm:$0xff]
        %v409 = vld [vmem:[%s318 + $0x178] sm:$0xff]
        %v410 = vld [vmem:[%s318 + $0x180] sm:$0xff]
        %v411 = vld [vmem:[%s318 + $0x188] sm:$0xff]
        %v412 = vld [vmem:[%s318 + $0x190] sm:$0xff]
        %v413 = vld [vmem:[%s318 + $0x198] sm:$0xff]
        %v414 = vld [vmem:[%s318 + $0x1a0] sm:$0xff]
        %v415 = vld [vmem:[%s318 + $0x1a8] sm:$0xff]
        %v416 = vld [vmem:[%s318 + $0x1b0] sm:$0xff]
        %v417 = vld [vmem:[%s318 + $0x1b8] sm:$0xff]
        %v418 = vld [vmem:[%s318 + $0x1c0] sm:$0xff]
        %v419 = vld [vmem:[%s318 + $0x1c8] sm:$0xff]
        %v420 = vld [vmem:[%s318 + $0x1d0] sm:$0xff]
        %v421 = vld [vmem:[%s318 + $0x1d8] sm:$0xff]
        %v422 = vld [vmem:[%s318 + $0x1e0] sm:$0xff]
        %v423 = vld [vmem:[%s318 + $0x1e8] sm:$0xff]
        %v424 = vld [vmem:[%s318 + $0x1f0] sm:$0xff]
        %v425 = vld [vmem:[%s318 + $0x1f8] sm:$0xff]
        %v430 = vunpack.c.l.b16 %v358
        %v431 = vunpack.c.h.b16 %v358
        %v432 = vunpack.c.l.b16 %v359
        %v433 = vunpack.c.h.b16 %v359
        %v434 = vunpack.c.l.b16 %v360
        %v435 = vunpack.c.h.b16 %v360
        %v436 = vunpack.c.l.b16 %v361
        %v437 = vunpack.c.h.b16 %v361
        %v438 = vpack.c.b16 %v434, %v430
        %v439 = vpack.c.b16 %v435, %v431
        %v440 = vpack.c.b16 %v436, %v432
        %v441 = vpack.c.b16 %v437, %v433
        %v510 = vunpack.c.l.b16 %v362
        %v511 = vunpack.c.h.b16 %v362
        %v512 = vunpack.c.l.b16 %v363
        %v513 = vunpack.c.h.b16 %v363
        %v514 = vunpack.c.l.b16 %v364
        %v515 = vunpack.c.h.b16 %v364
        %v516 = vunpack.c.l.b16 %v365
        %v517 = vunpack.c.h.b16 %v365
        %v518 = vunpack.c.l.b16 %v366
        %v519 = vunpack.c.h.b16 %v366
        %v520 = vunpack.c.l.b16 %v367
        %v521 = vunpack.c.h.b16 %v367
        %v522 = vunpack.c.l.b16 %v368
        %v523 = vunpack.c.h.b16 %v368
        %v524 = vunpack.c.l.b16 %v369
        %v525 = vunpack.c.h.b16 %v369
        %v526 = vunpack.c.l.b16 %v370
        %v527 = vunpack.c.h.b16 %v370
        %v528 = vunpack.c.l.b16 %v371
        %v529 = vunpack.c.h.b16 %v371
        %v530 = vunpack.c.l.b16 %v372
        %v531 = vunpack.c.h.b16 %v372
        %v532 = vunpack.c.l.b16 %v373
        %v533 = vunpack.c.h.b16 %v373
        %v534 = vunpack.c.l.b16 %v374
        %v535 = vunpack.c.h.b16 %v374
        %v536 = vunpack.c.l.b16 %v375
        %v537 = vunpack.c.h.b16 %v375
        %v538 = vunpack.c.l.b16 %v376
        %v539 = vunpack.c.h.b16 %v376
        %v540 = vunpack.c.l.b16 %v377
        %v541 = vunpack.c.h.b16 %v377
        %v542 = vunpack.c.l.b16 %v378
        %v543 = vunpack.c.h.b16 %v378
        %v544 = vunpack.c.l.b16 %v379
        %v545 = vunpack.c.h.b16 %v379
        %v546 = vunpack.c.l.b16 %v380
        %v547 = vunpack.c.h.b16 %v380
        %v548 = vunpack.c.l.b16 %v381
        %v549 = vunpack.c.h.b16 %v381
        %v550 = vunpack.c.l.b16 %v382
        %v551 = vunpack.c.h.b16 %v382
        %v552 = vunpack.c.l.b16 %v383
        %v553 = vunpack.c.h.b16 %v383
        %v554 = vunpack.c.l.b16 %v384
        %v555 = vunpack.c.h.b16 %v384
        %v556 = vunpack.c.l.b16 %v385
        %v557 = vunpack.c.h.b16 %v385
        %v558 = vunpack.c.l.b16 %v386
        %v559 = vunpack.c.h.b16 %v386
        %v560 = vunpack.c.l.b16 %v387
        %v561 = vunpack.c.h.b16 %v387
        %v562 = vunpack.c.l.b16 %v388
        %v563 = vunpack.c.h.b16 %v388
        %v564 = vunpack.c.l.b16 %v389
        %v565 = vunpack.c.h.b16 %v389
        %v566 = vunpack.c.l.b16 %v390
        %v567 = vunpack.c.h.b16 %v390
        %v568 = vunpack.c.l.b16 %v391
        %v569 = vunpack.c.h.b16 %v391
        %v570 = vunpack.c.l.b16 %v392
        %v571 = vunpack.c.h.b16 %v392
        %v572 = vunpack.c.l.b16 %v393
        %v573 = vunpack.c.h.b16 %v393
        %v574 = vunpack.c.l.b16 %v394
        %v575 = vunpack.c.h.b16 %v394
        %v576 = vunpack.c.l.b16 %v395
        %v577 = vunpack.c.h.b16 %v395
        %v578 = vunpack.c.l.b16 %v396
        %v579 = vunpack.c.h.b16 %v396
        %v580 = vunpack.c.l.b16 %v397
        %v581 = vunpack.c.h.b16 %v397
        %v582 = vunpack.c.l.b16 %v398
        %v583 = vunpack.c.h.b16 %v398
        %v584 = vunpack.c.l.b16 %v399
        %v585 = vunpack.c.h.b16 %v399
        %v586 = vunpack.c.l.b16 %v400
        %v587 = vunpack.c.h.b16 %v400
        %v588 = vunpack.c.l.b16 %v401
        %v589 = vunpack.c.h.b16 %v401
        %v590 = vunpack.c.l.b16 %v402
        %v591 = vunpack.c.h.b16 %v402
        %v592 = vunpack.c.l.b16 %v403
        %v593 = vunpack.c.h.b16 %v403
        %v594 = vunpack.c.l.b16 %v404
        %v595 = vunpack.c.h.b16 %v404
        %v596 = vunpack.c.l.b16 %v405
        %v597 = vunpack.c.h.b16 %v405
        %v598 = vunpack.c.l.b16 %v406
        %v599 = vunpack.c.h.b16 %v406
        %v600 = vunpack.c.l.b16 %v407
        %v601 = vunpack.c.h.b16 %v407
        %v602 = vunpack.c.l.b16 %v408
        %v603 = vunpack.c.h.b16 %v408
        %v604 = vunpack.c.l.b16 %v409
        %v605 = vunpack.c.h.b16 %v409
        %v606 = vunpack.c.l.b16 %v410
        %v607 = vunpack.c.h.b16 %v410
        %v608 = vunpack.c.l.b16 %v411
        %v609 = vunpack.c.h.b16 %v411
        %v610 = vunpack.c.l.b16 %v412
        %v611 = vunpack.c.h.b16 %v412
        %v612 = vunpack.c.l.b16 %v413
        %v613 = vunpack.c.h.b16 %v413
        %v614 = vunpack.c.l.b16 %v414
        %v615 = vunpack.c.h.b16 %v414
        %v616 = vunpack.c.l.b16 %v415
        %v617 = vunpack.c.h.b16 %v415
        %v618 = vunpack.c.l.b16 %v416
        %v619 = vunpack.c.h.b16 %v416
        %v620 = vunpack.c.l.b16 %v417
        %v621 = vunpack.c.h.b16 %v417
        %v622 = vunpack.c.l.b16 %v418
        %v623 = vunpack.c.h.b16 %v418
        %v624 = vunpack.c.l.b16 %v419
        %v625 = vunpack.c.h.b16 %v419
        %v626 = vunpack.c.l.b16 %v420
        %v627 = vunpack.c.h.b16 %v420
        %v628 = vunpack.c.l.b16 %v421
        %v629 = vunpack.c.h.b16 %v421
        %v630 = vunpack.c.l.b16 %v422
        %v631 = vunpack.c.h.b16 %v422
        %v632 = vunpack.c.l.b16 %v423
        %v633 = vunpack.c.h.b16 %v423
        %v634 = vunpack.c.l.b16 %v424
        %v635 = vunpack.c.h.b16 %v424
        %v636 = vunpack.c.l.b16 %v425
        %v637 = vunpack.c.h.b16 %v425
        %v638 = vpack.c.b16 %v512, %v510
        %v639 = vpack.c.b16 %v513, %v511
        %v640 = vpack.c.b16 %v516, %v514
        %v641 = vpack.c.b16 %v517, %v515
        %v642 = vpack.c.b16 %v520, %v518
        %v643 = vpack.c.b16 %v521, %v519
        %v644 = vpack.c.b16 %v524, %v522
        %v645 = vpack.c.b16 %v525, %v523
        %v646 = vpack.c.b16 %v528, %v526
        %v647 = vpack.c.b16 %v529, %v527
        %v648 = vpack.c.b16 %v532, %v530
        %v649 = vpack.c.b16 %v533, %v531
        %v650 = vpack.c.b16 %v536, %v534
        %v651 = vpack.c.b16 %v537, %v535
        %v652 = vpack.c.b16 %v540, %v538
        %v653 = vpack.c.b16 %v541, %v539
        %v654 = vpack.c.b16 %v544, %v542
        %v655 = vpack.c.b16 %v545, %v543
        %v656 = vpack.c.b16 %v548, %v546
        %v657 = vpack.c.b16 %v549, %v547
        %v658 = vpack.c.b16 %v552, %v550
        %v659 = vpack.c.b16 %v553, %v551
        %v660 = vpack.c.b16 %v556, %v554
        %v661 = vpack.c.b16 %v557, %v555
        %v662 = vpack.c.b16 %v560, %v558
        %v663 = vpack.c.b16 %v561, %v559
        %v664 = vpack.c.b16 %v564, %v562
        %v665 = vpack.c.b16 %v565, %v563
        %v666 = vpack.c.b16 %v568, %v566
        %v667 = vpack.c.b16 %v569, %v567
        %v668 = vpack.c.b16 %v572, %v570
        %v669 = vpack.c.b16 %v573, %v571
        %v670 = vpack.c.b16 %v576, %v574
        %v671 = vpack.c.b16 %v577, %v575
        %v672 = vpack.c.b16 %v580, %v578
        %v673 = vpack.c.b16 %v581, %v579
        %v674 = vpack.c.b16 %v584, %v582
        %v675 = vpack.c.b16 %v585, %v583
        %v676 = vpack.c.b16 %v588, %v586
        %v677 = vpack.c.b16 %v589, %v587
        %v678 = vpack.c.b16 %v592, %v590
        %v679 = vpack.c.b16 %v593, %v591
        %v680 = vpack.c.b16 %v596, %v594
        %v681 = vpack.c.b16 %v597, %v595
        %v682 = vpack.c.b16 %v600, %v598
        %v683 = vpack.c.b16 %v601, %v599
        %v684 = vpack.c.b16 %v604, %v602
        %v685 = vpack.c.b16 %v605, %v603
        %v686 = vpack.c.b16 %v608, %v606
        %v687 = vpack.c.b16 %v609, %v607
        %v688 = vpack.c.b16 %v612, %v610
        %v689 = vpack.c.b16 %v613, %v611
        %v690 = vpack.c.b16 %v616, %v614
        %v691 = vpack.c.b16 %v617, %v615
        %v692 = vpack.c.b16 %v620, %v618
        %v693 = vpack.c.b16 %v621, %v619
        %v694 = vpack.c.b16 %v624, %v622
        %v695 = vpack.c.b16 %v625, %v623
        %v696 = vpack.c.b16 %v628, %v626
        %v697 = vpack.c.b16 %v629, %v627
        %v698 = vpack.c.b16 %v632, %v630
        %v699 = vpack.c.b16 %v633, %v631
        %v700 = vpack.c.b16 %v636, %v634
        %v701 = vpack.c.b16 %v637, %v635
        %766 = vmatprep.subr.bf16.mxu0 %v653
        %767 = vmatpush1.bf16.msra.mxu0 %v652
        %768 = vmatprep.subr.bf16.mxu0 %v651
        %769 = vmatpush1.bf16.msra.mxu0 %v650
        %770 = vmatprep.subr.bf16.mxu0 %v649
        %771 = vmatpush1.bf16.msra.mxu0 %v648
        %772 = vmatprep.subr.bf16.mxu0 %v647
        %773 = vmatpush1.bf16.msra.mxu0 %v646
        %774 = vmatprep.subr.bf16.mxu0 %v645
        %775 = vmatpush1.bf16.msra.mxu0 %v644
        %776 = vmatprep.subr.bf16.mxu0 %v643
        %777 = vmatpush1.bf16.msra.mxu0 %v642
        %778 = vmatprep.subr.bf16.mxu0 %v641
        %779 = vmatpush1.bf16.msra.mxu0 %v640
        %780 = vmatprep.subr.bf16.mxu0 %v639
        %781 = vmatpush1.bf16.msra.mxu0 %v638
        %782 = vmatprep.subr.bf16.mxu0 %v669
        %783 = vmatpush2.bf16.msra.mxu0 %v668
        %784 = vmatprep.subr.bf16.mxu0 %v667
        %785 = vmatpush2.bf16.msra.mxu0 %v666
        %786 = vmatprep.subr.bf16.mxu0 %v665
        %787 = vmatpush2.bf16.msra.mxu0 %v664
        %788 = vmatprep.subr.bf16.mxu0 %v663
        %789 = vmatpush2.bf16.msra.mxu0 %v662
        %790 = vmatprep.subr.bf16.mxu0 %v661
        %791 = vmatpush2.bf16.msra.mxu0 %v660
        %792 = vmatprep.subr.bf16.mxu0 %v659
        %793 = vmatpush2.bf16.msra.mxu0 %v658
        %794 = vmatprep.subr.bf16.mxu0 %v657
        %795 = vmatpush2.bf16.msra.mxu0 %v656
        %796 = vmatprep.subr.bf16.mxu0 %v655
        %797 = vmatpush2.bf16.msra.mxu0 %v654
        %798 = vmatprep.mubr.bf16.mxu0 %v439
        %799 = vmatmul.mubr.bf16.gmra.mxu0 %v438
        %v800 = vpop.f32.mrf.mxu0
        %v801 = vadd.f32 0.0, %v800
        %v802 = vpop.f32.mrf.mxu0
        %v803 = vadd.f32 0.0, %v802
        %v804 = vpop.f32.mrf.mxu0
        %v805 = vadd.f32 0.0, %v804
        %v806 = vpop.f32.mrf.mxu0
        %v807 = vadd.f32 0.0, %v806
        %808 = vdwg.mxu0
        %809 = vmatprep.subr.bf16.mxu0 %v685
        %810 = vmatpush1.bf16.msra.mxu0 %v684
        %811 = vmatprep.subr.bf16.mxu0 %v683
        %812 = vmatpush1.bf16.msra.mxu0 %v682
        %813 = vmatprep.subr.bf16.mxu0 %v681
        %814 = vmatpush1.bf16.msra.mxu0 %v680
        %815 = vmatprep.subr.bf16.mxu0 %v679
        %816 = vmatpush1.bf16.msra.mxu0 %v678
        %817 = vmatprep.subr.bf16.mxu0 %v677
        %818 = vmatpush1.bf16.msra.mxu0 %v676
        %819 = vmatprep.subr.bf16.mxu0 %v675
        %820 = vmatpush1.bf16.msra.mxu0 %v674
        %821 = vmatprep.subr.bf16.mxu0 %v673
        %822 = vmatpush1.bf16.msra.mxu0 %v672
        %823 = vmatprep.subr.bf16.mxu0 %v671
        %824 = vmatpush1.bf16.msra.mxu0 %v670
        %825 = vmatprep.subr.bf16.mxu0 %v701
        %826 = vmatpush2.bf16.msra.mxu0 %v700
        %827 = vmatprep.subr.bf16.mxu0 %v699
        %828 = vmatpush2.bf16.msra.mxu0 %v698
        %829 = vmatprep.subr.bf16.mxu0 %v697
        %830 = vmatpush2.bf16.msra.mxu0 %v696
        %831 = vmatprep.subr.bf16.mxu0 %v695
        %832 = vmatpush2.bf16.msra.mxu0 %v694
        %833 = vmatprep.subr.bf16.mxu0 %v693
        %834 = vmatpush2.bf16.msra.mxu0 %v692
        %835 = vmatprep.subr.bf16.mxu0 %v691
        %836 = vmatpush2.bf16.msra.mxu0 %v690
        %837 = vmatprep.subr.bf16.mxu0 %v689
        %838 = vmatpush2.bf16.msra.mxu0 %v688
        %839 = vmatprep.subr.bf16.mxu0 %v687
        %840 = vmatpush2.bf16.msra.mxu0 %v686
        %841 = vmatprep.mubr.bf16.mxu0 %v441
        %842 = vmatmul.mubr.bf16.gmra.mxu0 %v440
        %v843 = vpop.f32.mrf.mxu0
        %v844 = vadd.f32 %v801, %v843
        %v845 = vpop.f32.mrf.mxu0
        %v846 = vadd.f32 %v803, %v845
        %v847 = vpop.f32.mrf.mxu0
        %v848 = vadd.f32 %v805, %v847
        %v849 = vpop.f32.mrf.mxu0
        %v850 = vadd.f32 %v807, %v849
        %851 = vdwg.mxu0
        %v852 = vadd.f32 %v354, %v844
        %v853 = vadd.f32 %v355, %v846
        %v854 = vadd.f32 %v356, %v848
        %v855 = vadd.f32 %v357, %v850
        %856 = vst [vmem:[#allocation2] sm:$0xff] %v852
        %857 = vst [vmem:[#allocation2 + $0x8] sm:$0xff] %v853
        %858 = vst [vmem:[#allocation2 + $0x10] sm:$0xff] %v854
        %859 = vst [vmem:[#allocation2 + $0x18] sm:$0xff] %v855
        %p860 = scmp.eq.s32.totalorder %s23, 3
        // Predicated region
        $region60: #{generator_forward.13} parent=50 // pred_check
          %p861 = pneg %p860
        $region61: #{generator_forward.13} parent=50 // pred_check_branch
          %863 = sbr.rel (%p861) target = $region63
        $region62: #{generator_forward.13} parent=50 // pred_region
          %v864 = vld [vmem:[#allocation2] sm:$0xff]
          %v865 = vld [vmem:[#allocation2 + $0x8] sm:$0xff]
          %v866 = vld [vmem:[#allocation2 + $0x10] sm:$0xff]
          %v867 = vld [vmem:[#allocation2 + $0x18] sm:$0xff]
          %v868 = vld [vmem:[%s328] sm:$0x3]
          %v870 = vlaneseq
          %v871 = vshrl.u32 %v870, 7
          %v872 = vsub.s32 0, %v871
          %v873 = vrot.slane %v868, %v872
          %v874 = vlaneseq
          %v875 = vshrl.u32 %v874, 7
          %v876 = vsub.s32 1, %v875
          %v877 = vrot.slane %v868, %v876
          %v880 = vadd.f32 %v864, %v873
          %v881 = vadd.f32 %v865, %v877
          %v882 = vadd.f32 %v866, %v873
          %v883 = vadd.f32 %v867, %v877
          %vm884 = vcmp.ge.f32.partialorder %v880, 0.0
          %vm885 = vcmp.ge.f32.partialorder %v881, 0.0
          %vm886 = vcmp.ge.f32.partialorder %v882, 0.0
          %vm887 = vcmp.ge.f32.partialorder %v883, 0.0
          %v888 = vmul.f32 %v880, 0.2
          %v889 = vmul.f32 %v881, 0.2
          %v890 = vmul.f32 %v882, 0.2
          %v891 = vmul.f32 %v883, 0.2
          %v892 = vsel %vm884, %v880, %v888
          %v893 = vsel %vm885, %v881, %v889
          %v894 = vsel %vm886, %v882, %v890
          %v895 = vsel %vm887, %v883, %v891
          %896 = vst [vmem:[%s343] sm:$0xff] %v892
          %897 = vst [vmem:[%s343 + $0x8] sm:$0xff] %v893
          %898 = vst [vmem:[%s343 + $0x10] sm:$0xff] %v894
          %899 = vst [vmem:[%s343 + $0x18] sm:$0xff] %v895
        $region63: #{generator_forward.13} parent=50 // pred_fallthru
          _
        %s900 = smul.u32 2, %s21
        %s901 = smul.u32 2, %s22
        %p902 = scmp.lt.s32.totalorder %s20, 0
        %s903 = scalar_select %p902, %s20, 0
        %p904 = scmp.lt.s32.totalorder %s900, 1
        %s905 = scalar_select %p904, %s900, 1
        %p906 = scmp.lt.s32.totalorder %s901, 1
        %s907 = scalar_select %p906, %s901, 1
        %s908 = smul.addr %s905, 2
        %s909 = sadd.s32 %s907, %s908
        %s910 = smul.addr %s903, 4
        %s911 = sadd.s32 %s909, %s910
        %s912 = smul.addr %s911, 8
        %s913 = scalar_lea.vmem %s3, %s912
        // Predicated region
        $region64: #{generator_forward.13} parent=50 // pred_check
          %p914 = pneg %p150
        $region65: #{generator_forward.13} parent=50 // pred_check_branch
          %916 = sbr.rel (%p914) target = $region67
        $region66: #{generator_forward.13} parent=50 // pred_region
          %s917 = smul.u32 2, %s21
          %s918 = smul.u32 2, %s22
        $region67: #{generator_forward.13} parent=50 // pred_fallthru
          _
        // Predicated region
        $region68: #{generator_forward.13} parent=50 // pred_check
          %p919 = pneg %p150
        $region69: #{generator_forward.13} parent=50 // pred_check_branch
          %921 = sbr.rel (%p919) target = $region71
        $region70: #{generator_forward.13} parent=50 // pred_region
          %s922 = smul.u32 2, %s21
          %s923 = smul.u32 2, %s22
          %p924 = scmp.lt.s32.totalorder %s20, 0
          %s925 = scalar_select %p924, %s20, 0
          %p926 = scmp.lt.s32.totalorder %s922, 1
          %s927 = scalar_select %p926, %s922, 1
          %p928 = scmp.lt.s32.totalorder %s923, 1
          %s929 = scalar_select %p928, %s923, 1
          %s930 = smul.addr %s927, 2
          %s931 = sadd.s32 %s929, %s930
          %s932 = smul.addr %s925, 4
          %s933 = sadd.s32 %s931, %s932
          %s934 = smul.addr %s933, 8
          %s935 = scalar_lea.vmem %s3, %s934
        $region71: #{generator_forward.13} parent=50 // pred_fallthru
          _
      $region51: #{generator_forward.13} parent=5 // pred_fallthru
        _
      %p936 = scmp.le.s32.totalorder 2, %s9
      // Predicated region
      $region72: #{generator_forward.13} parent=5 // pred_check
        %p937 = pneg %p936
      $region73: #{generator_forward.13} parent=5 // pred_check_branch
        %939 = sbr.rel (%p937) target = $region75
      $region74: #{generator_forward.13} parent=5 // pred_region
        %s940 = ssub.s32 %s9, 2
      $region75: #{generator_forward.13} parent=5 // pred_fallthru
        _
    $region6: #{generator_forward.13} parent=1 // loop_footer
      %s13 = sadd.s32 1, %s9
    $region7: #{generator_forward.13} parent=1 // loop_footer_branch
      %8 = sbr.rel target = $region3
    $region8: #{generator_forward.13} parent=1 // loop_exit
      _

// kernel: generator_forward.14
$region0: #{generator_forward.14}
  #allocation0 [shape = 'u32[]', space=smem, size = 0x4, offset = 0x4, fixed_abs, tag = 'smem constant byte address 0x4 - core index']
  #allocation1 [shape = 'u32[144,128]{1,0:T(1,128)}', space=vmem, size = 0x12000, scoped, tag = 'internal scratch']
  #allocation2 [shape = 'f32[1,1]{1,0:T(1,128)S(6)}', space=smem, size = 0x200, scoped, tag = 'scoped memory for generator_forward.14']
  %s0 = inlined_call_operand.vmem [shape: f32[2,4,256], index: 0, kind: input, shape index: {}]
  %s1 = inlined_call_operand.vmem [shape: f32[256,320], index: 1, kind: input, shape index: {}]
  %s2 = inlined_call_operand.vmem [shape: f32[1,320], index: 2, kind: input, shape index: {}]
  %s3 = inlined_call_operand.<no memory space> [shape: f32[1,1], index: 3, kind: input, shape index: {}]
  %s4 = inlined_call_operand.vmem [shape: f32[2,4,256], index: 4, kind: output, shape index: {}]
  %s5 = sld [smem:[#allocation0]]
  $region49: #{generator_forward.14} parent=0
    _
  %s7 = ssub.s32 1, %s5
  %s8 = scalar_select 0, %s7, %s5
  %9 = sst [smem:[#allocation2]] %s3
  loop: start=0, step=1, limit=4
  $region2: #{generator_forward.14} parent=0 // loop_pre_header
    _
  $region3: #{generator_forward.14} parent=0 // loop_header
    %s11 = sphi 0, %s15
    %p12 = scmp.ge.s32.totalorder %s11, 4
    %s21 = sphi 0, %s23
    %s24 = sphi 0, %s21
    %s25 = sphi 0, %s24
    %s41 = sphi 0, %s25
    %s45 = sphi 0, %s45
    %s47 = sphi 0, %s45
    %s48 = sphi 0, %s47
    %s62 = sphi 0, %s48
    %s66 = sphi 0, %s66
    %s68 = sphi 0, %s66
    %s69 = sphi 0, %s68
    %s83 = sphi 0, %s69
    %s87 = sphi 0, %s87
    %s89 = sphi 0, %s87
    %s90 = sphi 0, %s89
    %s104 = sphi 0, %s90
    %s110 = sphi 0, %s112
    %s113 = sphi 0, %s110
    %s114 = sphi 0, %s113
    %s130 = sphi 0, %s114
  $region4: #{generator_forward.14} parent=0 // loop_header_branch
    %14 = sbr.rel (%p12) target = $region8
  $region5: #{generator_forward.14} parent=0 // loop_body
    %s16 = ssub.s32 %s11, 1
    %s17 = ssub.s32 %s11, 2
    %s18 = sadd.s32 %s11, 1
    %s19 = ssub.s32 %s11, %s18
    %p20 = scmp.eq.s32.totalorder %s19, 0
    %s22 = sadd.s32 %s21, 1
    %s23 = scalar_select %p20, %s21, %s22
    %p26 = pneg %p20
    %p27 = scmp.eq.s32.totalorder %s11, 1
    %p28 = por %p26, %p27
    %p29 = scmp.ne.s32.totalorder %s21, %s24
    %p30 = scmp.eq.s32.totalorder %s11, 0
    %p31 = por %p29, %p30
    %p32 = scmp.ne.s32.totalorder %s21, %s24
    %p33 = scmp.eq.s32.totalorder %s16, 1
    %p34 = por %p32, %p33
    %p35 = scmp.ne.s32.totalorder %s24, %s25
    %p36 = scmp.eq.s32.totalorder %s16, 0
    %p37 = por %p35, %p36
    %p38 = scmp.ne.s32.totalorder %s24, %s25
    %p39 = scmp.eq.s32.totalorder %s17, 1
    %p40 = por %p38, %p39
    %p42 = scmp.ne.s32.totalorder %s25, %s41
    %p43 = scmp.eq.s32.totalorder %s17, 0
    %p44 = por %p42, %p43
    %s46 = sadd.s32 %s45, 1
    %p49 = scmp.eq.s32.totalorder %s11, 1
    %p50 = scmp.ne.s32.totalorder %s45, %s47
    %p51 = scmp.eq.s32.totalorder %s11, 0
    %p52 = por %p50, %p51
    %p53 = scmp.ne.s32.totalorder %s45, %s47
    %p54 = scmp.eq.s32.totalorder %s16, 1
    %p55 = por %p53, %p54
    %p56 = scmp.ne.s32.totalorder %s47, %s48
    %p57 = scmp.eq.s32.totalorder %s16, 0
    %p58 = por %p56, %p57
    %p59 = scmp.ne.s32.totalorder %s47, %s48
    %p60 = scmp.eq.s32.totalorder %s17, 1
    %p61 = por %p59, %p60
    %p63 = scmp.ne.s32.totalorder %s48, %s62
    %p64 = scmp.eq.s32.totalorder %s17, 0
    %p65 = por %p63, %p64
    %s67 = sadd.s32 %s66, 1
    %p70 = scmp.eq.s32.totalorder %s11, 1
    %p71 = scmp.ne.s32.totalorder %s66, %s68
    %p72 = scmp.eq.s32.totalorder %s11, 0
    %p73 = por %p71, %p72
    %p74 = scmp.ne.s32.totalorder %s66, %s68
    %p75 = scmp.eq.s32.totalorder %s16, 1
    %p76 = por %p74, %p75
    %p77 = scmp.ne.s32.totalorder %s68, %s69
    %p78 = scmp.eq.s32.totalorder %s16, 0
    %p79 = por %p77, %p78
    %p80 = scmp.ne.s32.totalorder %s68, %s69
    %p81 = scmp.eq.s32.totalorder %s17, 1
    %p82 = por %p80, %p81
    %p84 = scmp.ne.s32.totalorder %s69, %s83
    %p85 = scmp.eq.s32.totalorder %s17, 0
    %p86 = por %p84, %p85
    %s88 = sadd.s32 %s87, 1
    %p91 = scmp.eq.s32.totalorder %s11, 1
    %p92 = scmp.ne.s32.totalorder %s87, %s89
    %p93 = scmp.eq.s32.totalorder %s11, 0
    %p94 = por %p92, %p93
    %p95 = scmp.ne.s32.totalorder %s87, %s89
    %p96 = scmp.eq.s32.totalorder %s16, 1
    %p97 = por %p95, %p96
    %p98 = scmp.ne.s32.totalorder %s89, %s90
    %p99 = scmp.eq.s32.totalorder %s16, 0
    %p100 = por %p98, %p99
    %p101 = scmp.ne.s32.totalorder %s89, %s90
    %p102 = scmp.eq.s32.totalorder %s17, 1
    %p103 = por %p101, %p102
    %p105 = scmp.ne.s32.totalorder %s90, %s104
    %p106 = scmp.eq.s32.totalorder %s17, 0
    %p107 = por %p105, %p106
    %s108 = ssub.s32 %s11, %s18
    %p109 = scmp.eq.s32.totalorder %s108, 0
    %s111 = sadd.s32 %s110, 1
    %s112 = scalar_select %p109, %s110, %s111
    %p115 = pneg %p109
    %p116 = scmp.eq.s32.totalorder %s11, 1
    %p117 = por %p115, %p116
    %p118 = scmp.ne.s32.totalorder %s110, %s113
    %p119 = scmp.eq.s32.totalorder %s11, 0
    %p120 = por %p118, %p119
    %p121 = scmp.ne.s32.totalorder %s110, %s113
    %p122 = scmp.eq.s32.totalorder %s16, 1
    %p123 = por %p121, %p122
    %p124 = scmp.ne.s32.totalorder %s113, %s114
    %p125 = scmp.eq.s32.totalorder %s16, 0
    %p126 = por %p124, %p125
    %p127 = scmp.ne.s32.totalorder %s113, %s114
    %p128 = scmp.eq.s32.totalorder %s17, 1
    %p129 = por %p127, %p128
    %p131 = scmp.ne.s32.totalorder %s114, %s130
    %p132 = scmp.eq.s32.totalorder %s17, 0
    %p133 = por %p131, %p132
    %p134 = scmp.le.s32.totalorder 1, %s11
    %p135 = scmp.lt.s32.totalorder %s11, 3
    %p136 = pnand %p134, %p135
    %p137 = pneg %p136
    // Predicated region
    $region9: #{generator_forward.14} parent=5 // pred_check
      _
    $region10: #{generator_forward.14} parent=5 // pred_check_branch
      %139 = sbr.rel (%p136) target = $region12
    $region11: #{generator_forward.14} parent=5 // pred_region
      %s140 = ssub.s32 %s11, 1
      // Predicated region
      $region13: #{generator_forward.14} parent=11 // pred_check
        %p141 = pneg %p58
      $region14: #{generator_forward.14} parent=11 // pred_check_branch
        %143 = sbr.rel (%p141) target = $region16
      $region15: #{generator_forward.14} parent=11 // pred_region
        _
      $region16: #{generator_forward.14} parent=11 // pred_fallthru
        _
      // Predicated region
      $region17: #{generator_forward.14} parent=11 // pred_check
        %p144 = pneg %p79
      $region18: #{generator_forward.14} parent=11 // pred_check_branch
        %146 = sbr.rel (%p144) target = $region20
      $region19: #{generator_forward.14} parent=11 // pred_region
        _
      $region20: #{generator_forward.14} parent=11 // pred_fallthru
        _
      // Predicated region
      $region21: #{generator_forward.14} parent=11 // pred_check
        %p147 = pneg %p100
      $region22: #{generator_forward.14} parent=11 // pred_check_branch
        %149 = sbr.rel (%p147) target = $region24
      $region23: #{generator_forward.14} parent=11 // pred_region
        _
      $region24: #{generator_forward.14} parent=11 // pred_fallthru
        _
    $region12: #{generator_forward.14} parent=5 // pred_fallthru
      _
    %p150 = scmp.lt.s32.totalorder %s11, 2
    // Predicated region
    $region25: #{generator_forward.14} parent=5 // pred_check
      %p151 = pneg %p150
    $region26: #{generator_forward.14} parent=5 // pred_check_branch
      %153 = sbr.rel (%p151) target = $region28
    $region27: #{generator_forward.14} parent=5 // pred_region
      // Predicated region
      $region29: #{generator_forward.14} parent=27 // pred_check
        %p154 = pneg %p31
      $region30: #{generator_forward.14} parent=27 // pred_check_branch
        %156 = sbr.rel (%p154) target = $region32
      $region31: #{generator_forward.14} parent=27 // pred_region
        %p157 = scmp.lt.s32.totalorder %s11, 1
        %s158 = scalar_select %p157, %s11, 1
        %s159 = smul.addr %s158, 2
        %s160 = smul.addr %s159, 4
        %s161 = scalar_lea.vmem %s0, %s160
      $region32: #{generator_forward.14} parent=27 // pred_fallthru
        _
    $region28: #{generator_forward.14} parent=5 // pred_fallthru
      _
    %p162 = scmp.le.s32.totalorder 1, %s11
    %p163 = scmp.lt.s32.totalorder %s11, 3
    %p164 = pnand %p162, %p163
    %p165 = pneg %p164
    // Predicated region
    $region33: #{generator_forward.14} parent=5 // pred_check
      _
    $region34: #{generator_forward.14} parent=5 // pred_check_branch
      %167 = sbr.rel (%p164) target = $region36
    $region35: #{generator_forward.14} parent=5 // pred_region
      %s168 = ssub.s32 %s11, 1
      %p169 = scmp.lt.s32.totalorder %s16, 1
      %s170 = scalar_select %p169, %s16, 1
      %s171 = smul.addr %s170, 2
      %s172 = smul.addr %s171, 4
      %s173 = scalar_lea.vmem %s0, %s172
      %p174 = pneg %p37
      %p175 = pneg %p34
      %p176 = pneg %p58
      %p177 = pneg %p55
      %p178 = pneg %p79
      %p179 = pneg %p76
      %p180 = pneg %p100
      %p181 = pneg %p97
      %p182 = pneg %p126
      %p183 = pneg %p123
      %p184 = scmp.lt.s32.totalorder %s16, 1
      %s185 = scalar_select %p184, %s16, 1
      %s186 = smul.addr %s185, 2
      %s187 = smul.addr %s186, 4
      %s188 = scalar_lea.vmem %s4, %s187
      %p189 = scmp.lt.s32.totalorder %s16, 1
      %s190 = scalar_select %p189, %s16, 1
      %s191 = smul.addr %s190, 2
      %s192 = smul.addr %s191, 4
      %s193 = scalar_lea.vmem %s0, %s192
      %p194 = scmp.lt.s32.totalorder %s16, 1
      %s195 = scalar_select %p194, %s16, 1
      %s196 = smul.addr %s195, 2
      %s197 = smul.addr %s196, 4
      %s198 = scalar_lea.vmem %s4, %s197
      %v199 = vld [vmem:[%s193] sm:$0xff]
      %v200 = vld [vmem:[%s1] sm:$0xff]
      %v201 = vld [vmem:[%s1 + $0x8] sm:$0xff]
      %v202 = vld [vmem:[%s1 + $0x10] sm:$0xff]
      %v203 = vld [vmem:[%s1 + $0x18] sm:$0xff]
      %v204 = vld [vmem:[%s1 + $0x20] sm:$0xff]
      %v205 = vld [vmem:[%s1 + $0x28] sm:$0xff]
      %v206 = vld [vmem:[%s1 + $0x30] sm:$0xff]
      %v207 = vld [vmem:[%s1 + $0x38] sm:$0xff]
      %v208 = vld [vmem:[%s1 + $0x40] sm:$0xff]
      %v209 = vld [vmem:[%s1 + $0x48] sm:$0xff]
      %v210 = vld [vmem:[%s1 + $0x50] sm:$0xff]
      %v211 = vld [vmem:[%s1 + $0x58] sm:$0xff]
      %v212 = vld [vmem:[%s1 + $0x60] sm:$0xff]
      %v213 = vld [vmem:[%s1 + $0x68] sm:$0xff]
      %v214 = vld [vmem:[%s1 + $0x70] sm:$0xff]
      %v215 = vld [vmem:[%s1 + $0x78] sm:$0xff]
      %v216 = vld [vmem:[%s1 + $0x80] sm:$0xff]
      %v217 = vld [vmem:[%s1 + $0x88] sm:$0xff]
      %v218 = vld [vmem:[%s1 + $0x90] sm:$0xff]
      %v219 = vld [vmem:[%s1 + $0x98] sm:$0xff]
      %v220 = vld [vmem:[%s1 + $0xa0] sm:$0xff]
      %v221 = vld [vmem:[%s1 + $0xa8] sm:$0xff]
      %v222 = vld [vmem:[%s1 + $0xb0] sm:$0xff]
      %v223 = vld [vmem:[%s1 + $0xb8] sm:$0xff]
      %v224 = vld [vmem:[%s1 + $0xc0] sm:$0xff]
      %v225 = vld [vmem:[%s1 + $0xc8] sm:$0xff]
      %v226 = vld [vmem:[%s1 + $0xd0] sm:$0xff]
      %v227 = vld [vmem:[%s1 + $0xd8] sm:$0xff]
      %v228 = vld [vmem:[%s1 + $0xe0] sm:$0xff]
      %v229 = vld [vmem:[%s1 + $0xe8] sm:$0xff]
      %v230 = vld [vmem:[%s1 + $0xf0] sm:$0xff]
      %v231 = vld [vmem:[%s1 + $0xf8] sm:$0xff]
      %v232 = vld [vmem:[%s1 + $0x100] sm:$0xff]
      %v233 = vld [vmem:[%s1 + $0x108] sm:$0xff]
      %v234 = vld [vmem:[%s1 + $0x110] sm:$0xff]
      %v235 = vld [vmem:[%s1 + $0x118] sm:$0xff]
      %v236 = vld [vmem:[%s1 + $0x120] sm:$0xff]
      %v237 = vld [vmem:[%s1 + $0x128] sm:$0xff]
      %v238 = vld [vmem:[%s1 + $0x130] sm:$0xff]
      %v239 = vld [vmem:[%s1 + $0x138] sm:$0xff]
      %v240 = vld [vmem:[%s1 + $0x140] sm:$0xff]
      %v241 = vld [vmem:[%s1 + $0x148] sm:$0xff]
      %v242 = vld [vmem:[%s1 + $0x150] sm:$0xff]
      %v243 = vld [vmem:[%s1 + $0x158] sm:$0xff]
      %v244 = vld [vmem:[%s1 + $0x160] sm:$0xff]
      %v245 = vld [vmem:[%s1 + $0x168] sm:$0xff]
      %v246 = vld [vmem:[%s1 + $0x170] sm:$0xff]
      %v247 = vld [vmem:[%s1 + $0x178] sm:$0xff]
      %v248 = vld [vmem:[%s1 + $0x180] sm:$0xff]
      %v249 = vld [vmem:[%s1 + $0x188] sm:$0xff]
      %v250 = vld [vmem:[%s1 + $0x190] sm:$0xff]
      %v251 = vld [vmem:[%s1 + $0x198] sm:$0xff]
      %v252 = vld [vmem:[%s1 + $0x1a0] sm:$0xff]
      %v253 = vld [vmem:[%s1 + $0x1a8] sm:$0xff]
      %v254 = vld [vmem:[%s1 + $0x1b0] sm:$0xff]
      %v255 = vld [vmem:[%s1 + $0x1b8] sm:$0xff]
      %v256 = vld [vmem:[%s1 + $0x1c0] sm:$0xff]
      %v257 = vld [vmem:[%s1 + $0x1c8] sm:$0xff]
      %v258 = vld [vmem:[%s1 + $0x1d0] sm:$0xff]
      %v259 = vld [vmem:[%s1 + $0x1d8] sm:$0xff]
      %v260 = vld [vmem:[%s1 + $0x1e0] sm:$0xff]
      %v261 = vld [vmem:[%s1 + $0x1e8] sm:$0xff]
      %v262 = vld [vmem:[%s1 + $0x1f0] sm:$0xff]
      %v263 = vld [vmem:[%s1 + $0x1f8] sm:$0xff]
      %v264 = vld [vmem:[%s1 + $0x200] sm:$0xff]
      %v265 = vld [vmem:[%s1 + $0x208] sm:$0xff]
      %v266 = vld [vmem:[%s1 + $0x210] sm:$0xff]
      %v267 = vld [vmem:[%s1 + $0x218] sm:$0xff]
      %v268 = vld [vmem:[%s1 + $0x220] sm:$0xff]
      %v269 = vld [vmem:[%s1 + $0x228] sm:$0xff]
      %v270 = vld [vmem:[%s1 + $0x230] sm:$0xff]
      %v271 = vld [vmem:[%s1 + $0x238] sm:$0xff]
      %v272 = vld [vmem:[%s1 + $0x240] sm:$0xff]
      %v273 = vld [vmem:[%s1 + $0x248] sm:$0xff]
      %v274 = vld [vmem:[%s1 + $0x250] sm:$0xff]
      %v275 = vld [vmem:[%s1 + $0x258] sm:$0xff]
      %v276 = vld [vmem:[%s1 + $0x260] sm:$0xff]
      %v277 = vld [vmem:[%s1 + $0x268] sm:$0xff]
      %v278 = vld [vmem:[%s1 + $0x270] sm:$0xff]
      %v279 = vld [vmem:[%s1 + $0x278] sm:$0xff]
      %v280 = vld [vmem:[%s1 + $0x280] sm:$0xff]
      %v281 = vld [vmem:[%s1 + $0x288] sm:$0xff]
      %v282 = vld [vmem:[%s1 + $0x290] sm:$0xff]
      %v283 = vld [vmem:[%s1 + $0x298] sm:$0xff]
      %v284 = vld [vmem:[%s1 + $0x2a0] sm:$0xff]
      %v285 = vld [vmem:[%s1 + $0x2a8] sm:$0xff]
      %v286 = vld [vmem:[%s1 + $0x2b0] sm:$0xff]
      %v287 = vld [vmem:[%s1 + $0x2b8] sm:$0xff]
      %v288 = vld [vmem:[%s1 + $0x2c0] sm:$0xff]
      %v289 = vld [vmem:[%s1 + $0x2c8] sm:$0xff]
      %v290 = vld [vmem:[%s1 + $0x2d0] sm:$0xff]
      %v291 = vld [vmem:[%s1 + $0x2d8] sm:$0xff]
      %v292 = vld [vmem:[%s1 + $0x2e0] sm:$0xff]
      %v293 = vld [vmem:[%s1 + $0x2e8] sm:$0xff]
      %v294 = vld [vmem:[%s1 + $0x2f0] sm:$0xff]
      %v295 = vld [vmem:[%s1 + $0x2f8] sm:$0xff]
      %v296 = vld [vmem:[%s2] sm:$0x7]
      %v298 = vlaneseq
      %v299 = vshrl.u32 %v298, 7
      %v300 = vsub.s32 0, %v299
      %v301 = vrot.slane %v296, %v300
      %v302 = vlaneseq
      %v303 = vshrl.u32 %v302, 7
      %v304 = vsub.s32 1, %v303
      %v305 = vrot.slane %v296, %v304
      %v306 = vlaneseq
      %v307 = vshrl.u32 %v306, 7
      %v308 = vsub.s32 2, %v307
      %v309 = vrot.slane %v296, %v308
      %v314 = vcombine.high %v199, %v199
      %316 = vmatprep.subr.mxu0 %v246
      %317 = vmatpush1.msra.mxu0 %v245
      %318 = vmatprep.subr.mxu0 %v243
      %319 = vmatpush1.msra.mxu0 %v242
      %320 = vmatprep.subr.mxu0 %v240
      %321 = vmatpush1.msra.mxu0 %v239
      %322 = vmatprep.subr.mxu0 %v237
      %323 = vmatpush1.msra.mxu0 %v236
      %324 = vmatprep.subr.mxu0 %v234
      %325 = vmatpush1.msra.mxu0 %v233
      %326 = vmatprep.subr.mxu0 %v231
      %327 = vmatpush1.msra.mxu0 %v230
      %328 = vmatprep.subr.mxu0 %v228
      %329 = vmatpush1.msra.mxu0 %v227
      %330 = vmatprep.subr.mxu0 %v225
      %331 = vmatpush1.msra.mxu0 %v224
      %332 = vmatprep.subr.mxu0 %v222
      %333 = vmatpush1.msra.mxu0 %v221
      %334 = vmatprep.subr.mxu0 %v219
      %335 = vmatpush1.msra.mxu0 %v218
      %336 = vmatprep.subr.mxu0 %v216
      %337 = vmatpush1.msra.mxu0 %v215
      %338 = vmatprep.subr.mxu0 %v213
      %339 = vmatpush1.msra.mxu0 %v212
      %340 = vmatprep.subr.mxu0 %v210
      %341 = vmatpush1.msra.mxu0 %v209
      %342 = vmatprep.subr.mxu0 %v207
      %343 = vmatpush1.msra.mxu0 %v206
      %344 = vmatprep.subr.mxu0 %v204
      %345 = vmatpush1.msra.mxu0 %v203
      %346 = vmatprep.subr.mxu0 %v201
      %347 = vmatpush1.msra.mxu0 %v200
      %348 = vmatprep.subr.mxu0 %v294
      %349 = vmatpush2.msra.mxu0 %v293
      %350 = vmatprep.subr.mxu0 %v291
      %351 = vmatpush2.msra.mxu0 %v290
      %352 = vmatprep.subr.mxu0 %v288
      %353 = vmatpush2.msra.mxu0 %v287
      %354 = vmatprep.subr.mxu0 %v285
      %355 = vmatpush2.msra.mxu0 %v284
      %356 = vmatprep.subr.mxu0 %v282
      %357 = vmatpush2.msra.mxu0 %v281
      %358 = vmatprep.subr.mxu0 %v279
      %359 = vmatpush2.msra.mxu0 %v278
      %360 = vmatprep.subr.mxu0 %v276
      %361 = vmatpush2.msra.mxu0 %v275
      %362 = vmatprep.subr.mxu0 %v273
      %363 = vmatpush2.msra.mxu0 %v272
      %364 = vmatprep.subr.mxu0 %v270
      %365 = vmatpush2.msra.mxu0 %v269
      %366 = vmatprep.subr.mxu0 %v267
      %367 = vmatpush2.msra.mxu0 %v266
      %368 = vmatprep.subr.mxu0 %v264
      %369 = vmatpush2.msra.mxu0 %v263
      %370 = vmatprep.subr.mxu0 %v261
      %371 = vmatpush2.msra.mxu0 %v260
      %372 = vmatprep.subr.mxu0 %v258
      %373 = vmatpush2.msra.mxu0 %v257
      %374 = vmatprep.subr.mxu0 %v255
      %375 = vmatpush2.msra.mxu0 %v254
      %376 = vmatprep.subr.mxu0 %v252
      %377 = vmatpush2.msra.mxu0 %v251
      %378 = vmatprep.subr.mxu0 %v249
      %379 = vmatpush2.msra.mxu0 %v248
      %380 = vmatprep.mubr.f32.mxu0 %v314
      %381 = vmatmul.mubr.f32.gmra.mxu0 %v199
      %v382 = vpop.f32.mrf.mxu0
      %v383 = vadd.f32 %v301, %v382
      %v384 = vpop.f32.mrf.mxu0
      %v385 = vadd.f32 %v305, %v384
      %386 = vdwg.mxu0
      %387 = vmatprep.subr.mxu0 0.0
      %388 = vmatpush1.msra.mxu0 %v247
      %389 = vmatprep.subr.mxu0 0.0
      %390 = vmatpush1.msra.mxu0 %v244
      %391 = vmatprep.subr.mxu0 0.0
      %392 = vmatpush1.msra.mxu0 %v241
      %393 = vmatprep.subr.mxu0 0.0
      %394 = vmatpush1.msra.mxu0 %v238
      %395 = vmatprep.subr.mxu0 0.0
      %396 = vmatpush1.msra.mxu0 %v235
      %397 = vmatprep.subr.mxu0 0.0
      %398 = vmatpush1.msra.mxu0 %v232
      %399 = vmatprep.subr.mxu0 0.0
      %400 = vmatpush1.msra.mxu0 %v229
      %401 = vmatprep.subr.mxu0 0.0
      %402 = vmatpush1.msra.mxu0 %v226
      %403 = vmatprep.subr.mxu0 0.0
      %404 = vmatpush1.msra.mxu0 %v223
      %405 = vmatprep.subr.mxu0 0.0
      %406 = vmatpush1.msra.mxu0 %v220
      %407 = vmatprep.subr.mxu0 0.0
      %408 = vmatpush1.msra.mxu0 %v217
      %409 = vmatprep.subr.mxu0 0.0
      %410 = vmatpush1.msra.mxu0 %v214
      %411 = vmatprep.subr.mxu0 0.0
      %412 = vmatpush1.msra.mxu0 %v211
      %413 = vmatprep.subr.mxu0 0.0
      %414 = vmatpush1.msra.mxu0 %v208
      %415 = vmatprep.subr.mxu0 0.0
      %416 = vmatpush1.msra.mxu0 %v205
      %417 = vmatprep.subr.mxu0 0.0
      %418 = vmatpush1.msra.mxu0 %v202
      %419 = vmatprep.subr.mxu0 0.0
      %420 = vmatpush2.msra.mxu0 %v295
      %421 = vmatprep.subr.mxu0 0.0
      %422 = vmatpush2.msra.mxu0 %v292
      %423 = vmatprep.subr.mxu0 0.0
      %424 = vmatpush2.msra.mxu0 %v289
      %425 = vmatprep.subr.mxu0 0.0
      %426 = vmatpush2.msra.mxu0 %v286
      %427 = vmatprep.subr.mxu0 0.0
      %428 = vmatpush2.msra.mxu0 %v283
      %429 = vmatprep.subr.mxu0 0.0
      %430 = vmatpush2.msra.mxu0 %v280
      %431 = vmatprep.subr.mxu0 0.0
      %432 = vmatpush2.msra.mxu0 %v277
      %433 = vmatprep.subr.mxu0 0.0
      %434 = vmatpush2.msra.mxu0 %v274
      %435 = vmatprep.subr.mxu0 0.0
      %436 = vmatpush2.msra.mxu0 %v271
      %437 = vmatprep.subr.mxu0 0.0
      %438 = vmatpush2.msra.mxu0 %v268
      %439 = vmatprep.subr.mxu0 0.0
      %440 = vmatpush2.msra.mxu0 %v265
      %441 = vmatprep.subr.mxu0 0.0
      %442 = vmatpush2.msra.mxu0 %v262
      %443 = vmatprep.subr.mxu0 0.0
      %444 = vmatpush2.msra.mxu0 %v259
      %445 = vmatprep.subr.mxu0 0.0
      %446 = vmatpush2.msra.mxu0 %v256
      %447 = vmatprep.subr.mxu0 0.0
      %448 = vmatpush2.msra.mxu0 %v253
      %449 = vmatprep.subr.mxu0 0.0
      %450 = vmatpush2.msra.mxu0 %v250
      %451 = vmatprep.mubr.f32.mxu0 %v314
      %452 = vmatmul.mubr.f32.gmra.mxu0 %v199
      %v453 = vpop.f32.mrf.mxu0
      %v454 = vadd.f32 %v309, %v453
      %v455 = vpop.f32.mrf.mxu0
      %456 = vdwg.mxu0
      %458 = vrot.lane.b32.xlu0 %v383, 96
      %v459 = vpop.permute.xlu0 %458
      %vm460 = vcmask 261120
      %v461 = vsel %vm460, %v383, 0
      %v463 = vsel %vm460, %v459, 0
      %465 = vmatprep.subr.mxu0 0.0
      %466 = vmatpush1.xpose.msra.mxu0 0.0
      %467 = vmatprep.subr.mxu0 0.0
      %468 = vmatpush1.xpose.msra.mxu0 0.0
      %469 = vmatprep.subr.mxu0 0.0
      %470 = vmatpush1.xpose.msra.mxu0 0.0
      %471 = vmatprep.subr.mxu0 0.0
      %472 = vmatpush1.xpose.msra.mxu0 0.0
      %473 = vmatprep.subr.mxu0 0.0
      %474 = vmatpush1.xpose.msra.mxu0 0.0
      %475 = vmatprep.subr.mxu0 0.0
      %476 = vmatpush1.xpose.msra.mxu0 0.0
      %477 = vmatprep.subr.mxu0 0.0
      %478 = vmatpush1.xpose.msra.mxu0 0.0
      %479 = vmatprep.subr.mxu0 0.0
      %480 = vmatpush1.xpose.msra.mxu0 0.0
      %481 = vmatprep.subr.mxu0 0.0
      %482 = vmatpush1.xpose.msra.mxu0 0.0
      %483 = vmatprep.subr.mxu0 0.0
      %484 = vmatpush1.xpose.msra.mxu0 0.0
      %485 = vmatprep.subr.mxu0 0.0
      %486 = vmatpush1.xpose.msra.mxu0 0.0
      %487 = vmatprep.subr.mxu0 0.0
      %488 = vmatpush1.xpose.msra.mxu0 0.0
      %489 = vmatprep.subr.mxu0 0.0
      %490 = vmatpush1.xpose.msra.mxu0 0.0
      %491 = vmatprep.subr.mxu0 0.0
      %492 = vmatpush1.xpose.msra.mxu0 0.0
      %493 = vmatprep.subr.mxu0 0.0
      %494 = vmatpush1.xpose.msra.mxu0 0.0
      %495 = vmatprep.subr.mxu0 0.0
      %496 = vmatpush1.xpose.msra.mxu0 %v463
      %497 = vmatprep.subr.mxu0 0.0
      %498 = vmatpush2.xpose.msra.mxu0 0.0
      %499 = vmatprep.subr.mxu0 0.0
      %500 = vmatpush2.xpose.msra.mxu0 0.0
      %501 = vmatprep.subr.mxu0 0.0
      %502 = vmatpush2.xpose.msra.mxu0 0.0
      %503 = vmatprep.subr.mxu0 0.0
      %504 = vmatpush2.xpose.msra.mxu0 0.0
      %505 = vmatprep.subr.mxu0 0.0
      %506 = vmatpush2.xpose.msra.mxu0 0.0
      %507 = vmatprep.subr.mxu0 0.0
      %508 = vmatpush2.xpose.msra.mxu0 0.0
      %509 = vmatprep.subr.mxu0 0.0
      %510 = vmatpush2.xpose.msra.mxu0 0.0
      %511 = vmatprep.subr.mxu0 0.0
      %512 = vmatpush2.xpose.msra.mxu0 0.0
      %513 = vmatprep.subr.mxu0 0.0
      %514 = vmatpush2.xpose.msra.mxu0 0.0
      %515 = vmatprep.subr.mxu0 0.0
      %516 = vmatpush2.xpose.msra.mxu0 0.0
      %517 = vmatprep.subr.mxu0 0.0
      %518 = vmatpush2.xpose.msra.mxu0 0.0
      %519 = vmatprep.subr.mxu0 0.0
      %520 = vmatpush2.xpose.msra.mxu0 0.0
      %521 = vmatprep.subr.mxu0 0.0
      %522 = vmatpush2.xpose.msra.mxu0 0.0
      %523 = vmatprep.subr.mxu0 0.0
      %524 = vmatpush2.xpose.msra.mxu0 0.0
      %525 = vmatprep.subr.mxu0 0.0
      %526 = vmatpush2.xpose.msra.mxu0 0.0
      %527 = vmatprep.subr.mxu0 0.0
      %528 = vmatpush2.xpose.msra.mxu0 0.0
      %529 = vmatprep.mubr.f32.mxu0 0.0
      %530 = vmatmul.mubr.f32.gmra.mxu0 %v461
      %v531 = vpop.f32.mrf.mxu0
      %v532 = vadd.f32 0.0, %v531
      %v533 = vpop.f32.mrf.mxu0
      %534 = vdwg.mxu0
      %vm535 = vcmask 27648
      %v536 = vsel %vm535, %v532, -inf
      %537 = vmax.xlane.f32.xlu0 %v536
      %v538 = vpop.xlane.xlu0 %537
      %v539 = vsub.f32 %v532, %v538
      %v540 = vmul.f32 %v539, 1.442695
      %v541 = vpow.pop %v540
      %v542 = vsel %vm535, %v541, 0.0
      %543 = vadd.xlane.f32.xlu0 %v542
      %v544 = vpop.xlane.xlu0 %543
      %v545 = vrcp.pop %v544
      %v546 = vmul.f32 %v541, %v545
      %549 = vrot.lane.b32.xlu0 %v383, 64
      %v550 = vpop.permute.xlu0 %549
      %551 = vrot.lane.b32.xlu0 %v385, 64
      %v552 = vpop.permute.xlu0 %551
      %553 = vrot.lane.b32.xlu0 %v454, 64
      %v554 = vpop.permute.xlu0 %553
      %vm555 = vcmask 523264
      %v556 = vsel %vm555, %v550, %v552
      %v557 = vsel %vm555, %v552, %v554
      %vm558 = vcmask 31744
      %v560 = vsel %vm558, %v546, 0
      %vm562 = vcmask 1043456
      %v563 = vsel %vm562, %v556, 0
      %v565 = vsel %vm562, %v557, 0
      %567 = vmatprep.subr.mxu0 0.0
      %568 = vmatpush1.msra.mxu0 0.0
      %569 = vmatprep.subr.mxu0 0.0
      %570 = vmatpush1.msra.mxu0 0.0
      %571 = vmatprep.subr.mxu0 0.0
      %572 = vmatpush1.msra.mxu0 0.0
      %573 = vmatprep.subr.mxu0 0.0
      %574 = vmatpush1.msra.mxu0 0.0
      %575 = vmatprep.subr.mxu0 0.0
      %576 = vmatpush1.msra.mxu0 0.0
      %577 = vmatprep.subr.mxu0 0.0
      %578 = vmatpush1.msra.mxu0 0.0
      %579 = vmatprep.subr.mxu0 0.0
      %580 = vmatpush1.msra.mxu0 0.0
      %581 = vmatprep.subr.mxu0 0.0
      %582 = vmatpush1.msra.mxu0 0.0
      %583 = vmatprep.subr.mxu0 0.0
      %584 = vmatpush1.msra.mxu0 0.0
      %585 = vmatprep.subr.mxu0 0.0
      %586 = vmatpush1.msra.mxu0 0.0
      %587 = vmatprep.subr.mxu0 0.0
      %588 = vmatpush1.msra.mxu0 0.0
      %589 = vmatprep.subr.mxu0 0.0
      %590 = vmatpush1.msra.mxu0 0.0
      %591 = vmatprep.subr.mxu0 0.0
      %592 = vmatpush1.msra.mxu0 0.0
      %593 = vmatprep.subr.mxu0 0.0
      %594 = vmatpush1.msra.mxu0 0.0
      %595 = vmatprep.subr.mxu0 0.0
      %596 = vmatpush1.msra.mxu0 0.0
      %597 = vmatprep.subr.mxu0 %v565
      %598 = vmatpush1.msra.mxu0 %v563
      %599 = vmatprep.subr.mxu0 0.0
      %600 = vmatpush2.msra.mxu0 0.0
      %601 = vmatprep.subr.mxu0 0.0
      %602 = vmatpush2.msra.mxu0 0.0
      %603 = vmatprep.subr.mxu0 0.0
      %604 = vmatpush2.msra.mxu0 0.0
      %605 = vmatprep.subr.mxu0 0.0
      %606 = vmatpush2.msra.mxu0 0.0
      %607 = vmatprep.subr.mxu0 0.0
      %608 = vmatpush2.msra.mxu0 0.0
      %609 = vmatprep.subr.mxu0 0.0
      %610 = vmatpush2.msra.mxu0 0.0
      %611 = vmatprep.subr.mxu0 0.0
      %612 = vmatpush2.msra.mxu0 0.0
      %613 = vmatprep.subr.mxu0 0.0
      %614 = vmatpush2.msra.mxu0 0.0
      %615 = vmatprep.subr.mxu0 0.0
      %616 = vmatpush2.msra.mxu0 0.0
      %617 = vmatprep.subr.mxu0 0.0
      %618 = vmatpush2.msra.mxu0 0.0
      %619 = vmatprep.subr.mxu0 0.0
      %620 = vmatpush2.msra.mxu0 0.0
      %621 = vmatprep.subr.mxu0 0.0
      %622 = vmatpush2.msra.mxu0 0.0
      %623 = vmatprep.subr.mxu0 0.0
      %624 = vmatpush2.msra.mxu0 0.0
      %625 = vmatprep.subr.mxu0 0.0
      %626 = vmatpush2.msra.mxu0 0.0
      %627 = vmatprep.subr.mxu0 0.0
      %628 = vmatpush2.msra.mxu0 0.0
      %629 = vmatprep.subr.mxu0 0.0
      %630 = vmatpush2.msra.mxu0 0.0
      %631 = vmatprep.mubr.f32.mxu0 0.0
      %632 = vmatmul.mubr.f32.gmra.mxu0 %v560
      %v633 = vpop.f32.mrf.mxu0
      %v634 = vadd.f32 0.0, %v633
      %v635 = vpop.f32.mrf.mxu0
      %v636 = vadd.f32 0.0, %v635
      %637 = vdwg.mxu0
      %s638 = sld [smem:[#allocation2]]
      %v639 = vstv %s638
      %v640 = vmul.f32 %v639, %v634
      %v641 = vmul.f32 %v639, %v636
      %v642 = vadd.f32 %v640, %v199
      %v643 = vadd.f32 %v641, %v314
      %v646 = vcombine.low %v642, %v643
      %648 = vst [vmem:[%s198] sm:$0xff] %v646
      %p649 = scmp.lt.s32.totalorder %s16, 1
      %s650 = scalar_select %p649, %s16, 1
      %s651 = smul.addr %s650, 2
      %s652 = smul.addr %s651, 4
      %s653 = scalar_lea.vmem %s4, %s652
      // Predicated region
      $region37: #{generator_forward.14} parent=35 // pred_check
        %p654 = pneg %p123
      $region38: #{generator_forward.14} parent=35 // pred_check_branch
        %656 = sbr.rel (%p654) target = $region40
      $region39: #{generator_forward.14} parent=35 // pred_region
        _
      $region40: #{generator_forward.14} parent=35 // pred_fallthru
        _
    $region36: #{generator_forward.14} parent=5 // pred_fallthru
      _
    %p657 = scmp.le.s32.totalorder 2, %s11
    // Predicated region
    $region41: #{generator_forward.14} parent=5 // pred_check
      %p658 = pneg %p657
    $region42: #{generator_forward.14} parent=5 // pred_check_branch
      %660 = sbr.rel (%p658) target = $region44
    $region43: #{generator_forward.14} parent=5 // pred_region
      %s661 = ssub.s32 %s11, 2
      // Predicated region
      $region45: #{generator_forward.14} parent=43 // pred_check
        %p662 = pneg %p129
      $region46: #{generator_forward.14} parent=43 // pred_check_branch
        %664 = sbr.rel (%p662) target = $region48
      $region47: #{generator_forward.14} parent=43 // pred_region
        %p665 = scmp.lt.s32.totalorder %s17, 1
        %s666 = scalar_select %p665, %s17, 1
        %s667 = smul.addr %s666, 2
        %s668 = smul.addr %s667, 4
        %s669 = scalar_lea.vmem %s4, %s668
      $region48: #{generator_forward.14} parent=43 // pred_fallthru
        _
    $region44: #{generator_forward.14} parent=5 // pred_fallthru
      _
  $region6: #{generator_forward.14} parent=0 // loop_footer
    %s15 = sadd.s32 1, %s11
  $region7: #{generator_forward.14} parent=0 // loop_footer_branch
    %10 = sbr.rel target = $region3
  $region8: #{generator_forward.14} parent=0 // loop_exit
    _

// kernel: generator_forward.15
$region0: #{generator_forward.15}
  #allocation0 [shape = 'u32[]', space=smem, size = 0x4, offset = 0x4, fixed_abs, tag = 'smem constant byte address 0x4 - core index']
  #allocation1 [shape = 'u32[144,128]{1,0:T(1,128)}', space=vmem, size = 0x12000, scoped, tag = 'internal scratch']
  #allocation2 [shape = 'f32[16,256]{1,0:T(8,128)}', space=vmem, size = 0x4000, scoped, tag = 'scratch operand']
  %s0 = inlined_call_operand.vmem [shape: bf16[1,16,4096], index: 0, kind: input, shape index: {}]
  %s1 = inlined_call_operand.vmem [shape: bf16[1,4096,256], index: 1, kind: input, shape index: {}]
  %s2 = inlined_call_operand.vmem [shape: f32[1,1,256], index: 2, kind: input, shape index: {}]
  %s3 = inlined_call_operand.vmem [shape: f32[1,16,256], index: 3, kind: output, shape index: {}]
  %s4 = sld [smem:[#allocation0]]
  $region76: #{generator_forward.15} parent=0
    _
  %s6 = ssub.s32 1, %s4
  %s7 = scalar_select 0, %s6, %s4
  $region1: #{generator_forward.15} parent=0
    #allocation3 [shape = 'u8[32768]{0}', space=vmem, size = 0x8000, scoped, tag = 'input window, operand 0']
    loop: start=0, step=1, limit=10
    $region2: #{generator_forward.15} parent=1 // loop_pre_header
      _
    $region3: #{generator_forward.15} parent=1 // loop_header
      %s9 = sphi 0, %s13
      %p10 = scmp.ge.s32.totalorder %s9, 10
      %s16 = sphi 0, %s42
      %s17 = sphi 0, %s38
      %s18 = sphi 0, %s34
      %s19 = sphi 0, %s30
      %s20 = sphi 0, %s16
      %s21 = sphi 0, %s17
      %s22 = sphi 0, %s18
      %s23 = sphi 0, %s19
      %s24 = sphi 0, %s20
      %s25 = sphi 0, %s21
      %s26 = sphi 0, %s22
      %s27 = sphi 0, %s23
      %s49 = sphi 0, %s51
      %s52 = sphi 0, %s49
      %s53 = sphi 0, %s52
      %s69 = sphi 0, %s53
      %s79 = sphi 0, %s81
      %s82 = sphi 0, %s79
      %s83 = sphi 0, %s82
      %s99 = sphi 0, %s83
      %s107 = sphi 0, %s109
      %s110 = sphi 0, %s107
      %s111 = sphi 0, %s110
      %s127 = sphi 0, %s111
      %s137 = sphi 0, %s139
      %s140 = sphi 0, %s137
      %s141 = sphi 0, %s140
      %s157 = sphi 0, %s141
    $region4: #{generator_forward.15} parent=1 // loop_header_branch
      %12 = sbr.rel (%p10) target = $region8
    $region5: #{generator_forward.15} parent=1 // loop_body
      %s14 = ssub.s32 %s9, 1
      %s15 = ssub.s32 %s9, 2
      %s28 = sadd.s32 1, %s19
      %p29 = scmp.ge.s32.totalorder %s28, 8
      %s30 = scalar_select %p29, 0, %s28
      %s31 = sadd.s32 1, %s18
      %s32 = scalar_select %p29, %s31, %s18
      %p33 = scmp.ge.s32.totalorder %s32, 1
      %s34 = scalar_select %p33, 0, %s32
      %s35 = sadd.s32 1, %s17
      %s36 = scalar_select %p33, %s35, %s17
      %p37 = scmp.ge.s32.totalorder %s36, 1
      %s38 = scalar_select %p37, 0, %s36
      %s39 = sadd.s32 1, %s16
      %s40 = scalar_select %p37, %s39, %s16
      %p41 = scmp.ge.s32.totalorder %s40, 1
      %s42 = scalar_select %p41, 0, %s40
      %s43 = ssub.s32 %s16, %s42
      %s44 = ssub.s32 %s17, %s38
      %s45 = sor.u32 %s43, %s44
      %s46 = ssub.s32 %s19, %s30
      %s47 = sor.u32 %s45, %s46
      %p48 = scmp.eq.s32.totalorder %s47, 0
      %s50 = sadd.s32 %s49, 1
      %s51 = scalar_select %p48, %s49, %s50
      %p54 = pneg %p48
      %p55 = scmp.eq.s32.totalorder %s9, 7
      %p56 = por %p54, %p55
      %p57 = scmp.ne.s32.totalorder %s49, %s52
      %p58 = scmp.eq.s32.totalorder %s9, 0
      %p59 = por %p57, %p58
      %p60 = scmp.ne.s32.totalorder %s49, %s52
      %p61 = scmp.eq.s32.totalorder %s14, 7
      %p62 = por %p60, %p61
      %p63 = scmp.ne.s32.totalorder %s52, %s53
      %p64 = scmp.eq.s32.totalorder %s14, 0
      %p65 = por %p63, %p64
      %p66 = scmp.ne.s32.totalorder %s52, %s53
      %p67 = scmp.eq.s32.totalorder %s15, 7
      %p68 = por %p66, %p67
      %p70 = scmp.ne.s32.totalorder %s53, %s69
      %p71 = scmp.eq.s32.totalorder %s15, 0
      %p72 = por %p70, %p71
      %s73 = ssub.s32 %s16, %s42
      %s74 = ssub.s32 %s19, %s30
      %s75 = sor.u32 %s73, %s74
      %s76 = ssub.s32 %s18, %s34
      %s77 = sor.u32 %s75, %s76
      %p78 = scmp.eq.s32.totalorder %s77, 0
      %s80 = sadd.s32 %s79, 1
      %s81 = scalar_select %p78, %s79, %s80
      %p84 = pneg %p78
      %p85 = scmp.eq.s32.totalorder %s9, 7
      %p86 = por %p84, %p85
      %p87 = scmp.ne.s32.totalorder %s79, %s82
      %p88 = scmp.eq.s32.totalorder %s9, 0
      %p89 = por %p87, %p88
      %p90 = scmp.ne.s32.totalorder %s79, %s82
      %p91 = scmp.eq.s32.totalorder %s14, 7
      %p92 = por %p90, %p91
      %p93 = scmp.ne.s32.totalorder %s82, %s83
      %p94 = scmp.eq.s32.totalorder %s14, 0
      %p95 = por %p93, %p94
      %p96 = scmp.ne.s32.totalorder %s82, %s83
      %p97 = scmp.eq.s32.totalorder %s15, 7
      %p98 = por %p96, %p97
      %p100 = scmp.ne.s32.totalorder %s83, %s99
      %p101 = scmp.eq.s32.totalorder %s15, 0
      %p102 = por %p100, %p101
      %s103 = ssub.s32 %s16, %s42
      %s104 = ssub.s32 %s18, %s34
      %s105 = sor.u32 %s103, %s104
      %p106 = scmp.eq.s32.totalorder %s105, 0
      %s108 = sadd.s32 %s107, 1
      %s109 = scalar_select %p106, %s107, %s108
      %p112 = pneg %p106
      %p113 = scmp.eq.s32.totalorder %s9, 7
      %p114 = por %p112, %p113
      %p115 = scmp.ne.s32.totalorder %s107, %s110
      %p116 = scmp.eq.s32.totalorder %s9, 0
      %p117 = por %p115, %p116
      %p118 = scmp.ne.s32.totalorder %s107, %s110
      %p119 = scmp.eq.s32.totalorder %s14, 7
      %p120 = por %p118, %p119
      %p121 = scmp.ne.s32.totalorder %s110, %s111
      %p122 = scmp.eq.s32.totalorder %s14, 0
      %p123 = por %p121, %p122
      %p124 = scmp.ne.s32.totalorder %s110, %s111
      %p125 = scmp.eq.s32.totalorder %s15, 7
      %p126 = por %p124, %p125
      %p128 = scmp.ne.s32.totalorder %s111, %s127
      %p129 = scmp.eq.s32.totalorder %s15, 0
      %p130 = por %p128, %p129
      %s131 = ssub.s32 %s16, %s42
      %s132 = ssub.s32 %s17, %s38
      %s133 = sor.u32 %s131, %s132
      %s134 = ssub.s32 %s18, %s34
      %s135 = sor.u32 %s133, %s134
      %p136 = scmp.eq.s32.totalorder %s135, 0
      %s138 = sadd.s32 %s137, 1
      %s139 = scalar_select %p136, %s137, %s138
      %p142 = pneg %p136
      %p143 = scmp.eq.s32.totalorder %s9, 7
      %p144 = por %p142, %p143
      %p145 = scmp.ne.s32.totalorder %s137, %s140
      %p146 = scmp.eq.s32.totalorder %s9, 0
      %p147 = por %p145, %p146
      %p148 = scmp.ne.s32.totalorder %s137, %s140
      %p149 = scmp.eq.s32.totalorder %s14, 7
      %p150 = por %p148, %p149
      %p151 = scmp.ne.s32.totalorder %s140, %s141
      %p152 = scmp.eq.s32.totalorder %s14, 0
      %p153 = por %p151, %p152
      %p154 = scmp.ne.s32.totalorder %s140, %s141
      %p155 = scmp.eq.s32.totalorder %s15, 7
      %p156 = por %p154, %p155
      %p158 = scmp.ne.s32.totalorder %s141, %s157
      %p159 = scmp.eq.s32.totalorder %s15, 0
      %p160 = por %p158, %p159
      %p161 = scmp.le.s32.totalorder 1, %s9
      %p162 = scmp.lt.s32.totalorder %s9, 9
      %p163 = pnand %p161, %p162
      %p164 = pneg %p163
      // Predicated region
      $region9: #{generator_forward.15} parent=5 // pred_check
        _
      $region10: #{generator_forward.15} parent=5 // pred_check_branch
        %166 = sbr.rel (%p163) target = $region12
      $region11: #{generator_forward.15} parent=5 // pred_region
        %s167 = ssub.s32 %s9, 1
        // Predicated region
        $region13: #{generator_forward.15} parent=11 // pred_check
          %p168 = pneg %p123
        $region14: #{generator_forward.15} parent=11 // pred_check_branch
          %170 = sbr.rel (%p168) target = $region16
        $region15: #{generator_forward.15} parent=11 // pred_region
          %s171 = smul.u32 2, %s22
          %p172 = scmp.lt.s32.totalorder %s20, 0
          %s173 = scalar_select %p172, %s20, 0
          %p174 = scmp.lt.s32.totalorder %s171, 1
          %s175 = scalar_select %p174, %s171, 1
          %s176 = smul.addr %s173, 2
          %s177 = sadd.s32 %s175, %s176
          %s178 = scalar_lea.vmem %s2, %s177
          %s179 = smul.u32 2, %s22
        $region16: #{generator_forward.15} parent=11 // pred_fallthru
          _
      $region12: #{generator_forward.15} parent=5 // pred_fallthru
        _
      %p180 = scmp.lt.s32.totalorder %s9, 8
      // Predicated region
      $region17: #{generator_forward.15} parent=5 // pred_check
        %p181 = pneg %p180
      $region18: #{generator_forward.15} parent=5 // pred_check_branch
        %183 = sbr.rel (%p181) target = $region20
      $region19: #{generator_forward.15} parent=5 // pred_region
        // Predicated region
        $region21: #{generator_forward.15} parent=19 // pred_check
          %p184 = pneg %p59
        $region22: #{generator_forward.15} parent=19 // pred_check_branch
          %186 = sbr.rel (%p184) target = $region24
        $region23: #{generator_forward.15} parent=19 // pred_region
          %s187 = sand.u32 %s49, 1
          %s188 = sand.u32 %s49, 1
          %s189 = smul.addr %s188, 32
          %s190 = scalar_lea.vmem [#allocation3], %s189
          %s191 = smul.u32 2, %s17
          %s192 = smul.u32 4, %s19
          %s193 = smul.addr %s191, 32
          %s194 = sadd.s32 %s192, %s193
          %s195 = smul.addr %s16, 64
          %s196 = sadd.s32 %s194, %s195
          %s197 = smul.addr %s196, 4
          %s198 = scalar_lea.vmem %s0, %s197
          // Predicated region
          $region25: #{generator_forward.15} parent=23 // pred_check
            _
          $region26: #{generator_forward.15} parent=23 // pred_check_branch
            %200 = sbr.rel (0) target = $region28
          $region27: #{generator_forward.15} parent=23 // pred_region
            // Predicated region
            $region29: #{generator_forward.15} parent=27 // pred_check
              _
            $region30: #{generator_forward.15} parent=27 // pred_check_branch
              %202 = sbr.rel (0) target = $region32
            $region31: #{generator_forward.15} parent=27 // pred_region
              loop: start=0, step=1, limit=1
              $region33: #{generator_forward.15} parent=31 // loop_pre_header
                _
              $region34: #{generator_forward.15} parent=31 // loop_header
                %s204 = sphi 0, %s208
                %p205 = scmp.ge.s32.totalorder %s204, 1
                %s209 = sphi %s198, %s198
                %s210 = sphi %s190, %s190
              $region35: #{generator_forward.15} parent=31 // loop_header_branch
                %207 = sbr.rel (%p205) target = $region39
              $region36: #{generator_forward.15} parent=31 // loop_body
                %v211 = vld [vmem:[%s209] sm:$0xff]
                %212 = vst [vmem:[%s210] sm:$0xff] %v211
                %v213 = vld [vmem:[%s209 + $0x8] sm:$0xff]
                %214 = vst [vmem:[%s210 + $0x8] sm:$0xff] %v213
                %v215 = vld [vmem:[%s209 + $0x80] sm:$0xff]
                %216 = vst [vmem:[%s210 + $0x10] sm:$0xff] %v215
                %v217 = vld [vmem:[%s209 + $0x88] sm:$0xff]
                %218 = vst [vmem:[%s210 + $0x18] sm:$0xff] %v217
              $region37: #{generator_forward.15} parent=31 // loop_footer
                %s208 = sadd.s32 1, %s204
              $region38: #{generator_forward.15} parent=31 // loop_footer_branch
                %203 = sbr.rel target = $region34
              $region39: #{generator_forward.15} parent=31 // loop_exit
                _
            $region32: #{generator_forward.15} parent=27 // pred_fallthru
              _
            // Predicated region
            $region40: #{generator_forward.15} parent=27 // pred_check
              _
            $region41: #{generator_forward.15} parent=27 // pred_check_branch
              %220 = sbr.rel target = $region43
            $region42: #{generator_forward.15} parent=27 // pred_region
              _
            $region43: #{generator_forward.15} parent=27 // pred_fallthru
              _
          $region28: #{generator_forward.15} parent=23 // pred_fallthru
            _
          %221 = vnop
        $region24: #{generator_forward.15} parent=19 // pred_fallthru
          _
        // Predicated region
        $region44: #{generator_forward.15} parent=19 // pred_check
          %p222 = pneg %p89
        $region45: #{generator_forward.15} parent=19 // pred_check_branch
          %224 = sbr.rel (%p222) target = $region47
        $region46: #{generator_forward.15} parent=19 // pred_region
          %s225 = smul.u32 64, %s19
          %s226 = smul.u32 2, %s18
          %p227 = scmp.lt.s32.totalorder %s16, 0
          %s228 = scalar_select %p227, %s16, 0
          %p229 = scmp.lt.s32.totalorder %s225, 511
          %s230 = scalar_select %p229, %s225, 511
          %p231 = scmp.lt.s32.totalorder %s226, 1
          %s232 = scalar_select %p231, %s226, 1
          %s233 = smul.addr %s230, 2
          %s234 = sadd.s32 %s232, %s233
          %s235 = smul.addr %s228, 1024
          %s236 = sadd.s32 %s234, %s235
          %s237 = smul.addr %s236, 4
          %s238 = scalar_lea.vmem %s1, %s237
          %s239 = smul.u32 64, %s19
          %s240 = smul.u32 2, %s18
        $region47: #{generator_forward.15} parent=19 // pred_fallthru
          _
      $region20: #{generator_forward.15} parent=5 // pred_fallthru
        _
      %p241 = scmp.le.s32.totalorder 1, %s9
      %p242 = scmp.lt.s32.totalorder %s9, 9
      %p243 = pnand %p241, %p242
      %p244 = pneg %p243
      // Predicated region
      $region48: #{generator_forward.15} parent=5 // pred_check
        _
      $region49: #{generator_forward.15} parent=5 // pred_check_branch
        %246 = sbr.rel (%p243) target = $region51
      $region50: #{generator_forward.15} parent=5 // pred_region
        %s247 = ssub.s32 %s9, 1
        %s248 = sand.u32 %s52, 1
        %s249 = sand.u32 %s52, 1
        %s250 = smul.addr %s249, 32
        %s251 = scalar_lea.vmem [#allocation3], %s250
        // Predicated region
        $region52: #{generator_forward.15} parent=50 // pred_check
          %p252 = pneg %p65
        $region53: #{generator_forward.15} parent=50 // pred_check_branch
          %254 = sbr.rel (%p252) target = $region55
        $region54: #{generator_forward.15} parent=50 // pred_region
          _
        $region55: #{generator_forward.15} parent=50 // pred_fallthru
          _
        %s255 = sand.u32 %s52, 1
        %s256 = sand.u32 %s52, 1
        %s257 = smul.addr %s256, 32
        %s258 = scalar_lea.vmem [#allocation3], %s257
        %p259 = pneg %p65
        %p260 = pneg %p62
        %s261 = smul.u32 64, %s23
        %s262 = smul.u32 2, %s22
        %p263 = scmp.lt.s32.totalorder %s20, 0
        %s264 = scalar_select %p263, %s20, 0
        %p265 = scmp.lt.s32.totalorder %s261, 511
        %s266 = scalar_select %p265, %s261, 511
        %p267 = scmp.lt.s32.totalorder %s262, 1
        %s268 = scalar_select %p267, %s262, 1
        %s269 = smul.addr %s266, 2
        %s270 = sadd.s32 %s268, %s269
        %s271 = smul.addr %s264, 1024
        %s272 = sadd.s32 %s270, %s271
        %s273 = smul.addr %s272, 4
        %s274 = scalar_lea.vmem %s1, %s273
        %p275 = pneg %p95
        %p276 = pneg %p92
        %s277 = smul.u32 2, %s22
        %p278 = scmp.lt.s32.totalorder %s20, 0
        %s279 = scalar_select %p278, %s20, 0
        %p280 = scmp.lt.s32.totalorder %s277, 1
        %s281 = scalar_select %p280, %s277, 1
        %s282 = smul.addr %s279, 2
        %s283 = sadd.s32 %s281, %s282
        %s284 = scalar_lea.vmem %s2, %s283
        %p285 = pneg %p123
        %p286 = pneg %p120
        %p287 = pneg %p153
        %p288 = pneg %p150
        %s289 = smul.u32 2, %s21
        %s290 = smul.u32 2, %s22
        %p291 = scmp.lt.s32.totalorder %s20, 0
        %s292 = scalar_select %p291, %s20, 0
        %p293 = scmp.lt.s32.totalorder %s289, 1
        %s294 = scalar_select %p293, %s289, 1
        %p295 = scmp.lt.s32.totalorder %s290, 1
        %s296 = scalar_select %p295, %s290, 1
        %s297 = smul.addr %s294, 2
        %s298 = sadd.s32 %s296, %s297
        %s299 = smul.addr %s292, 4
        %s300 = sadd.s32 %s298, %s299
        %s301 = smul.addr %s300, 8
        %s302 = scalar_lea.vmem %s3, %s301
        %s303 = smul.u32 2, %s21
        %s304 = smul.u32 4, %s23
        %s305 = smul.u32 64, %s23
        %s306 = smul.u32 2, %s22
        %p307 = scmp.lt.s32.totalorder %s20, 0
        %s308 = scalar_select %p307, %s20, 0
        %p309 = scmp.lt.s32.totalorder %s305, 511
        %s310 = scalar_select %p309, %s305, 511
        %p311 = scmp.lt.s32.totalorder %s306, 1
        %s312 = scalar_select %p311, %s306, 1
        %s313 = smul.addr %s310, 2
        %s314 = sadd.s32 %s312, %s313
        %s315 = smul.addr %s308, 1024
        %s316 = sadd.s32 %s314, %s315
        %s317 = smul.addr %s316, 4
        %s318 = scalar_lea.vmem %s1, %s317
        %s319 = smul.u32 64, %s23
        %s320 = smul.u32 2, %s22
        %s321 = smul.u32 2, %s22
        %p322 = scmp.lt.s32.totalorder %s20, 0
        %s323 = scalar_select %p322, %s20, 0
        %p324 = scmp.lt.s32.totalorder %s321, 1
        %s325 = scalar_select %p324, %s321, 1
        %s326 = smul.addr %s323, 2
        %s327 = sadd.s32 %s325, %s326
        %s328 = scalar_lea.vmem %s2, %s327
        %s329 = smul.u32 2, %s22
        %s330 = smul.u32 2, %s21
        %s331 = smul.u32 2, %s22
        %p332 = scmp.lt.s32.totalorder %s20, 0
        %s333 = scalar_select %p332, %s20, 0
        %p334 = scmp.lt.s32.totalorder %s330, 1
        %s335 = scalar_select %p334, %s330, 1
        %p336 = scmp.lt.s32.totalorder %s331, 1
        %s337 = scalar_select %p336, %s331, 1
        %s338 = smul.addr %s335, 2
        %s339 = sadd.s32 %s337, %s338
        %s340 = smul.addr %s333, 4
        %s341 = sadd.s32 %s339, %s340
        %s342 = smul.addr %s341, 8
        %s343 = scalar_lea.vmem %s3, %s342
        %s344 = smul.u32 2, %s21
        %s345 = smul.u32 2, %s22
        %p346 = scmp.eq.s32.totalorder %s23, 0
        // Predicated region
        $region56: #{generator_forward.15} parent=50 // pred_check
          %p347 = pneg %p346
        $region57: #{generator_forward.15} parent=50 // pred_check_branch
          %349 = sbr.rel (%p347) target = $region59
        $region58: #{generator_forward.15} parent=50 // pred_region
          %350 = vst [vmem:[#allocation2] sm:$0xff] 0.0
          %351 = vst [vmem:[#allocation2 + $0x8] sm:$0xff] 0.0
          %352 = vst [vmem:[#allocation2 + $0x10] sm:$0xff] 0.0
          %353 = vst [vmem:[#allocation2 + $0x18] sm:$0xff] 0.0
        $region59: #{generator_forward.15} parent=50 // pred_fallthru
          _
        %v354 = vld [vmem:[#allocation2] sm:$0xff]
        %v355 = vld [vmem:[#allocation2 + $0x8] sm:$0xff]
        %v356 = vld [vmem:[#allocation2 + $0x10] sm:$0xff]
        %v357 = vld [vmem:[#allocation2 + $0x18] sm:$0xff]
        %v358 = vld [vmem:[%s251] sm:$0xff]
        %v359 = vld [vmem:[%s251 + $0x8] sm:$0xff]
        %v360 = vld [vmem:[%s251 + $0x10] sm:$0xff]
        %v361 = vld [vmem:[%s251 + $0x18] sm:$0xff]
        %v362 = vld [vmem:[%s318] sm:$0xff]
        %v363 = vld [vmem:[%s318 + $0x8] sm:$0xff]
        %v364 = vld [vmem:[%s318 + $0x10] sm:$0xff]
        %v365 = vld [vmem:[%s318 + $0x18] sm:$0xff]
        %v366 = vld [vmem:[%s318 + $0x20] sm:$0xff]
        %v367 = vld [vmem:[%s318 + $0x28] sm:$0xff]
        %v368 = vld [vmem:[%s318 + $0x30] sm:$0xff]
        %v369 = vld [vmem:[%s318 + $0x38] sm:$0xff]
        %v370 = vld [vmem:[%s318 + $0x40] sm:$0xff]
        %v371 = vld [vmem:[%s318 + $0x48] sm:$0xff]
        %v372 = vld [vmem:[%s318 + $0x50] sm:$0xff]
        %v373 = vld [vmem:[%s318 + $0x58] sm:$0xff]
        %v374 = vld [vmem:[%s318 + $0x60] sm:$0xff]
        %v375 = vld [vmem:[%s318 + $0x68] sm:$0xff]
        %v376 = vld [vmem:[%s318 + $0x70] sm:$0xff]
        %v377 = vld [vmem:[%s318 + $0x78] sm:$0xff]
        %v378 = vld [vmem:[%s318 + $0x80] sm:$0xff]
        %v379 = vld [vmem:[%s318 + $0x88] sm:$0xff]
        %v380 = vld [vmem:[%s318 + $0x90] sm:$0xff]
        %v381 = vld [vmem:[%s318 + $0x98] sm:$0xff]
        %v382 = vld [vmem:[%s318 + $0xa0] sm:$0xff]
        %v383 = vld [vmem:[%s318 + $0xa8] sm:$0xff]
        %v384 = vld [vmem:[%s318 + $0xb0] sm:$0xff]
        %v385 = vld [vmem:[%s318 + $0xb8] sm:$0xff]
        %v386 = vld [vmem:[%s318 + $0xc0] sm:$0xff]
        %v387 = vld [vmem:[%s318 + $0xc8] sm:$0xff]
        %v388 = vld [vmem:[%s318 + $0xd0] sm:$0xff]
        %v389 = vld [vmem:[%s318 + $0xd8] sm:$0xff]
        %v390 = vld [vmem:[%s318 + $0xe0] sm:$0xff]
        %v391 = vld [vmem:[%s318 + $0xe8] sm:$0xff]
        %v392 = vld [vmem:[%s318 + $0xf0] sm:$0xff]
        %v393 = vld [vmem:[%s318 + $0xf8] sm:$0xff]
        %v394 = vld [vmem:[%s318 + $0x100] sm:$0xff]
        %v395 = vld [vmem:[%s318 + $0x108] sm:$0xff]
        %v396 = vld [vmem:[%s318 + $0x110] sm:$0xff]
        %v397 = vld [vmem:[%s318 + $0x118] sm:$0xff]
        %v398 = vld [vmem:[%s318 + $0x120] sm:$0xff]
        %v399 = vld [vmem:[%s318 + $0x128] sm:$0xff]
        %v400 = vld [vmem:[%s318 + $0x130] sm:$0xff]
        %v401 = vld [vmem:[%s318 + $0x138] sm:$0xff]
        %v402 = vld [vmem:[%s318 + $0x140] sm:$0xff]
        %v403 = vld [vmem:[%s318 + $0x148] sm:$0xff]
        %v404 = vld [vmem:[%s318 + $0x150] sm:$0xff]
        %v405 = vld [vmem:[%s318 + $0x158] sm:$0xff]
        %v406 = vld [vmem:[%s318 + $0x160] sm:$0xff]
        %v407 = vld [vmem:[%s318 + $0x168] sm:$0xff]
        %v408 = vld [vmem:[%s318 + $0x170] sm:$0xff]
        %v409 = vld [vmem:[%s318 + $0x178] sm:$0xff]
        %v410 = vld [vmem:[%s318 + $0x180] sm:$0xff]
        %v411 = vld [vmem:[%s318 + $0x188] sm:$0xff]
        %v412 = vld [vmem:[%s318 + $0x190] sm:$0xff]
        %v413 = vld [vmem:[%s318 + $0x198] sm:$0xff]
        %v414 = vld [vmem:[%s318 + $0x1a0] sm:$0xff]
        %v415 = vld [vmem:[%s318 + $0x1a8] sm:$0xff]
        %v416 = vld [vmem:[%s318 + $0x1b0] sm:$0xff]
        %v417 = vld [vmem:[%s318 + $0x1b8] sm:$0xff]
        %v418 = vld [vmem:[%s318 + $0x1c0] sm:$0xff]
        %v419 = vld [vmem:[%s318 + $0x1c8] sm:$0xff]
        %v420 = vld [vmem:[%s318 + $0x1d0] sm:$0xff]
        %v421 = vld [vmem:[%s318 + $0x1d8] sm:$0xff]
        %v422 = vld [vmem:[%s318 + $0x1e0] sm:$0xff]
        %v423 = vld [vmem:[%s318 + $0x1e8] sm:$0xff]
        %v424 = vld [vmem:[%s318 + $0x1f0] sm:$0xff]
        %v425 = vld [vmem:[%s318 + $0x1f8] sm:$0xff]
        %v430 = vunpack.c.l.b16 %v358
        %v431 = vunpack.c.h.b16 %v358
        %v432 = vunpack.c.l.b16 %v359
        %v433 = vunpack.c.h.b16 %v359
        %v434 = vunpack.c.l.b16 %v360
        %v435 = vunpack.c.h.b16 %v360
        %v436 = vunpack.c.l.b16 %v361
        %v437 = vunpack.c.h.b16 %v361
        %v438 = vpack.c.b16 %v434, %v430
        %v439 = vpack.c.b16 %v435, %v431
        %v440 = vpack.c.b16 %v436, %v432
        %v441 = vpack.c.b16 %v437, %v433
        %v510 = vunpack.c.l.b16 %v362
        %v511 = vunpack.c.h.b16 %v362
        %v512 = vunpack.c.l.b16 %v363
        %v513 = vunpack.c.h.b16 %v363
        %v514 = vunpack.c.l.b16 %v364
        %v515 = vunpack.c.h.b16 %v364
        %v516 = vunpack.c.l.b16 %v365
        %v517 = vunpack.c.h.b16 %v365
        %v518 = vunpack.c.l.b16 %v366
        %v519 = vunpack.c.h.b16 %v366
        %v520 = vunpack.c.l.b16 %v367
        %v521 = vunpack.c.h.b16 %v367
        %v522 = vunpack.c.l.b16 %v368
        %v523 = vunpack.c.h.b16 %v368
        %v524 = vunpack.c.l.b16 %v369
        %v525 = vunpack.c.h.b16 %v369
        %v526 = vunpack.c.l.b16 %v370
        %v527 = vunpack.c.h.b16 %v370
        %v528 = vunpack.c.l.b16 %v371
        %v529 = vunpack.c.h.b16 %v371
        %v530 = vunpack.c.l.b16 %v372
        %v531 = vunpack.c.h.b16 %v372
        %v532 = vunpack.c.l.b16 %v373
        %v533 = vunpack.c.h.b16 %v373
        %v534 = vunpack.c.l.b16 %v374
        %v535 = vunpack.c.h.b16 %v374
        %v536 = vunpack.c.l.b16 %v375
        %v537 = vunpack.c.h.b16 %v375
        %v538 = vunpack.c.l.b16 %v376
        %v539 = vunpack.c.h.b16 %v376
        %v540 = vunpack.c.l.b16 %v377
        %v541 = vunpack.c.h.b16 %v377
        %v542 = vunpack.c.l.b16 %v378
        %v543 = vunpack.c.h.b16 %v378
        %v544 = vunpack.c.l.b16 %v379
        %v545 = vunpack.c.h.b16 %v379
        %v546 = vunpack.c.l.b16 %v380
        %v547 = vunpack.c.h.b16 %v380
        %v548 = vunpack.c.l.b16 %v381
        %v549 = vunpack.c.h.b16 %v381
        %v550 = vunpack.c.l.b16 %v382
        %v551 = vunpack.c.h.b16 %v382
        %v552 = vunpack.c.l.b16 %v383
        %v553 = vunpack.c.h.b16 %v383
        %v554 = vunpack.c.l.b16 %v384
        %v555 = vunpack.c.h.b16 %v384
        %v556 = vunpack.c.l.b16 %v385
        %v557 = vunpack.c.h.b16 %v385
        %v558 = vunpack.c.l.b16 %v386
        %v559 = vunpack.c.h.b16 %v386
        %v560 = vunpack.c.l.b16 %v387
        %v561 = vunpack.c.h.b16 %v387
        %v562 = vunpack.c.l.b16 %v388
        %v563 = vunpack.c.h.b16 %v388
        %v564 = vunpack.c.l.b16 %v389
        %v565 = vunpack.c.h.b16 %v389
        %v566 = vunpack.c.l.b16 %v390
        %v567 = vunpack.c.h.b16 %v390
        %v568 = vunpack.c.l.b16 %v391
        %v569 = vunpack.c.h.b16 %v391
        %v570 = vunpack.c.l.b16 %v392
        %v571 = vunpack.c.h.b16 %v392
        %v572 = vunpack.c.l.b16 %v393
        %v573 = vunpack.c.h.b16 %v393
        %v574 = vunpack.c.l.b16 %v394
        %v575 = vunpack.c.h.b16 %v394
        %v576 = vunpack.c.l.b16 %v395
        %v577 = vunpack.c.h.b16 %v395
        %v578 = vunpack.c.l.b16 %v396
        %v579 = vunpack.c.h.b16 %v396
        %v580 = vunpack.c.l.b16 %v397
        %v581 = vunpack.c.h.b16 %v397
        %v582 = vunpack.c.l.b16 %v398
        %v583 = vunpack.c.h.b16 %v398
        %v584 = vunpack.c.l.b16 %v399
        %v585 = vunpack.c.h.b16 %v399
        %v586 = vunpack.c.l.b16 %v400
        %v587 = vunpack.c.h.b16 %v400
        %v588 = vunpack.c.l.b16 %v401
        %v589 = vunpack.c.h.b16 %v401
        %v590 = vunpack.c.l.b16 %v402
        %v591 = vunpack.c.h.b16 %v402
        %v592 = vunpack.c.l.b16 %v403
        %v593 = vunpack.c.h.b16 %v403
        %v594 = vunpack.c.l.b16 %v404
        %v595 = vunpack.c.h.b16 %v404
        %v596 = vunpack.c.l.b16 %v405
        %v597 = vunpack.c.h.b16 %v405
        %v598 = vunpack.c.l.b16 %v406
        %v599 = vunpack.c.h.b16 %v406
        %v600 = vunpack.c.l.b16 %v407
        %v601 = vunpack.c.h.b16 %v407
        %v602 = vunpack.c.l.b16 %v408
        %v603 = vunpack.c.h.b16 %v408
        %v604 = vunpack.c.l.b16 %v409
        %v605 = vunpack.c.h.b16 %v409
        %v606 = vunpack.c.l.b16 %v410
        %v607 = vunpack.c.h.b16 %v410
        %v608 = vunpack.c.l.b16 %v411
        %v609 = vunpack.c.h.b16 %v411
        %v610 = vunpack.c.l.b16 %v412
        %v611 = vunpack.c.h.b16 %v412
        %v612 = vunpack.c.l.b16 %v413
        %v613 = vunpack.c.h.b16 %v413
        %v614 = vunpack.c.l.b16 %v414
        %v615 = vunpack.c.h.b16 %v414
        %v616 = vunpack.c.l.b16 %v415
        %v617 = vunpack.c.h.b16 %v415
        %v618 = vunpack.c.l.b16 %v416
        %v619 = vunpack.c.h.b16 %v416
        %v620 = vunpack.c.l.b16 %v417
        %v621 = vunpack.c.h.b16 %v417
        %v622 = vunpack.c.l.b16 %v418
        %v623 = vunpack.c.h.b16 %v418
        %v624 = vunpack.c.l.b16 %v419
        %v625 = vunpack.c.h.b16 %v419
        %v626 = vunpack.c.l.b16 %v420
        %v627 = vunpack.c.h.b16 %v420
        %v628 = vunpack.c.l.b16 %v421
        %v629 = vunpack.c.h.b16 %v421
        %v630 = vunpack.c.l.b16 %v422
        %v631 = vunpack.c.h.b16 %v422
        %v632 = vunpack.c.l.b16 %v423
        %v633 = vunpack.c.h.b16 %v423
        %v634 = vunpack.c.l.b16 %v424
        %v635 = vunpack.c.h.b16 %v424
        %v636 = vunpack.c.l.b16 %v425
        %v637 = vunpack.c.h.b16 %v425
        %v638 = vpack.c.b16 %v512, %v510
        %v639 = vpack.c.b16 %v513, %v511
        %v640 = vpack.c.b16 %v516, %v514
        %v641 = vpack.c.b16 %v517, %v515
        %v642 = vpack.c.b16 %v520, %v518
        %v643 = vpack.c.b16 %v521, %v519
        %v644 = vpack.c.b16 %v524, %v522
        %v645 = vpack.c.b16 %v525, %v523
        %v646 = vpack.c.b16 %v528, %v526
        %v647 = vpack.c.b16 %v529, %v527
        %v648 = vpack.c.b16 %v532, %v530
        %v649 = vpack.c.b16 %v533, %v531
        %v650 = vpack.c.b16 %v536, %v534
        %v651 = vpack.c.b16 %v537, %v535
        %v652 = vpack.c.b16 %v540, %v538
        %v653 = vpack.c.b16 %v541, %v539
        %v654 = vpack.c.b16 %v544, %v542
        %v655 = vpack.c.b16 %v545, %v543
        %v656 = vpack.c.b16 %v548, %v546
        %v657 = vpack.c.b16 %v549, %v547
        %v658 = vpack.c.b16 %v552, %v550
        %v659 = vpack.c.b16 %v553, %v551
        %v660 = vpack.c.b16 %v556, %v554
        %v661 = vpack.c.b16 %v557, %v555
        %v662 = vpack.c.b16 %v560, %v558
        %v663 = vpack.c.b16 %v561, %v559
        %v664 = vpack.c.b16 %v564, %v562
        %v665 = vpack.c.b16 %v565, %v563
        %v666 = vpack.c.b16 %v568, %v566
        %v667 = vpack.c.b16 %v569, %v567
        %v668 = vpack.c.b16 %v572, %v570
        %v669 = vpack.c.b16 %v573, %v571
        %v670 = vpack.c.b16 %v576, %v574
        %v671 = vpack.c.b16 %v577, %v575
        %v672 = vpack.c.b16 %v580, %v578
        %v673 = vpack.c.b16 %v581, %v579
        %v674 = vpack.c.b16 %v584, %v582
        %v675 = vpack.c.b16 %v585, %v583
        %v676 = vpack.c.b16 %v588, %v586
        %v677 = vpack.c.b16 %v589, %v587
        %v678 = vpack.c.b16 %v592, %v590
        %v679 = vpack.c.b16 %v593, %v591
        %v680 = vpack.c.b16 %v596, %v594
        %v681 = vpack.c.b16 %v597, %v595
        %v682 = vpack.c.b16 %v600, %v598
        %v683 = vpack.c.b16 %v601, %v599
        %v684 = vpack.c.b16 %v604, %v602
        %v685 = vpack.c.b16 %v605, %v603
        %v686 = vpack.c.b16 %v608, %v606
        %v687 = vpack.c.b16 %v609, %v607
        %v688 = vpack.c.b16 %v612, %v610
        %v689 = vpack.c.b16 %v613, %v611
        %v690 = vpack.c.b16 %v616, %v614
        %v691 = vpack.c.b16 %v617, %v615
        %v692 = vpack.c.b16 %v620, %v618
        %v693 = vpack.c.b16 %v621, %v619
        %v694 = vpack.c.b16 %v624, %v622
        %v695 = vpack.c.b16 %v625, %v623
        %v696 = vpack.c.b16 %v628, %v626
        %v697 = vpack.c.b16 %v629, %v627
        %v698 = vpack.c.b16 %v632, %v630
        %v699 = vpack.c.b16 %v633, %v631
        %v700 = vpack.c.b16 %v636, %v634
        %v701 = vpack.c.b16 %v637, %v635
        %766 = vmatprep.subr.bf16.mxu0 %v653
        %767 = vmatpush1.bf16.msra.mxu0 %v652
        %768 = vmatprep.subr.bf16.mxu0 %v651
        %769 = vmatpush1.bf16.msra.mxu0 %v650
        %770 = vmatprep.subr.bf16.mxu0 %v649
        %771 = vmatpush1.bf16.msra.mxu0 %v648
        %772 = vmatprep.subr.bf16.mxu0 %v647
        %773 = vmatpush1.bf16.msra.mxu0 %v646
        %774 = vmatprep.subr.bf16.mxu0 %v645
        %775 = vmatpush1.bf16.msra.mxu0 %v644
        %776 = vmatprep.subr.bf16.mxu0 %v643
        %777 = vmatpush1.bf16.msra.mxu0 %v642
        %778 = vmatprep.subr.bf16.mxu0 %v641
        %779 = vmatpush1.bf16.msra.mxu0 %v640
        %780 = vmatprep.subr.bf16.mxu0 %v639
        %781 = vmatpush1.bf16.msra.mxu0 %v638
        %782 = vmatprep.subr.bf16.mxu0 %v669
        %783 = vmatpush2.bf16.msra.mxu0 %v668
        %784 = vmatprep.subr.bf16.mxu0 %v667
        %785 = vmatpush2.bf16.msra.mxu0 %v666
        %786 = vmatprep.subr.bf16.mxu0 %v665
        %787 = vmatpush2.bf16.msra.mxu0 %v664
        %788 = vmatprep.subr.bf16.mxu0 %v663
        %789 = vmatpush2.bf16.msra.mxu0 %v662
        %790 = vmatprep.subr.bf16.mxu0 %v661
        %791 = vmatpush2.bf16.msra.mxu0 %v660
        %792 = vmatprep.subr.bf16.mxu0 %v659
        %793 = vmatpush2.bf16.msra.mxu0 %v658
        %794 = vmatprep.subr.bf16.mxu0 %v657
        %795 = vmatpush2.bf16.msra.mxu0 %v656
        %796 = vmatprep.subr.bf16.mxu0 %v655
        %797 = vmatpush2.bf16.msra.mxu0 %v654
        %798 = vmatprep.mubr.bf16.mxu0 %v439
        %799 = vmatmul.mubr.bf16.gmra.mxu0 %v438
        %v800 = vpop.f32.mrf.mxu0
        %v801 = vadd.f32 0.0, %v800
        %v802 = vpop.f32.mrf.mxu0
        %v803 = vadd.f32 0.0, %v802
        %v804 = vpop.f32.mrf.mxu0
        %v805 = vadd.f32 0.0, %v804
        %v806 = vpop.f32.mrf.mxu0
        %v807 = vadd.f32 0.0, %v806
        %808 = vdwg.mxu0
        %809 = vmatprep.subr.bf16.mxu0 %v685
        %810 = vmatpush1.bf16.msra.mxu0 %v684
        %811 = vmatprep.subr.bf16.mxu0 %v683
        %812 = vmatpush1.bf16.msra.mxu0 %v682
        %813 = vmatprep.subr.bf16.mxu0 %v681
        %814 = vmatpush1.bf16.msra.mxu0 %v680
        %815 = vmatprep.subr.bf16.mxu0 %v679
        %816 = vmatpush1.bf16.msra.mxu0 %v678
        %817 = vmatprep.subr.bf16.mxu0 %v677
        %818 = vmatpush1.bf16.msra.mxu0 %v676
        %819 = vmatprep.subr.bf16.mxu0 %v675
        %820 = vmatpush1.bf16.msra.mxu0 %v674
        %821 = vmatprep.subr.bf16.mxu0 %v673
        %822 = vmatpush1.bf16.msra.mxu0 %v672
        %823 = vmatprep.subr.bf16.mxu0 %v671
        %824 = vmatpush1.bf16.msra.mxu0 %v670
        %825 = vmatprep.subr.bf16.mxu0 %v701
        %826 = vmatpush2.bf16.msra.mxu0 %v700
        %827 = vmatprep.subr.bf16.mxu0 %v699
        %828 = vmatpush2.bf16.msra.mxu0 %v698
        %829 = vmatprep.subr.bf16.mxu0 %v697
        %830 = vmatpush2.bf16.msra.mxu0 %v696
        %831 = vmatprep.subr.bf16.mxu0 %v695
        %832 = vmatpush2.bf16.msra.mxu0 %v694
        %833 = vmatprep.subr.bf16.mxu0 %v693
        %834 = vmatpush2.bf16.msra.mxu0 %v692
        %835 = vmatprep.subr.bf16.mxu0 %v691
        %836 = vmatpush2.bf16.msra.mxu0 %v690
        %837 = vmatprep.subr.bf16.mxu0 %v689
        %838 = vmatpush2.bf16.msra.mxu0 %v688
        %839 = vmatprep.subr.bf16.mxu0 %v687
        %840 = vmatpush2.bf16.msra.mxu0 %v686
        %841 = vmatprep.mubr.bf16.mxu0 %v441
        %842 = vmatmul.mubr.bf16.gmra.mxu0 %v440
        %v843 = vpop.f32.mrf.mxu0
        %v844 = vadd.f32 %v801, %v843
        %v845 = vpop.f32.mrf.mxu0
        %v846 = vadd.f32 %v803, %v845
        %v847 = vpop.f32.mrf.mxu0
        %v848 = vadd.f32 %v805, %v847
        %v849 = vpop.f32.mrf.mxu0
        %v850 = vadd.f32 %v807, %v849
        %851 = vdwg.mxu0
        %v852 = vadd.f32 %v354, %v844
        %v853 = vadd.f32 %v355, %v846
        %v854 = vadd.f32 %v356, %v848
        %v855 = vadd.f32 %v357, %v850
        %856 = vst [vmem:[#allocation2] sm:$0xff] %v852
        %857 = vst [vmem:[#allocation2 + $0x8] sm:$0xff] %v853
        %858 = vst [vmem:[#allocation2 + $0x10] sm:$0xff] %v854
        %859 = vst [vmem:[#allocation2 + $0x18] sm:$0xff] %v855
        %p860 = scmp.eq.s32.totalorder %s23, 7
        // Predicated region
        $region60: #{generator_forward.15} parent=50 // pred_check
          %p861 = pneg %p860
        $region61: #{generator_forward.15} parent=50 // pred_check_branch
          %863 = sbr.rel (%p861) target = $region63
        $region62: #{generator_forward.15} parent=50 // pred_region
          %v864 = vld [vmem:[#allocation2] sm:$0xff]
          %v865 = vld [vmem:[#allocation2 + $0x8] sm:$0xff]
          %v866 = vld [vmem:[#allocation2 + $0x10] sm:$0xff]
          %v867 = vld [vmem:[#allocation2 + $0x18] sm:$0xff]
          %v868 = vld [vmem:[%s328] sm:$0x3]
          %v870 = vlaneseq
          %v871 = vshrl.u32 %v870, 7
          %v872 = vsub.s32 0, %v871
          %v873 = vrot.slane %v868, %v872
          %v874 = vlaneseq
          %v875 = vshrl.u32 %v874, 7
          %v876 = vsub.s32 1, %v875
          %v877 = vrot.slane %v868, %v876
          %v880 = vadd.f32 %v864, %v873
          %v881 = vadd.f32 %v865, %v877
          %v882 = vadd.f32 %v866, %v873
          %v883 = vadd.f32 %v867, %v877
          %vm884 = vcmp.ge.f32.partialorder %v880, 0.0
          %vm885 = vcmp.ge.f32.partialorder %v881, 0.0
          %vm886 = vcmp.ge.f32.partialorder %v882, 0.0
          %vm887 = vcmp.ge.f32.partialorder %v883, 0.0
          %v888 = vmul.f32 %v880, 0.2
          %v889 = vmul.f32 %v881, 0.2
          %v890 = vmul.f32 %v882, 0.2
          %v891 = vmul.f32 %v883, 0.2
          %v892 = vsel %vm884, %v880, %v888
          %v893 = vsel %vm885, %v881, %v889
          %v894 = vsel %vm886, %v882, %v890
          %v895 = vsel %vm887, %v883, %v891
          %896 = vst [vmem:[%s343] sm:$0xff] %v892
          %897 = vst [vmem:[%s343 + $0x8] sm:$0xff] %v893
          %898 = vst [vmem:[%s343 + $0x10] sm:$0xff] %v894
          %899 = vst [vmem:[%s343 + $0x18] sm:$0xff] %v895
        $region63: #{generator_forward.15} parent=50 // pred_fallthru
          _
        %s900 = smul.u32 2, %s21
        %s901 = smul.u32 2, %s22
        %p902 = scmp.lt.s32.totalorder %s20, 0
        %s903 = scalar_select %p902, %s20, 0
        %p904 = scmp.lt.s32.totalorder %s900, 1
        %s905 = scalar_select %p904, %s900, 1
        %p906 = scmp.lt.s32.totalorder %s901, 1
        %s907 = scalar_select %p906, %s901, 1
        %s908 = smul.addr %s905, 2
        %s909 = sadd.s32 %s907, %s908
        %s910 = smul.addr %s903, 4
        %s911 = sadd.s32 %s909, %s910
        %s912 = smul.addr %s911, 8
        %s913 = scalar_lea.vmem %s3, %s912
        // Predicated region
        $region64: #{generator_forward.15} parent=50 // pred_check
          %p914 = pneg %p150
        $region65: #{generator_forward.15} parent=50 // pred_check_branch
          %916 = sbr.rel (%p914) target = $region67
        $region66: #{generator_forward.15} parent=50 // pred_region
          %s917 = smul.u32 2, %s21
          %s918 = smul.u32 2, %s22
        $region67: #{generator_forward.15} parent=50 // pred_fallthru
          _
        // Predicated region
        $region68: #{generator_forward.15} parent=50 // pred_check
          %p919 = pneg %p150
        $region69: #{generator_forward.15} parent=50 // pred_check_branch
          %921 = sbr.rel (%p919) target = $region71
        $region70: #{generator_forward.15} parent=50 // pred_region
          %s922 = smul.u32 2, %s21
          %s923 = smul.u32 2, %s22
          %p924 = scmp.lt.s32.totalorder %s20, 0
          %s925 = scalar_select %p924, %s20, 0
          %p926 = scmp.lt.s32.totalorder %s922, 1
          %s927 = scalar_select %p926, %s922, 1
          %p928 = scmp.lt.s32.totalorder %s923, 1
          %s929 = scalar_select %p928, %s923, 1
          %s930 = smul.addr %s927, 2
          %s931 = sadd.s32 %s929, %s930
          %s932 = smul.addr %s925, 4
          %s933 = sadd.s32 %s931, %s932
          %s934 = smul.addr %s933, 8
          %s935 = scalar_lea.vmem %s3, %s934
        $region71: #{generator_forward.15} parent=50 // pred_fallthru
          _
      $region51: #{generator_forward.15} parent=5 // pred_fallthru
        _
      %p936 = scmp.le.s32.totalorder 2, %s9
      // Predicated region
      $region72: #{generator_forward.15} parent=5 // pred_check
        %p937 = pneg %p936
      $region73: #{generator_forward.15} parent=5 // pred_check_branch
        %939 = sbr.rel (%p937) target = $region75
      $region74: #{generator_forward.15} parent=5 // pred_region
        %s940 = ssub.s32 %s9, 2
      $region75: #{generator_forward.15} parent=5 // pred_fallthru
        _
    $region6: #{generator_forward.15} parent=1 // loop_footer
      %s13 = sadd.s32 1, %s9
    $region7: #{generator_forward.15} parent=1 // loop_footer_branch
      %8 = sbr.rel target = $region3
    $region8: #{generator_forward.15} parent=1 // loop_exit
      _

// kernel: generator_forward.16
$region0: #{generator_forward.16}
  #allocation0 [shape = 'u32[]', space=smem, size = 0x4, offset = 0x4, fixed_abs, tag = 'smem constant byte address 0x4 - core index']
  #allocation1 [shape = 'u32[144,128]{1,0:T(1,128)}', space=vmem, size = 0x12000, scoped, tag = 'internal scratch']
  #allocation2 [shape = 'f32[16,256]{1,0:T(8,128)}', space=vmem, size = 0x4000, scoped, tag = 'scratch operand']
  %s0 = inlined_call_operand.vmem [shape: bf16[4,16,1024], index: 0, kind: input, shape index: {}]
  %s1 = inlined_call_operand.vmem [shape: bf16[4,1024,256], index: 1, kind: input, shape index: {}]
  %s2 = inlined_call_operand.vmem [shape: f32[4,1,256], index: 2, kind: input, shape index: {}]
  %s3 = inlined_call_operand.vmem [shape: f32[4,16,256], index: 3, kind: output, shape index: {}]
  %s4 = sld [smem:[#allocation0]]
  $region76: #{generator_forward.16} parent=0
    _
  %s6 = ssub.s32 1, %s4
  %s7 = scalar_select 0, %s6, %s4
  $region1: #{generator_forward.16} parent=0
    #allocation3 [shape = 'u8[32768]{0}', space=vmem, size = 0x8000, scoped, tag = 'input window, operand 0']
    loop: start=0, step=1, limit=10
    $region2: #{generator_forward.16} parent=1 // loop_pre_header
      _
    $region3: #{generator_forward.16} parent=1 // loop_header
      %s9 = sphi 0, %s13
      %p10 = scmp.ge.s32.totalorder %s9, 10
      %s16 = sphi 0, %s42
      %s17 = sphi 0, %s38
      %s18 = sphi 0, %s34
      %s19 = sphi 0, %s30
      %s20 = sphi 0, %s16
      %s21 = sphi 0, %s17
      %s22 = sphi 0, %s18
      %s23 = sphi 0, %s19
      %s24 = sphi 0, %s20
      %s25 = sphi 0, %s21
      %s26 = sphi 0, %s22
      %s27 = sphi 0, %s23
      %s49 = sphi 0, %s51
      %s52 = sphi 0, %s49
      %s53 = sphi 0, %s52
      %s69 = sphi 0, %s53
      %s79 = sphi 0, %s81
      %s82 = sphi 0, %s79
      %s83 = sphi 0, %s82
      %s99 = sphi 0, %s83
      %s107 = sphi 0, %s109
      %s110 = sphi 0, %s107
      %s111 = sphi 0, %s110
      %s127 = sphi 0, %s111
      %s137 = sphi 0, %s139
      %s140 = sphi 0, %s137
      %s141 = sphi 0, %s140
      %s157 = sphi 0, %s141
    $region4: #{generator_forward.16} parent=1 // loop_header_branch
      %12 = sbr.rel (%p10) target = $region8
    $region5: #{generator_forward.16} parent=1 // loop_body
      %s14 = ssub.s32 %s9, 1
      %s15 = ssub.s32 %s9, 2
      %s28 = sadd.s32 1, %s19
      %p29 = scmp.ge.s32.totalorder %s28, 2
      %s30 = scalar_select %p29, 0, %s28
      %s31 = sadd.s32 1, %s18
      %s32 = scalar_select %p29, %s31, %s18
      %p33 = scmp.ge.s32.totalorder %s32, 1
      %s34 = scalar_select %p33, 0, %s32
      %s35 = sadd.s32 1, %s17
      %s36 = scalar_select %p33, %s35, %s17
      %p37 = scmp.ge.s32.totalorder %s36, 1
      %s38 = scalar_select %p37, 0, %s36
      %s39 = sadd.s32 1, %s16
      %s40 = scalar_select %p37, %s39, %s16
      %p41 = scmp.ge.s32.totalorder %s40, 4
      %s42 = scalar_select %p41, 0, %s40
      %s43 = ssub.s32 %s16, %s42
      %s44 = ssub.s32 %s17, %s38
      %s45 = sor.u32 %s43, %s44
      %s46 = ssub.s32 %s19, %s30
      %s47 = sor.u32 %s45, %s46
      %p48 = scmp.eq.s32.totalorder %s47, 0
      %s50 = sadd.s32 %s49, 1
      %s51 = scalar_select %p48, %s49, %s50
      %p54 = pneg %p48
      %p55 = scmp.eq.s32.totalorder %s9, 7
      %p56 = por %p54, %p55
      %p57 = scmp.ne.s32.totalorder %s49, %s52
      %p58 = scmp.eq.s32.totalorder %s9, 0
      %p59 = por %p57, %p58
      %p60 = scmp.ne.s32.totalorder %s49, %s52
      %p61 = scmp.eq.s32.totalorder %s14, 7
      %p62 = por %p60, %p61
      %p63 = scmp.ne.s32.totalorder %s52, %s53
      %p64 = scmp.eq.s32.totalorder %s14, 0
      %p65 = por %p63, %p64
      %p66 = scmp.ne.s32.totalorder %s52, %s53
      %p67 = scmp.eq.s32.totalorder %s15, 7
      %p68 = por %p66, %p67
      %p70 = scmp.ne.s32.totalorder %s53, %s69
      %p71 = scmp.eq.s32.totalorder %s15, 0
      %p72 = por %p70, %p71
      %s73 = ssub.s32 %s16, %s42
      %s74 = ssub.s32 %s19, %s30
      %s75 = sor.u32 %s73, %s74
      %s76 = ssub.s32 %s18, %s34
      %s77 = sor.u32 %s75, %s76
      %p78 = scmp.eq.s32.totalorder %s77, 0
      %s80 = sadd.s32 %s79, 1
      %s81 = scalar_select %p78, %s79, %s80
      %p84 = pneg %p78
      %p85 = scmp.eq.s32.totalorder %s9, 7
      %p86 = por %p84, %p85
      %p87 = scmp.ne.s32.totalorder %s79, %s82
      %p88 = scmp.eq.s32.totalorder %s9, 0
      %p89 = por %p87, %p88
      %p90 = scmp.ne.s32.totalorder %s79, %s82
      %p91 = scmp.eq.s32.totalorder %s14, 7
      %p92 = por %p90, %p91
      %p93 = scmp.ne.s32.totalorder %s82, %s83
      %p94 = scmp.eq.s32.totalorder %s14, 0
      %p95 = por %p93, %p94
      %p96 = scmp.ne.s32.totalorder %s82, %s83
      %p97 = scmp.eq.s32.totalorder %s15, 7
      %p98 = por %p96, %p97
      %p100 = scmp.ne.s32.totalorder %s83, %s99
      %p101 = scmp.eq.s32.totalorder %s15, 0
      %p102 = por %p100, %p101
      %s103 = ssub.s32 %s16, %s42
      %s104 = ssub.s32 %s18, %s34
      %s105 = sor.u32 %s103, %s104
      %p106 = scmp.eq.s32.totalorder %s105, 0
      %s108 = sadd.s32 %s107, 1
      %s109 = scalar_select %p106, %s107, %s108
      %p112 = pneg %p106
      %p113 = scmp.eq.s32.totalorder %s9, 7
      %p114 = por %p112, %p113
      %p115 = scmp.ne.s32.totalorder %s107, %s110
      %p116 = scmp.eq.s32.totalorder %s9, 0
      %p117 = por %p115, %p116
      %p118 = scmp.ne.s32.totalorder %s107, %s110
      %p119 = scmp.eq.s32.totalorder %s14, 7
      %p120 = por %p118, %p119
      %p121 = scmp.ne.s32.totalorder %s110, %s111
      %p122 = scmp.eq.s32.totalorder %s14, 0
      %p123 = por %p121, %p122
      %p124 = scmp.ne.s32.totalorder %s110, %s111
      %p125 = scmp.eq.s32.totalorder %s15, 7
      %p126 = por %p124, %p125
      %p128 = scmp.ne.s32.totalorder %s111, %s127
      %p129 = scmp.eq.s32.totalorder %s15, 0
      %p130 = por %p128, %p129
      %s131 = ssub.s32 %s16, %s42
      %s132 = ssub.s32 %s17, %s38
      %s133 = sor.u32 %s131, %s132
      %s134 = ssub.s32 %s18, %s34
      %s135 = sor.u32 %s133, %s134
      %p136 = scmp.eq.s32.totalorder %s135, 0
      %s138 = sadd.s32 %s137, 1
      %s139 = scalar_select %p136, %s137, %s138
      %p142 = pneg %p136
      %p143 = scmp.eq.s32.totalorder %s9, 7
      %p144 = por %p142, %p143
      %p145 = scmp.ne.s32.totalorder %s137, %s140
      %p146 = scmp.eq.s32.totalorder %s9, 0
      %p147 = por %p145, %p146
      %p148 = scmp.ne.s32.totalorder %s137, %s140
      %p149 = scmp.eq.s32.totalorder %s14, 7
      %p150 = por %p148, %p149
      %p151 = scmp.ne.s32.totalorder %s140, %s141
      %p152 = scmp.eq.s32.totalorder %s14, 0
      %p153 = por %p151, %p152
      %p154 = scmp.ne.s32.totalorder %s140, %s141
      %p155 = scmp.eq.s32.totalorder %s15, 7
      %p156 = por %p154, %p155
      %p158 = scmp.ne.s32.totalorder %s141, %s157
      %p159 = scmp.eq.s32.totalorder %s15, 0
      %p160 = por %p158, %p159
      %p161 = scmp.le.s32.totalorder 1, %s9
      %p162 = scmp.lt.s32.totalorder %s9, 9
      %p163 = pnand %p161, %p162
      %p164 = pneg %p163
      // Predicated region
      $region9: #{generator_forward.16} parent=5 // pred_check
        _
      $region10: #{generator_forward.16} parent=5 // pred_check_branch
        %166 = sbr.rel (%p163) target = $region12
      $region11: #{generator_forward.16} parent=5 // pred_region
        %s167 = ssub.s32 %s9, 1
      $region12: #{generator_forward.16} parent=5 // pred_fallthru
        _
      %p168 = scmp.lt.s32.totalorder %s9, 8
      // Predicated region
      $region13: #{generator_forward.16} parent=5 // pred_check
        %p169 = pneg %p168
      $region14: #{generator_forward.16} parent=5 // pred_check_branch
        %171 = sbr.rel (%p169) target = $region16
      $region15: #{generator_forward.16} parent=5 // pred_region
        // Predicated region
        $region17: #{generator_forward.16} parent=15 // pred_check
          %p172 = pneg %p59
        $region18: #{generator_forward.16} parent=15 // pred_check_branch
          %174 = sbr.rel (%p172) target = $region20
        $region19: #{generator_forward.16} parent=15 // pred_region
          %s175 = sand.u32 %s49, 1
          %s176 = sand.u32 %s49, 1
          %s177 = smul.addr %s176, 32
          %s178 = scalar_lea.vmem [#allocation3], %s177
          %s179 = smul.u32 2, %s17
          %s180 = smul.u32 4, %s19
          %s181 = smul.addr %s179, 8
          %s182 = sadd.s32 %s180, %s181
          %s183 = smul.addr %s16, 16
          %s184 = sadd.s32 %s182, %s183
          %s185 = smul.addr %s184, 4
          %s186 = scalar_lea.vmem %s0, %s185
          // Predicated region
          $region21: #{generator_forward.16} parent=19 // pred_check
            _
          $region22: #{generator_forward.16} parent=19 // pred_check_branch
            %188 = sbr.rel (0) target = $region24
          $region23: #{generator_forward.16} parent=19 // pred_region
            // Predicated region
            $region25: #{generator_forward.16} parent=23 // pred_check
              _
            $region26: #{generator_forward.16} parent=23 // pred_check_branch
              %190 = sbr.rel (0) target = $region28
            $region27: #{generator_forward.16} parent=23 // pred_region
              loop: start=0, step=1, limit=1
              $region29: #{generator_forward.16} parent=27 // loop_pre_header
                _
              $region30: #{generator_forward.16} parent=27 // loop_header
                %s192 = sphi 0, %s196
                %p193 = scmp.ge.s32.totalorder %s192, 1
                %s197 = sphi %s186, %s186
                %s198 = sphi %s178, %s178
              $region31: #{generator_forward.16} parent=27 // loop_header_branch
                %195 = sbr.rel (%p193) target = $region35
              $region32: #{generator_forward.16} parent=27 // loop_body
                %v199 = vld [vmem:[%s197] sm:$0xff]
                %200 = vst [vmem:[%s198] sm:$0xff] %v199
                %v201 = vld [vmem:[%s197 + $0x8] sm:$0xff]
                %202 = vst [vmem:[%s198 + $0x8] sm:$0xff] %v201
                %v203 = vld [vmem:[%s197 + $0x20] sm:$0xff]
                %204 = vst [vmem:[%s198 + $0x10] sm:$0xff] %v203
                %v205 = vld [vmem:[%s197 + $0x28] sm:$0xff]
                %206 = vst [vmem:[%s198 + $0x18] sm:$0xff] %v205
              $region33: #{generator_forward.16} parent=27 // loop_footer
                %s196 = sadd.s32 1, %s192
              $region34: #{generator_forward.16} parent=27 // loop_footer_branch
                %191 = sbr.rel target = $region30
              $region35: #{generator_forward.16} parent=27 // loop_exit
                _
            $region28: #{generator_forward.16} parent=23 // pred_fallthru
              _
            // Predicated region
            $region36: #{generator_forward.16} parent=23 // pred_check
              _
            $region37: #{generator_forward.16} parent=23 // pred_check_branch
              %208 = sbr.rel target = $region39
            $region38: #{generator_forward.16} parent=23 // pred_region
              _
            $region39: #{generator_forward.16} parent=23 // pred_fallthru
              _
          $region24: #{generator_forward.16} parent=19 // pred_fallthru
            _
          %209 = vnop
        $region20: #{generator_forward.16} parent=15 // pred_fallthru
          _
        // Predicated region
        $region40: #{generator_forward.16} parent=15 // pred_check
          %p210 = pneg %p89
        $region41: #{generator_forward.16} parent=15 // pred_check_branch
          %212 = sbr.rel (%p210) target = $region43
        $region42: #{generator_forward.16} parent=15 // pred_region
          %s213 = smul.u32 64, %s19
          %s214 = smul.u32 2, %s18
          %p215 = scmp.lt.s32.totalorder %s16, 3
          %s216 = scalar_select %p215, %s16, 3
          %p217 = scmp.lt.s32.totalorder %s213, 127
          %s218 = scalar_select %p217, %s213, 127
          %p219 = scmp.lt.s32.totalorder %s214, 1
          %s220 = scalar_select %p219, %s214, 1
          %s221 = smul.addr %s218, 2
          %s222 = sadd.s32 %s220, %s221
          %s223 = smul.addr %s216, 256
          %s224 = sadd.s32 %s222, %s223
          %s225 = smul.addr %s224, 4
          %s226 = scalar_lea.vmem %s1, %s225
          %s227 = smul.u32 64, %s19
          %s228 = smul.u32 2, %s18
        $region43: #{generator_forward.16} parent=15 // pred_fallthru
          _
        // Predicated region
        $region44: #{generator_forward.16} parent=15 // pred_check
          %p229 = pneg %p117
        $region45: #{generator_forward.16} parent=15 // pred_check_branch
          %231 = sbr.rel (%p229) target = $region47
        $region46: #{generator_forward.16} parent=15 // pred_region
          %s232 = smul.u32 2, %s18
          %p233 = scmp.lt.s32.totalorder %s16, 3
          %s234 = scalar_select %p233, %s16, 3
          %p235 = scmp.lt.s32.totalorder %s232, 1
          %s236 = scalar_select %p235, %s232, 1
          %s237 = smul.addr %s234, 2
          %s238 = sadd.s32 %s236, %s237
          %s239 = scalar_lea.vmem %s2, %s238
          %s240 = smul.u32 2, %s18
        $region47: #{generator_forward.16} parent=15 // pred_fallthru
          _
      $region16: #{generator_forward.16} parent=5 // pred_fallthru
        _
      %p241 = scmp.le.s32.totalorder 1, %s9
      %p242 = scmp.lt.s32.totalorder %s9, 9
      %p243 = pnand %p241, %p242
      %p244 = pneg %p243
      // Predicated region
      $region48: #{generator_forward.16} parent=5 // pred_check
        _
      $region49: #{generator_forward.16} parent=5 // pred_check_branch
        %246 = sbr.rel (%p243) target = $region51
      $region50: #{generator_forward.16} parent=5 // pred_region
        %s247 = ssub.s32 %s9, 1
        %s248 = sand.u32 %s52, 1
        %s249 = sand.u32 %s52, 1
        %s250 = smul.addr %s249, 32
        %s251 = scalar_lea.vmem [#allocation3], %s250
        // Predicated region
        $region52: #{generator_forward.16} parent=50 // pred_check
          %p252 = pneg %p65
        $region53: #{generator_forward.16} parent=50 // pred_check_branch
          %254 = sbr.rel (%p252) target = $region55
        $region54: #{generator_forward.16} parent=50 // pred_region
          _
        $region55: #{generator_forward.16} parent=50 // pred_fallthru
          _
        %s255 = sand.u32 %s52, 1
        %s256 = sand.u32 %s52, 1
        %s257 = smul.addr %s256, 32
        %s258 = scalar_lea.vmem [#allocation3], %s257
        %p259 = pneg %p65
        %p260 = pneg %p62
        %s261 = smul.u32 64, %s23
        %s262 = smul.u32 2, %s22
        %p263 = scmp.lt.s32.totalorder %s20, 3
        %s264 = scalar_select %p263, %s20, 3
        %p265 = scmp.lt.s32.totalorder %s261, 127
        %s266 = scalar_select %p265, %s261, 127
        %p267 = scmp.lt.s32.totalorder %s262, 1
        %s268 = scalar_select %p267, %s262, 1
        %s269 = smul.addr %s266, 2
        %s270 = sadd.s32 %s268, %s269
        %s271 = smul.addr %s264, 256
        %s272 = sadd.s32 %s270, %s271
        %s273 = smul.addr %s272, 4
        %s274 = scalar_lea.vmem %s1, %s273
        %p275 = pneg %p95
        %p276 = pneg %p92
        %s277 = smul.u32 2, %s22
        %p278 = scmp.lt.s32.totalorder %s20, 3
        %s279 = scalar_select %p278, %s20, 3
        %p280 = scmp.lt.s32.totalorder %s277, 1
        %s281 = scalar_select %p280, %s277, 1
        %s282 = smul.addr %s279, 2
        %s283 = sadd.s32 %s281, %s282
        %s284 = scalar_lea.vmem %s2, %s283
        %p285 = pneg %p123
        %p286 = pneg %p120
        %p287 = pneg %p153
        %p288 = pneg %p150
        %s289 = smul.u32 2, %s21
        %s290 = smul.u32 2, %s22
        %p291 = scmp.lt.s32.totalorder %s20, 3
        %s292 = scalar_select %p291, %s20, 3
        %p293 = scmp.lt.s32.totalorder %s289, 1
        %s294 = scalar_select %p293, %s289, 1
        %p295 = scmp.lt.s32.totalorder %s290, 1
        %s296 = scalar_select %p295, %s290, 1
        %s297 = smul.addr %s294, 2
        %s298 = sadd.s32 %s296, %s297
        %s299 = smul.addr %s292, 4
        %s300 = sadd.s32 %s298, %s299
        %s301 = smul.addr %s300, 8
        %s302 = scalar_lea.vmem %s3, %s301
        %s303 = smul.u32 2, %s21
        %s304 = smul.u32 4, %s23
        %s305 = smul.u32 64, %s23
        %s306 = smul.u32 2, %s22
        %p307 = scmp.lt.s32.totalorder %s20, 3
        %s308 = scalar_select %p307, %s20, 3
        %p309 = scmp.lt.s32.totalorder %s305, 127
        %s310 = scalar_select %p309, %s305, 127
        %p311 = scmp.lt.s32.totalorder %s306, 1
        %s312 = scalar_select %p311, %s306, 1
        %s313 = smul.addr %s310, 2
        %s314 = sadd.s32 %s312, %s313
        %s315 = smul.addr %s308, 256
        %s316 = sadd.s32 %s314, %s315
        %s317 = smul.addr %s316, 4
        %s318 = scalar_lea.vmem %s1, %s317
        %s319 = smul.u32 64, %s23
        %s320 = smul.u32 2, %s22
        %s321 = smul.u32 2, %s22
        %p322 = scmp.lt.s32.totalorder %s20, 3
        %s323 = scalar_select %p322, %s20, 3
        %p324 = scmp.lt.s32.totalorder %s321, 1
        %s325 = scalar_select %p324, %s321, 1
        %s326 = smul.addr %s323, 2
        %s327 = sadd.s32 %s325, %s326
        %s328 = scalar_lea.vmem %s2, %s327
        %s329 = smul.u32 2, %s22
        %s330 = smul.u32 2, %s21
        %s331 = smul.u32 2, %s22
        %p332 = scmp.lt.s32.totalorder %s20, 3
        %s333 = scalar_select %p332, %s20, 3
        %p334 = scmp.lt.s32.totalorder %s330, 1
        %s335 = scalar_select %p334, %s330, 1
        %p336 = scmp.lt.s32.totalorder %s331, 1
        %s337 = scalar_select %p336, %s331, 1
        %s338 = smul.addr %s335, 2
        %s339 = sadd.s32 %s337, %s338
        %s340 = smul.addr %s333, 4
        %s341 = sadd.s32 %s339, %s340
        %s342 = smul.addr %s341, 8
        %s343 = scalar_lea.vmem %s3, %s342
        %s344 = smul.u32 2, %s21
        %s345 = smul.u32 2, %s22
        %p346 = scmp.eq.s32.totalorder %s23, 0
        // Predicated region
        $region56: #{generator_forward.16} parent=50 // pred_check
          %p347 = pneg %p346
        $region57: #{generator_forward.16} parent=50 // pred_check_branch
          %349 = sbr.rel (%p347) target = $region59
        $region58: #{generator_forward.16} parent=50 // pred_region
          %350 = vst [vmem:[#allocation2] sm:$0xff] 0.0
          %351 = vst [vmem:[#allocation2 + $0x8] sm:$0xff] 0.0
          %352 = vst [vmem:[#allocation2 + $0x10] sm:$0xff] 0.0
          %353 = vst [vmem:[#allocation2 + $0x18] sm:$0xff] 0.0
        $region59: #{generator_forward.16} parent=50 // pred_fallthru
          _
        %v354 = vld [vmem:[#allocation2] sm:$0xff]
        %v355 = vld [vmem:[#allocation2 + $0x8] sm:$0xff]
        %v356 = vld [vmem:[#allocation2 + $0x10] sm:$0xff]
        %v357 = vld [vmem:[#allocation2 + $0x18] sm:$0xff]
        %v358 = vld [vmem:[%s251] sm:$0xff]
        %v359 = vld [vmem:[%s251 + $0x8] sm:$0xff]
        %v360 = vld [vmem:[%s251 + $0x10] sm:$0xff]
        %v361 = vld [vmem:[%s251 + $0x18] sm:$0xff]
        %v362 = vld [vmem:[%s318] sm:$0xff]
        %v363 = vld [vmem:[%s318 + $0x8] sm:$0xff]
        %v364 = vld [vmem:[%s318 + $0x10] sm:$0xff]
        %v365 = vld [vmem:[%s318 + $0x18] sm:$0xff]
        %v366 = vld [vmem:[%s318 + $0x20] sm:$0xff]
        %v367 = vld [vmem:[%s318 + $0x28] sm:$0xff]
        %v368 = vld [vmem:[%s318 + $0x30] sm:$0xff]
        %v369 = vld [vmem:[%s318 + $0x38] sm:$0xff]
        %v370 = vld [vmem:[%s318 + $0x40] sm:$0xff]
        %v371 = vld [vmem:[%s318 + $0x48] sm:$0xff]
        %v372 = vld [vmem:[%s318 + $0x50] sm:$0xff]
        %v373 = vld [vmem:[%s318 + $0x58] sm:$0xff]
        %v374 = vld [vmem:[%s318 + $0x60] sm:$0xff]
        %v375 = vld [vmem:[%s318 + $0x68] sm:$0xff]
        %v376 = vld [vmem:[%s318 + $0x70] sm:$0xff]
        %v377 = vld [vmem:[%s318 + $0x78] sm:$0xff]
        %v378 = vld [vmem:[%s318 + $0x80] sm:$0xff]
        %v379 = vld [vmem:[%s318 + $0x88] sm:$0xff]
        %v380 = vld [vmem:[%s318 + $0x90] sm:$0xff]
        %v381 = vld [vmem:[%s318 + $0x98] sm:$0xff]
        %v382 = vld [vmem:[%s318 + $0xa0] sm:$0xff]
        %v383 = vld [vmem:[%s318 + $0xa8] sm:$0xff]
        %v384 = vld [vmem:[%s318 + $0xb0] sm:$0xff]
        %v385 = vld [vmem:[%s318 + $0xb8] sm:$0xff]
        %v386 = vld [vmem:[%s318 + $0xc0] sm:$0xff]
        %v387 = vld [vmem:[%s318 + $0xc8] sm:$0xff]
        %v388 = vld [vmem:[%s318 + $0xd0] sm:$0xff]
        %v389 = vld [vmem:[%s318 + $0xd8] sm:$0xff]
        %v390 = vld [vmem:[%s318 + $0xe0] sm:$0xff]
        %v391 = vld [vmem:[%s318 + $0xe8] sm:$0xff]
        %v392 = vld [vmem:[%s318 + $0xf0] sm:$0xff]
        %v393 = vld [vmem:[%s318 + $0xf8] sm:$0xff]
        %v394 = vld [vmem:[%s318 + $0x100] sm:$0xff]
        %v395 = vld [vmem:[%s318 + $0x108] sm:$0xff]
        %v396 = vld [vmem:[%s318 + $0x110] sm:$0xff]
        %v397 = vld [vmem:[%s318 + $0x118] sm:$0xff]
        %v398 = vld [vmem:[%s318 + $0x120] sm:$0xff]
        %v399 = vld [vmem:[%s318 + $0x128] sm:$0xff]
        %v400 = vld [vmem:[%s318 + $0x130] sm:$0xff]
        %v401 = vld [vmem:[%s318 + $0x138] sm:$0xff]
        %v402 = vld [vmem:[%s318 + $0x140] sm:$0xff]
        %v403 = vld [vmem:[%s318 + $0x148] sm:$0xff]
        %v404 = vld [vmem:[%s318 + $0x150] sm:$0xff]
        %v405 = vld [vmem:[%s318 + $0x158] sm:$0xff]
        %v406 = vld [vmem:[%s318 + $0x160] sm:$0xff]
        %v407 = vld [vmem:[%s318 + $0x168] sm:$0xff]
        %v408 = vld [vmem:[%s318 + $0x170] sm:$0xff]
        %v409 = vld [vmem:[%s318 + $0x178] sm:$0xff]
        %v410 = vld [vmem:[%s318 + $0x180] sm:$0xff]
        %v411 = vld [vmem:[%s318 + $0x188] sm:$0xff]
        %v412 = vld [vmem:[%s318 + $0x190] sm:$0xff]
        %v413 = vld [vmem:[%s318 + $0x198] sm:$0xff]
        %v414 = vld [vmem:[%s318 + $0x1a0] sm:$0xff]
        %v415 = vld [vmem:[%s318 + $0x1a8] sm:$0xff]
        %v416 = vld [vmem:[%s318 + $0x1b0] sm:$0xff]
        %v417 = vld [vmem:[%s318 + $0x1b8] sm:$0xff]
        %v418 = vld [vmem:[%s318 + $0x1c0] sm:$0xff]
        %v419 = vld [vmem:[%s318 + $0x1c8] sm:$0xff]
        %v420 = vld [vmem:[%s318 + $0x1d0] sm:$0xff]
        %v421 = vld [vmem:[%s318 + $0x1d8] sm:$0xff]
        %v422 = vld [vmem:[%s318 + $0x1e0] sm:$0xff]
        %v423 = vld [vmem:[%s318 + $0x1e8] sm:$0xff]
        %v424 = vld [vmem:[%s318 + $0x1f0] sm:$0xff]
        %v425 = vld [vmem:[%s318 + $0x1f8] sm:$0xff]
        %v430 = vunpack.c.l.b16 %v358
        %v431 = vunpack.c.h.b16 %v358
        %v432 = vunpack.c.l.b16 %v359
        %v433 = vunpack.c.h.b16 %v359
        %v434 = vunpack.c.l.b16 %v360
        %v435 = vunpack.c.h.b16 %v360
        %v436 = vunpack.c.l.b16 %v361
        %v437 = vunpack.c.h.b16 %v361
        %v438 = vpack.c.b16 %v434, %v430
        %v439 = vpack.c.b16 %v435, %v431
        %v440 = vpack.c.b16 %v436, %v432
        %v441 = vpack.c.b16 %v437, %v433
        %v510 = vunpack.c.l.b16 %v362
        %v511 = vunpack.c.h.b16 %v362
        %v512 = vunpack.c.l.b16 %v363
        %v513 = vunpack.c.h.b16 %v363
        %v514 = vunpack.c.l.b16 %v364
        %v515 = vunpack.c.h.b16 %v364
        %v516 = vunpack.c.l.b16 %v365
        %v517 = vunpack.c.h.b16 %v365
        %v518 = vunpack.c.l.b16 %v366
        %v519 = vunpack.c.h.b16 %v366
        %v520 = vunpack.c.l.b16 %v367
        %v521 = vunpack.c.h.b16 %v367
        %v522 = vunpack.c.l.b16 %v368
        %v523 = vunpack.c.h.b16 %v368
        %v524 = vunpack.c.l.b16 %v369
        %v525 = vunpack.c.h.b16 %v369
        %v526 = vunpack.c.l.b16 %v370
        %v527 = vunpack.c.h.b16 %v370
        %v528 = vunpack.c.l.b16 %v371
        %v529 = vunpack.c.h.b16 %v371
        %v530 = vunpack.c.l.b16 %v372
        %v531 = vunpack.c.h.b16 %v372
        %v532 = vunpack.c.l.b16 %v373
        %v533 = vunpack.c.h.b16 %v373
        %v534 = vunpack.c.l.b16 %v374
        %v535 = vunpack.c.h.b16 %v374
        %v536 = vunpack.c.l.b16 %v375
        %v537 = vunpack.c.h.b16 %v375
        %v538 = vunpack.c.l.b16 %v376
        %v539 = vunpack.c.h.b16 %v376
        %v540 = vunpack.c.l.b16 %v377
        %v541 = vunpack.c.h.b16 %v377
        %v542 = vunpack.c.l.b16 %v378
        %v543 = vunpack.c.h.b16 %v378
        %v544 = vunpack.c.l.b16 %v379
        %v545 = vunpack.c.h.b16 %v379
        %v546 = vunpack.c.l.b16 %v380
        %v547 = vunpack.c.h.b16 %v380
        %v548 = vunpack.c.l.b16 %v381
        %v549 = vunpack.c.h.b16 %v381
        %v550 = vunpack.c.l.b16 %v382
        %v551 = vunpack.c.h.b16 %v382
        %v552 = vunpack.c.l.b16 %v383
        %v553 = vunpack.c.h.b16 %v383
        %v554 = vunpack.c.l.b16 %v384
        %v555 = vunpack.c.h.b16 %v384
        %v556 = vunpack.c.l.b16 %v385
        %v557 = vunpack.c.h.b16 %v385
        %v558 = vunpack.c.l.b16 %v386
        %v559 = vunpack.c.h.b16 %v386
        %v560 = vunpack.c.l.b16 %v387
        %v561 = vunpack.c.h.b16 %v387
        %v562 = vunpack.c.l.b16 %v388
        %v563 = vunpack.c.h.b16 %v388
        %v564 = vunpack.c.l.b16 %v389
        %v565 = vunpack.c.h.b16 %v389
        %v566 = vunpack.c.l.b16 %v390
        %v567 = vunpack.c.h.b16 %v390
        %v568 = vunpack.c.l.b16 %v391
        %v569 = vunpack.c.h.b16 %v391
        %v570 = vunpack.c.l.b16 %v392
        %v571 = vunpack.c.h.b16 %v392
        %v572 = vunpack.c.l.b16 %v393
        %v573 = vunpack.c.h.b16 %v393
        %v574 = vunpack.c.l.b16 %v394
        %v575 = vunpack.c.h.b16 %v394
        %v576 = vunpack.c.l.b16 %v395
        %v577 = vunpack.c.h.b16 %v395
        %v578 = vunpack.c.l.b16 %v396
        %v579 = vunpack.c.h.b16 %v396
        %v580 = vunpack.c.l.b16 %v397
        %v581 = vunpack.c.h.b16 %v397
        %v582 = vunpack.c.l.b16 %v398
        %v583 = vunpack.c.h.b16 %v398
        %v584 = vunpack.c.l.b16 %v399
        %v585 = vunpack.c.h.b16 %v399
        %v586 = vunpack.c.l.b16 %v400
        %v587 = vunpack.c.h.b16 %v400
        %v588 = vunpack.c.l.b16 %v401
        %v589 = vunpack.c.h.b16 %v401
        %v590 = vunpack.c.l.b16 %v402
        %v591 = vunpack.c.h.b16 %v402
        %v592 = vunpack.c.l.b16 %v403
        %v593 = vunpack.c.h.b16 %v403
        %v594 = vunpack.c.l.b16 %v404
        %v595 = vunpack.c.h.b16 %v404
        %v596 = vunpack.c.l.b16 %v405
        %v597 = vunpack.c.h.b16 %v405
        %v598 = vunpack.c.l.b16 %v406
        %v599 = vunpack.c.h.b16 %v406
        %v600 = vunpack.c.l.b16 %v407
        %v601 = vunpack.c.h.b16 %v407
        %v602 = vunpack.c.l.b16 %v408
        %v603 = vunpack.c.h.b16 %v408
        %v604 = vunpack.c.l.b16 %v409
        %v605 = vunpack.c.h.b16 %v409
        %v606 = vunpack.c.l.b16 %v410
        %v607 = vunpack.c.h.b16 %v410
        %v608 = vunpack.c.l.b16 %v411
        %v609 = vunpack.c.h.b16 %v411
        %v610 = vunpack.c.l.b16 %v412
        %v611 = vunpack.c.h.b16 %v412
        %v612 = vunpack.c.l.b16 %v413
        %v613 = vunpack.c.h.b16 %v413
        %v614 = vunpack.c.l.b16 %v414
        %v615 = vunpack.c.h.b16 %v414
        %v616 = vunpack.c.l.b16 %v415
        %v617 = vunpack.c.h.b16 %v415
        %v618 = vunpack.c.l.b16 %v416
        %v619 = vunpack.c.h.b16 %v416
        %v620 = vunpack.c.l.b16 %v417
        %v621 = vunpack.c.h.b16 %v417
        %v622 = vunpack.c.l.b16 %v418
        %v623 = vunpack.c.h.b16 %v418
        %v624 = vunpack.c.l.b16 %v419
        %v625 = vunpack.c.h.b16 %v419
        %v626 = vunpack.c.l.b16 %v420
        %v627 = vunpack.c.h.b16 %v420
        %v628 = vunpack.c.l.b16 %v421
        %v629 = vunpack.c.h.b16 %v421
        %v630 = vunpack.c.l.b16 %v422
        %v631 = vunpack.c.h.b16 %v422
        %v632 = vunpack.c.l.b16 %v423
        %v633 = vunpack.c.h.b16 %v423
        %v634 = vunpack.c.l.b16 %v424
        %v635 = vunpack.c.h.b16 %v424
        %v636 = vunpack.c.l.b16 %v425
        %v637 = vunpack.c.h.b16 %v425
        %v638 = vpack.c.b16 %v512, %v510
        %v639 = vpack.c.b16 %v513, %v511
        %v640 = vpack.c.b16 %v516, %v514
        %v641 = vpack.c.b16 %v517, %v515
        %v642 = vpack.c.b16 %v520, %v518
        %v643 = vpack.c.b16 %v521, %v519
        %v644 = vpack.c.b16 %v524, %v522
        %v645 = vpack.c.b16 %v525, %v523
        %v646 = vpack.c.b16 %v528, %v526
        %v647 = vpack.c.b16 %v529, %v527
        %v648 = vpack.c.b16 %v532, %v530
        %v649 = vpack.c.b16 %v533, %v531
        %v650 = vpack.c.b16 %v536, %v534
        %v651 = vpack.c.b16 %v537, %v535
        %v652 = vpack.c.b16 %v540, %v538
        %v653 = vpack.c.b16 %v541, %v539
        %v654 = vpack.c.b16 %v544, %v542
        %v655 = vpack.c.b16 %v545, %v543
        %v656 = vpack.c.b16 %v548, %v546
        %v657 = vpack.c.b16 %v549, %v547
        %v658 = vpack.c.b16 %v552, %v550
        %v659 = vpack.c.b16 %v553, %v551
        %v660 = vpack.c.b16 %v556, %v554
        %v661 = vpack.c.b16 %v557, %v555
        %v662 = vpack.c.b16 %v560, %v558
        %v663 = vpack.c.b16 %v561, %v559
        %v664 = vpack.c.b16 %v564, %v562
        %v665 = vpack.c.b16 %v565, %v563
        %v666 = vpack.c.b16 %v568, %v566
        %v667 = vpack.c.b16 %v569, %v567
        %v668 = vpack.c.b16 %v572, %v570
        %v669 = vpack.c.b16 %v573, %v571
        %v670 = vpack.c.b16 %v576, %v574
        %v671 = vpack.c.b16 %v577, %v575
        %v672 = vpack.c.b16 %v580, %v578
        %v673 = vpack.c.b16 %v581, %v579
        %v674 = vpack.c.b16 %v584, %v582
        %v675 = vpack.c.b16 %v585, %v583
        %v676 = vpack.c.b16 %v588, %v586
        %v677 = vpack.c.b16 %v589, %v587
        %v678 = vpack.c.b16 %v592, %v590
        %v679 = vpack.c.b16 %v593, %v591
        %v680 = vpack.c.b16 %v596, %v594
        %v681 = vpack.c.b16 %v597, %v595
        %v682 = vpack.c.b16 %v600, %v598
        %v683 = vpack.c.b16 %v601, %v599
        %v684 = vpack.c.b16 %v604, %v602
        %v685 = vpack.c.b16 %v605, %v603
        %v686 = vpack.c.b16 %v608, %v606
        %v687 = vpack.c.b16 %v609, %v607
        %v688 = vpack.c.b16 %v612, %v610
        %v689 = vpack.c.b16 %v613, %v611
        %v690 = vpack.c.b16 %v616, %v614
        %v691 = vpack.c.b16 %v617, %v615
        %v692 = vpack.c.b16 %v620, %v618
        %v693 = vpack.c.b16 %v621, %v619
        %v694 = vpack.c.b16 %v624, %v622
        %v695 = vpack.c.b16 %v625, %v623
        %v696 = vpack.c.b16 %v628, %v626
        %v697 = vpack.c.b16 %v629, %v627
        %v698 = vpack.c.b16 %v632, %v630
        %v699 = vpack.c.b16 %v633, %v631
        %v700 = vpack.c.b16 %v636, %v634
        %v701 = vpack.c.b16 %v637, %v635
        %766 = vmatprep.subr.bf16.mxu0 %v653
        %767 = vmatpush1.bf16.msra.mxu0 %v652
        %768 = vmatprep.subr.bf16.mxu0 %v651
        %769 = vmatpush1.bf16.msra.mxu0 %v650
        %770 = vmatprep.subr.bf16.mxu0 %v649
        %771 = vmatpush1.bf16.msra.mxu0 %v648
        %772 = vmatprep.subr.bf16.mxu0 %v647
        %773 = vmatpush1.bf16.msra.mxu0 %v646
        %774 = vmatprep.subr.bf16.mxu0 %v645
        %775 = vmatpush1.bf16.msra.mxu0 %v644
        %776 = vmatprep.subr.bf16.mxu0 %v643
        %777 = vmatpush1.bf16.msra.mxu0 %v642
        %778 = vmatprep.subr.bf16.mxu0 %v641
        %779 = vmatpush1.bf16.msra.mxu0 %v640
        %780 = vmatprep.subr.bf16.mxu0 %v639
        %781 = vmatpush1.bf16.msra.mxu0 %v638
        %782 = vmatprep.subr.bf16.mxu0 %v669
        %783 = vmatpush2.bf16.msra.mxu0 %v668
        %784 = vmatprep.subr.bf16.mxu0 %v667
        %785 = vmatpush2.bf16.msra.mxu0 %v666
        %786 = vmatprep.subr.bf16.mxu0 %v665
        %787 = vmatpush2.bf16.msra.mxu0 %v664
        %788 = vmatprep.subr.bf16.mxu0 %v663
        %789 = vmatpush2.bf16.msra.mxu0 %v662
        %790 = vmatprep.subr.bf16.mxu0 %v661
        %791 = vmatpush2.bf16.msra.mxu0 %v660
        %792 = vmatprep.subr.bf16.mxu0 %v659
        %793 = vmatpush2.bf16.msra.mxu0 %v658
        %794 = vmatprep.subr.bf16.mxu0 %v657
        %795 = vmatpush2.bf16.msra.mxu0 %v656
        %796 = vmatprep.subr.bf16.mxu0 %v655
        %797 = vmatpush2.bf16.msra.mxu0 %v654
        %798 = vmatprep.mubr.bf16.mxu0 %v439
        %799 = vmatmul.mubr.bf16.gmra.mxu0 %v438
        %v800 = vpop.f32.mrf.mxu0
        %v801 = vadd.f32 0.0, %v800
        %v802 = vpop.f32.mrf.mxu0
        %v803 = vadd.f32 0.0, %v802
        %v804 = vpop.f32.mrf.mxu0
        %v805 = vadd.f32 0.0, %v804
        %v806 = vpop.f32.mrf.mxu0
        %v807 = vadd.f32 0.0, %v806
        %808 = vdwg.mxu0
        %809 = vmatprep.subr.bf16.mxu0 %v685
        %810 = vmatpush1.bf16.msra.mxu0 %v684
        %811 = vmatprep.subr.bf16.mxu0 %v683
        %812 = vmatpush1.bf16.msra.mxu0 %v682
        %813 = vmatprep.subr.bf16.mxu0 %v681
        %814 = vmatpush1.bf16.msra.mxu0 %v680
        %815 = vmatprep.subr.bf16.mxu0 %v679
        %816 = vmatpush1.bf16.msra.mxu0 %v678
        %817 = vmatprep.subr.bf16.mxu0 %v677
        %818 = vmatpush1.bf16.msra.mxu0 %v676
        %819 = vmatprep.subr.bf16.mxu0 %v675
        %820 = vmatpush1.bf16.msra.mxu0 %v674
        %821 = vmatprep.subr.bf16.mxu0 %v673
        %822 = vmatpush1.bf16.msra.mxu0 %v672
        %823 = vmatprep.subr.bf16.mxu0 %v671
        %824 = vmatpush1.bf16.msra.mxu0 %v670
        %825 = vmatprep.subr.bf16.mxu0 %v701
        %826 = vmatpush2.bf16.msra.mxu0 %v700
        %827 = vmatprep.subr.bf16.mxu0 %v699
        %828 = vmatpush2.bf16.msra.mxu0 %v698
        %829 = vmatprep.subr.bf16.mxu0 %v697
        %830 = vmatpush2.bf16.msra.mxu0 %v696
        %831 = vmatprep.subr.bf16.mxu0 %v695
        %832 = vmatpush2.bf16.msra.mxu0 %v694
        %833 = vmatprep.subr.bf16.mxu0 %v693
        %834 = vmatpush2.bf16.msra.mxu0 %v692
        %835 = vmatprep.subr.bf16.mxu0 %v691
        %836 = vmatpush2.bf16.msra.mxu0 %v690
        %837 = vmatprep.subr.bf16.mxu0 %v689
        %838 = vmatpush2.bf16.msra.mxu0 %v688
        %839 = vmatprep.subr.bf16.mxu0 %v687
        %840 = vmatpush2.bf16.msra.mxu0 %v686
        %841 = vmatprep.mubr.bf16.mxu0 %v441
        %842 = vmatmul.mubr.bf16.gmra.mxu0 %v440
        %v843 = vpop.f32.mrf.mxu0
        %v844 = vadd.f32 %v801, %v843
        %v845 = vpop.f32.mrf.mxu0
        %v846 = vadd.f32 %v803, %v845
        %v847 = vpop.f32.mrf.mxu0
        %v848 = vadd.f32 %v805, %v847
        %v849 = vpop.f32.mrf.mxu0
        %v850 = vadd.f32 %v807, %v849
        %851 = vdwg.mxu0
        %v852 = vadd.f32 %v354, %v844
        %v853 = vadd.f32 %v355, %v846
        %v854 = vadd.f32 %v356, %v848
        %v855 = vadd.f32 %v357, %v850
        %856 = vst [vmem:[#allocation2] sm:$0xff] %v852
        %857 = vst [vmem:[#allocation2 + $0x8] sm:$0xff] %v853
        %858 = vst [vmem:[#allocation2 + $0x10] sm:$0xff] %v854
        %859 = vst [vmem:[#allocation2 + $0x18] sm:$0xff] %v855
        %p860 = scmp.eq.s32.totalorder %s23, 1
        // Predicated region
        $region60: #{generator_forward.16} parent=50 // pred_check
          %p861 = pneg %p860
        $region61: #{generator_forward.16} parent=50 // pred_check_branch
          %863 = sbr.rel (%p861) target = $region63
        $region62: #{generator_forward.16} parent=50 // pred_region
          %v864 = vld [vmem:[#allocation2] sm:$0xff]
          %v865 = vld [vmem:[#allocation2 + $0x8] sm:$0xff]
          %v866 = vld [vmem:[#allocation2 + $0x10] sm:$0xff]
          %v867 = vld [vmem:[#allocation2 + $0x18] sm:$0xff]
          %v868 = vld [vmem:[%s328] sm:$0x3]
          %v870 = vlaneseq
          %v871 = vshrl.u32 %v870, 7
          %v872 = vsub.s32 0, %v871
          %v873 = vrot.slane %v868, %v872
          %v874 = vlaneseq
          %v875 = vshrl.u32 %v874, 7
          %v876 = vsub.s32 1, %v875
          %v877 = vrot.slane %v868, %v876
          %v880 = vadd.f32 %v864, %v873
          %v881 = vadd.f32 %v865, %v877
          %v882 = vadd.f32 %v866, %v873
          %v883 = vadd.f32 %v867, %v877
          %v884 = vmax.f32 %v880, 0.0
          %v885 = vmax.f32 %v881, 0.0
          %v886 = vmax.f32 %v882, 0.0
          %v887 = vmax.f32 %v883, 0.0
          %888 = vst [vmem:[%s343] sm:$0xff] %v884
          %889 = vst [vmem:[%s343 + $0x8] sm:$0xff] %v885
          %890 = vst [vmem:[%s343 + $0x10] sm:$0xff] %v886
          %891 = vst [vmem:[%s343 + $0x18] sm:$0xff] %v887
        $region63: #{generator_forward.16} parent=50 // pred_fallthru
          _
        %s892 = smul.u32 2, %s21
        %s893 = smul.u32 2, %s22
        %p894 = scmp.lt.s32.totalorder %s20, 3
        %s895 = scalar_select %p894, %s20, 3
        %p896 = scmp.lt.s32.totalorder %s892, 1
        %s897 = scalar_select %p896, %s892, 1
        %p898 = scmp.lt.s32.totalorder %s893, 1
        %s899 = scalar_select %p898, %s893, 1
        %s900 = smul.addr %s897, 2
        %s901 = sadd.s32 %s899, %s900
        %s902 = smul.addr %s895, 4
        %s903 = sadd.s32 %s901, %s902
        %s904 = smul.addr %s903, 8
        %s905 = scalar_lea.vmem %s3, %s904
        // Predicated region
        $region64: #{generator_forward.16} parent=50 // pred_check
          %p906 = pneg %p150
        $region65: #{generator_forward.16} parent=50 // pred_check_branch
          %908 = sbr.rel (%p906) target = $region67
        $region66: #{generator_forward.16} parent=50 // pred_region
          %s909 = smul.u32 2, %s21
          %s910 = smul.u32 2, %s22
        $region67: #{generator_forward.16} parent=50 // pred_fallthru
          _
      $region51: #{generator_forward.16} parent=5 // pred_fallthru
        _
      %p911 = scmp.le.s32.totalorder 2, %s9
      // Predicated region
      $region68: #{generator_forward.16} parent=5 // pred_check
        %p912 = pneg %p911
      $region69: #{generator_forward.16} parent=5 // pred_check_branch
        %914 = sbr.rel (%p912) target = $region71
      $region70: #{generator_forward.16} parent=5 // pred_region
        %s915 = ssub.s32 %s9, 2
        // Predicated region
        $region72: #{generator_forward.16} parent=70 // pred_check
          %p916 = pneg %p156
        $region73: #{generator_forward.16} parent=70 // pred_check_branch
          %918 = sbr.rel (%p916) target = $region75
        $region74: #{generator_forward.16} parent=70 // pred_region
          %s919 = smul.u32 2, %s25
          %s920 = smul.u32 2, %s26
          %p921 = scmp.lt.s32.totalorder %s24, 3
          %s922 = scalar_select %p921, %s24, 3
          %p923 = scmp.lt.s32.totalorder %s919, 1
          %s924 = scalar_select %p923, %s919, 1
          %p925 = scmp.lt.s32.totalorder %s920, 1
          %s926 = scalar_select %p925, %s920, 1
          %s927 = smul.addr %s924, 2
          %s928 = sadd.s32 %s926, %s927
          %s929 = smul.addr %s922, 4
          %s930 = sadd.s32 %s928, %s929
          %s931 = smul.addr %s930, 8
          %s932 = scalar_lea.vmem %s3, %s931
        $region75: #{generator_forward.16} parent=70 // pred_fallthru
          _
      $region71: #{generator_forward.16} parent=5 // pred_fallthru
        _
    $region6: #{generator_forward.16} parent=1 // loop_footer
      %s13 = sadd.s32 1, %s9
    $region7: #{generator_forward.16} parent=1 // loop_footer_branch
      %8 = sbr.rel target = $region3
    $region8: #{generator_forward.16} parent=1 // loop_exit
      _

// kernel: generator_forward.17
$region0: #{generator_forward.17}
  #allocation0 [shape = 'u32[]', space=smem, size = 0x4, offset = 0x4, fixed_abs, tag = 'smem constant byte address 0x4 - core index']
  #allocation1 [shape = 'u32[144,128]{1,0:T(1,128)}', space=vmem, size = 0x12000, scoped, tag = 'internal scratch']
  #allocation2 [shape = 'f32[16,128]{1,0:T(8,128)}', space=vmem, size = 0x2000, scoped, tag = 'scratch operand']
  %s0 = inlined_call_operand.vmem [shape: bf16[4,16,1024], index: 0, kind: input, shape index: {}]
  %s1 = inlined_call_operand.vmem [shape: bf16[4,1024,128], index: 1, kind: input, shape index: {}]
  %s2 = inlined_call_operand.vmem [shape: f32[4,1,128], index: 2, kind: input, shape index: {}]
  %s3 = inlined_call_operand.vmem [shape: f32[4,16,128], index: 3, kind: output, shape index: {}]
  %s4 = sld [smem:[#allocation0]]
  $region76: #{generator_forward.17} parent=0
    _
  %s6 = ssub.s32 1, %s4
  %s7 = scalar_select 0, %s6, %s4
  $region1: #{generator_forward.17} parent=0
    #allocation3 [shape = 'u8[32768]{0}', space=vmem, size = 0x8000, scoped, tag = 'input window, operand 0']
    loop: start=0, step=1, limit=10
    $region2: #{generator_forward.17} parent=1 // loop_pre_header
      _
    $region3: #{generator_forward.17} parent=1 // loop_header
      %s9 = sphi 0, %s13
      %p10 = scmp.ge.s32.totalorder %s9, 10
      %s16 = sphi 0, %s42
      %s17 = sphi 0, %s38
      %s18 = sphi 0, %s34
      %s19 = sphi 0, %s30
      %s20 = sphi 0, %s16
      %s21 = sphi 0, %s17
      %s22 = sphi 0, %s18
      %s23 = sphi 0, %s19
      %s24 = sphi 0, %s20
      %s25 = sphi 0, %s21
      %s26 = sphi 0, %s22
      %s27 = sphi 0, %s23
      %s49 = sphi 0, %s51
      %s52 = sphi 0, %s49
      %s53 = sphi 0, %s52
      %s69 = sphi 0, %s53
      %s79 = sphi 0, %s81
      %s82 = sphi 0, %s79
      %s83 = sphi 0, %s82
      %s99 = sphi 0, %s83
      %s107 = sphi 0, %s109
      %s110 = sphi 0, %s107
      %s111 = sphi 0, %s110
      %s127 = sphi 0, %s111
      %s137 = sphi 0, %s139
      %s140 = sphi 0, %s137
      %s141 = sphi 0, %s140
      %s157 = sphi 0, %s141
    $region4: #{generator_forward.17} parent=1 // loop_header_branch
      %12 = sbr.rel (%p10) target = $region8
    $region5: #{generator_forward.17} parent=1 // loop_body
      %s14 = ssub.s32 %s9, 1
      %s15 = ssub.s32 %s9, 2
      %s28 = sadd.s32 1, %s19
      %p29 = scmp.ge.s32.totalorder %s28, 2
      %s30 = scalar_select %p29, 0, %s28
      %s31 = sadd.s32 1, %s18
      %s32 = scalar_select %p29, %s31, %s18
      %p33 = scmp.ge.s32.totalorder %s32, 1
      %s34 = scalar_select %p33, 0, %s32
      %s35 = sadd.s32 1, %s17
      %s36 = scalar_select %p33, %s35, %s17
      %p37 = scmp.ge.s32.totalorder %s36, 1
      %s38 = scalar_select %p37, 0, %s36
      %s39 = sadd.s32 1, %s16
      %s40 = scalar_select %p37, %s39, %s16
      %p41 = scmp.ge.s32.totalorder %s40, 4
      %s42 = scalar_select %p41, 0, %s40
      %s43 = ssub.s32 %s16, %s42
      %s44 = ssub.s32 %s17, %s38
      %s45 = sor.u32 %s43, %s44
      %s46 = ssub.s32 %s19, %s30
      %s47 = sor.u32 %s45, %s46
      %p48 = scmp.eq.s32.totalorder %s47, 0
      %s50 = sadd.s32 %s49, 1
      %s51 = scalar_select %p48, %s49, %s50
      %p54 = pneg %p48
      %p55 = scmp.eq.s32.totalorder %s9, 7
      %p56 = por %p54, %p55
      %p57 = scmp.ne.s32.totalorder %s49, %s52
      %p58 = scmp.eq.s32.totalorder %s9, 0
      %p59 = por %p57, %p58
      %p60 = scmp.ne.s32.totalorder %s49, %s52
      %p61 = scmp.eq.s32.totalorder %s14, 7
      %p62 = por %p60, %p61
      %p63 = scmp.ne.s32.totalorder %s52, %s53
      %p64 = scmp.eq.s32.totalorder %s14, 0
      %p65 = por %p63, %p64
      %p66 = scmp.ne.s32.totalorder %s52, %s53
      %p67 = scmp.eq.s32.totalorder %s15, 7
      %p68 = por %p66, %p67
      %p70 = scmp.ne.s32.totalorder %s53, %s69
      %p71 = scmp.eq.s32.totalorder %s15, 0
      %p72 = por %p70, %p71
      %s73 = ssub.s32 %s16, %s42
      %s74 = ssub.s32 %s19, %s30
      %s75 = sor.u32 %s73, %s74
      %s76 = ssub.s32 %s18, %s34
      %s77 = sor.u32 %s75, %s76
      %p78 = scmp.eq.s32.totalorder %s77, 0
      %s80 = sadd.s32 %s79, 1
      %s81 = scalar_select %p78, %s79, %s80
      %p84 = pneg %p78
      %p85 = scmp.eq.s32.totalorder %s9, 7
      %p86 = por %p84, %p85
      %p87 = scmp.ne.s32.totalorder %s79, %s82
      %p88 = scmp.eq.s32.totalorder %s9, 0
      %p89 = por %p87, %p88
      %p90 = scmp.ne.s32.totalorder %s79, %s82
      %p91 = scmp.eq.s32.totalorder %s14, 7
      %p92 = por %p90, %p91
      %p93 = scmp.ne.s32.totalorder %s82, %s83
      %p94 = scmp.eq.s32.totalorder %s14, 0
      %p95 = por %p93, %p94
      %p96 = scmp.ne.s32.totalorder %s82, %s83
      %p97 = scmp.eq.s32.totalorder %s15, 7
      %p98 = por %p96, %p97
      %p100 = scmp.ne.s32.totalorder %s83, %s99
      %p101 = scmp.eq.s32.totalorder %s15, 0
      %p102 = por %p100, %p101
      %s103 = ssub.s32 %s16, %s42
      %s104 = ssub.s32 %s18, %s34
      %s105 = sor.u32 %s103, %s104
      %p106 = scmp.eq.s32.totalorder %s105, 0
      %s108 = sadd.s32 %s107, 1
      %s109 = scalar_select %p106, %s107, %s108
      %p112 = pneg %p106
      %p113 = scmp.eq.s32.totalorder %s9, 7
      %p114 = por %p112, %p113
      %p115 = scmp.ne.s32.totalorder %s107, %s110
      %p116 = scmp.eq.s32.totalorder %s9, 0
      %p117 = por %p115, %p116
      %p118 = scmp.ne.s32.totalorder %s107, %s110
      %p119 = scmp.eq.s32.totalorder %s14, 7
      %p120 = por %p118, %p119
      %p121 = scmp.ne.s32.totalorder %s110, %s111
      %p122 = scmp.eq.s32.totalorder %s14, 0
      %p123 = por %p121, %p122
      %p124 = scmp.ne.s32.totalorder %s110, %s111
      %p125 = scmp.eq.s32.totalorder %s15, 7
      %p126 = por %p124, %p125
      %p128 = scmp.ne.s32.totalorder %s111, %s127
      %p129 = scmp.eq.s32.totalorder %s15, 0
      %p130 = por %p128, %p129
      %s131 = ssub.s32 %s16, %s42
      %s132 = ssub.s32 %s17, %s38
      %s133 = sor.u32 %s131, %s132
      %s134 = ssub.s32 %s18, %s34
      %s135 = sor.u32 %s133, %s134
      %p136 = scmp.eq.s32.totalorder %s135, 0
      %s138 = sadd.s32 %s137, 1
      %s139 = scalar_select %p136, %s137, %s138
      %p142 = pneg %p136
      %p143 = scmp.eq.s32.totalorder %s9, 7
      %p144 = por %p142, %p143
      %p145 = scmp.ne.s32.totalorder %s137, %s140
      %p146 = scmp.eq.s32.totalorder %s9, 0
      %p147 = por %p145, %p146
      %p148 = scmp.ne.s32.totalorder %s137, %s140
      %p149 = scmp.eq.s32.totalorder %s14, 7
      %p150 = por %p148, %p149
      %p151 = scmp.ne.s32.totalorder %s140, %s141
      %p152 = scmp.eq.s32.totalorder %s14, 0
      %p153 = por %p151, %p152
      %p154 = scmp.ne.s32.totalorder %s140, %s141
      %p155 = scmp.eq.s32.totalorder %s15, 7
      %p156 = por %p154, %p155
      %p158 = scmp.ne.s32.totalorder %s141, %s157
      %p159 = scmp.eq.s32.totalorder %s15, 0
      %p160 = por %p158, %p159
      %p161 = scmp.le.s32.totalorder 1, %s9
      %p162 = scmp.lt.s32.totalorder %s9, 9
      %p163 = pnand %p161, %p162
      %p164 = pneg %p163
      // Predicated region
      $region9: #{generator_forward.17} parent=5 // pred_check
        _
      $region10: #{generator_forward.17} parent=5 // pred_check_branch
        %166 = sbr.rel (%p163) target = $region12
      $region11: #{generator_forward.17} parent=5 // pred_region
        %s167 = ssub.s32 %s9, 1
      $region12: #{generator_forward.17} parent=5 // pred_fallthru
        _
      %p168 = scmp.lt.s32.totalorder %s9, 8
      // Predicated region
      $region13: #{generator_forward.17} parent=5 // pred_check
        %p169 = pneg %p168
      $region14: #{generator_forward.17} parent=5 // pred_check_branch
        %171 = sbr.rel (%p169) target = $region16
      $region15: #{generator_forward.17} parent=5 // pred_region
        // Predicated region
        $region17: #{generator_forward.17} parent=15 // pred_check
          %p172 = pneg %p59
        $region18: #{generator_forward.17} parent=15 // pred_check_branch
          %174 = sbr.rel (%p172) target = $region20
        $region19: #{generator_forward.17} parent=15 // pred_region
          %s175 = sand.u32 %s49, 1
          %s176 = sand.u32 %s49, 1
          %s177 = smul.addr %s176, 32
          %s178 = scalar_lea.vmem [#allocation3], %s177
          %s179 = smul.u32 2, %s17
          %s180 = smul.u32 4, %s19
          %s181 = smul.addr %s179, 8
          %s182 = sadd.s32 %s180, %s181
          %s183 = smul.addr %s16, 16
          %s184 = sadd.s32 %s182, %s183
          %s185 = smul.addr %s184, 4
          %s186 = scalar_lea.vmem %s0, %s185
          // Predicated region
          $region21: #{generator_forward.17} parent=19 // pred_check
            _
          $region22: #{generator_forward.17} parent=19 // pred_check_branch
            %188 = sbr.rel (0) target = $region24
          $region23: #{generator_forward.17} parent=19 // pred_region
            // Predicated region
            $region25: #{generator_forward.17} parent=23 // pred_check
              _
            $region26: #{generator_forward.17} parent=23 // pred_check_branch
              %190 = sbr.rel (0) target = $region28
            $region27: #{generator_forward.17} parent=23 // pred_region
              loop: start=0, step=1, limit=1
              $region29: #{generator_forward.17} parent=27 // loop_pre_header
                _
              $region30: #{generator_forward.17} parent=27 // loop_header
                %s192 = sphi 0, %s196
                %p193 = scmp.ge.s32.totalorder %s192, 1
                %s197 = sphi %s186, %s186
                %s198 = sphi %s178, %s178
              $region31: #{generator_forward.17} parent=27 // loop_header_branch
                %195 = sbr.rel (%p193) target = $region35
              $region32: #{generator_forward.17} parent=27 // loop_body
                %v199 = vld [vmem:[%s197] sm:$0xff]
                %200 = vst [vmem:[%s198] sm:$0xff] %v199
                %v201 = vld [vmem:[%s197 + $0x8] sm:$0xff]
                %202 = vst [vmem:[%s198 + $0x8] sm:$0xff] %v201
                %v203 = vld [vmem:[%s197 + $0x20] sm:$0xff]
                %204 = vst [vmem:[%s198 + $0x10] sm:$0xff] %v203
                %v205 = vld [vmem:[%s197 + $0x28] sm:$0xff]
                %206 = vst [vmem:[%s198 + $0x18] sm:$0xff] %v205
              $region33: #{generator_forward.17} parent=27 // loop_footer
                %s196 = sadd.s32 1, %s192
              $region34: #{generator_forward.17} parent=27 // loop_footer_branch
                %191 = sbr.rel target = $region30
              $region35: #{generator_forward.17} parent=27 // loop_exit
                _
            $region28: #{generator_forward.17} parent=23 // pred_fallthru
              _
            // Predicated region
            $region36: #{generator_forward.17} parent=23 // pred_check
              _
            $region37: #{generator_forward.17} parent=23 // pred_check_branch
              %208 = sbr.rel target = $region39
            $region38: #{generator_forward.17} parent=23 // pred_region
              _
            $region39: #{generator_forward.17} parent=23 // pred_fallthru
              _
          $region24: #{generator_forward.17} parent=19 // pred_fallthru
            _
          %209 = vnop
        $region20: #{generator_forward.17} parent=15 // pred_fallthru
          _
        // Predicated region
        $region40: #{generator_forward.17} parent=15 // pred_check
          %p210 = pneg %p89
        $region41: #{generator_forward.17} parent=15 // pred_check_branch
          %212 = sbr.rel (%p210) target = $region43
        $region42: #{generator_forward.17} parent=15 // pred_region
          %s213 = smul.u32 64, %s19
          %p214 = scmp.lt.s32.totalorder %s16, 3
          %s215 = scalar_select %p214, %s16, 3
          %p216 = scmp.lt.s32.totalorder %s213, 127
          %s217 = scalar_select %p216, %s213, 127
          %p218 = scmp.lt.s32.totalorder %s18, 0
          %s219 = scalar_select %p218, %s18, 0
          %s220 = sadd.s32 %s219, %s217
          %s221 = smul.addr %s215, 128
          %s222 = sadd.s32 %s220, %s221
          %s223 = smul.addr %s222, 4
          %s224 = scalar_lea.vmem %s1, %s223
          %s225 = smul.u32 64, %s19
        $region43: #{generator_forward.17} parent=15 // pred_fallthru
          _
        // Predicated region
        $region44: #{generator_forward.17} parent=15 // pred_check
          %p226 = pneg %p117
        $region45: #{generator_forward.17} parent=15 // pred_check_branch
          %228 = sbr.rel (%p226) target = $region47
        $region46: #{generator_forward.17} parent=15 // pred_region
          %p229 = scmp.lt.s32.totalorder %s16, 3
          %s230 = scalar_select %p229, %s16, 3
          %p231 = scmp.lt.s32.totalorder %s18, 0
          %s232 = scalar_select %p231, %s18, 0
          %s233 = sadd.s32 %s232, %s230
          %s234 = scalar_lea.vmem %s2, %s233
        $region47: #{generator_forward.17} parent=15 // pred_fallthru
          _
      $region16: #{generator_forward.17} parent=5 // pred_fallthru
        _
      %p235 = scmp.le.s32.totalorder 1, %s9
      %p236 = scmp.lt.s32.totalorder %s9, 9
      %p237 = pnand %p235, %p236
      %p238 = pneg %p237
      // Predicated region
      $region48: #{generator_forward.17} parent=5 // pred_check
        _
      $region49: #{generator_forward.17} parent=5 // pred_check_branch
        %240 = sbr.rel (%p237) target = $region51
      $region50: #{generator_forward.17} parent=5 // pred_region
        %s241 = ssub.s32 %s9, 1
        %s242 = sand.u32 %s52, 1
        %s243 = sand.u32 %s52, 1
        %s244 = smul.addr %s243, 32
        %s245 = scalar_lea.vmem [#allocation3], %s244
        // Predicated region
        $region52: #{generator_forward.17} parent=50 // pred_check
          %p246 = pneg %p65
        $region53: #{generator_forward.17} parent=50 // pred_check_branch
          %248 = sbr.rel (%p246) target = $region55
        $region54: #{generator_forward.17} parent=50 // pred_region
          _
        $region55: #{generator_forward.17} parent=50 // pred_fallthru
          _
        %s249 = sand.u32 %s52, 1
        %s250 = sand.u32 %s52, 1
        %s251 = smul.addr %s250, 32
        %s252 = scalar_lea.vmem [#allocation3], %s251
        %p253 = pneg %p65
        %p254 = pneg %p62
        %s255 = smul.u32 64, %s23
        %p256 = scmp.lt.s32.totalorder %s20, 3
        %s257 = scalar_select %p256, %s20, 3
        %p258 = scmp.lt.s32.totalorder %s255, 127
        %s259 = scalar_select %p258, %s255, 127
        %p260 = scmp.lt.s32.totalorder %s22, 0
        %s261 = scalar_select %p260, %s22, 0
        %s262 = sadd.s32 %s261, %s259
        %s263 = smul.addr %s257, 128
        %s264 = sadd.s32 %s262, %s263
        %s265 = smul.addr %s264, 4
        %s266 = scalar_lea.vmem %s1, %s265
        %p267 = pneg %p95
        %p268 = pneg %p92
        %p269 = scmp.lt.s32.totalorder %s20, 3
        %s270 = scalar_select %p269, %s20, 3
        %p271 = scmp.lt.s32.totalorder %s22, 0
        %s272 = scalar_select %p271, %s22, 0
        %s273 = sadd.s32 %s272, %s270
        %s274 = scalar_lea.vmem %s2, %s273
        %p275 = pneg %p123
        %p276 = pneg %p120
        %p277 = pneg %p153
        %p278 = pneg %p150
        %s279 = smul.u32 2, %s21
        %p280 = scmp.lt.s32.totalorder %s20, 3
        %s281 = scalar_select %p280, %s20, 3
        %p282 = scmp.lt.s32.totalorder %s279, 1
        %s283 = scalar_select %p282, %s279, 1
        %p284 = scmp.lt.s32.totalorder %s22, 0
        %s285 = scalar_select %p284, %s22, 0
        %s286 = sadd.s32 %s285, %s283
        %s287 = smul.addr %s281, 2
        %s288 = sadd.s32 %s286, %s287
        %s289 = smul.addr %s288, 8
        %s290 = scalar_lea.vmem %s3, %s289
        %s291 = smul.u32 2, %s21
        %s292 = smul.u32 4, %s23
        %s293 = smul.u32 64, %s23
        %p294 = scmp.lt.s32.totalorder %s20, 3
        %s295 = scalar_select %p294, %s20, 3
        %p296 = scmp.lt.s32.totalorder %s293, 127
        %s297 = scalar_select %p296, %s293, 127
        %p298 = scmp.lt.s32.totalorder %s22, 0
        %s299 = scalar_select %p298, %s22, 0
        %s300 = sadd.s32 %s299, %s297
        %s301 = smul.addr %s295, 128
        %s302 = sadd.s32 %s300, %s301
        %s303 = smul.addr %s302, 4
        %s304 = scalar_lea.vmem %s1, %s303
        %s305 = smul.u32 64, %s23
        %p306 = scmp.lt.s32.totalorder %s20, 3
        %s307 = scalar_select %p306, %s20, 3
        %p308 = scmp.lt.s32.totalorder %s22, 0
        %s309 = scalar_select %p308, %s22, 0
        %s310 = sadd.s32 %s309, %s307
        %s311 = scalar_lea.vmem %s2, %s310
        %s312 = smul.u32 2, %s21
        %p313 = scmp.lt.s32.totalorder %s20, 3
        %s314 = scalar_select %p313, %s20, 3
        %p315 = scmp.lt.s32.totalorder %s312, 1
        %s316 = scalar_select %p315, %s312, 1
        %p317 = scmp.lt.s32.totalorder %s22, 0
        %s318 = scalar_select %p317, %s22, 0
        %s319 = sadd.s32 %s318, %s316
        %s320 = smul.addr %s314, 2
        %s321 = sadd.s32 %s319, %s320
        %s322 = smul.addr %s321, 8
        %s323 = scalar_lea.vmem %s3, %s322
        %s324 = smul.u32 2, %s21
        %p326 = scmp.eq.s32.totalorder %s23, 0
        // Predicated region
        $region56: #{generator_forward.17} parent=50 // pred_check
          %p327 = pneg %p326
        $region57: #{generator_forward.17} parent=50 // pred_check_branch
          %329 = sbr.rel (%p327) target = $region59
        $region58: #{generator_forward.17} parent=50 // pred_region
          %330 = vst [vmem:[#allocation2] sm:$0xff] 0.0
          %331 = vst [vmem:[#allocation2 + $0x8] sm:$0xff] 0.0
        $region59: #{generator_forward.17} parent=50 // pred_fallthru
          _
        %v332 = vld [vmem:[#allocation2] sm:$0xff]
        %v333 = vld [vmem:[#allocation2 + $0x8] sm:$0xff]
        %v334 = vld [vmem:[%s245] sm:$0xff]
        %v335 = vld [vmem:[%s245 + $0x8] sm:$0xff]
        %v336 = vld [vmem:[%s245 + $0x10] sm:$0xff]
        %v337 = vld [vmem:[%s245 + $0x18] sm:$0xff]
        %v338 = vld [vmem:[%s304] sm:$0xf]
        %v339 = vld [vmem:[%s304 + $0x4] sm:$0xf]
        %v340 = vld [vmem:[%s304 + $0x8] sm:$0xf]
        %v341 = vld [vmem:[%s304 + $0xc] sm:$0xf]
        %v342 = vld [vmem:[%s304 + $0x10] sm:$0xf]
        %v343 = vld [vmem:[%s304 + $0x14] sm:$0xf]
        %v344 = vld [vmem:[%s304 + $0x18] sm:$0xf]
        %v345 = vld [vmem:[%s304 + $0x1c] sm:$0xf]
        %v346 = vld [vmem:[%s304 + $0x20] sm:$0xf]
        %v347 = vld [vmem:[%s304 + $0x24] sm:$0xf]
        %v348 = vld [vmem:[%s304 + $0x28] sm:$0xf]
        %v349 = vld [vmem:[%s304 + $0x2c] sm:$0xf]
        %v350 = vld [vmem:[%s304 + $0x30] sm:$0xf]
        %v351 = vld [vmem:[%s304 + $0x34] sm:$0xf]
        %v352 = vld [vmem:[%s304 + $0x38] sm:$0xf]
        %v353 = vld [vmem:[%s304 + $0x3c] sm:$0xf]
        %v354 = vld [vmem:[%s304 + $0x40] sm:$0xf]
        %v355 = vld [vmem:[%s304 + $0x44] sm:$0xf]
        %v356 = vld [vmem:[%s304 + $0x48] sm:$0xf]
        %v357 = vld [vmem:[%s304 + $0x4c] sm:$0xf]
        %v358 = vld [vmem:[%s304 + $0x50] sm:$0xf]
        %v359 = vld [vmem:[%s304 + $0x54] sm:$0xf]
        %v360 = vld [vmem:[%s304 + $0x58] sm:$0xf]
        %v361 = vld [vmem:[%s304 + $0x5c] sm:$0xf]
        %v362 = vld [vmem:[%s304 + $0x60] sm:$0xf]
        %v363 = vld [vmem:[%s304 + $0x64] sm:$0xf]
        %v364 = vld [vmem:[%s304 + $0x68] sm:$0xf]
        %v365 = vld [vmem:[%s304 + $0x6c] sm:$0xf]
        %v366 = vld [vmem:[%s304 + $0x70] sm:$0xf]
        %v367 = vld [vmem:[%s304 + $0x74] sm:$0xf]
        %v368 = vld [vmem:[%s304 + $0x78] sm:$0xf]
        %v369 = vld [vmem:[%s304 + $0x7c] sm:$0xf]
        %v370 = vld [vmem:[%s304 + $0x80] sm:$0xf]
        %v371 = vld [vmem:[%s304 + $0x84] sm:$0xf]
        %v372 = vld [vmem:[%s304 + $0x88] sm:$0xf]
        %v373 = vld [vmem:[%s304 + $0x8c] sm:$0xf]
        %v374 = vld [vmem:[%s304 + $0x90] sm:$0xf]
        %v375 = vld [vmem:[%s304 + $0x94] sm:$0xf]
        %v376 = vld [vmem:[%s304 + $0x98] sm:$0xf]
        %v377 = vld [vmem:[%s304 + $0x9c] sm:$0xf]
        %v378 = vld [vmem:[%s304 + $0xa0] sm:$0xf]
        %v379 = vld [vmem:[%s304 + $0xa4] sm:$0xf]
        %v380 = vld [vmem:[%s304 + $0xa8] sm:$0xf]
        %v381 = vld [vmem:[%s304 + $0xac] sm:$0xf]
        %v382 = vld [vmem:[%s304 + $0xb0] sm:$0xf]
        %v383 = vld [vmem:[%s304 + $0xb4] sm:$0xf]
        %v384 = vld [vmem:[%s304 + $0xb8] sm:$0xf]
        %v385 = vld [vmem:[%s304 + $0xbc] sm:$0xf]
        %v386 = vld [vmem:[%s304 + $0xc0] sm:$0xf]
        %v387 = vld [vmem:[%s304 + $0xc4] sm:$0xf]
        %v388 = vld [vmem:[%s304 + $0xc8] sm:$0xf]
        %v389 = vld [vmem:[%s304 + $0xcc] sm:$0xf]
        %v390 = vld [vmem:[%s304 + $0xd0] sm:$0xf]
        %v391 = vld [vmem:[%s304 + $0xd4] sm:$0xf]
        %v392 = vld [vmem:[%s304 + $0xd8] sm:$0xf]
        %v393 = vld [vmem:[%s304 + $0xdc] sm:$0xf]
        %v394 = vld [vmem:[%s304 + $0xe0] sm:$0xf]
        %v395 = vld [vmem:[%s304 + $0xe4] sm:$0xf]
        %v396 = vld [vmem:[%s304 + $0xe8] sm:$0xf]
        %v397 = vld [vmem:[%s304 + $0xec] sm:$0xf]
        %v398 = vld [vmem:[%s304 + $0xf0] sm:$0xf]
        %v399 = vld [vmem:[%s304 + $0xf4] sm:$0xf]
        %v400 = vld [vmem:[%s304 + $0xf8] sm:$0xf]
        %v401 = vld [vmem:[%s304 + $0xfc] sm:$0xf]
        %v406 = vunpack.c.l.b16 %v334
        %v407 = vunpack.c.h.b16 %v334
        %v408 = vunpack.c.l.b16 %v335
        %v409 = vunpack.c.h.b16 %v335
        %v410 = vunpack.c.l.b16 %v336
        %v411 = vunpack.c.h.b16 %v336
        %v412 = vunpack.c.l.b16 %v337
        %v413 = vunpack.c.h.b16 %v337
        %v414 = vpack.c.b16 %v410, %v406
        %v415 = vpack.c.b16 %v411, %v407
        %v416 = vpack.c.b16 %v412, %v408
        %v417 = vpack.c.b16 %v413, %v409
        %v486 = vunpack.c.l.b16 %v338
        %v487 = vunpack.c.l.b16 %v339
        %v488 = vunpack.c.l.b16 %v340
        %v489 = vunpack.c.l.b16 %v341
        %v490 = vunpack.c.l.b16 %v342
        %v491 = vunpack.c.l.b16 %v343
        %v492 = vunpack.c.l.b16 %v344
        %v493 = vunpack.c.l.b16 %v345
        %v494 = vunpack.c.l.b16 %v346
        %v495 = vunpack.c.l.b16 %v347
        %v496 = vunpack.c.l.b16 %v348
        %v497 = vunpack.c.l.b16 %v349
        %v498 = vunpack.c.l.b16 %v350
        %v499 = vunpack.c.l.b16 %v351
        %v500 = vunpack.c.l.b16 %v352
        %v501 = vunpack.c.l.b16 %v353
        %v502 = vunpack.c.l.b16 %v354
        %v503 = vunpack.c.l.b16 %v355
        %v504 = vunpack.c.l.b16 %v356
        %v505 = vunpack.c.l.b16 %v357
        %v506 = vunpack.c.l.b16 %v358
        %v507 = vunpack.c.l.b16 %v359
        %v508 = vunpack.c.l.b16 %v360
        %v509 = vunpack.c.l.b16 %v361
        %v510 = vunpack.c.l.b16 %v362
        %v511 = vunpack.c.l.b16 %v363
        %v512 = vunpack.c.l.b16 %v364
        %v513 = vunpack.c.l.b16 %v365
        %v514 = vunpack.c.l.b16 %v366
        %v515 = vunpack.c.l.b16 %v367
        %v516 = vunpack.c.l.b16 %v368
        %v517 = vunpack.c.l.b16 %v369
        %v518 = vunpack.c.l.b16 %v370
        %v519 = vunpack.c.l.b16 %v371
        %v520 = vunpack.c.l.b16 %v372
        %v521 = vunpack.c.l.b16 %v373
        %v522 = vunpack.c.l.b16 %v374
        %v523 = vunpack.c.l.b16 %v375
        %v524 = vunpack.c.l.b16 %v376
        %v525 = vunpack.c.l.b16 %v377
        %v526 = vunpack.c.l.b16 %v378
        %v527 = vunpack.c.l.b16 %v379
        %v528 = vunpack.c.l.b16 %v380
        %v529 = vunpack.c.l.b16 %v381
        %v530 = vunpack.c.l.b16 %v382
        %v531 = vunpack.c.l.b16 %v383
        %v532 = vunpack.c.l.b16 %v384
        %v533 = vunpack.c.l.b16 %v385
        %v534 = vunpack.c.l.b16 %v386
        %v535 = vunpack.c.l.b16 %v387
        %v536 = vunpack.c.l.b16 %v388
        %v537 = vunpack.c.l.b16 %v389
        %v538 = vunpack.c.l.b16 %v390
        %v539 = vunpack.c.l.b16 %v391
        %v540 = vunpack.c.l.b16 %v392
        %v541 = vunpack.c.l.b16 %v393
        %v542 = vunpack.c.l.b16 %v394
        %v543 = vunpack.c.l.b16 %v395
        %v544 = vunpack.c.l.b16 %v396
        %v545 = vunpack.c.l.b16 %v397
        %v546 = vunpack.c.l.b16 %v398
        %v547 = vunpack.c.l.b16 %v399
        %v548 = vunpack.c.l.b16 %v400
        %v549 = vunpack.c.l.b16 %v401
        %v550 = vpack.c.b16 %v487, %v486
        %v551 = vpack.c.b16 %v489, %v488
        %v552 = vpack.c.b16 %v491, %v490
        %v553 = vpack.c.b16 %v493, %v492
        %v554 = vpack.c.b16 %v495, %v494
        %v555 = vpack.c.b16 %v497, %v496
        %v556 = vpack.c.b16 %v499, %v498
        %v557 = vpack.c.b16 %v501, %v500
        %v558 = vpack.c.b16 %v503, %v502
        %v559 = vpack.c.b16 %v505, %v504
        %v560 = vpack.c.b16 %v507, %v506
        %v561 = vpack.c.b16 %v509, %v508
        %v562 = vpack.c.b16 %v511, %v510
        %v563 = vpack.c.b16 %v513, %v512
        %v564 = vpack.c.b16 %v515, %v514
        %v565 = vpack.c.b16 %v517, %v516
        %v566 = vpack.c.b16 %v519, %v518
        %v567 = vpack.c.b16 %v521, %v520
        %v568 = vpack.c.b16 %v523, %v522
        %v569 = vpack.c.b16 %v525, %v524
        %v570 = vpack.c.b16 %v527, %v526
        %v571 = vpack.c.b16 %v529, %v528
        %v572 = vpack.c.b16 %v531, %v530
        %v573 = vpack.c.b16 %v533, %v532
        %v574 = vpack.c.b16 %v535, %v534
        %v575 = vpack.c.b16 %v537, %v536
        %v576 = vpack.c.b16 %v539, %v538
        %v577 = vpack.c.b16 %v541, %v540
        %v578 = vpack.c.b16 %v543, %v542
        %v579 = vpack.c.b16 %v545, %v544
        %v580 = vpack.c.b16 %v547, %v546
        %v581 = vpack.c.b16 %v549, %v548
        %614 = vmatprep.subr.bf16.mxu0 0
        %615 = vmatpush1.bf16.msra.mxu0 %v557
        %616 = vmatprep.subr.bf16.mxu0 0
        %617 = vmatpush1.bf16.msra.mxu0 %v556
        %618 = vmatprep.subr.bf16.mxu0 0
        %619 = vmatpush1.bf16.msra.mxu0 %v555
        %620 = vmatprep.subr.bf16.mxu0 0
        %621 = vmatpush1.bf16.msra.mxu0 %v554
        %622 = vmatprep.subr.bf16.mxu0 0
        %623 = vmatpush1.bf16.msra.mxu0 %v553
        %624 = vmatprep.subr.bf16.mxu0 0
        %625 = vmatpush1.bf16.msra.mxu0 %v552
        %626 = vmatprep.subr.bf16.mxu0 0
        %627 = vmatpush1.bf16.msra.mxu0 %v551
        %628 = vmatprep.subr.bf16.mxu0 0
        %629 = vmatpush1.bf16.msra.mxu0 %v550
        %630 = vmatprep.subr.bf16.mxu0 0
        %631 = vmatpush2.bf16.msra.mxu0 %v565
        %632 = vmatprep.subr.bf16.mxu0 0
        %633 = vmatpush2.bf16.msra.mxu0 %v564
        %634 = vmatprep.subr.bf16.mxu0 0
        %635 = vmatpush2.bf16.msra.mxu0 %v563
        %636 = vmatprep.subr.bf16.mxu0 0
        %637 = vmatpush2.bf16.msra.mxu0 %v562
        %638 = vmatprep.subr.bf16.mxu0 0
        %639 = vmatpush2.bf16.msra.mxu0 %v561
        %640 = vmatprep.subr.bf16.mxu0 0
        %641 = vmatpush2.bf16.msra.mxu0 %v560
        %642 = vmatprep.subr.bf16.mxu0 0
        %643 = vmatpush2.bf16.msra.mxu0 %v559
        %644 = vmatprep.subr.bf16.mxu0 0
        %645 = vmatpush2.bf16.msra.mxu0 %v558
        %646 = vmatprep.mubr.bf16.mxu0 %v415
        %647 = vmatmul.mubr.bf16.gmra.mxu0 %v414
        %v648 = vpop.f32.mrf.mxu0
        %v649 = vadd.f32 0.0, %v648
        %v650 = vpop.f32.mrf.mxu0
        %v651 = vpop.f32.mrf.mxu0
        %v652 = vadd.f32 0.0, %v651
        %v653 = vpop.f32.mrf.mxu0
        %654 = vdwg.mxu0
        %655 = vmatprep.subr.bf16.mxu0 0
        %656 = vmatpush1.bf16.msra.mxu0 %v573
        %657 = vmatprep.subr.bf16.mxu0 0
        %658 = vmatpush1.bf16.msra.mxu0 %v572
        %659 = vmatprep.subr.bf16.mxu0 0
        %660 = vmatpush1.bf16.msra.mxu0 %v571
        %661 = vmatprep.subr.bf16.mxu0 0
        %662 = vmatpush1.bf16.msra.mxu0 %v570
        %663 = vmatprep.subr.bf16.mxu0 0
        %664 = vmatpush1.bf16.msra.mxu0 %v569
        %665 = vmatprep.subr.bf16.mxu0 0
        %666 = vmatpush1.bf16.msra.mxu0 %v568
        %667 = vmatprep.subr.bf16.mxu0 0
        %668 = vmatpush1.bf16.msra.mxu0 %v567
        %669 = vmatprep.subr.bf16.mxu0 0
        %670 = vmatpush1.bf16.msra.mxu0 %v566
        %671 = vmatprep.subr.bf16.mxu0 0
        %672 = vmatpush2.bf16.msra.mxu0 %v581
        %673 = vmatprep.subr.bf16.mxu0 0
        %674 = vmatpush2.bf16.msra.mxu0 %v580
        %675 = vmatprep.subr.bf16.mxu0 0
        %676 = vmatpush2.bf16.msra.mxu0 %v579
        %677 = vmatprep.subr.bf16.mxu0 0
        %678 = vmatpush2.bf16.msra.mxu0 %v578
        %679 = vmatprep.subr.bf16.mxu0 0
        %680 = vmatpush2.bf16.msra.mxu0 %v577
        %681 = vmatprep.subr.bf16.mxu0 0
        %682 = vmatpush2.bf16.msra.mxu0 %v576
        %683 = vmatprep.subr.bf16.mxu0 0
        %684 = vmatpush2.bf16.msra.mxu0 %v575
        %685 = vmatprep.subr.bf16.mxu0 0
        %686 = vmatpush2.bf16.msra.mxu0 %v574
        %687 = vmatprep.mubr.bf16.mxu0 %v417
        %688 = vmatmul.mubr.bf16.gmra.mxu0 %v416
        %v689 = vpop.f32.mrf.mxu0
        %v690 = vadd.f32 %v649, %v689
        %v691 = vpop.f32.mrf.mxu0
        %v692 = vpop.f32.mrf.mxu0
        %v693 = vadd.f32 %v652, %v692
        %v694 = vpop.f32.mrf.mxu0
        %695 = vdwg.mxu0
        %v696 = vadd.f32 %v332, %v690
        %v697 = vadd.f32 %v333, %v693
        %698 = vst [vmem:[#allocation2] sm:$0xff] %v696
        %699 = vst [vmem:[#allocation2 + $0x8] sm:$0xff] %v697
        %p700 = scmp.eq.s32.totalorder %s23, 1
        // Predicated region
        $region60: #{generator_forward.17} parent=50 // pred_check
          %p701 = pneg %p700
        $region61: #{generator_forward.17} parent=50 // pred_check_branch
          %703 = sbr.rel (%p701) target = $region63
        $region62: #{generator_forward.17} parent=50 // pred_region
          %v704 = vld [vmem:[#allocation2] sm:$0xff]
          %v705 = vld [vmem:[#allocation2 + $0x8] sm:$0xff]
          %v706 = vld [vmem:[%s311] sm:$0x1]
          %v708 = vlaneseq
          %v709 = vshrl.u32 %v708, 7
          %v710 = vsub.s32 0, %v709
          %v711 = vrot.slane %v706, %v710
          %v713 = vadd.f32 %v704, %v711
          %v714 = vadd.f32 %v705, %v711
          %v715 = vmax.f32 %v713, 0.0
          %v716 = vmax.f32 %v714, 0.0
          %717 = vst [vmem:[%s323] sm:$0xff] %v715
          %718 = vst [vmem:[%s323 + $0x8] sm:$0xff] %v716
        $region63: #{generator_forward.17} parent=50 // pred_fallthru
          _
        %s719 = smul.u32 2, %s21
        %p720 = scmp.lt.s32.totalorder %s20, 3
        %s721 = scalar_select %p720, %s20, 3
        %p722 = scmp.lt.s32.totalorder %s719, 1
        %s723 = scalar_select %p722, %s719, 1
        %p724 = scmp.lt.s32.totalorder %s22, 0
        %s725 = scalar_select %p724, %s22, 0
        %s726 = sadd.s32 %s725, %s723
        %s727 = smul.addr %s721, 2
        %s728 = sadd.s32 %s726, %s727
        %s729 = smul.addr %s728, 8
        %s730 = scalar_lea.vmem %s3, %s729
        // Predicated region
        $region64: #{generator_forward.17} parent=50 // pred_check
          %p731 = pneg %p150
        $region65: #{generator_forward.17} parent=50 // pred_check_branch
          %733 = sbr.rel (%p731) target = $region67
        $region66: #{generator_forward.17} parent=50 // pred_region
          %s734 = smul.u32 2, %s21
        $region67: #{generator_forward.17} parent=50 // pred_fallthru
          _
      $region51: #{generator_forward.17} parent=5 // pred_fallthru
        _
      %p735 = scmp.le.s32.totalorder 2, %s9
      // Predicated region
      $region68: #{generator_forward.17} parent=5 // pred_check
        %p736 = pneg %p735
      $region69: #{generator_forward.17} parent=5 // pred_check_branch
        %738 = sbr.rel (%p736) target = $region71
      $region70: #{generator_forward.17} parent=5 // pred_region
        %s739 = ssub.s32 %s9, 2
        // Predicated region
        $region72: #{generator_forward.17} parent=70 // pred_check
          %p740 = pneg %p156
        $region73: #{generator_forward.17} parent=70 // pred_check_branch
          %742 = sbr.rel (%p740) target = $region75
        $region74: #{generator_forward.17} parent=70 // pred_region
          %s743 = smul.u32 2, %s25
          %p744 = scmp.lt.s32.totalorder %s24, 3
          %s745 = scalar_select %p744, %s24, 3
          %p746 = scmp.lt.s32.totalorder %s743, 1
          %s747 = scalar_select %p746, %s743, 1
          %p748 = scmp.lt.s32.totalorder %s26, 0
          %s749 = scalar_select %p748, %s26, 0
          %s750 = sadd.s32 %s749, %s747
          %s751 = smul.addr %s745, 2
          %s752 = sadd.s32 %s750, %s751
          %s753 = smul.addr %s752, 8
          %s754 = scalar_lea.vmem %s3, %s753
        $region75: #{generator_forward.17} parent=70 // pred_fallthru
          _
      $region71: #{generator_forward.17} parent=5 // pred_fallthru
        _
    $region6: #{generator_forward.17} parent=1 // loop_footer
      %s13 = sadd.s32 1, %s9
    $region7: #{generator_forward.17} parent=1 // loop_footer_branch
      %8 = sbr.rel target = $region3
    $region8: #{generator_forward.17} parent=1 // loop_exit
      _

// kernel: generator_forward.18
$region0: #{generator_forward.18}
  #allocation0 [shape = 'u32[]', space=smem, size = 0x4, offset = 0x4, fixed_abs, tag = 'smem constant byte address 0x4 - core index']
  #allocation1 [shape = 'u32[144,128]{1,0:T(1,128)}', space=vmem, size = 0x12000, scoped, tag = 'internal scratch']
  #allocation2 [shape = 'f32[32,128]{1,0:T(8,128)}', space=vmem, size = 0x4000, scoped, tag = 'scratch operand']
  %s0 = inlined_call_operand.vmem [shape: bf16[4,32,512], index: 0, kind: input, shape index: {}]
  %s1 = inlined_call_operand.vmem [shape: bf16[4,512,128], index: 1, kind: input, shape index: {}]
  %s2 = inlined_call_operand.vmem [shape: f32[4,1,128], index: 2, kind: input, shape index: {}]
  %s3 = inlined_call_operand.vmem [shape: f32[4,32,128], index: 3, kind: output, shape index: {}]
  %s4 = sld [smem:[#allocation0]]
  $region53: #{generator_forward.18} parent=0
    _
  %s6 = ssub.s32 1, %s4
  %s7 = scalar_select 0, %s6, %s4
  loop: start=0, step=1, limit=6
  $region2: #{generator_forward.18} parent=0 // loop_pre_header
    _
  $region3: #{generator_forward.18} parent=0 // loop_header
    %s9 = sphi 0, %s13
    %p10 = scmp.ge.s32.totalorder %s9, 6
    %s16 = sphi 0, %s42
    %s17 = sphi 0, %s38
    %s18 = sphi 0, %s34
    %s19 = sphi 0, %s30
    %s20 = sphi 0, %s16
    %s21 = sphi 0, %s17
    %s22 = sphi 0, %s18
    %s23 = sphi 0, %s19
    %s24 = sphi 0, %s20
    %s25 = sphi 0, %s21
    %s26 = sphi 0, %s22
    %s27 = sphi 0, %s23
    %s49 = sphi 0, %s51
    %s52 = sphi 0, %s49
    %s53 = sphi 0, %s52
    %s69 = sphi 0, %s53
    %s79 = sphi 0, %s81
    %s82 = sphi 0, %s79
    %s83 = sphi 0, %s82
    %s99 = sphi 0, %s83
    %s107 = sphi 0, %s109
    %s110 = sphi 0, %s107
    %s111 = sphi 0, %s110
    %s127 = sphi 0, %s111
    %s137 = sphi 0, %s139
    %s140 = sphi 0, %s137
    %s141 = sphi 0, %s140
    %s157 = sphi 0, %s141
  $region4: #{generator_forward.18} parent=0 // loop_header_branch
    %12 = sbr.rel (%p10) target = $region8
  $region5: #{generator_forward.18} parent=0 // loop_body
    %s14 = ssub.s32 %s9, 1
    %s15 = ssub.s32 %s9, 2
    %s28 = sadd.s32 1, %s19
    %p29 = scmp.ge.s32.totalorder %s28, 1
    %s30 = scalar_select %p29, 0, %s28
    %s31 = sadd.s32 1, %s18
    %s32 = scalar_select %p29, %s31, %s18
    %p33 = scmp.ge.s32.totalorder %s32, 1
    %s34 = scalar_select %p33, 0, %s32
    %s35 = sadd.s32 1, %s17
    %s36 = scalar_select %p33, %s35, %s17
    %p37 = scmp.ge.s32.totalorder %s36, 1
    %s38 = scalar_select %p37, 0, %s36
    %s39 = sadd.s32 1, %s16
    %s40 = scalar_select %p37, %s39, %s16
    %p41 = scmp.ge.s32.totalorder %s40, 4
    %s42 = scalar_select %p41, 0, %s40
    %s43 = ssub.s32 %s16, %s42
    %s44 = ssub.s32 %s17, %s38
    %s45 = sor.u32 %s43, %s44
    %s46 = ssub.s32 %s19, %s30
    %s47 = sor.u32 %s45, %s46
    %p48 = scmp.eq.s32.totalorder %s47, 0
    %s50 = sadd.s32 %s49, 1
    %s51 = scalar_select %p48, %s49, %s50
    %p54 = pneg %p48
    %p55 = scmp.eq.s32.totalorder %s9, 3
    %p56 = por %p54, %p55
    %p57 = scmp.ne.s32.totalorder %s49, %s52
    %p58 = scmp.eq.s32.totalorder %s9, 0
    %p59 = por %p57, %p58
    %p60 = scmp.ne.s32.totalorder %s49, %s52
    %p61 = scmp.eq.s32.totalorder %s14, 3
    %p62 = por %p60, %p61
    %p63 = scmp.ne.s32.totalorder %s52, %s53
    %p64 = scmp.eq.s32.totalorder %s14, 0
    %p65 = por %p63, %p64
    %p66 = scmp.ne.s32.totalorder %s52, %s53
    %p67 = scmp.eq.s32.totalorder %s15, 3
    %p68 = por %p66, %p67
    %p70 = scmp.ne.s32.totalorder %s53, %s69
    %p71 = scmp.eq.s32.totalorder %s15, 0
    %p72 = por %p70, %p71
    %s73 = ssub.s32 %s16, %s42
    %s74 = ssub.s32 %s19, %s30
    %s75 = sor.u32 %s73, %s74
    %s76 = ssub.s32 %s18, %s34
    %s77 = sor.u32 %s75, %s76
    %p78 = scmp.eq.s32.totalorder %s77, 0
    %s80 = sadd.s32 %s79, 1
    %s81 = scalar_select %p78, %s79, %s80
    %p84 = pneg %p78
    %p85 = scmp.eq.s32.totalorder %s9, 3
    %p86 = por %p84, %p85
    %p87 = scmp.ne.s32.totalorder %s79, %s82
    %p88 = scmp.eq.s32.totalorder %s9, 0
    %p89 = por %p87, %p88
    %p90 = scmp.ne.s32.totalorder %s79, %s82
    %p91 = scmp.eq.s32.totalorder %s14, 3
    %p92 = por %p90, %p91
    %p93 = scmp.ne.s32.totalorder %s82, %s83
    %p94 = scmp.eq.s32.totalorder %s14, 0
    %p95 = por %p93, %p94
    %p96 = scmp.ne.s32.totalorder %s82, %s83
    %p97 = scmp.eq.s32.totalorder %s15, 3
    %p98 = por %p96, %p97
    %p100 = scmp.ne.s32.totalorder %s83, %s99
    %p101 = scmp.eq.s32.totalorder %s15, 0
    %p102 = por %p100, %p101
    %s103 = ssub.s32 %s16, %s42
    %s104 = ssub.s32 %s18, %s34
    %s105 = sor.u32 %s103, %s104
    %p106 = scmp.eq.s32.totalorder %s105, 0
    %s108 = sadd.s32 %s107, 1
    %s109 = scalar_select %p106, %s107, %s108
    %p112 = pneg %p106
    %p113 = scmp.eq.s32.totalorder %s9, 3
    %p114 = por %p112, %p113
    %p115 = scmp.ne.s32.totalorder %s107, %s110
    %p116 = scmp.eq.s32.totalorder %s9, 0
    %p117 = por %p115, %p116
    %p118 = scmp.ne.s32.totalorder %s107, %s110
    %p119 = scmp.eq.s32.totalorder %s14, 3
    %p120 = por %p118, %p119
    %p121 = scmp.ne.s32.totalorder %s110, %s111
    %p122 = scmp.eq.s32.totalorder %s14, 0
    %p123 = por %p121, %p122
    %p124 = scmp.ne.s32.totalorder %s110, %s111
    %p125 = scmp.eq.s32.totalorder %s15, 3
    %p126 = por %p124, %p125
    %p128 = scmp.ne.s32.totalorder %s111, %s127
    %p129 = scmp.eq.s32.totalorder %s15, 0
    %p130 = por %p128, %p129
    %s131 = ssub.s32 %s16, %s42
    %s132 = ssub.s32 %s17, %s38
    %s133 = sor.u32 %s131, %s132
    %s134 = ssub.s32 %s18, %s34
    %s135 = sor.u32 %s133, %s134
    %p136 = scmp.eq.s32.totalorder %s135, 0
    %s138 = sadd.s32 %s137, 1
    %s139 = scalar_select %p136, %s137, %s138
    %p142 = pneg %p136
    %p143 = scmp.eq.s32.totalorder %s9, 3
    %p144 = por %p142, %p143
    %p145 = scmp.ne.s32.totalorder %s137, %s140
    %p146 = scmp.eq.s32.totalorder %s9, 0
    %p147 = por %p145, %p146
    %p148 = scmp.ne.s32.totalorder %s137, %s140
    %p149 = scmp.eq.s32.totalorder %s14, 3
    %p150 = por %p148, %p149
    %p151 = scmp.ne.s32.totalorder %s140, %s141
    %p152 = scmp.eq.s32.totalorder %s14, 0
    %p153 = por %p151, %p152
    %p154 = scmp.ne.s32.totalorder %s140, %s141
    %p155 = scmp.eq.s32.totalorder %s15, 3
    %p156 = por %p154, %p155
    %p158 = scmp.ne.s32.totalorder %s141, %s157
    %p159 = scmp.eq.s32.totalorder %s15, 0
    %p160 = por %p158, %p159
    %p161 = scmp.le.s32.totalorder 1, %s9
    %p162 = scmp.lt.s32.totalorder %s9, 5
    %p163 = pnand %p161, %p162
    %p164 = pneg %p163
    // Predicated region
    $region9: #{generator_forward.18} parent=5 // pred_check
      _
    $region10: #{generator_forward.18} parent=5 // pred_check_branch
      %166 = sbr.rel (%p163) target = $region12
    $region11: #{generator_forward.18} parent=5 // pred_region
      %s167 = ssub.s32 %s9, 1
    $region12: #{generator_forward.18} parent=5 // pred_fallthru
      _
    %p168 = scmp.lt.s32.totalorder %s9, 4
    // Predicated region
    $region13: #{generator_forward.18} parent=5 // pred_check
      %p169 = pneg %p168
    $region14: #{generator_forward.18} parent=5 // pred_check_branch
      %171 = sbr.rel (%p169) target = $region16
    $region15: #{generator_forward.18} parent=5 // pred_region
      // Predicated region
      $region17: #{generator_forward.18} parent=15 // pred_check
        %p172 = pneg %p59
      $region18: #{generator_forward.18} parent=15 // pred_check_branch
        %174 = sbr.rel (%p172) target = $region20
      $region19: #{generator_forward.18} parent=15 // pred_region
        %s175 = smul.u32 4, %s17
        %s176 = smul.u32 4, %s19
        %p177 = scmp.lt.s32.totalorder %s16, 3
        %s178 = scalar_select %p177, %s16, 3
        %p179 = scmp.lt.s32.totalorder %s175, 3
        %s180 = scalar_select %p179, %s175, 3
        %p181 = scmp.lt.s32.totalorder %s176, 3
        %s182 = scalar_select %p181, %s176, 3
        %s183 = smul.addr %s180, 4
        %s184 = sadd.s32 %s182, %s183
        %s185 = smul.addr %s178, 16
        %s186 = sadd.s32 %s184, %s185
        %s187 = smul.addr %s186, 4
        %s188 = scalar_lea.vmem %s0, %s187
        %s189 = smul.u32 4, %s17
        %s190 = smul.u32 4, %s19
      $region20: #{generator_forward.18} parent=15 // pred_fallthru
        _
      // Predicated region
      $region21: #{generator_forward.18} parent=15 // pred_check
        %p191 = pneg %p89
      $region22: #{generator_forward.18} parent=15 // pred_check_branch
        %193 = sbr.rel (%p191) target = $region24
      $region23: #{generator_forward.18} parent=15 // pred_region
        %s194 = smul.u32 64, %s19
        %p195 = scmp.lt.s32.totalorder %s16, 3
        %s196 = scalar_select %p195, %s16, 3
        %p197 = scmp.lt.s32.totalorder %s194, 63
        %s198 = scalar_select %p197, %s194, 63
        %p199 = scmp.lt.s32.totalorder %s18, 0
        %s200 = scalar_select %p199, %s18, 0
        %s201 = sadd.s32 %s200, %s198
        %s202 = smul.addr %s196, 64
        %s203 = sadd.s32 %s201, %s202
        %s204 = smul.addr %s203, 4
        %s205 = scalar_lea.vmem %s1, %s204
        %s206 = smul.u32 64, %s19
      $region24: #{generator_forward.18} parent=15 // pred_fallthru
        _
      // Predicated region
      $region25: #{generator_forward.18} parent=15 // pred_check
        %p207 = pneg %p117
      $region26: #{generator_forward.18} parent=15 // pred_check_branch
        %209 = sbr.rel (%p207) target = $region28
      $region27: #{generator_forward.18} parent=15 // pred_region
        %p210 = scmp.lt.s32.totalorder %s16, 3
        %s211 = scalar_select %p210, %s16, 3
        %p212 = scmp.lt.s32.totalorder %s18, 0
        %s213 = scalar_select %p212, %s18, 0
        %s214 = sadd.s32 %s213, %s211
        %s215 = scalar_lea.vmem %s2, %s214
      $region28: #{generator_forward.18} parent=15 // pred_fallthru
        _
    $region16: #{generator_forward.18} parent=5 // pred_fallthru
      _
    %p216 = scmp.le.s32.totalorder 1, %s9
    %p217 = scmp.lt.s32.totalorder %s9, 5
    %p218 = pnand %p216, %p217
    %p219 = pneg %p218
    // Predicated region
    $region29: #{generator_forward.18} parent=5 // pred_check
      _
    $region30: #{generator_forward.18} parent=5 // pred_check_branch
      %221 = sbr.rel (%p218) target = $region32
    $region31: #{generator_forward.18} parent=5 // pred_region
      %s222 = ssub.s32 %s9, 1
      %s223 = smul.u32 4, %s21
      %s224 = smul.u32 4, %s23
      %p225 = scmp.lt.s32.totalorder %s20, 3
      %s226 = scalar_select %p225, %s20, 3
      %p227 = scmp.lt.s32.totalorder %s223, 3
      %s228 = scalar_select %p227, %s223, 3
      %p229 = scmp.lt.s32.totalorder %s224, 3
      %s230 = scalar_select %p229, %s224, 3
      %s231 = smul.addr %s228, 4
      %s232 = sadd.s32 %s230, %s231
      %s233 = smul.addr %s226, 16
      %s234 = sadd.s32 %s232, %s233
      %s235 = smul.addr %s234, 4
      %s236 = scalar_lea.vmem %s0, %s235
      %p237 = pneg %p65
      %p238 = pneg %p62
      %s239 = smul.u32 64, %s23
      %p240 = scmp.lt.s32.totalorder %s20, 3
      %s241 = scalar_select %p240, %s20, 3
      %p242 = scmp.lt.s32.totalorder %s239, 63
      %s243 = scalar_select %p242, %s239, 63
      %p244 = scmp.lt.s32.totalorder %s22, 0
      %s245 = scalar_select %p244, %s22, 0
      %s246 = sadd.s32 %s245, %s243
      %s247 = smul.addr %s241, 64
      %s248 = sadd.s32 %s246, %s247
      %s249 = smul.addr %s248, 4
      %s250 = scalar_lea.vmem %s1, %s249
      %p251 = pneg %p95
      %p252 = pneg %p92
      %p253 = scmp.lt.s32.totalorder %s20, 3
      %s254 = scalar_select %p253, %s20, 3
      %p255 = scmp.lt.s32.totalorder %s22, 0
      %s256 = scalar_select %p255, %s22, 0
      %s257 = sadd.s32 %s256, %s254
      %s258 = scalar_lea.vmem %s2, %s257
      %p259 = pneg %p123
      %p260 = pneg %p120
      %p261 = pneg %p153
      %p262 = pneg %p150
      %s263 = smul.u32 4, %s21
      %p264 = scmp.lt.s32.totalorder %s20, 3
      %s265 = scalar_select %p264, %s20, 3
      %p266 = scmp.lt.s32.totalorder %s263, 3
      %s267 = scalar_select %p266, %s263, 3
      %p268 = scmp.lt.s32.totalorder %s22, 0
      %s269 = scalar_select %p268, %s22, 0
      %s270 = sadd.s32 %s269, %s267
      %s271 = smul.addr %s265, 4
      %s272 = sadd.s32 %s270, %s271
      %s273 = smul.addr %s272, 8
      %s274 = scalar_lea.vmem %s3, %s273
      %s275 = smul.u32 4, %s21
      %s276 = smul.u32 4, %s23
      %p277 = scmp.lt.s32.totalorder %s20, 3
      %s278 = scalar_select %p277, %s20, 3
      %p279 = scmp.lt.s32.totalorder %s275, 3
      %s280 = scalar_select %p279, %s275, 3
      %p281 = scmp.lt.s32.totalorder %s276, 3
      %s282 = scalar_select %p281, %s276, 3
      %s283 = smul.addr %s280, 4
      %s284 = sadd.s32 %s282, %s283
      %s285 = smul.addr %s278, 16
      %s286 = sadd.s32 %s284, %s285
      %s287 = smul.addr %s286, 4
      %s288 = scalar_lea.vmem %s0, %s287
      %s289 = smul.u32 4, %s21
      %s290 = smul.u32 4, %s23
      %s291 = smul.u32 64, %s23
      %p292 = scmp.lt.s32.totalorder %s20, 3
      %s293 = scalar_select %p292, %s20, 3
      %p294 = scmp.lt.s32.totalorder %s291, 63
      %s295 = scalar_select %p294, %s291, 63
      %p296 = scmp.lt.s32.totalorder %s22, 0
      %s297 = scalar_select %p296, %s22, 0
      %s298 = sadd.s32 %s297, %s295
      %s299 = smul.addr %s293, 64
      %s300 = sadd.s32 %s298, %s299
      %s301 = smul.addr %s300, 4
      %s302 = scalar_lea.vmem %s1, %s301
      %s303 = smul.u32 64, %s23
      %p304 = scmp.lt.s32.totalorder %s20, 3
      %s305 = scalar_select %p304, %s20, 3
      %p306 = scmp.lt.s32.totalorder %s22, 0
      %s307 = scalar_select %p306, %s22, 0
      %s308 = sadd.s32 %s307, %s305
      %s309 = scalar_lea.vmem %s2, %s308
      %s310 = smul.u32 4, %s21
      %p311 = scmp.lt.s32.totalorder %s20, 3
      %s312 = scalar_select %p311, %s20, 3
      %p313 = scmp.lt.s32.totalorder %s310, 3
      %s314 = scalar_select %p313, %s310, 3
      %p315 = scmp.lt.s32.totalorder %s22, 0
      %s316 = scalar_select %p315, %s22, 0
      %s317 = sadd.s32 %s316, %s314
      %s318 = smul.addr %s312, 4
      %s319 = sadd.s32 %s317, %s318
      %s320 = smul.addr %s319, 8
      %s321 = scalar_lea.vmem %s3, %s320
      %s322 = smul.u32 4, %s21
      %p324 = scmp.eq.s32.totalorder %s23, 0
      // Predicated region
      $region33: #{generator_forward.18} parent=31 // pred_check
        %p325 = pneg %p324
      $region34: #{generator_forward.18} parent=31 // pred_check_branch
        %327 = sbr.rel (%p325) target = $region36
      $region35: #{generator_forward.18} parent=31 // pred_region
        %328 = vst [vmem:[#allocation2] sm:$0xff] 0.0
        %329 = vst [vmem:[#allocation2 + $0x8] sm:$0xff] 0.0
        %330 = vst [vmem:[#allocation2 + $0x10] sm:$0xff] 0.0
        %331 = vst [vmem:[#allocation2 + $0x18] sm:$0xff] 0.0
      $region36: #{generator_forward.18} parent=31 // pred_fallthru
        _
      %v332 = vld [vmem:[#allocation2] sm:$0xff]
      %v333 = vld [vmem:[#allocation2 + $0x8] sm:$0xff]
      %v334 = vld [vmem:[#allocation2 + $0x10] sm:$0xff]
      %v335 = vld [vmem:[#allocation2 + $0x18] sm:$0xff]
      %v336 = vld [vmem:[%s288] sm:$0xff]
      %v337 = vld [vmem:[%s288 + $0x8] sm:$0xff]
      %v338 = vld [vmem:[%s288 + $0x10] sm:$0xff]
      %v339 = vld [vmem:[%s288 + $0x18] sm:$0xff]
      %v340 = vld [vmem:[%s288 + $0x20] sm:$0xff]
      %v341 = vld [vmem:[%s288 + $0x28] sm:$0xff]
      %v342 = vld [vmem:[%s288 + $0x30] sm:$0xff]
      %v343 = vld [vmem:[%s288 + $0x38] sm:$0xff]
      %v344 = vld [vmem:[%s302] sm:$0xf]
      %v345 = vld [vmem:[%s302 + $0x4] sm:$0xf]
      %v346 = vld [vmem:[%s302 + $0x8] sm:$0xf]
      %v347 = vld [vmem:[%s302 + $0xc] sm:$0xf]
      %v348 = vld [vmem:[%s302 + $0x10] sm:$0xf]
      %v349 = vld [vmem:[%s302 + $0x14] sm:$0xf]
      %v350 = vld [vmem:[%s302 + $0x18] sm:$0xf]
      %v351 = vld [vmem:[%s302 + $0x1c] sm:$0xf]
      %v352 = vld [vmem:[%s302 + $0x20] sm:$0xf]
      %v353 = vld [vmem:[%s302 + $0x24] sm:$0xf]
      %v354 = vld [vmem:[%s302 + $0x28] sm:$0xf]
      %v355 = vld [vmem:[%s302 + $0x2c] sm:$0xf]
      %v356 = vld [vmem:[%s302 + $0x30] sm:$0xf]
      %v357 = vld [vmem:[%s302 + $0x34] sm:$0xf]
      %v358 = vld [vmem:[%s302 + $0x38] sm:$0xf]
      %v359 = vld [vmem:[%s302 + $0x3c] sm:$0xf]
      %v360 = vld [vmem:[%s302 + $0x40] sm:$0xf]
      %v361 = vld [vmem:[%s302 + $0x44] sm:$0xf]
      %v362 = vld [vmem:[%s302 + $0x48] sm:$0xf]
      %v363 = vld [vmem:[%s302 + $0x4c] sm:$0xf]
      %v364 = vld [vmem:[%s302 + $0x50] sm:$0xf]
      %v365 = vld [vmem:[%s302 + $0x54] sm:$0xf]
      %v366 = vld [vmem:[%s302 + $0x58] sm:$0xf]
      %v367 = vld [vmem:[%s302 + $0x5c] sm:$0xf]
      %v368 = vld [vmem:[%s302 + $0x60] sm:$0xf]
      %v369 = vld [vmem:[%s302 + $0x64] sm:$0xf]
      %v370 = vld [vmem:[%s302 + $0x68] sm:$0xf]
      %v371 = vld [vmem:[%s302 + $0x6c] sm:$0xf]
      %v372 = vld [vmem:[%s302 + $0x70] sm:$0xf]
      %v373 = vld [vmem:[%s302 + $0x74] sm:$0xf]
      %v374 = vld [vmem:[%s302 + $0x78] sm:$0xf]
      %v375 = vld [vmem:[%s302 + $0x7c] sm:$0xf]
      %v376 = vld [vmem:[%s302 + $0x80] sm:$0xf]
      %v377 = vld [vmem:[%s302 + $0x84] sm:$0xf]
      %v378 = vld [vmem:[%s302 + $0x88] sm:$0xf]
      %v379 = vld [vmem:[%s302 + $0x8c] sm:$0xf]
      %v380 = vld [vmem:[%s302 + $0x90] sm:$0xf]
      %v381 = vld [vmem:[%s302 + $0x94] sm:$0xf]
      %v382 = vld [vmem:[%s302 + $0x98] sm:$0xf]
      %v383 = vld [vmem:[%s302 + $0x9c] sm:$0xf]
      %v384 = vld [vmem:[%s302 + $0xa0] sm:$0xf]
      %v385 = vld [vmem:[%s302 + $0xa4] sm:$0xf]
      %v386 = vld [vmem:[%s302 + $0xa8] sm:$0xf]
      %v387 = vld [vmem:[%s302 + $0xac] sm:$0xf]
      %v388 = vld [vmem:[%s302 + $0xb0] sm:$0xf]
      %v389 = vld [vmem:[%s302 + $0xb4] sm:$0xf]
      %v390 = vld [vmem:[%s302 + $0xb8] sm:$0xf]
      %v391 = vld [vmem:[%s302 + $0xbc] sm:$0xf]
      %v392 = vld [vmem:[%s302 + $0xc0] sm:$0xf]
      %v393 = vld [vmem:[%s302 + $0xc4] sm:$0xf]
      %v394 = vld [vmem:[%s302 + $0xc8] sm:$0xf]
      %v395 = vld [vmem:[%s302 + $0xcc] sm:$0xf]
      %v396 = vld [vmem:[%s302 + $0xd0] sm:$0xf]
      %v397 = vld [vmem:[%s302 + $0xd4] sm:$0xf]
      %v398 = vld [vmem:[%s302 + $0xd8] sm:$0xf]
      %v399 = vld [vmem:[%s302 + $0xdc] sm:$0xf]
      %v400 = vld [vmem:[%s302 + $0xe0] sm:$0xf]
      %v401 = vld [vmem:[%s302 + $0xe4] sm:$0xf]
      %v402 = vld [vmem:[%s302 + $0xe8] sm:$0xf]
      %v403 = vld [vmem:[%s302 + $0xec] sm:$0xf]
      %v404 = vld [vmem:[%s302 + $0xf0] sm:$0xf]
      %v405 = vld [vmem:[%s302 + $0xf4] sm:$0xf]
      %v406 = vld [vmem:[%s302 + $0xf8] sm:$0xf]
      %v407 = vld [vmem:[%s302 + $0xfc] sm:$0xf]
      %v416 = vunpack.c.l.b16 %v336
      %v417 = vunpack.c.h.b16 %v336
      %v418 = vunpack.c.l.b16 %v337
      %v419 = vunpack.c.h.b16 %v337
      %v420 = vunpack.c.l.b16 %v338
      %v421 = vunpack.c.h.b16 %v338
      %v422 = vunpack.c.l.b16 %v339
      %v423 = vunpack.c.h.b16 %v339
      %v424 = vunpack.c.l.b16 %v340
      %v425 = vunpack.c.h.b16 %v340
      %v426 = vunpack.c.l.b16 %v341
      %v427 = vunpack.c.h.b16 %v341
      %v428 = vunpack.c.l.b16 %v342
      %v429 = vunpack.c.h.b16 %v342
      %v430 = vunpack.c.l.b16 %v343
      %v431 = vunpack.c.h.b16 %v343
      %v432 = vpack.c.b16 %v420, %v416
      %v433 = vpack.c.b16 %v421, %v417
      %v434 = vpack.c.b16 %v422, %v418
      %v435 = vpack.c.b16 %v423, %v419
      %v436 = vpack.c.b16 %v428, %v424
      %v437 = vpack.c.b16 %v429, %v425
      %v438 = vpack.c.b16 %v430, %v426
      %v439 = vpack.c.b16 %v431, %v427
      %v512 = vunpack.c.l.b16 %v344
      %v513 = vunpack.c.l.b16 %v345
      %v514 = vunpack.c.l.b16 %v346
      %v515 = vunpack.c.l.b16 %v347
      %v516 = vunpack.c.l.b16 %v348
      %v517 = vunpack.c.l.b16 %v349
      %v518 = vunpack.c.l.b16 %v350
      %v519 = vunpack.c.l.b16 %v351
      %v520 = vunpack.c.l.b16 %v352
      %v521 = vunpack.c.l.b16 %v353
      %v522 = vunpack.c.l.b16 %v354
      %v523 = vunpack.c.l.b16 %v355
      %v524 = vunpack.c.l.b16 %v356
      %v525 = vunpack.c.l.b16 %v357
      %v526 = vunpack.c.l.b16 %v358
      %v527 = vunpack.c.l.b16 %v359
      %v528 = vunpack.c.l.b16 %v360
      %v529 = vunpack.c.l.b16 %v361
      %v530 = vunpack.c.l.b16 %v362
      %v531 = vunpack.c.l.b16 %v363
      %v532 = vunpack.c.l.b16 %v364
      %v533 = vunpack.c.l.b16 %v365
      %v534 = vunpack.c.l.b16 %v366
      %v535 = vunpack.c.l.b16 %v367
      %v536 = vunpack.c.l.b16 %v368
      %v537 = vunpack.c.l.b16 %v369
      %v538 = vunpack.c.l.b16 %v370
      %v539 = vunpack.c.l.b16 %v371
      %v540 = vunpack.c.l.b16 %v372
      %v541 = vunpack.c.l.b16 %v373
      %v542 = vunpack.c.l.b16 %v374
      %v543 = vunpack.c.l.b16 %v375
      %v544 = vunpack.c.l.b16 %v376
      %v545 = vunpack.c.l.b16 %v377
      %v546 = vunpack.c.l.b16 %v378
      %v547 = vunpack.c.l.b16 %v379
      %v548 = vunpack.c.l.b16 %v380
      %v549 = vunpack.c.l.b16 %v381
      %v550 = vunpack.c.l.b16 %v382
      %v551 = vunpack.c.l.b16 %v383
      %v552 = vunpack.c.l.b16 %v384
      %v553 = vunpack.c.l.b16 %v385
      %v554 = vunpack.c.l.b16 %v386
      %v555 = vunpack.c.l.b16 %v387
      %v556 = vunpack.c.l.b16 %v388
      %v557 = vunpack.c.l.b16 %v389
      %v558 = vunpack.c.l.b16 %v390
      %v559 = vunpack.c.l.b16 %v391
      %v560 = vunpack.c.l.b16 %v392
      %v561 = vunpack.c.l.b16 %v393
      %v562 = vunpack.c.l.b16 %v394
      %v563 = vunpack.c.l.b16 %v395
      %v564 = vunpack.c.l.b16 %v396
      %v565 = vunpack.c.l.b16 %v397
      %v566 = vunpack.c.l.b16 %v398
      %v567 = vunpack.c.l.b16 %v399
      %v568 = vunpack.c.l.b16 %v400
      %v569 = vunpack.c.l.b16 %v401
      %v570 = vunpack.c.l.b16 %v402
      %v571 = vunpack.c.l.b16 %v403
      %v572 = vunpack.c.l.b16 %v404
      %v573 = vunpack.c.l.b16 %v405
      %v574 = vunpack.c.l.b16 %v406
      %v575 = vunpack.c.l.b16 %v407
      %v576 = vpack.c.b16 %v513, %v512
      %v577 = vpack.c.b16 %v515, %v514
      %v578 = vpack.c.b16 %v517, %v516
      %v579 = vpack.c.b16 %v519, %v518
      %v580 = vpack.c.b16 %v521, %v520
      %v581 = vpack.c.b16 %v523, %v522
      %v582 = vpack.c.b16 %v525, %v524
      %v583 = vpack.c.b16 %v527, %v526
      %v584 = vpack.c.b16 %v529, %v528
      %v585 = vpack.c.b16 %v531, %v530
      %v586 = vpack.c.b16 %v533, %v532
      %v587 = vpack.c.b16 %v535, %v534
      %v588 = vpack.c.b16 %v537, %v536
      %v589 = vpack.c.b16 %v539, %v538
      %v590 = vpack.c.b16 %v541, %v540
      %v591 = vpack.c.b16 %v543, %v542
      %v592 = vpack.c.b16 %v545, %v544
      %v593 = vpack.c.b16 %v547, %v546
      %v594 = vpack.c.b16 %v549, %v548
      %v595 = vpack.c.b16 %v551, %v550
      %v596 = vpack.c.b16 %v553, %v552
      %v597 = vpack.c.b16 %v555, %v554
      %v598 = vpack.c.b16 %v557, %v556
      %v599 = vpack.c.b16 %v559, %v558
      %v600 = vpack.c.b16 %v561, %v560
      %v601 = vpack.c.b16 %v563, %v562
      %v602 = vpack.c.b16 %v565, %v564
      %v603 = vpack.c.b16 %v567, %v566
      %v604 = vpack.c.b16 %v569, %v568
      %v605 = vpack.c.b16 %v571, %v570
      %v606 = vpack.c.b16 %v573, %v572
      %v607 = vpack.c.b16 %v575, %v574
      %640 = vmatprep.subr.bf16.mxu0 0
      %641 = vmatpush1.bf16.msra.mxu0 %v583
      %642 = vmatprep.subr.bf16.mxu0 0
      %643 = vmatpush1.bf16.msra.mxu0 %v582
      %644 = vmatprep.subr.bf16.mxu0 0
      %645 = vmatpush1.bf16.msra.mxu0 %v581
      %646 = vmatprep.subr.bf16.mxu0 0
      %647 = vmatpush1.bf16.msra.mxu0 %v580
      %648 = vmatprep.subr.bf16.mxu0 0
      %649 = vmatpush1.bf16.msra.mxu0 %v579
      %650 = vmatprep.subr.bf16.mxu0 0
      %651 = vmatpush1.bf16.msra.mxu0 %v578
      %652 = vmatprep.subr.bf16.mxu0 0
      %653 = vmatpush1.bf16.msra.mxu0 %v577
      %654 = vmatprep.subr.bf16.mxu0 0
      %655 = vmatpush1.bf16.msra.mxu0 %v576
      %656 = vmatprep.subr.bf16.mxu0 0
      %657 = vmatpush2.bf16.msra.mxu0 %v591
      %658 = vmatprep.subr.bf16.mxu0 0
      %659 = vmatpush2.bf16.msra.mxu0 %v590
      %660 = vmatprep.subr.bf16.mxu0 0
      %661 = vmatpush2.bf16.msra.mxu0 %v589
      %662 = vmatprep.subr.bf16.mxu0 0
      %663 = vmatpush2.bf16.msra.mxu0 %v588
      %664 = vmatprep.subr.bf16.mxu0 0
      %665 = vmatpush2.bf16.msra.mxu0 %v587
      %666 = vmatprep.subr.bf16.mxu0 0
      %667 = vmatpush2.bf16.msra.mxu0 %v586
      %668 = vmatprep.subr.bf16.mxu0 0
      %669 = vmatpush2.bf16.msra.mxu0 %v585
      %670 = vmatprep.subr.bf16.mxu0 0
      %671 = vmatpush2.bf16.msra.mxu0 %v584
      %672 = vmatprep.mubr.bf16.mxu0 %v433
      %673 = vmatmul.mubr.bf16.gmra.mxu0 %v432
      %v674 = vpop.f32.mrf.mxu0
      %v675 = vadd.f32 0.0, %v674
      %v676 = vpop.f32.mrf.mxu0
      %v677 = vpop.f32.mrf.mxu0
      %v678 = vadd.f32 0.0, %v677
      %v679 = vpop.f32.mrf.mxu0
      %680 = vmatprep.mubr.bf16.mxu0 %v437
      %681 = vmatmul.mubr.bf16.gmra.mxu0 %v436
      %v682 = vpop.f32.mrf.mxu0
      %v683 = vadd.f32 0.0, %v682
      %v684 = vpop.f32.mrf.mxu0
      %v685 = vpop.f32.mrf.mxu0
      %v686 = vadd.f32 0.0, %v685
      %v687 = vpop.f32.mrf.mxu0
      %688 = vdwg.mxu0
      %689 = vmatprep.subr.bf16.mxu0 0
      %690 = vmatpush1.bf16.msra.mxu0 %v599
      %691 = vmatprep.subr.bf16.mxu0 0
      %692 = vmatpush1.bf16.msra.mxu0 %v598
      %693 = vmatprep.subr.bf16.mxu0 0
      %694 = vmatpush1.bf16.msra.mxu0 %v597
      %695 = vmatprep.subr.bf16.mxu0 0
      %696 = vmatpush1.bf16.msra.mxu0 %v596
      %697 = vmatprep.subr.bf16.mxu0 0
      %698 = vmatpush1.bf16.msra.mxu0 %v595
      %699 = vmatprep.subr.bf16.mxu0 0
      %700 = vmatpush1.bf16.msra.mxu0 %v594
      %701 = vmatprep.subr.bf16.mxu0 0
      %702 = vmatpush1.bf16.msra.mxu0 %v593
      %703 = vmatprep.subr.bf16.mxu0 0
      %704 = vmatpush1.bf16.msra.mxu0 %v592
      %705 = vmatprep.subr.bf16.mxu0 0
      %706 = vmatpush2.bf16.msra.mxu0 %v607
      %707 = vmatprep.subr.bf16.mxu0 0
      %708 = vmatpush2.bf16.msra.mxu0 %v606
      %709 = vmatprep.subr.bf16.mxu0 0
      %710 = vmatpush2.bf16.msra.mxu0 %v605
      %711 = vmatprep.subr.bf16.mxu0 0
      %712 = vmatpush2.bf16.msra.mxu0 %v604
      %713 = vmatprep.subr.bf16.mxu0 0
      %714 = vmatpush2.bf16.msra.mxu0 %v603
      %715 = vmatprep.subr.bf16.mxu0 0
      %716 = vmatpush2.bf16.msra.mxu0 %v602
      %717 = vmatprep.subr.bf16.mxu0 0
      %718 = vmatpush2.bf16.msra.mxu0 %v601
      %719 = vmatprep.subr.bf16.mxu0 0
      %720 = vmatpush2.bf16.msra.mxu0 %v600
      %721 = vmatprep.mubr.bf16.mxu0 %v435
      %722 = vmatmul.mubr.bf16.gmra.mxu0 %v434
      %v723 = vpop.f32.mrf.mxu0
      %v724 = vadd.f32 %v675, %v723
      %v725 = vpop.f32.mrf.mxu0
      %v726 = vpop.f32.mrf.mxu0
      %v727 = vadd.f32 %v678, %v726
      %v728 = vpop.f32.mrf.mxu0
      %729 = vmatprep.mubr.bf16.mxu0 %v439
      %730 = vmatmul.mubr.bf16.gmra.mxu0 %v438
      %v731 = vpop.f32.mrf.mxu0
      %v732 = vadd.f32 %v683, %v731
      %v733 = vpop.f32.mrf.mxu0
      %v734 = vpop.f32.mrf.mxu0
      %v735 = vadd.f32 %v686, %v734
      %v736 = vpop.f32.mrf.mxu0
      %737 = vdwg.mxu0
      %v738 = vadd.f32 %v332, %v724
      %v739 = vadd.f32 %v333, %v727
      %v740 = vadd.f32 %v334, %v732
      %v741 = vadd.f32 %v335, %v735
      %742 = vst [vmem:[#allocation2] sm:$0xff] %v738
      %743 = vst [vmem:[#allocation2 + $0x8] sm:$0xff] %v739
      %744 = vst [vmem:[#allocation2 + $0x10] sm:$0xff] %v740
      %745 = vst [vmem:[#allocation2 + $0x18] sm:$0xff] %v741
      // Predicated region
      $region37: #{generator_forward.18} parent=31 // pred_check
        %p746 = pneg %p324
      $region38: #{generator_forward.18} parent=31 // pred_check_branch
        %748 = sbr.rel (%p746) target = $region40
      $region39: #{generator_forward.18} parent=31 // pred_region
        %v749 = vld [vmem:[#allocation2] sm:$0xff]
        %v750 = vld [vmem:[#allocation2 + $0x8] sm:$0xff]
        %v751 = vld [vmem:[#allocation2 + $0x10] sm:$0xff]
        %v752 = vld [vmem:[#allocation2 + $0x18] sm:$0xff]
        %v753 = vld [vmem:[%s309] sm:$0x1]
        %v755 = vlaneseq
        %v756 = vshrl.u32 %v755, 7
        %v757 = vsub.s32 0, %v756
        %v758 = vrot.slane %v753, %v757
        %v760 = vadd.f32 %v749, %v758
        %v761 = vadd.f32 %v750, %v758
        %v762 = vadd.f32 %v751, %v758
        %v763 = vadd.f32 %v752, %v758
        %v764 = vmax.f32 %v760, 0.0
        %v765 = vmax.f32 %v761, 0.0
        %v766 = vmax.f32 %v762, 0.0
        %v767 = vmax.f32 %v763, 0.0
        %768 = vst [vmem:[%s321] sm:$0xff] %v764
        %769 = vst [vmem:[%s321 + $0x8] sm:$0xff] %v765
        %770 = vst [vmem:[%s321 + $0x10] sm:$0xff] %v766
        %771 = vst [vmem:[%s321 + $0x18] sm:$0xff] %v767
      $region40: #{generator_forward.18} parent=31 // pred_fallthru
        _
      %s772 = smul.u32 4, %s21
      %p773 = scmp.lt.s32.totalorder %s20, 3
      %s774 = scalar_select %p773, %s20, 3
      %p775 = scmp.lt.s32.totalorder %s772, 3
      %s776 = scalar_select %p775, %s772, 3
      %p777 = scmp.lt.s32.totalorder %s22, 0
      %s778 = scalar_select %p777, %s22, 0
      %s779 = sadd.s32 %s778, %s776
      %s780 = smul.addr %s774, 4
      %s781 = sadd.s32 %s779, %s780
      %s782 = smul.addr %s781, 8
      %s783 = scalar_lea.vmem %s3, %s782
      // Predicated region
      $region41: #{generator_forward.18} parent=31 // pred_check
        %p784 = pneg %p150
      $region42: #{generator_forward.18} parent=31 // pred_check_branch
        %786 = sbr.rel (%p784) target = $region44
      $region43: #{generator_forward.18} parent=31 // pred_region
        %s787 = smul.u32 4, %s21
      $region44: #{generator_forward.18} parent=31 // pred_fallthru
        _
    $region32: #{generator_forward.18} parent=5 // pred_fallthru
      _
    %p788 = scmp.le.s32.totalorder 2, %s9
    // Predicated region
    $region45: #{generator_forward.18} parent=5 // pred_check
      %p789 = pneg %p788
    $region46: #{generator_forward.18} parent=5 // pred_check_branch
      %791 = sbr.rel (%p789) target = $region48
    $region47: #{generator_forward.18} parent=5 // pred_region
      %s792 = ssub.s32 %s9, 2
      // Predicated region
      $region49: #{generator_forward.18} parent=47 // pred_check
        %p793 = pneg %p156
      $region50: #{generator_forward.18} parent=47 // pred_check_branch
        %795 = sbr.rel (%p793) target = $region52
      $region51: #{generator_forward.18} parent=47 // pred_region
        %s796 = smul.u32 4, %s25
        %p797 = scmp.lt.s32.totalorder %s24, 3
        %s798 = scalar_select %p797, %s24, 3
        %p799 = scmp.lt.s32.totalorder %s796, 3
        %s800 = scalar_select %p799, %s796, 3
        %p801 = scmp.lt.s32.totalorder %s26, 0
        %s802 = scalar_select %p801, %s26, 0
        %s803 = sadd.s32 %s802, %s800
        %s804 = smul.addr %s798, 4
        %s805 = sadd.s32 %s803, %s804
        %s806 = smul.addr %s805, 8
        %s807 = scalar_lea.vmem %s3, %s806
      $region52: #{generator_forward.18} parent=47 // pred_fallthru
        _
    $region48: #{generator_forward.18} parent=5 // pred_fallthru
      _
  $region6: #{generator_forward.18} parent=0 // loop_footer
    %s13 = sadd.s32 1, %s9
  $region7: #{generator_forward.18} parent=0 // loop_footer_branch
    %8 = sbr.rel target = $region3
  $region8: #{generator_forward.18} parent=0 // loop_exit
    _

// kernel: generator_forward.19
$region0: #{generator_forward.19}
  #allocation0 [shape = 'u32[]', space=smem, size = 0x4, offset = 0x4, fixed_abs, tag = 'smem constant byte address 0x4 - core index']
  #allocation1 [shape = 'u32[144,128]{1,0:T(1,128)}', space=vmem, size = 0x12000, scoped, tag = 'internal scratch']
  #allocation2 [shape = 'f32[128,128]{1,0:T(8,128)}', space=vmem, size = 0x10000, scoped, tag = 'scratch operand']
  %s0 = inlined_call_operand.vmem [shape: bf16[4,128,256], index: 0, kind: input, shape index: {}]
  %s1 = inlined_call_operand.vmem [shape: bf16[4,256,128], index: 1, kind: input, shape index: {}]
  %s2 = inlined_call_operand.vmem [shape: f32[4,1,128], index: 2, kind: input, shape index: {}]
  %s3 = inlined_call_operand.vmem [shape: f32[4,128,128], index: 3, kind: output, shape index: {}]
  %s4 = sld [smem:[#allocation0]]
  $region53: #{generator_forward.19} parent=0
    _
  %s6 = ssub.s32 1, %s4
  %s7 = scalar_select 0, %s6, %s4
  loop: start=0, step=1, limit=6
  $region2: #{generator_forward.19} parent=0 // loop_pre_header
    _
  $region3: #{generator_forward.19} parent=0 // loop_header
    %s9 = sphi 0, %s13
    %p10 = scmp.ge.s32.totalorder %s9, 6
    %s16 = sphi 0, %s42
    %s17 = sphi 0, %s38
    %s18 = sphi 0, %s34
    %s19 = sphi 0, %s30
    %s20 = sphi 0, %s16
    %s21 = sphi 0, %s17
    %s22 = sphi 0, %s18
    %s23 = sphi 0, %s19
    %s24 = sphi 0, %s20
    %s25 = sphi 0, %s21
    %s26 = sphi 0, %s22
    %s27 = sphi 0, %s23
    %s49 = sphi 0, %s51
    %s52 = sphi 0, %s49
    %s53 = sphi 0, %s52
    %s69 = sphi 0, %s53
    %s79 = sphi 0, %s81
    %s82 = sphi 0, %s79
    %s83 = sphi 0, %s82
    %s99 = sphi 0, %s83
    %s107 = sphi 0, %s109
    %s110 = sphi 0, %s107
    %s111 = sphi 0, %s110
    %s127 = sphi 0, %s111
    %s137 = sphi 0, %s139
    %s140 = sphi 0, %s137
    %s141 = sphi 0, %s140
    %s157 = sphi 0, %s141
  $region4: #{generator_forward.19} parent=0 // loop_header_branch
    %12 = sbr.rel (%p10) target = $region8
  $region5: #{generator_forward.19} parent=0 // loop_body
    %s14 = ssub.s32 %s9, 1
    %s15 = ssub.s32 %s9, 2
    %s28 = sadd.s32 1, %s19
    %p29 = scmp.ge.s32.totalorder %s28, 1
    %s30 = scalar_select %p29, 0, %s28
    %s31 = sadd.s32 1, %s18
    %s32 = scalar_select %p29, %s31, %s18
    %p33 = scmp.ge.s32.totalorder %s32, 1
    %s34 = scalar_select %p33, 0, %s32
    %s35 = sadd.s32 1, %s17
    %s36 = scalar_select %p33, %s35, %s17
    %p37 = scmp.ge.s32.totalorder %s36, 1
    %s38 = scalar_select %p37, 0, %s36
    %s39 = sadd.s32 1, %s16
    %s40 = scalar_select %p37, %s39, %s16
    %p41 = scmp.ge.s32.totalorder %s40, 4
    %s42 = scalar_select %p41, 0, %s40
    %s43 = ssub.s32 %s16, %s42
    %s44 = ssub.s32 %s17, %s38
    %s45 = sor.u32 %s43, %s44
    %s46 = ssub.s32 %s19, %s30
    %s47 = sor.u32 %s45, %s46
    %p48 = scmp.eq.s32.totalorder %s47, 0
    %s50 = sadd.s32 %s49, 1
    %s51 = scalar_select %p48, %s49, %s50
    %p54 = pneg %p48
    %p55 = scmp.eq.s32.totalorder %s9, 3
    %p56 = por %p54, %p55
    %p57 = scmp.ne.s32.totalorder %s49, %s52
    %p58 = scmp.eq.s32.totalorder %s9, 0
    %p59 = por %p57, %p58
    %p60 = scmp.ne.s32.totalorder %s49, %s52
    %p61 = scmp.eq.s32.totalorder %s14, 3
    %p62 = por %p60, %p61
    %p63 = scmp.ne.s32.totalorder %s52, %s53
    %p64 = scmp.eq.s32.totalorder %s14, 0
    %p65 = por %p63, %p64
    %p66 = scmp.ne.s32.totalorder %s52, %s53
    %p67 = scmp.eq.s32.totalorder %s15, 3
    %p68 = por %p66, %p67
    %p70 = scmp.ne.s32.totalorder %s53, %s69
    %p71 = scmp.eq.s32.totalorder %s15, 0
    %p72 = por %p70, %p71
    %s73 = ssub.s32 %s16, %s42
    %s74 = ssub.s32 %s19, %s30
    %s75 = sor.u32 %s73, %s74
    %s76 = ssub.s32 %s18, %s34
    %s77 = sor.u32 %s75, %s76
    %p78 = scmp.eq.s32.totalorder %s77, 0
    %s80 = sadd.s32 %s79, 1
    %s81 = scalar_select %p78, %s79, %s80
    %p84 = pneg %p78
    %p85 = scmp.eq.s32.totalorder %s9, 3
    %p86 = por %p84, %p85
    %p87 = scmp.ne.s32.totalorder %s79, %s82
    %p88 = scmp.eq.s32.totalorder %s9, 0
    %p89 = por %p87, %p88
    %p90 = scmp.ne.s32.totalorder %s79, %s82
    %p91 = scmp.eq.s32.totalorder %s14, 3
    %p92 = por %p90, %p91
    %p93 = scmp.ne.s32.totalorder %s82, %s83
    %p94 = scmp.eq.s32.totalorder %s14, 0
    %p95 = por %p93, %p94
    %p96 = scmp.ne.s32.totalorder %s82, %s83
    %p97 = scmp.eq.s32.totalorder %s15, 3
    %p98 = por %p96, %p97
    %p100 = scmp.ne.s32.totalorder %s83, %s99
    %p101 = scmp.eq.s32.totalorder %s15, 0
    %p102 = por %p100, %p101
    %s103 = ssub.s32 %s16, %s42
    %s104 = ssub.s32 %s18, %s34
    %s105 = sor.u32 %s103, %s104
    %p106 = scmp.eq.s32.totalorder %s105, 0
    %s108 = sadd.s32 %s107, 1
    %s109 = scalar_select %p106, %s107, %s108
    %p112 = pneg %p106
    %p113 = scmp.eq.s32.totalorder %s9, 3
    %p114 = por %p112, %p113
    %p115 = scmp.ne.s32.totalorder %s107, %s110
    %p116 = scmp.eq.s32.totalorder %s9, 0
    %p117 = por %p115, %p116
    %p118 = scmp.ne.s32.totalorder %s107, %s110
    %p119 = scmp.eq.s32.totalorder %s14, 3
    %p120 = por %p118, %p119
    %p121 = scmp.ne.s32.totalorder %s110, %s111
    %p122 = scmp.eq.s32.totalorder %s14, 0
    %p123 = por %p121, %p122
    %p124 = scmp.ne.s32.totalorder %s110, %s111
    %p125 = scmp.eq.s32.totalorder %s15, 3
    %p126 = por %p124, %p125
    %p128 = scmp.ne.s32.totalorder %s111, %s127
    %p129 = scmp.eq.s32.totalorder %s15, 0
    %p130 = por %p128, %p129
    %s131 = ssub.s32 %s16, %s42
    %s132 = ssub.s32 %s17, %s38
    %s133 = sor.u32 %s131, %s132
    %s134 = ssub.s32 %s18, %s34
    %s135 = sor.u32 %s133, %s134
    %p136 = scmp.eq.s32.totalorder %s135, 0
    %s138 = sadd.s32 %s137, 1
    %s139 = scalar_select %p136, %s137, %s138
    %p142 = pneg %p136
    %p143 = scmp.eq.s32.totalorder %s9, 3
    %p144 = por %p142, %p143
    %p145 = scmp.ne.s32.totalorder %s137, %s140
    %p146 = scmp.eq.s32.totalorder %s9, 0
    %p147 = por %p145, %p146
    %p148 = scmp.ne.s32.totalorder %s137, %s140
    %p149 = scmp.eq.s32.totalorder %s14, 3
    %p150 = por %p148, %p149
    %p151 = scmp.ne.s32.totalorder %s140, %s141
    %p152 = scmp.eq.s32.totalorder %s14, 0
    %p153 = por %p151, %p152
    %p154 = scmp.ne.s32.totalorder %s140, %s141
    %p155 = scmp.eq.s32.totalorder %s15, 3
    %p156 = por %p154, %p155
    %p158 = scmp.ne.s32.totalorder %s141, %s157
    %p159 = scmp.eq.s32.totalorder %s15, 0
    %p160 = por %p158, %p159
    %p161 = scmp.le.s32.totalorder 1, %s9
    %p162 = scmp.lt.s32.totalorder %s9, 5
    %p163 = pnand %p161, %p162
    %p164 = pneg %p163
    // Predicated region
    $region9: #{generator_forward.19} parent=5 // pred_check
      _
    $region10: #{generator_forward.19} parent=5 // pred_check_branch
      %166 = sbr.rel (%p163) target = $region12
    $region11: #{generator_forward.19} parent=5 // pred_region
      %s167 = ssub.s32 %s9, 1
    $region12: #{generator_forward.19} parent=5 // pred_fallthru
      _
    %p168 = scmp.lt.s32.totalorder %s9, 4
    // Predicated region
    $region13: #{generator_forward.19} parent=5 // pred_check
      %p169 = pneg %p168
    $region14: #{generator_forward.19} parent=5 // pred_check_branch
      %171 = sbr.rel (%p169) target = $region16
    $region15: #{generator_forward.19} parent=5 // pred_region
      // Predicated region
      $region17: #{generator_forward.19} parent=15 // pred_check
        %p172 = pneg %p59
      $region18: #{generator_forward.19} parent=15 // pred_check_branch
        %174 = sbr.rel (%p172) target = $region20
      $region19: #{generator_forward.19} parent=15 // pred_region
        %s175 = smul.u32 16, %s17
        %s176 = smul.u32 2, %s19
        %p177 = scmp.lt.s32.totalorder %s16, 3
        %s178 = scalar_select %p177, %s16, 3
        %p179 = scmp.lt.s32.totalorder %s175, 15
        %s180 = scalar_select %p179, %s175, 15
        %p181 = scmp.lt.s32.totalorder %s176, 1
        %s182 = scalar_select %p181, %s176, 1
        %s183 = smul.addr %s180, 2
        %s184 = sadd.s32 %s182, %s183
        %s185 = smul.addr %s178, 32
        %s186 = sadd.s32 %s184, %s185
        %s187 = smul.addr %s186, 4
        %s188 = scalar_lea.vmem %s0, %s187
        %s189 = smul.u32 16, %s17
        %s190 = smul.u32 2, %s19
      $region20: #{generator_forward.19} parent=15 // pred_fallthru
        _
      // Predicated region
      $region21: #{generator_forward.19} parent=15 // pred_check
        %p191 = pneg %p89
      $region22: #{generator_forward.19} parent=15 // pred_check_branch
        %193 = sbr.rel (%p191) target = $region24
      $region23: #{generator_forward.19} parent=15 // pred_region
        %s194 = smul.u32 32, %s19
        %p195 = scmp.lt.s32.totalorder %s16, 3
        %s196 = scalar_select %p195, %s16, 3
        %p197 = scmp.lt.s32.totalorder %s194, 31
        %s198 = scalar_select %p197, %s194, 31
        %p199 = scmp.lt.s32.totalorder %s18, 0
        %s200 = scalar_select %p199, %s18, 0
        %s201 = sadd.s32 %s200, %s198
        %s202 = smul.addr %s196, 32
        %s203 = sadd.s32 %s201, %s202
        %s204 = smul.addr %s203, 4
        %s205 = scalar_lea.vmem %s1, %s204
        %s206 = smul.u32 32, %s19
      $region24: #{generator_forward.19} parent=15 // pred_fallthru
        _
      // Predicated region
      $region25: #{generator_forward.19} parent=15 // pred_check
        %p207 = pneg %p117
      $region26: #{generator_forward.19} parent=15 // pred_check_branch
        %209 = sbr.rel (%p207) target = $region28
      $region27: #{generator_forward.19} parent=15 // pred_region
        %p210 = scmp.lt.s32.totalorder %s16, 3
        %s211 = scalar_select %p210, %s16, 3
        %p212 = scmp.lt.s32.totalorder %s18, 0
        %s213 = scalar_select %p212, %s18, 0
        %s214 = sadd.s32 %s213, %s211
        %s215 = scalar_lea.vmem %s2, %s214
      $region28: #{generator_forward.19} parent=15 // pred_fallthru
        _
    $region16: #{generator_forward.19} parent=5 // pred_fallthru
      _
    %p216 = scmp.le.s32.totalorder 1, %s9
    %p217 = scmp.lt.s32.totalorder %s9, 5
    %p218 = pnand %p216, %p217
    %p219 = pneg %p218
    // Predicated region
    $region29: #{generator_forward.19} parent=5 // pred_check
      _
    $region30: #{generator_forward.19} parent=5 // pred_check_branch
      %221 = sbr.rel (%p218) target = $region32
    $region31: #{generator_forward.19} parent=5 // pred_region
      %s222 = ssub.s32 %s9, 1
      %s223 = smul.u32 16, %s21
      %s224 = smul.u32 2, %s23
      %p225 = scmp.lt.s32.totalorder %s20, 3
      %s226 = scalar_select %p225, %s20, 3
      %p227 = scmp.lt.s32.totalorder %s223, 15
      %s228 = scalar_select %p227, %s223, 15
      %p229 = scmp.lt.s32.totalorder %s224, 1
      %s230 = scalar_select %p229, %s224, 1
      %s231 = smul.addr %s228, 2
      %s232 = sadd.s32 %s230, %s231
      %s233 = smul.addr %s226, 32
      %s234 = sadd.s32 %s232, %s233
      %s235 = smul.addr %s234, 4
      %s236 = scalar_lea.vmem %s0, %s235
      %p237 = pneg %p65
      %p238 = pneg %p62
      %s239 = smul.u32 32, %s23
      %p240 = scmp.lt.s32.totalorder %s20, 3
      %s241 = scalar_select %p240, %s20, 3
      %p242 = scmp.lt.s32.totalorder %s239, 31
      %s243 = scalar_select %p242, %s239, 31
      %p244 = scmp.lt.s32.totalorder %s22, 0
      %s245 = scalar_select %p244, %s22, 0
      %s246 = sadd.s32 %s245, %s243
      %s247 = smul.addr %s241, 32
      %s248 = sadd.s32 %s246, %s247
      %s249 = smul.addr %s248, 4
      %s250 = scalar_lea.vmem %s1, %s249
      %p251 = pneg %p95
      %p252 = pneg %p92
      %p253 = scmp.lt.s32.totalorder %s20, 3
      %s254 = scalar_select %p253, %s20, 3
      %p255 = scmp.lt.s32.totalorder %s22, 0
      %s256 = scalar_select %p255, %s22, 0
      %s257 = sadd.s32 %s256, %s254
      %s258 = scalar_lea.vmem %s2, %s257
      %p259 = pneg %p123
      %p260 = pneg %p120
      %p261 = pneg %p153
      %p262 = pneg %p150
      %s263 = smul.u32 16, %s21
      %p264 = scmp.lt.s32.totalorder %s20, 3
      %s265 = scalar_select %p264, %s20, 3
      %p266 = scmp.lt.s32.totalorder %s263, 15
      %s267 = scalar_select %p266, %s263, 15
      %p268 = scmp.lt.s32.totalorder %s22, 0
      %s269 = scalar_select %p268, %s22, 0
      %s270 = sadd.s32 %s269, %s267
      %s271 = smul.addr %s265, 16
      %s272 = sadd.s32 %s270, %s271
      %s273 = smul.addr %s272, 8
      %s274 = scalar_lea.vmem %s3, %s273
      %s275 = smul.u32 16, %s21
      %s276 = smul.u32 2, %s23
      %p277 = scmp.lt.s32.totalorder %s20, 3
      %s278 = scalar_select %p277, %s20, 3
      %p279 = scmp.lt.s32.totalorder %s275, 15
      %s280 = scalar_select %p279, %s275, 15
      %p281 = scmp.lt.s32.totalorder %s276, 1
      %s282 = scalar_select %p281, %s276, 1
      %s283 = smul.addr %s280, 2
      %s284 = sadd.s32 %s282, %s283
      %s285 = smul.addr %s278, 32
      %s286 = sadd.s32 %s284, %s285
      %s287 = smul.addr %s286, 4
      %s288 = scalar_lea.vmem %s0, %s287
      %s289 = smul.u32 16, %s21
      %s290 = smul.u32 2, %s23
      %s291 = smul.u32 32, %s23
      %p292 = scmp.lt.s32.totalorder %s20, 3
      %s293 = scalar_select %p292, %s20, 3
      %p294 = scmp.lt.s32.totalorder %s291, 31
      %s295 = scalar_select %p294, %s291, 31
      %p296 = scmp.lt.s32.totalorder %s22, 0
      %s297 = scalar_select %p296, %s22, 0
      %s298 = sadd.s32 %s297, %s295
      %s299 = smul.addr %s293, 32
      %s300 = sadd.s32 %s298, %s299
      %s301 = smul.addr %s300, 4
      %s302 = scalar_lea.vmem %s1, %s301
      %s303 = smul.u32 32, %s23
      %p304 = scmp.lt.s32.totalorder %s20, 3
      %s305 = scalar_select %p304, %s20, 3
      %p306 = scmp.lt.s32.totalorder %s22, 0
      %s307 = scalar_select %p306, %s22, 0
      %s308 = sadd.s32 %s307, %s305
      %s309 = scalar_lea.vmem %s2, %s308
      %s310 = smul.u32 16, %s21
      %p311 = scmp.lt.s32.totalorder %s20, 3
      %s312 = scalar_select %p311, %s20, 3
      %p313 = scmp.lt.s32.totalorder %s310, 15
      %s314 = scalar_select %p313, %s310, 15
      %p315 = scmp.lt.s32.totalorder %s22, 0
      %s316 = scalar_select %p315, %s22, 0
      %s317 = sadd.s32 %s316, %s314
      %s318 = smul.addr %s312, 16
      %s319 = sadd.s32 %s317, %s318
      %s320 = smul.addr %s319, 8
      %s321 = scalar_lea.vmem %s3, %s320
      %s322 = smul.u32 16, %s21
      %p324 = scmp.eq.s32.totalorder %s23, 0
      // Predicated region
      $region33: #{generator_forward.19} parent=31 // pred_check
        %p325 = pneg %p324
      $region34: #{generator_forward.19} parent=31 // pred_check_branch
        %327 = sbr.rel (%p325) target = $region36
      $region35: #{generator_forward.19} parent=31 // pred_region
        %328 = vst [vmem:[#allocation2] sm:$0xff] 0.0
        %329 = vst [vmem:[#allocation2 + $0x8] sm:$0xff] 0.0
        %330 = vst [vmem:[#allocation2 + $0x10] sm:$0xff] 0.0
        %331 = vst [vmem:[#allocation2 + $0x18] sm:$0xff] 0.0
        %332 = vst [vmem:[#allocation2 + $0x20] sm:$0xff] 0.0
        %333 = vst [vmem:[#allocation2 + $0x28] sm:$0xff] 0.0
        %334 = vst [vmem:[#allocation2 + $0x30] sm:$0xff] 0.0
        %335 = vst [vmem:[#allocation2 + $0x38] sm:$0xff] 0.0
        %336 = vst [vmem:[#allocation2 + $0x40] sm:$0xff] 0.0
        %337 = vst [vmem:[#allocation2 + $0x48] sm:$0xff] 0.0
        %338 = vst [vmem:[#allocation2 + $0x50] sm:$0xff] 0.0
        %339 = vst [vmem:[#allocation2 + $0x58] sm:$0xff] 0.0
        %340 = vst [vmem:[#allocation2 + $0x60] sm:$0xff] 0.0
        %341 = vst [vmem:[#allocation2 + $0x68] sm:$0xff] 0.0
        %342 = vst [vmem:[#allocation2 + $0x70] sm:$0xff] 0.0
        %343 = vst [vmem:[#allocation2 + $0x78] sm:$0xff] 0.0
      $region36: #{generator_forward.19} parent=31 // pred_fallthru
        _
      %v344 = vld [vmem:[#allocation2] sm:$0xff]
      %v345 = vld [vmem:[#allocation2 + $0x8] sm:$0xff]
      %v346 = vld [vmem:[#allocation2 + $0x10] sm:$0xff]
      %v347 = vld [vmem:[#allocation2 + $0x18] sm:$0xff]
      %v348 = vld [vmem:[#allocation2 + $0x20] sm:$0xff]
      %v349 = vld [vmem:[#allocation2 + $0x28] sm:$0xff]
      %v350 = vld [vmem:[#allocation2 + $0x30] sm:$0xff]
      %v351 = vld [vmem:[#allocation2 + $0x38] sm:$0xff]
      %v352 = vld [vmem:[#allocation2 + $0x40] sm:$0xff]
      %v353 = vld [vmem:[#allocation2 + $0x48] sm:$0xff]
      %v354 = vld [vmem:[#allocation2 + $0x50] sm:$0xff]
      %v355 = vld [vmem:[#allocation2 + $0x58] sm:$0xff]
      %v356 = vld [vmem:[#allocation2 + $0x60] sm:$0xff]
      %v357 = vld [vmem:[#allocation2 + $0x68] sm:$0xff]
      %v358 = vld [vmem:[#allocation2 + $0x70] sm:$0xff]
      %v359 = vld [vmem:[#allocation2 + $0x78] sm:$0xff]
      %v360 = vld [vmem:[%s288] sm:$0xff]
      %v361 = vld [vmem:[%s288 + $0x8] sm:$0xff]
      %v362 = vld [vmem:[%s288 + $0x10] sm:$0xff]
      %v363 = vld [vmem:[%s288 + $0x18] sm:$0xff]
      %v364 = vld [vmem:[%s288 + $0x20] sm:$0xff]
      %v365 = vld [vmem:[%s288 + $0x28] sm:$0xff]
      %v366 = vld [vmem:[%s288 + $0x30] sm:$0xff]
      %v367 = vld [vmem:[%s288 + $0x38] sm:$0xff]
      %v368 = vld [vmem:[%s288 + $0x40] sm:$0xff]
      %v369 = vld [vmem:[%s288 + $0x48] sm:$0xff]
      %v370 = vld [vmem:[%s288 + $0x50] sm:$0xff]
      %v371 = vld [vmem:[%s288 + $0x58] sm:$0xff]
      %v372 = vld [vmem:[%s288 + $0x60] sm:$0xff]
      %v373 = vld [vmem:[%s288 + $0x68] sm:$0xff]
      %v374 = vld [vmem:[%s288 + $0x70] sm:$0xff]
      %v375 = vld [vmem:[%s288 + $0x78] sm:$0xff]
      %v376 = vld [vmem:[%s302] sm:$0xf]
      %v377 = vld [vmem:[%s302 + $0x4] sm:$0xf]
      %v378 = vld [vmem:[%s302 + $0x8] sm:$0xf]
      %v379 = vld [vmem:[%s302 + $0xc] sm:$0xf]
      %v380 = vld [vmem:[%s302 + $0x10] sm:$0xf]
      %v381 = vld [vmem:[%s302 + $0x14] sm:$0xf]
      %v382 = vld [vmem:[%s302 + $0x18] sm:$0xf]
      %v383 = vld [vmem:[%s302 + $0x1c] sm:$0xf]
      %v384 = vld [vmem:[%s302 + $0x20] sm:$0xf]
      %v385 = vld [vmem:[%s302 + $0x24] sm:$0xf]
      %v386 = vld [vmem:[%s302 + $0x28] sm:$0xf]
      %v387 = vld [vmem:[%s302 + $0x2c] sm:$0xf]
      %v388 = vld [vmem:[%s302 + $0x30] sm:$0xf]
      %v389 = vld [vmem:[%s302 + $0x34] sm:$0xf]
      %v390 = vld [vmem:[%s302 + $0x38] sm:$0xf]
      %v391 = vld [vmem:[%s302 + $0x3c] sm:$0xf]
      %v392 = vld [vmem:[%s302 + $0x40] sm:$0xf]
      %v393 = vld [vmem:[%s302 + $0x44] sm:$0xf]
      %v394 = vld [vmem:[%s302 + $0x48] sm:$0xf]
      %v395 = vld [vmem:[%s302 + $0x4c] sm:$0xf]
      %v396 = vld [vmem:[%s302 + $0x50] sm:$0xf]
      %v397 = vld [vmem:[%s302 + $0x54] sm:$0xf]
      %v398 = vld [vmem:[%s302 + $0x58] sm:$0xf]
      %v399 = vld [vmem:[%s302 + $0x5c] sm:$0xf]
      %v400 = vld [vmem:[%s302 + $0x60] sm:$0xf]
      %v401 = vld [vmem:[%s302 + $0x64] sm:$0xf]
      %v402 = vld [vmem:[%s302 + $0x68] sm:$0xf]
      %v403 = vld [vmem:[%s302 + $0x6c] sm:$0xf]
      %v404 = vld [vmem:[%s302 + $0x70] sm:$0xf]
      %v405 = vld [vmem:[%s302 + $0x74] sm:$0xf]
      %v406 = vld [vmem:[%s302 + $0x78] sm:$0xf]
      %v407 = vld [vmem:[%s302 + $0x7c] sm:$0xf]
      %v424 = vunpack.c.l.b16 %v360
      %v425 = vunpack.c.h.b16 %v360
      %v426 = vunpack.c.l.b16 %v361
      %v427 = vunpack.c.h.b16 %v361
      %v428 = vunpack.c.l.b16 %v362
      %v429 = vunpack.c.h.b16 %v362
      %v430 = vunpack.c.l.b16 %v363
      %v431 = vunpack.c.h.b16 %v363
      %v432 = vunpack.c.l.b16 %v364
      %v433 = vunpack.c.h.b16 %v364
      %v434 = vunpack.c.l.b16 %v365
      %v435 = vunpack.c.h.b16 %v365
      %v436 = vunpack.c.l.b16 %v366
      %v437 = vunpack.c.h.b16 %v366
      %v438 = vunpack.c.l.b16 %v367
      %v439 = vunpack.c.h.b16 %v367
      %v440 = vunpack.c.l.b16 %v368
      %v441 = vunpack.c.h.b16 %v368
      %v442 = vunpack.c.l.b16 %v369
      %v443 = vunpack.c.h.b16 %v369
      %v444 = vunpack.c.l.b16 %v370
      %v445 = vunpack.c.h.b16 %v370
      %v446 = vunpack.c.l.b16 %v371
      %v447 = vunpack.c.h.b16 %v371
      %v448 = vunpack.c.l.b16 %v372
      %v449 = vunpack.c.h.b16 %v372
      %v450 = vunpack.c.l.b16 %v373
      %v451 = vunpack.c.h.b16 %v373
      %v452 = vunpack.c.l.b16 %v374
      %v453 = vunpack.c.h.b16 %v374
      %v454 = vunpack.c.l.b16 %v375
      %v455 = vunpack.c.h.b16 %v375
      %v456 = vpack.c.b16 %v426, %v424
      %v457 = vpack.c.b16 %v427, %v425
      %v458 = vpack.c.b16 %v430, %v428
      %v459 = vpack.c.b16 %v431, %v429
      %v460 = vpack.c.b16 %v434, %v432
      %v461 = vpack.c.b16 %v435, %v433
      %v462 = vpack.c.b16 %v438, %v436
      %v463 = vpack.c.b16 %v439, %v437
      %v464 = vpack.c.b16 %v442, %v440
      %v465 = vpack.c.b16 %v443, %v441
      %v466 = vpack.c.b16 %v446, %v444
      %v467 = vpack.c.b16 %v447, %v445
      %v468 = vpack.c.b16 %v450, %v448
      %v469 = vpack.c.b16 %v451, %v449
      %v470 = vpack.c.b16 %v454, %v452
      %v471 = vpack.c.b16 %v455, %v453
      %v520 = vunpack.c.l.b16 %v376
      %v521 = vunpack.c.l.b16 %v377
      %v522 = vunpack.c.l.b16 %v378
      %v523 = vunpack.c.l.b16 %v379
      %v524 = vunpack.c.l.b16 %v380
      %v525 = vunpack.c.l.b16 %v381
      %v526 = vunpack.c.l.b16 %v382
      %v527 = vunpack.c.l.b16 %v383
      %v528 = vunpack.c.l.b16 %v384
      %v529 = vunpack.c.l.b16 %v385
      %v530 = vunpack.c.l.b16 %v386
      %v531 = vunpack.c.l.b16 %v387
      %v532 = vunpack.c.l.b16 %v388
      %v533 = vunpack.c.l.b16 %v389
      %v534 = vunpack.c.l.b16 %v390
      %v535 = vunpack.c.l.b16 %v391
      %v536 = vunpack.c.l.b16 %v392
      %v537 = vunpack.c.l.b16 %v393
      %v538 = vunpack.c.l.b16 %v394
      %v539 = vunpack.c.l.b16 %v395
      %v540 = vunpack.c.l.b16 %v396
      %v541 = vunpack.c.l.b16 %v397
      %v542 = vunpack.c.l.b16 %v398
      %v543 = vunpack.c.l.b16 %v399
      %v544 = vunpack.c.l.b16 %v400
      %v545 = vunpack.c.l.b16 %v401
      %v546 = vunpack.c.l.b16 %v402
      %v547 = vunpack.c.l.b16 %v403
      %v548 = vunpack.c.l.b16 %v404
      %v549 = vunpack.c.l.b16 %v405
      %v550 = vunpack.c.l.b16 %v406
      %v551 = vunpack.c.l.b16 %v407
      %v552 = vpack.c.b16 %v521, %v520
      %v553 = vpack.c.b16 %v523, %v522
      %v554 = vpack.c.b16 %v525, %v524
      %v555 = vpack.c.b16 %v527, %v526
      %v556 = vpack.c.b16 %v529, %v528
      %v557 = vpack.c.b16 %v531, %v530
      %v558 = vpack.c.b16 %v533, %v532
      %v559 = vpack.c.b16 %v535, %v534
      %v560 = vpack.c.b16 %v537, %v536
      %v561 = vpack.c.b16 %v539, %v538
      %v562 = vpack.c.b16 %v541, %v540
      %v563 = vpack.c.b16 %v543, %v542
      %v564 = vpack.c.b16 %v545, %v544
      %v565 = vpack.c.b16 %v547, %v546
      %v566 = vpack.c.b16 %v549, %v548
      %v567 = vpack.c.b16 %v551, %v550
      %584 = vmatprep.subr.bf16.mxu0 0
      %585 = vmatpush1.bf16.msra.mxu0 %v559
      %586 = vmatprep.subr.bf16.mxu0 0
      %587 = vmatpush1.bf16.msra.mxu0 %v558
      %588 = vmatprep.subr.bf16.mxu0 0
      %589 = vmatpush1.bf16.msra.mxu0 %v557
      %590 = vmatprep.subr.bf16.mxu0 0
      %591 = vmatpush1.bf16.msra.mxu0 %v556
      %592 = vmatprep.subr.bf16.mxu0 0
      %593 = vmatpush1.bf16.msra.mxu0 %v555
      %594 = vmatprep.subr.bf16.mxu0 0
      %595 = vmatpush1.bf16.msra.mxu0 %v554
      %596 = vmatprep.subr.bf16.mxu0 0
      %597 = vmatpush1.bf16.msra.mxu0 %v553
      %598 = vmatprep.subr.bf16.mxu0 0
      %599 = vmatpush1.bf16.msra.mxu0 %v552
      %600 = vmatprep.subr.bf16.mxu0 0
      %601 = vmatpush2.bf16.msra.mxu0 %v567
      %602 = vmatprep.subr.bf16.mxu0 0
      %603 = vmatpush2.bf16.msra.mxu0 %v566
      %604 = vmatprep.subr.bf16.mxu0 0
      %605 = vmatpush2.bf16.msra.mxu0 %v565
      %606 = vmatprep.subr.bf16.mxu0 0
      %607 = vmatpush2.bf16.msra.mxu0 %v564
      %608 = vmatprep.subr.bf16.mxu0 0
      %609 = vmatpush2.bf16.msra.mxu0 %v563
      %610 = vmatprep.subr.bf16.mxu0 0
      %611 = vmatpush2.bf16.msra.mxu0 %v562
      %612 = vmatprep.subr.bf16.mxu0 0
      %613 = vmatpush2.bf16.msra.mxu0 %v561
      %614 = vmatprep.subr.bf16.mxu0 0
      %615 = vmatpush2.bf16.msra.mxu0 %v560
      %616 = vmatprep.mubr.bf16.mxu0 %v457
      %617 = vmatmul.mubr.bf16.gmra.mxu0 %v456
      %v618 = vpop.f32.mrf.mxu0
      %v619 = vadd.f32 0.0, %v618
      %v620 = vpop.f32.mrf.mxu0
      %v621 = vpop.f32.mrf.mxu0
      %v622 = vadd.f32 0.0, %v621
      %v623 = vpop.f32.mrf.mxu0
      %624 = vmatprep.mubr.bf16.mxu0 %v459
      %625 = vmatmul.mubr.bf16.gmra.mxu0 %v458
      %v626 = vpop.f32.mrf.mxu0
      %v627 = vadd.f32 0.0, %v626
      %v628 = vpop.f32.mrf.mxu0
      %v629 = vpop.f32.mrf.mxu0
      %v630 = vadd.f32 0.0, %v629
      %v631 = vpop.f32.mrf.mxu0
      %632 = vmatprep.mubr.bf16.mxu0 %v461
      %633 = vmatmul.mubr.bf16.gmra.mxu0 %v460
      %v634 = vpop.f32.mrf.mxu0
      %v635 = vadd.f32 0.0, %v634
      %v636 = vpop.f32.mrf.mxu0
      %v637 = vpop.f32.mrf.mxu0
      %v638 = vadd.f32 0.0, %v637
      %v639 = vpop.f32.mrf.mxu0
      %640 = vmatprep.mubr.bf16.mxu0 %v463
      %641 = vmatmul.mubr.bf16.gmra.mxu0 %v462
      %v642 = vpop.f32.mrf.mxu0
      %v643 = vadd.f32 0.0, %v642
      %v644 = vpop.f32.mrf.mxu0
      %v645 = vpop.f32.mrf.mxu0
      %v646 = vadd.f32 0.0, %v645
      %v647 = vpop.f32.mrf.mxu0
      %648 = vmatprep.mubr.bf16.mxu0 %v465
      %649 = vmatmul.mubr.bf16.gmra.mxu0 %v464
      %v650 = vpop.f32.mrf.mxu0
      %v651 = vadd.f32 0.0, %v650
      %v652 = vpop.f32.mrf.mxu0
      %v653 = vpop.f32.mrf.mxu0
      %v654 = vadd.f32 0.0, %v653
      %v655 = vpop.f32.mrf.mxu0
      %656 = vmatprep.mubr.bf16.mxu0 %v467
      %657 = vmatmul.mubr.bf16.gmra.mxu0 %v466
      %v658 = vpop.f32.mrf.mxu0
      %v659 = vadd.f32 0.0, %v658
      %v660 = vpop.f32.mrf.mxu0
      %v661 = vpop.f32.mrf.mxu0
      %v662 = vadd.f32 0.0, %v661
      %v663 = vpop.f32.mrf.mxu0
      %664 = vmatprep.mubr.bf16.mxu0 %v469
      %665 = vmatmul.mubr.bf16.gmra.mxu0 %v468
      %v666 = vpop.f32.mrf.mxu0
      %v667 = vadd.f32 0.0, %v666
      %v668 = vpop.f32.mrf.mxu0
      %v669 = vpop.f32.mrf.mxu0
      %v670 = vadd.f32 0.0, %v669
      %v671 = vpop.f32.mrf.mxu0
      %672 = vmatprep.mubr.bf16.mxu0 %v471
      %673 = vmatmul.mubr.bf16.gmra.mxu0 %v470
      %v674 = vpop.f32.mrf.mxu0
      %v675 = vadd.f32 0.0, %v674
      %v676 = vpop.f32.mrf.mxu0
      %v677 = vpop.f32.mrf.mxu0
      %v678 = vadd.f32 0.0, %v677
      %v679 = vpop.f32.mrf.mxu0
      %680 = vdwg.mxu0
      %v681 = vadd.f32 %v344, %v619
      %v682 = vadd.f32 %v345, %v622
      %v683 = vadd.f32 %v346, %v627
      %v684 = vadd.f32 %v347, %v630
      %v685 = vadd.f32 %v348, %v635
      %v686 = vadd.f32 %v349, %v638
      %v687 = vadd.f32 %v350, %v643
      %v688 = vadd.f32 %v351, %v646
      %v689 = vadd.f32 %v352, %v651
      %v690 = vadd.f32 %v353, %v654
      %v691 = vadd.f32 %v354, %v659
      %v692 = vadd.f32 %v355, %v662
      %v693 = vadd.f32 %v356, %v667
      %v694 = vadd.f32 %v357, %v670
      %v695 = vadd.f32 %v358, %v675
      %v696 = vadd.f32 %v359, %v678
      %697 = vst [vmem:[#allocation2] sm:$0xff] %v681
      %698 = vst [vmem:[#allocation2 + $0x8] sm:$0xff] %v682
      %699 = vst [vmem:[#allocation2 + $0x10] sm:$0xff] %v683
      %700 = vst [vmem:[#allocation2 + $0x18] sm:$0xff] %v684
      %701 = vst [vmem:[#allocation2 + $0x20] sm:$0xff] %v685
      %702 = vst [vmem:[#allocation2 + $0x28] sm:$0xff] %v686
      %703 = vst [vmem:[#allocation2 + $0x30] sm:$0xff] %v687
      %704 = vst [vmem:[#allocation2 + $0x38] sm:$0xff] %v688
      %705 = vst [vmem:[#allocation2 + $0x40] sm:$0xff] %v689
      %706 = vst [vmem:[#allocation2 + $0x48] sm:$0xff] %v690
      %707 = vst [vmem:[#allocation2 + $0x50] sm:$0xff] %v691
      %708 = vst [vmem:[#allocation2 + $0x58] sm:$0xff] %v692
      %709 = vst [vmem:[#allocation2 + $0x60] sm:$0xff] %v693
      %710 = vst [vmem:[#allocation2 + $0x68] sm:$0xff] %v694
      %711 = vst [vmem:[#allocation2 + $0x70] sm:$0xff] %v695
      %712 = vst [vmem:[#allocation2 + $0x78] sm:$0xff] %v696
      // Predicated region
      $region37: #{generator_forward.19} parent=31 // pred_check
        %p713 = pneg %p324
      $region38: #{generator_forward.19} parent=31 // pred_check_branch
        %715 = sbr.rel (%p713) target = $region40
      $region39: #{generator_forward.19} parent=31 // pred_region
        %v716 = vld [vmem:[#allocation2] sm:$0xff]
        %v717 = vld [vmem:[#allocation2 + $0x8] sm:$0xff]
        %v718 = vld [vmem:[#allocation2 + $0x10] sm:$0xff]
        %v719 = vld [vmem:[#allocation2 + $0x18] sm:$0xff]
        %v720 = vld [vmem:[#allocation2 + $0x20] sm:$0xff]
        %v721 = vld [vmem:[#allocation2 + $0x28] sm:$0xff]
        %v722 = vld [vmem:[#allocation2 + $0x30] sm:$0xff]
        %v723 = vld [vmem:[#allocation2 + $0x38] sm:$0xff]
        %v724 = vld [vmem:[#allocation2 + $0x40] sm:$0xff]
        %v725 = vld [vmem:[#allocation2 + $0x48] sm:$0xff]
        %v726 = vld [vmem:[#allocation2 + $0x50] sm:$0xff]
        %v727 = vld [vmem:[#allocation2 + $0x58] sm:$0xff]
        %v728 = vld [vmem:[#allocation2 + $0x60] sm:$0xff]
        %v729 = vld [vmem:[#allocation2 + $0x68] sm:$0xff]
        %v730 = vld [vmem:[#allocation2 + $0x70] sm:$0xff]
        %v731 = vld [vmem:[#allocation2 + $0x78] sm:$0xff]
        %v732 = vld [vmem:[%s309] sm:$0x1]
        %v734 = vlaneseq
        %v735 = vshrl.u32 %v734, 7
        %v736 = vsub.s32 0, %v735
        %v737 = vrot.slane %v732, %v736
        %v739 = vadd.f32 %v716, %v737
        %v740 = vadd.f32 %v717, %v737
        %v741 = vadd.f32 %v718, %v737
        %v742 = vadd.f32 %v719, %v737
        %v743 = vadd.f32 %v720, %v737
        %v744 = vadd.f32 %v721, %v737
        %v745 = vadd.f32 %v722, %v737
        %v746 = vadd.f32 %v723, %v737
        %v747 = vadd.f32 %v724, %v737
        %v748 = vadd.f32 %v725, %v737
        %v749 = vadd.f32 %v726, %v737
        %v750 = vadd.f32 %v727, %v737
        %v751 = vadd.f32 %v728, %v737
        %v752 = vadd.f32 %v729, %v737
        %v753 = vadd.f32 %v730, %v737
        %v754 = vadd.f32 %v731, %v737
        %v755 = vtanh.pop %v739
        %v756 = vtanh.pop %v740
        %v757 = vtanh.pop %v741
        %v758 = vtanh.pop %v742
        %v759 = vtanh.pop %v743
        %v760 = vtanh.pop %v744
        %v761 = vtanh.pop %v745
        %v762 = vtanh.pop %v746
        %v763 = vtanh.pop %v747
        %v764 = vtanh.pop %v748
        %v765 = vtanh.pop %v749
        %v766 = vtanh.pop %v750
        %v767 = vtanh.pop %v751
        %v768 = vtanh.pop %v752
        %v769 = vtanh.pop %v753
        %v770 = vtanh.pop %v754
        %771 = vst [vmem:[%s321] sm:$0xff] %v755
        %772 = vst [vmem:[%s321 + $0x8] sm:$0xff] %v756
        %773 = vst [vmem:[%s321 + $0x10] sm:$0xff] %v757
        %774 = vst [vmem:[%s321 + $0x18] sm:$0xff] %v758
        %775 = vst [vmem:[%s321 + $0x20] sm:$0xff] %v759
        %776 = vst [vmem:[%s321 + $0x28] sm:$0xff] %v760
        %777 = vst [vmem:[%s321 + $0x30] sm:$0xff] %v761
        %778 = vst [vmem:[%s321 + $0x38] sm:$0xff] %v762
        %779 = vst [vmem:[%s321 + $0x40] sm:$0xff] %v763
        %780 = vst [vmem:[%s321 + $0x48] sm:$0xff] %v764
        %781 = vst [vmem:[%s321 + $0x50] sm:$0xff] %v765
        %782 = vst [vmem:[%s321 + $0x58] sm:$0xff] %v766
        %783 = vst [vmem:[%s321 + $0x60] sm:$0xff] %v767
        %784 = vst [vmem:[%s321 + $0x68] sm:$0xff] %v768
        %785 = vst [vmem:[%s321 + $0x70] sm:$0xff] %v769
        %786 = vst [vmem:[%s321 + $0x78] sm:$0xff] %v770
      $region40: #{generator_forward.19} parent=31 // pred_fallthru
        _
      %s787 = smul.u32 16, %s21
      %p788 = scmp.lt.s32.totalorder %s20, 3
      %s789 = scalar_select %p788, %s20, 3
      %p790 = scmp.lt.s32.totalorder %s787, 15
      %s791 = scalar_select %p790, %s787, 15
      %p792 = scmp.lt.s32.totalorder %s22, 0
      %s793 = scalar_select %p792, %s22, 0
      %s794 = sadd.s32 %s793, %s791
      %s795 = smul.addr %s789, 16
      %s796 = sadd.s32 %s794, %s795
      %s797 = smul.addr %s796, 8
      %s798 = scalar_lea.vmem %s3, %s797
      // Predicated region
      $region41: #{generator_forward.19} parent=31 // pred_check
        %p799 = pneg %p150
      $region42: #{generator_forward.19} parent=31 // pred_check_branch
        %801 = sbr.rel (%p799) target = $region44
      $region43: #{generator_forward.19} parent=31 // pred_region
        %s802 = smul.u32 16, %s21
      $region44: #{generator_forward.19} parent=31 // pred_fallthru
        _
    $region32: #{generator_forward.19} parent=5 // pred_fallthru
      _
    %p803 = scmp.le.s32.totalorder 2, %s9
    // Predicated region
    $region45: #{generator_forward.19} parent=5 // pred_check
      %p804 = pneg %p803
    $region46: #{generator_forward.19} parent=5 // pred_check_branch
      %806 = sbr.rel (%p804) target = $region48
    $region47: #{generator_forward.19} parent=5 // pred_region
      %s807 = ssub.s32 %s9, 2
      // Predicated region
      $region49: #{generator_forward.19} parent=47 // pred_check
        %p808 = pneg %p156
      $region50: #{generator_forward.19} parent=47 // pred_check_branch
        %810 = sbr.rel (%p808) target = $region52
      $region51: #{generator_forward.19} parent=47 // pred_region
        %s811 = smul.u32 16, %s25
        %p812 = scmp.lt.s32.totalorder %s24, 3
        %s813 = scalar_select %p812, %s24, 3
        %p814 = scmp.lt.s32.totalorder %s811, 15
        %s815 = scalar_select %p814, %s811, 15
        %p816 = scmp.lt.s32.totalorder %s26, 0
        %s817 = scalar_select %p816, %s26, 0
        %s818 = sadd.s32 %s817, %s815
        %s819 = smul.addr %s813, 16
        %s820 = sadd.s32 %s818, %s819
        %s821 = smul.addr %s820, 8
        %s822 = scalar_lea.vmem %s3, %s821
      $region52: #{generator_forward.19} parent=47 // pred_fallthru
        _
    $region48: #{generator_forward.19} parent=5 // pred_fallthru
      _
  $region6: #{generator_forward.19} parent=0 // loop_footer
    %s13 = sadd.s32 1, %s9
  $region7: #{generator_forward.19} parent=0 // loop_footer_branch
    %8 = sbr.rel target = $region3
  $region8: #{generator_forward.19} parent=0 // loop_exit
    _

</llo_original>
